<compile_context>
chip_gen: v6e
topology: v6e:2x2x1
jax: 0.10.0
libtpu: 0.0.40
codegen_flags: <defaults>
</compile_context>

<pallas_src>
import jax
import jax.numpy as jnp
from jax.experimental import pallas as pl
from jax.experimental.pallas import tpu as pltpu


HIDDEN_SHAPES = [500, 500, 2000]  # fixed by the module definition
LANE = 128
SUBLANE_BF16 = 16  # bf16 packs 2 rows per sublane -> batch tiles in multiples of 16


def _round_up(x, m):
    return ((x + m - 1) // m) * m


def _cdiv(a, b):
    return -(-a // b)


def _chip_defaults():
    """(batch tile, vmem_limit_bytes) tuned per TPU generation."""
    try:
        kind = jax.devices()[0].device_kind.lower()
    except Exception:
        kind = ""
    if "v6" in kind:      # v6e: 1 TC, 128 MiB physical VMEM -> big tiles amortize step overhead
        return 1024, 64 << 20
    if "v5" in kind:      # v5e: scoped VMEM default is only 16 MiB -> must raise it explicitly
        return 512, 48 << 20
    # v7x (64 MiB VMEM per TC, 2 TCs) and unknown chips: stay conservative.
    return 512, 40 << 20


def _encoder_kernel(x_ref,
                    w1_ref, b1_ref,
                    w2_ref, b2_ref,
                    w3_ref, b3_ref,
                    w4_ref, b4_ref,
                    o_ref):
    # Layer 1: Linear + ReLU   (Dropout p=0 -> identity)
    h = jnp.dot(x_ref[...], w1_ref[...], preferred_element_type=jnp.float32)
    h = jnp.maximum(h + b1_ref[...], 0.0)
    # Layer 2: Linear + ReLU
    h = jnp.dot(h.astype(jnp.bfloat16), w2_ref[...],
                preferred_element_type=jnp.float32)
    h = jnp.maximum(h + b2_ref[...], 0.0)
    # Layer 3: Linear + ReLU
    h = jnp.dot(h.astype(jnp.bfloat16), w3_ref[...],
                preferred_element_type=jnp.float32)
    h = jnp.maximum(h + b3_ref[...], 0.0)
    # Layer 4: Linear + ReLU (the module applies ReLU after the last Linear too)
    h = jnp.dot(h.astype(jnp.bfloat16), w4_ref[...],
                preferred_element_type=jnp.float32)
    h = jnp.maximum(h + b4_ref[...], 0.0)
    o_ref[...] = h.astype(o_ref.dtype)
    # TODO(synk): training-mode Dropout (p>0) would need pltpu.prng_seed /
    # prng_random_bits + 1/(1-p) scaling; with the default dropout=False it is
    # an identity and is omitted.
    # TODO(synk): optional int8 (v5e/v6e) / fp8 (v7x) weight quantization for the
    # weight-DMA-bound small-batch regime (per-column scales folded into the bias
    # epilogue); omitted to keep numerics close to the f32 module.


def prepare_params(params, input_shape):
    """One-time pad + cast of weights (bf16) and biases (f32) to lane-dense shapes.

    params = [(W1, b1), ..., (W4, b4)] with W_i of shape (in, out) float32 and
    b_i of shape (1, out) float32 (weights stored transposed vs. PyTorch so the
    kernel computes y = x @ W + b).  Doing this per forward call costs ~3x the
    kernel's own HBM traffic at small batch, so it is hoisted here.
    """
    feat = [input_shape] + [w.shape[1] for w, _ in params]   # [in, 500, 500, 2000, emb]
    feat_p = [_round_up(f, LANE) for f in feat]               # lane-dense dims
    flat = []
    for li, (w, b) in enumerate(params):
        kp, np_ = feat_p[li], feat_p[li + 1]
        w_p = jnp.zeros((kp, np_), jnp.bfloat16)
        w_p = w_p.at[:w.shape[0], :w.shape[1]].set(w.astype(jnp.bfloat16))
        b_p = jnp.zeros((1, np_), jnp.float32)
        b_p = b_p.at[:, :b.shape[1]].set(b.astype(jnp.float32))
        flat += [w_p, b_p]
    flat = tuple(jax.device_put(jax.block_until_ready(a)) for a in flat)
    return {"flat": flat, "feat_p": tuple(feat_p), "emb": feat[-1]}


def encoder_forward(x, prepped, *, block_b=None, vmem_limit_bytes=None):
    """Run the encoder on `x` (B, input_shape) using cached padded params."""
    B, in_dim = x.shape
    feat_p = prepped["feat_p"]
    flat = prepped["flat"]
    emb = prepped["emb"]

    def_tb, def_vmem = _chip_defaults()
    block_b = def_tb if block_b is None else block_b
    vmem_limit_bytes = def_vmem if vmem_limit_bytes is None else vmem_limit_bytes

    # --- batch tile selection: bf16-sublane aligned, capped at block_b, and with
    # >= 2 grid tiles whenever the batch allows (v7x 2-TC sharding of the
    # "parallel" axis; no effect on single-TC v5e/v6e). ---
    b_min = _round_up(B, SUBLANE_BF16)
    if b_min <= 2 * SUBLANE_BF16:
        tb = b_min
    else:
        half = _round_up(_cdiv(b_min, 2), SUBLANE_BF16)
        tb = min(block_b, half)
    b_pad = _round_up(B, tb)

    # --- pad + cast activations ---
    x_p = jnp.zeros((b_pad, feat_p[0]), jnp.bfloat16)
    x_p = x_p.at[:B, :in_dim].set(x.astype(jnp.bfloat16))

    grid = (b_pad // tb,)

    def _build_in_specs(single_buffer_weights):
        w_kwargs = {"pipeline_mode": pl.Buffered(1)} if single_buffer_weights else {}
        specs = [pl.BlockSpec((tb, feat_p[0]), lambda i: (i, 0))]
        for li in range(len(feat_p) - 1):
            kp, np_ = feat_p[li], feat_p[li + 1]
            # Constant index_map -> weights/biases stay VMEM-resident across batch
            # tiles; single-buffered since the block never changes.
            specs.append(pl.BlockSpec((kp, np_), lambda i: (0, 0), **w_kwargs))
            specs.append(pl.BlockSpec((1, np_), lambda i: (0, 0), **w_kwargs))
        return specs

    out_spec = pl.BlockSpec((tb, feat_p[-1]), lambda i: (i, 0))
    out_shape = jax.ShapeDtypeStruct((b_pad, feat_p[-1]), jnp.float32)
    cparams = pltpu.CompilerParams(
        dimension_semantics=("parallel",),
        vmem_limit_bytes=vmem_limit_bytes)

    def _call(single_buffer_weights):
        return pl.pallas_call(
            _encoder_kernel,
            out_shape=out_shape,
            grid=grid,
            in_specs=_build_in_specs(single_buffer_weights),
            out_specs=out_spec,
            compiler_params=cparams,
        )(x_p, *flat)

    try:
        out = jax.block_until_ready(_call(True))
    except Exception:
        # Fallback if this jax build rejects single-buffered (Buffered(1)) specs.
        out = jax.block_until_ready(_call(False))

    return out[:B, :emb]


def init_params(key, input_shape, embedding_shape):
    """Deterministic init mimicking PyTorch nn.Linear default U(-1/sqrt(in), 1/sqrt(in))."""
    shapes = [input_shape] + HIDDEN_SHAPES + [embedding_shape]
    params = []
    for i in range(len(shapes) - 1):
        fan_in, fan_out = shapes[i], shapes[i + 1]
        key, kw, kb = jax.random.split(key, 3)
        bound = 1.0 / (fan_in ** 0.5)
        w = jax.random.uniform(kw, (fan_in, fan_out), jnp.float32, -bound, bound)
        b = jax.random.uniform(kb, (1, fan_out), jnp.float32, -bound, bound)
        params.append((w, b))
    return params


def reference_forward(x, params):
    """Pure-JAX reference with the same bf16-weight / f32-accumulate recipe."""
    h = x.astype(jnp.bfloat16)
    n = len(params)
    for li, (w, b) in enumerate(params):
        y = jnp.dot(h, w.astype(jnp.bfloat16),
                    preferred_element_type=jnp.float32)
        y = jnp.maximum(y + b, 0.0)
        h = y.astype(jnp.bfloat16) if li < n - 1 else y
    return h


if __name__ == "__main__":
    key = jax.random.PRNGKey(0)
    k_in, k_params = jax.random.split(key)

    batch = 8
    input_shape = 32        # flattened input dimension
    embedding_shape = 16

    x = jax.random.normal(k_in, (batch, input_shape), dtype=jnp.float32)
    params = init_params(k_params, input_shape, embedding_shape)

    prepped = prepare_params(params, input_shape)   # one-time pad+cast (cached)

    out = encoder_forward(x, prepped)
    out = jax.block_until_ready(out)

    ref = reference_forward(x, params)
    assert out.shape == (batch, embedding_shape)
    assert jnp.allclose(out, ref, atol=1e-2, rtol=1e-2), "mismatch vs. reference"

    print("KERNEL_OK")
</pallas_src>

<mosaic_0001>
module attributes {stable_mosaic.version = 11 : i64} {
  func.func @_encoder_kernel(%arg0: i32, %arg1: memref<16x128xbf16, #tpu.memory_space<vmem>>, %arg2: memref<128x512xbf16, #tpu.memory_space<vmem>>, %arg3: memref<1x512xf32, #tpu.memory_space<vmem>>, %arg4: memref<512x512xbf16, #tpu.memory_space<vmem>>, %arg5: memref<1x512xf32, #tpu.memory_space<vmem>>, %arg6: memref<512x2048xbf16, #tpu.memory_space<vmem>>, %arg7: memref<1x2048xf32, #tpu.memory_space<vmem>>, %arg8: memref<2048x128xbf16, #tpu.memory_space<vmem>>, %arg9: memref<1x128xf32, #tpu.memory_space<vmem>>, %arg10: memref<16x128xf32, #tpu.memory_space<vmem>>) attributes {dimension_semantics = [#tpu.dimension_semantics<parallel>], iteration_bounds = array<i64: 1>, scalar_prefetch = 0 : i64, scratch_operands = 0 : i64, tpu.core_type = #tpu.core_type<tc>, window_params = [{transform_indices = @transform_0, window_bounds = array<i64: 16, 128>}, {pipeline_mode = #tpu.pipeline_mode<synchronous>, transform_indices = @transform_1, window_bounds = array<i64: 128, 512>}, {pipeline_mode = #tpu.pipeline_mode<synchronous>, transform_indices = @transform_2, window_bounds = array<i64: 1, 512>}, {pipeline_mode = #tpu.pipeline_mode<synchronous>, transform_indices = @transform_3, window_bounds = array<i64: 512, 512>}, {pipeline_mode = #tpu.pipeline_mode<synchronous>, transform_indices = @transform_4, window_bounds = array<i64: 1, 512>}, {pipeline_mode = #tpu.pipeline_mode<synchronous>, transform_indices = @transform_5, window_bounds = array<i64: 512, 2048>}, {pipeline_mode = #tpu.pipeline_mode<synchronous>, transform_indices = @transform_6, window_bounds = array<i64: 1, 2048>}, {pipeline_mode = #tpu.pipeline_mode<synchronous>, transform_indices = @transform_7, window_bounds = array<i64: 2048, 128>}, {pipeline_mode = #tpu.pipeline_mode<synchronous>, transform_indices = @transform_8, window_bounds = array<i64: 1, 128>}, {transform_indices = @transform_9, window_bounds = array<i64: 16, 128>}]} {
    %c0 = arith.constant 0 : index
    %c0_0 = arith.constant 0 : index
    %0 = vector.load %arg1[%c0, %c0_0] : memref<16x128xbf16, #tpu.memory_space<vmem>>, vector<16x128xbf16>
    %c0_1 = arith.constant 0 : index
    %c0_2 = arith.constant 0 : index
    %1 = vector.load %arg2[%c0_1, %c0_2] : memref<128x512xbf16, #tpu.memory_space<vmem>>, vector<128x512xbf16>
    %cst = arith.constant dense<0.000000e+00> : vector<16x512xf32>
    %2 = tpu.matmul %0, %1, %cst {dimension_numbers = #tpu.dot_dimension_numbers<[1], [0], [0], [1], [0, 0, 1, 1], [], []>} : vector<16x128xbf16>, vector<128x512xbf16>, vector<16x512xf32> -> vector<16x512xf32>
    %c0_3 = arith.constant 0 : index
    %c0_4 = arith.constant 0 : index
    %3 = vector.load %arg3[%c0_3, %c0_4] : memref<1x512xf32, #tpu.memory_space<vmem>>, vector<1x512xf32>
    %4 = vector.broadcast %3 : vector<1x512xf32> to vector<16x512xf32>
    %5 = arith.addf %2, %4 : vector<16x512xf32>
    %cst_5 = arith.constant 0.000000e+00 : f32
    %6 = vector.broadcast %cst_5 : f32 to vector<16x512xf32>
    %7 = arith.maximumf %5, %6 : vector<16x512xf32>
    %8 = arith.truncf %7 : vector<16x512xf32> to vector<16x512xbf16>
    %c0_6 = arith.constant 0 : index
    %c0_7 = arith.constant 0 : index
    %9 = vector.load %arg4[%c0_6, %c0_7] : memref<512x512xbf16, #tpu.memory_space<vmem>>, vector<512x512xbf16>
    %cst_8 = arith.constant dense<0.000000e+00> : vector<16x512xf32>
    %10 = tpu.matmul %8, %9, %cst_8 {dimension_numbers = #tpu.dot_dimension_numbers<[1], [0], [0], [1], [0, 0, 1, 1], [], []>} : vector<16x512xbf16>, vector<512x512xbf16>, vector<16x512xf32> -> vector<16x512xf32>
    %c0_9 = arith.constant 0 : index
    %c0_10 = arith.constant 0 : index
    %11 = vector.load %arg5[%c0_9, %c0_10] : memref<1x512xf32, #tpu.memory_space<vmem>>, vector<1x512xf32>
    %12 = vector.broadcast %11 : vector<1x512xf32> to vector<16x512xf32>
    %13 = arith.addf %10, %12 : vector<16x512xf32>
    %cst_11 = arith.constant 0.000000e+00 : f32
    %14 = vector.broadcast %cst_11 : f32 to vector<16x512xf32>
    %15 = arith.maximumf %13, %14 : vector<16x512xf32>
    %16 = arith.truncf %15 : vector<16x512xf32> to vector<16x512xbf16>
    %c0_12 = arith.constant 0 : index
    %c0_13 = arith.constant 0 : index
    %17 = vector.load %arg6[%c0_12, %c0_13] : memref<512x2048xbf16, #tpu.memory_space<vmem>>, vector<512x2048xbf16>
    %cst_14 = arith.constant dense<0.000000e+00> : vector<16x2048xf32>
    %18 = tpu.matmul %16, %17, %cst_14 {dimension_numbers = #tpu.dot_dimension_numbers<[1], [0], [0], [1], [0, 0, 1, 1], [], []>} : vector<16x512xbf16>, vector<512x2048xbf16>, vector<16x2048xf32> -> vector<16x2048xf32>
    %c0_15 = arith.constant 0 : index
    %c0_16 = arith.constant 0 : index
    %19 = vector.load %arg7[%c0_15, %c0_16] : memref<1x2048xf32, #tpu.memory_space<vmem>>, vector<1x2048xf32>
    %20 = vector.broadcast %19 : vector<1x2048xf32> to vector<16x2048xf32>
    %21 = arith.addf %18, %20 : vector<16x2048xf32>
    %cst_17 = arith.constant 0.000000e+00 : f32
    %22 = vector.broadcast %cst_17 : f32 to vector<16x2048xf32>
    %23 = arith.maximumf %21, %22 : vector<16x2048xf32>
    %24 = arith.truncf %23 : vector<16x2048xf32> to vector<16x2048xbf16>
    %c0_18 = arith.constant 0 : index
    %c0_19 = arith.constant 0 : index
    %25 = vector.load %arg8[%c0_18, %c0_19] : memref<2048x128xbf16, #tpu.memory_space<vmem>>, vector<2048x128xbf16>
    %cst_20 = arith.constant dense<0.000000e+00> : vector<16x128xf32>
    %26 = tpu.matmul %24, %25, %cst_20 {dimension_numbers = #tpu.dot_dimension_numbers<[1], [0], [0], [1], [0, 0, 1, 1], [], []>} : vector<16x2048xbf16>, vector<2048x128xbf16>, vector<16x128xf32> -> vector<16x128xf32>
    %c0_21 = arith.constant 0 : index
    %c0_22 = arith.constant 0 : index
    %27 = vector.load %arg9[%c0_21, %c0_22] : memref<1x128xf32, #tpu.memory_space<vmem>>, vector<1x128xf32>
    %28 = vector.broadcast %27 : vector<1x128xf32> to vector<16x128xf32>
    %29 = arith.addf %26, %28 : vector<16x128xf32>
    %cst_23 = arith.constant 0.000000e+00 : f32
    %30 = vector.broadcast %cst_23 : f32 to vector<16x128xf32>
    %31 = arith.maximumf %29, %30 : vector<16x128xf32>
    %c0_24 = arith.constant 0 : index
    %c0_25 = arith.constant 0 : index
    %32 = vector.load %arg10[%c0_24, %c0_25] : memref<16x128xf32, #tpu.memory_space<vmem>>, vector<16x128xf32>
    tpu.vector_store %arg10[%c0_24, %c0_25], %31 {strides = array<i32>} : memref<16x128xf32, #tpu.memory_space<vmem>>, vector<16x128xf32>,
    return
  }
  func.func @transform_0(%arg0: i32) -> (i32, i32) {
    %c0_i32 = arith.constant 0 : i32
    %c0_i32_0 = arith.constant 0 : i32
    return %arg0, %c0_i32 : i32, i32
  }
  func.func @transform_1(%arg0: i32) -> (i32, i32) {
    %c0_i32 = arith.constant 0 : i32
    %c0_i32_0 = arith.constant 0 : i32
    %c0_i32_1 = arith.constant 0 : i32
    return %c0_i32, %c0_i32_0 : i32, i32
  }
  func.func @transform_2(%arg0: i32) -> (i32, i32) {
    %c0_i32 = arith.constant 0 : i32
    %c0_i32_0 = arith.constant 0 : i32
    %c0_i32_1 = arith.constant 0 : i32
    return %c0_i32, %c0_i32_0 : i32, i32
  }
  func.func @transform_3(%arg0: i32) -> (i32, i32) {
    %c0_i32 = arith.constant 0 : i32
    %c0_i32_0 = arith.constant 0 : i32
    %c0_i32_1 = arith.constant 0 : i32
    return %c0_i32, %c0_i32_0 : i32, i32
  }
  func.func @transform_4(%arg0: i32) -> (i32, i32) {
    %c0_i32 = arith.constant 0 : i32
    %c0_i32_0 = arith.constant 0 : i32
    %c0_i32_1 = arith.constant 0 : i32
    return %c0_i32, %c0_i32_0 : i32, i32
  }
  func.func @transform_5(%arg0: i32) -> (i32, i32) {
    %c0_i32 = arith.constant 0 : i32
    %c0_i32_0 = arith.constant 0 : i32
    %c0_i32_1 = arith.constant 0 : i32
    return %c0_i32, %c0_i32_0 : i32, i32
  }
  func.func @transform_6(%arg0: i32) -> (i32, i32) {
    %c0_i32 = arith.constant 0 : i32
    %c0_i32_0 = arith.constant 0 : i32
    %c0_i32_1 = arith.constant 0 : i32
    return %c0_i32, %c0_i32_0 : i32, i32
  }
  func.func @transform_7(%arg0: i32) -> (i32, i32) {
    %c0_i32 = arith.constant 0 : i32
    %c0_i32_0 = arith.constant 0 : i32
    %c0_i32_1 = arith.constant 0 : i32
    return %c0_i32, %c0_i32_0 : i32, i32
  }
  func.func @transform_8(%arg0: i32) -> (i32, i32) {
    %c0_i32 = arith.constant 0 : i32
    %c0_i32_0 = arith.constant 0 : i32
    %c0_i32_1 = arith.constant 0 : i32
    return %c0_i32, %c0_i32_0 : i32, i32
  }
  func.func @transform_9(%arg0: i32) -> (i32, i32) {
    %c0_i32 = arith.constant 0 : i32
    %c0_i32_0 = arith.constant 0 : i32
    return %arg0, %c0_i32 : i32, i32
  }
}

module attributes {stable_mosaic.version = 11 : i64} {
  func.func @_encoder_kernel(%arg0: i32, %arg1: memref<16x128xbf16, #tpu.memory_space<vmem>>, %arg2: memref<128x512xbf16, #tpu.memory_space<vmem>>, %arg3: memref<1x512xf32, #tpu.memory_space<vmem>>, %arg4: memref<512x512xbf16, #tpu.memory_space<vmem>>, %arg5: memref<1x512xf32, #tpu.memory_space<vmem>>, %arg6: memref<512x2048xbf16, #tpu.memory_space<vmem>>, %arg7: memref<1x2048xf32, #tpu.memory_space<vmem>>, %arg8: memref<2048x128xbf16, #tpu.memory_space<vmem>>, %arg9: memref<1x128xf32, #tpu.memory_space<vmem>>, %arg10: memref<16x128xf32, #tpu.memory_space<vmem>>) attributes {dimension_semantics = [#tpu.dimension_semantics<parallel>], iteration_bounds = array<i64: 1>, scalar_prefetch = 0 : i64, scratch_operands = 0 : i64, tpu.core_type = #tpu.core_type<tc>, window_params = [{transform_indices = @transform_0, window_bounds = array<i64: 16, 128>}, {pipeline_mode = #tpu.pipeline_mode<synchronous>, transform_indices = @transform_1, window_bounds = array<i64: 128, 512>}, {pipeline_mode = #tpu.pipeline_mode<synchronous>, transform_indices = @transform_2, window_bounds = array<i64: 1, 512>}, {pipeline_mode = #tpu.pipeline_mode<synchronous>, transform_indices = @transform_3, window_bounds = array<i64: 512, 512>}, {pipeline_mode = #tpu.pipeline_mode<synchronous>, transform_indices = @transform_4, window_bounds = array<i64: 1, 512>}, {pipeline_mode = #tpu.pipeline_mode<synchronous>, transform_indices = @transform_5, window_bounds = array<i64: 512, 2048>}, {pipeline_mode = #tpu.pipeline_mode<synchronous>, transform_indices = @transform_6, window_bounds = array<i64: 1, 2048>}, {pipeline_mode = #tpu.pipeline_mode<synchronous>, transform_indices = @transform_7, window_bounds = array<i64: 2048, 128>}, {pipeline_mode = #tpu.pipeline_mode<synchronous>, transform_indices = @transform_8, window_bounds = array<i64: 1, 128>}, {transform_indices = @transform_9, window_bounds = array<i64: 16, 128>}]} {
    %c0 = arith.constant 0 : index
    %c0_0 = arith.constant 0 : index
    %0 = vector.load %arg1[%c0, %c0_0] : memref<16x128xbf16, #tpu.memory_space<vmem>>, vector<16x128xbf16>
    %c0_1 = arith.constant 0 : index
    %c0_2 = arith.constant 0 : index
    %1 = vector.load %arg2[%c0_1, %c0_2] : memref<128x512xbf16, #tpu.memory_space<vmem>>, vector<128x512xbf16>
    %cst = arith.constant dense<0.000000e+00> : vector<16x512xf32>
    %2 = tpu.matmul %0, %1, %cst {dimension_numbers = #tpu.dot_dimension_numbers<[1], [0], [0], [1], [0, 0, 1, 1], [], []>} : vector<16x128xbf16>, vector<128x512xbf16>, vector<16x512xf32> -> vector<16x512xf32>
    %c0_3 = arith.constant 0 : index
    %c0_4 = arith.constant 0 : index
    %3 = vector.load %arg3[%c0_3, %c0_4] : memref<1x512xf32, #tpu.memory_space<vmem>>, vector<1x512xf32>
    %4 = vector.broadcast %3 : vector<1x512xf32> to vector<16x512xf32>
    %5 = arith.addf %2, %4 : vector<16x512xf32>
    %cst_5 = arith.constant 0.000000e+00 : f32
    %6 = vector.broadcast %cst_5 : f32 to vector<16x512xf32>
    %7 = arith.maximumf %5, %6 : vector<16x512xf32>
    %8 = arith.truncf %7 : vector<16x512xf32> to vector<16x512xbf16>
    %c0_6 = arith.constant 0 : index
    %c0_7 = arith.constant 0 : index
    %9 = vector.load %arg4[%c0_6, %c0_7] : memref<512x512xbf16, #tpu.memory_space<vmem>>, vector<512x512xbf16>
    %cst_8 = arith.constant dense<0.000000e+00> : vector<16x512xf32>
    %10 = tpu.matmul %8, %9, %cst_8 {dimension_numbers = #tpu.dot_dimension_numbers<[1], [0], [0], [1], [0, 0, 1, 1], [], []>} : vector<16x512xbf16>, vector<512x512xbf16>, vector<16x512xf32> -> vector<16x512xf32>
    %c0_9 = arith.constant 0 : index
    %c0_10 = arith.constant 0 : index
    %11 = vector.load %arg5[%c0_9, %c0_10] : memref<1x512xf32, #tpu.memory_space<vmem>>, vector<1x512xf32>
    %12 = vector.broadcast %11 : vector<1x512xf32> to vector<16x512xf32>
    %13 = arith.addf %10, %12 : vector<16x512xf32>
    %cst_11 = arith.constant 0.000000e+00 : f32
    %14 = vector.broadcast %cst_11 : f32 to vector<16x512xf32>
    %15 = arith.maximumf %13, %14 : vector<16x512xf32>
    %16 = arith.truncf %15 : vector<16x512xf32> to vector<16x512xbf16>
    %c0_12 = arith.constant 0 : index
    %c0_13 = arith.constant 0 : index
    %17 = vector.load %arg6[%c0_12, %c0_13] : memref<512x2048xbf16, #tpu.memory_space<vmem>>, vector<512x2048xbf16>
    %cst_14 = arith.constant dense<0.000000e+00> : vector<16x2048xf32>
    %18 = tpu.matmul %16, %17, %cst_14 {dimension_numbers = #tpu.dot_dimension_numbers<[1], [0], [0], [1], [0, 0, 1, 1], [], []>} : vector<16x512xbf16>, vector<512x2048xbf16>, vector<16x2048xf32> -> vector<16x2048xf32>
    %c0_15 = arith.constant 0 : index
    %c0_16 = arith.constant 0 : index
    %19 = vector.load %arg7[%c0_15, %c0_16] : memref<1x2048xf32, #tpu.memory_space<vmem>>, vector<1x2048xf32>
    %20 = vector.broadcast %19 : vector<1x2048xf32> to vector<16x2048xf32>
    %21 = arith.addf %18, %20 : vector<16x2048xf32>
    %cst_17 = arith.constant 0.000000e+00 : f32
    %22 = vector.broadcast %cst_17 : f32 to vector<16x2048xf32>
    %23 = arith.maximumf %21, %22 : vector<16x2048xf32>
    %24 = arith.truncf %23 : vector<16x2048xf32> to vector<16x2048xbf16>
    %c0_18 = arith.constant 0 : index
    %c0_19 = arith.constant 0 : index
    %25 = vector.load %arg8[%c0_18, %c0_19] : memref<2048x128xbf16, #tpu.memory_space<vmem>>, vector<2048x128xbf16>
    %cst_20 = arith.constant dense<0.000000e+00> : vector<16x128xf32>
    %26 = tpu.matmul %24, %25, %cst_20 {dimension_numbers = #tpu.dot_dimension_numbers<[1], [0], [0], [1], [0, 0, 1, 1], [], []>} : vector<16x2048xbf16>, vector<2048x128xbf16>, vector<16x128xf32> -> vector<16x128xf32>
    %c0_21 = arith.constant 0 : index
    %c0_22 = arith.constant 0 : index
    %27 = vector.load %arg9[%c0_21, %c0_22] : memref<1x128xf32, #tpu.memory_space<vmem>>, vector<1x128xf32>
    %28 = vector.broadcast %27 : vector<1x128xf32> to vector<16x128xf32>
    %29 = arith.addf %26, %28 : vector<16x128xf32>
    %cst_23 = arith.constant 0.000000e+00 : f32
    %30 = vector.broadcast %cst_23 : f32 to vector<16x128xf32>
    %31 = arith.maximumf %29, %30 : vector<16x128xf32>
    %c0_24 = arith.constant 0 : index
    %c0_25 = arith.constant 0 : index
    %32 = vector.load %arg10[%c0_24, %c0_25] : memref<16x128xf32, #tpu.memory_space<vmem>>, vector<16x128xf32>
    tpu.vector_store %arg10[%c0_24, %c0_25], %31 {strides = array<i32>} : memref<16x128xf32, #tpu.memory_space<vmem>>, vector<16x128xf32>,
    return
  }
  func.func @transform_0(%arg0: i32) -> (i32, i32) {
    %c0_i32 = arith.constant 0 : i32
    %c0_i32_0 = arith.constant 0 : i32
    return %arg0, %c0_i32 : i32, i32
  }
  func.func @transform_1(%arg0: i32) -> (i32, i32) {
    %c0_i32 = arith.constant 0 : i32
    %c0_i32_0 = arith.constant 0 : i32
    %c0_i32_1 = arith.constant 0 : i32
    return %c0_i32, %c0_i32_0 : i32, i32
  }
  func.func @transform_2(%arg0: i32) -> (i32, i32) {
    %c0_i32 = arith.constant 0 : i32
    %c0_i32_0 = arith.constant 0 : i32
    %c0_i32_1 = arith.constant 0 : i32
    return %c0_i32, %c0_i32_0 : i32, i32
  }
  func.func @transform_3(%arg0: i32) -> (i32, i32) {
    %c0_i32 = arith.constant 0 : i32
    %c0_i32_0 = arith.constant 0 : i32
    %c0_i32_1 = arith.constant 0 : i32
    return %c0_i32, %c0_i32_0 : i32, i32
  }
  func.func @transform_4(%arg0: i32) -> (i32, i32) {
    %c0_i32 = arith.constant 0 : i32
    %c0_i32_0 = arith.constant 0 : i32
    %c0_i32_1 = arith.constant 0 : i32
    return %c0_i32, %c0_i32_0 : i32, i32
  }
  func.func @transform_5(%arg0: i32) -> (i32, i32) {
    %c0_i32 = arith.constant 0 : i32
    %c0_i32_0 = arith.constant 0 : i32
    %c0_i32_1 = arith.constant 0 : i32
    return %c0_i32, %c0_i32_0 : i32, i32
  }
  func.func @transform_6(%arg0: i32) -> (i32, i32) {
    %c0_i32 = arith.constant 0 : i32
    %c0_i32_0 = arith.constant 0 : i32
    %c0_i32_1 = arith.constant 0 : i32
    return %c0_i32, %c0_i32_0 : i32, i32
  }
  func.func @transform_7(%arg0: i32) -> (i32, i32) {
    %c0_i32 = arith.constant 0 : i32
    %c0_i32_0 = arith.constant 0 : i32
    %c0_i32_1 = arith.constant 0 : i32
    return %c0_i32, %c0_i32_0 : i32, i32
  }
  func.func @transform_8(%arg0: i32) -> (i32, i32) {
    %c0_i32 = arith.constant 0 : i32
    %c0_i32_0 = arith.constant 0 : i32
    %c0_i32_1 = arith.constant 0 : i32
    return %c0_i32, %c0_i32_0 : i32, i32
  }
  func.func @transform_9(%arg0: i32) -> (i32, i32) {
    %c0_i32 = arith.constant 0 : i32
    %c0_i32_0 = arith.constant 0 : i32
    return %arg0, %c0_i32 : i32, i32
  }
}

</mosaic_0001>

<llo_original>
// kernel: tpu_custom_call.1
$region0: #{tpu_custom_call.1}
  #allocation0 [shape = 'u32[]', space=smem, size = 0x4, offset = 0x4, fixed_abs, tag = 'smem constant byte address 0x4 - core index']
  #allocation1 [shape = 'u32[144,128]{1,0:T(1,128)}', space=vmem, size = 0x12000, scoped, tag = 'internal scratch']
  %s0 = inlined_call_operand.hbm [shape: bf16[16,128], index: 0, kind: input, shape index: {}]
  %s1 = inlined_call_operand.hbm [shape: bf16[128,512], index: 1, kind: input, shape index: {}]
  %s2 = inlined_call_operand.hbm [shape: f32[1,512], index: 2, kind: input, shape index: {}]
  %s3 = inlined_call_operand.hbm [shape: bf16[512,512], index: 3, kind: input, shape index: {}]
  %s4 = inlined_call_operand.hbm [shape: f32[1,512], index: 4, kind: input, shape index: {}]
  %s5 = inlined_call_operand.hbm [shape: bf16[512,2048], index: 5, kind: input, shape index: {}]
  %s6 = inlined_call_operand.hbm [shape: f32[1,2048], index: 6, kind: input, shape index: {}]
  %s7 = inlined_call_operand.hbm [shape: bf16[2048,128], index: 7, kind: input, shape index: {}]
  %s8 = inlined_call_operand.hbm [shape: f32[1,128], index: 8, kind: input, shape index: {}]
  %s9 = inlined_call_operand.hbm [shape: f32[16,128], index: 9, kind: output, shape index: {}]
  %s10 = sld [smem:[#allocation0]]
  $region82: #{tpu_custom_call.1} parent=0
    _
  %s12 = ssub.s32 1, %s10
  %s13 = scalar_select 0, %s12, %s10
  $region1: #{tpu_custom_call.1} parent=0
    #allocation2 [shape = 'u8[4096]{0}', space=vmem, size = 0x1000, scoped, tag = 'input window, operand 0, single buffered']
    #allocation3 [shape = 's32[1]{0}', space=sflag, size = 0x4, scoped, tag = 'scoped memory for tpu_custom_call.1']
    #allocation4 [shape = 's32[1]{0}', space=sflag, size = 0x4, scoped, tag = 'scoped memory for tpu_custom_call.1']
    #allocation5 [shape = 'u8[131072]{0}', space=vmem, size = 0x20000, scoped, tag = 'input window, operand 1, single buffered']
    #allocation6 [shape = 's32[1]{0}', space=sflag, size = 0x4, scoped, tag = 'scoped memory for tpu_custom_call.1']
    #allocation7 [shape = 'u8[2048]{0}', space=vmem, size = 0x800, scoped, tag = 'input window, operand 2, single buffered']
    #allocation8 [shape = 'u8[524288]{0}', space=vmem, size = 0x80000, scoped, tag = 'input window, operand 3, single buffered']
    #allocation9 [shape = 's32[1]{0}', space=sflag, size = 0x4, scoped, tag = 'scoped memory for tpu_custom_call.1']
    #allocation10 [shape = 'u8[2048]{0}', space=vmem, size = 0x800, scoped, tag = 'input window, operand 4, single buffered']
    #allocation11 [shape = 'u8[2097152]{0}', space=vmem, size = 0x200000, scoped, tag = 'input window, operand 5, single buffered']
    #allocation12 [shape = 's32[1]{0}', space=sflag, size = 0x4, scoped, tag = 'scoped memory for tpu_custom_call.1']
    #allocation13 [shape = 'u8[8192]{0}', space=vmem, size = 0x2000, scoped, tag = 'input window, operand 6, single buffered']
    #allocation14 [shape = 'u8[524288]{0}', space=vmem, size = 0x80000, scoped, tag = 'input window, operand 7, single buffered']
    #allocation15 [shape = 's32[1]{0}', space=sflag, size = 0x4, scoped, tag = 'scoped memory for tpu_custom_call.1']
    #allocation16 [shape = 'u8[512]{0}', space=vmem, size = 0x400, scoped, tag = 'input window, operand 8, single buffered']
    #allocation17 [shape = 'u8[8192]{0}', space=vmem, size = 0x2000, scoped, tag = 'output window, operand 0, single buffered']
    %14 = vsyncpa [#allocation3], 0
    %15 = vsyncpa [#allocation6], 0
    %16 = vsyncpa [#allocation9], 0
    %17 = vsyncpa [#allocation12], 0
    %18 = vsyncpa [#allocation15], 0
    %19 = vsyncpa [#allocation4], 0
    // Predicated region
    $region2: #{tpu_custom_call.1} parent=1 // pred_check
      _
    $region3: #{tpu_custom_call.1} parent=1 // pred_check_branch
      %21 = sbr.rel (0) target = $region5
    $region4: #{tpu_custom_call.1} parent=1 // pred_region
      %s23 = ssub.s32 128, 128
      %24 = vsyncadd [#allocation3], %s23
      %s25 = sshll.u32 [#allocation2], 4
      %s26 = int_to_ptr.vmem [resolvable:$true] %s25
      %31 = dma.hbm_to_vmem [thread:$0]  %s0, 128, %s26, [#allocation3], 64, 64, 4
    $region5: #{tpu_custom_call.1} parent=1 // pred_fallthru
      _
    // Predicated region
    $region6: #{tpu_custom_call.1} parent=1 // pred_check
      _
    $region7: #{tpu_custom_call.1} parent=1 // pred_check_branch
      %33 = sbr.rel (0) target = $region9
    $region8: #{tpu_custom_call.1} parent=1 // pred_region
      %s35 = ssub.s32 4096, 4096
      %36 = vsyncadd [#allocation6], %s35
      %s37 = sshll.u32 [#allocation5], 4
      %s38 = int_to_ptr.vmem [resolvable:$true] %s37
      %43 = dma.hbm_to_vmem [thread:$0]  %s1, 4096, %s38, [#allocation6], 256, 256, 16
    $region9: #{tpu_custom_call.1} parent=1 // pred_fallthru
      _
    // Predicated region
    $region10: #{tpu_custom_call.1} parent=1 // pred_check
      _
    $region11: #{tpu_custom_call.1} parent=1 // pred_check_branch
      %45 = sbr.rel (0) target = $region13
    $region12: #{tpu_custom_call.1} parent=1 // pred_region
      %s47 = ssub.s32 64, 64
      %48 = vsyncadd [#allocation6], %s47
      %s50 = sshll.u32 [#allocation7], 4
      %s51 = int_to_ptr.vmem [resolvable:$true] %s50
      %53 = dma.hbm_to_vmem [thread:$0]  %s2, 64, %s51, [#allocation6]
    $region13: #{tpu_custom_call.1} parent=1 // pred_fallthru
      _
    // Predicated region
    $region14: #{tpu_custom_call.1} parent=1 // pred_check
      _
    $region15: #{tpu_custom_call.1} parent=1 // pred_check_branch
      %55 = sbr.rel (0) target = $region17
    $region16: #{tpu_custom_call.1} parent=1 // pred_region
      %s57 = ssub.s32 16384, 16384
      %58 = vsyncadd [#allocation9], %s57
      %s59 = sshll.u32 [#allocation8], 4
      %s60 = int_to_ptr.vmem [resolvable:$true] %s59
      %65 = dma.hbm_to_vmem [thread:$0]  %s3, 16384, %s60, [#allocation9], 256, 256, 16
    $region17: #{tpu_custom_call.1} parent=1 // pred_fallthru
      _
    // Predicated region
    $region18: #{tpu_custom_call.1} parent=1 // pred_check
      _
    $region19: #{tpu_custom_call.1} parent=1 // pred_check_branch
      %67 = sbr.rel (0) target = $region21
    $region20: #{tpu_custom_call.1} parent=1 // pred_region
      %s69 = ssub.s32 64, 64
      %70 = vsyncadd [#allocation9], %s69
      %s72 = sshll.u32 [#allocation10], 4
      %s73 = int_to_ptr.vmem [resolvable:$true] %s72
      %75 = dma.hbm_to_vmem [thread:$0]  %s4, 64, %s73, [#allocation9]
    $region21: #{tpu_custom_call.1} parent=1 // pred_fallthru
      _
    // Predicated region
    $region22: #{tpu_custom_call.1} parent=1 // pred_check
      _
    $region23: #{tpu_custom_call.1} parent=1 // pred_check_branch
      %77 = sbr.rel (0) target = $region25
    $region24: #{tpu_custom_call.1} parent=1 // pred_region
      %s79 = ssub.s32 65536, 65536
      %80 = vsyncadd [#allocation12], %s79
      %s81 = sshll.u32 [#allocation11], 4
      %s82 = int_to_ptr.vmem [resolvable:$true] %s81
      %87 = dma.hbm_to_vmem [thread:$0]  %s5, 65536, %s82, [#allocation12], 1024, 1024, 64
    $region25: #{tpu_custom_call.1} parent=1 // pred_fallthru
      _
    // Predicated region
    $region26: #{tpu_custom_call.1} parent=1 // pred_check
      _
    $region27: #{tpu_custom_call.1} parent=1 // pred_check_branch
      %89 = sbr.rel (0) target = $region29
    $region28: #{tpu_custom_call.1} parent=1 // pred_region
      %s91 = ssub.s32 256, 256
      %92 = vsyncadd [#allocation12], %s91
      %s94 = sshll.u32 [#allocation13], 4
      %s95 = int_to_ptr.vmem [resolvable:$true] %s94
      %97 = dma.hbm_to_vmem [thread:$0]  %s6, 256, %s95, [#allocation12]
    $region29: #{tpu_custom_call.1} parent=1 // pred_fallthru
      _
    // Predicated region
    $region30: #{tpu_custom_call.1} parent=1 // pred_check
      _
    $region31: #{tpu_custom_call.1} parent=1 // pred_check_branch
      %99 = sbr.rel (0) target = $region33
    $region32: #{tpu_custom_call.1} parent=1 // pred_region
      %s101 = ssub.s32 16384, 16384
      %102 = vsyncadd [#allocation15], %s101
      %s103 = sshll.u32 [#allocation14], 4
      %s104 = int_to_ptr.vmem [resolvable:$true] %s103
      %109 = dma.hbm_to_vmem [thread:$0]  %s7, 16384, %s104, [#allocation15], 64, 64, 4
    $region33: #{tpu_custom_call.1} parent=1 // pred_fallthru
      _
    // Predicated region
    $region34: #{tpu_custom_call.1} parent=1 // pred_check
      _
    $region35: #{tpu_custom_call.1} parent=1 // pred_check_branch
      %111 = sbr.rel (0) target = $region37
    $region36: #{tpu_custom_call.1} parent=1 // pred_region
      %s113 = ssub.s32 16, 16
      %114 = vsyncadd [#allocation15], %s113
      %s116 = sshll.u32 [#allocation16], 4
      %s117 = int_to_ptr.vmem [resolvable:$true] %s116
      %119 = dma.hbm_to_vmem [thread:$0]  %s8, 16, %s117, [#allocation15]
    $region37: #{tpu_custom_call.1} parent=1 // pred_fallthru
      _
    // Predicated region
    $region38: #{tpu_custom_call.1} parent=1 // pred_check
      _
    $region39: #{tpu_custom_call.1} parent=1 // pred_check_branch
      %121 = sbr.rel (0) target = $region41
    $region40: #{tpu_custom_call.1} parent=1 // pred_region
      %122 = dma.done [#allocation3], 128
    $region41: #{tpu_custom_call.1} parent=1 // pred_fallthru
      _
    // Predicated region
    $region42: #{tpu_custom_call.1} parent=1 // pred_check
      _
    $region43: #{tpu_custom_call.1} parent=1 // pred_check_branch
      %124 = sbr.rel (0) target = $region45
    $region44: #{tpu_custom_call.1} parent=1 // pred_region
      %125 = dma.done [#allocation6], 4096
    $region45: #{tpu_custom_call.1} parent=1 // pred_fallthru
      _
    // Predicated region
    $region46: #{tpu_custom_call.1} parent=1 // pred_check
      _
    $region47: #{tpu_custom_call.1} parent=1 // pred_check_branch
      %127 = sbr.rel (0) target = $region49
    $region48: #{tpu_custom_call.1} parent=1 // pred_region
      %128 = dma.done [#allocation6], 64
    $region49: #{tpu_custom_call.1} parent=1 // pred_fallthru
      _
    // Predicated region
    $region50: #{tpu_custom_call.1} parent=1 // pred_check
      _
    $region51: #{tpu_custom_call.1} parent=1 // pred_check_branch
      %130 = sbr.rel (0) target = $region53
    $region52: #{tpu_custom_call.1} parent=1 // pred_region
      %131 = dma.done [#allocation9], 16384
    $region53: #{tpu_custom_call.1} parent=1 // pred_fallthru
      _
    // Predicated region
    $region54: #{tpu_custom_call.1} parent=1 // pred_check
      _
    $region55: #{tpu_custom_call.1} parent=1 // pred_check_branch
      %133 = sbr.rel (0) target = $region57
    $region56: #{tpu_custom_call.1} parent=1 // pred_region
      %134 = dma.done [#allocation9], 64
    $region57: #{tpu_custom_call.1} parent=1 // pred_fallthru
      _
    // Predicated region
    $region58: #{tpu_custom_call.1} parent=1 // pred_check
      _
    $region59: #{tpu_custom_call.1} parent=1 // pred_check_branch
      %136 = sbr.rel (0) target = $region61
    $region60: #{tpu_custom_call.1} parent=1 // pred_region
      %137 = dma.done [#allocation12], 65536
    $region61: #{tpu_custom_call.1} parent=1 // pred_fallthru
      _
    // Predicated region
    $region62: #{tpu_custom_call.1} parent=1 // pred_check
      _
    $region63: #{tpu_custom_call.1} parent=1 // pred_check_branch
      %139 = sbr.rel (0) target = $region65
    $region64: #{tpu_custom_call.1} parent=1 // pred_region
      %140 = dma.done [#allocation12], 256
    $region65: #{tpu_custom_call.1} parent=1 // pred_fallthru
      _
    // Predicated region
    $region66: #{tpu_custom_call.1} parent=1 // pred_check
      _
    $region67: #{tpu_custom_call.1} parent=1 // pred_check_branch
      %142 = sbr.rel (0) target = $region69
    $region68: #{tpu_custom_call.1} parent=1 // pred_region
      %143 = dma.done [#allocation15], 16384
    $region69: #{tpu_custom_call.1} parent=1 // pred_fallthru
      _
    // Predicated region
    $region70: #{tpu_custom_call.1} parent=1 // pred_check
      _
    $region71: #{tpu_custom_call.1} parent=1 // pred_check_branch
      %145 = sbr.rel (0) target = $region73
    $region72: #{tpu_custom_call.1} parent=1 // pred_region
      %146 = dma.done [#allocation15], 16
    $region73: #{tpu_custom_call.1} parent=1 // pred_fallthru
      _
    %v148 = vld [vmem:[#allocation2] sm:$0xf]
    %v149 = vld [vmem:[#allocation2 + $0x4] sm:$0xf]
    %v150 = vld [vmem:[#allocation5] sm:$0xff]
    %v151 = vld [vmem:[#allocation5 + $0x8] sm:$0xff]
    %v152 = vld [vmem:[#allocation5 + $0x10] sm:$0xff]
    %v153 = vld [vmem:[#allocation5 + $0x18] sm:$0xff]
    %v154 = vld [vmem:[#allocation5 + $0x20] sm:$0xff]
    %v155 = vld [vmem:[#allocation5 + $0x28] sm:$0xff]
    %v156 = vld [vmem:[#allocation5 + $0x30] sm:$0xff]
    %v157 = vld [vmem:[#allocation5 + $0x38] sm:$0xff]
    %v158 = vld [vmem:[#allocation5 + $0x40] sm:$0xff]
    %v159 = vld [vmem:[#allocation5 + $0x48] sm:$0xff]
    %v160 = vld [vmem:[#allocation5 + $0x50] sm:$0xff]
    %v161 = vld [vmem:[#allocation5 + $0x58] sm:$0xff]
    %v162 = vld [vmem:[#allocation5 + $0x60] sm:$0xff]
    %v163 = vld [vmem:[#allocation5 + $0x68] sm:$0xff]
    %v164 = vld [vmem:[#allocation5 + $0x70] sm:$0xff]
    %v165 = vld [vmem:[#allocation5 + $0x78] sm:$0xff]
    %v166 = vld [vmem:[#allocation5 + $0x80] sm:$0xff]
    %v167 = vld [vmem:[#allocation5 + $0x88] sm:$0xff]
    %v168 = vld [vmem:[#allocation5 + $0x90] sm:$0xff]
    %v169 = vld [vmem:[#allocation5 + $0x98] sm:$0xff]
    %v170 = vld [vmem:[#allocation5 + $0xa0] sm:$0xff]
    %v171 = vld [vmem:[#allocation5 + $0xa8] sm:$0xff]
    %v172 = vld [vmem:[#allocation5 + $0xb0] sm:$0xff]
    %v173 = vld [vmem:[#allocation5 + $0xb8] sm:$0xff]
    %v174 = vld [vmem:[#allocation5 + $0xc0] sm:$0xff]
    %v175 = vld [vmem:[#allocation5 + $0xc8] sm:$0xff]
    %v176 = vld [vmem:[#allocation5 + $0xd0] sm:$0xff]
    %v177 = vld [vmem:[#allocation5 + $0xd8] sm:$0xff]
    %v178 = vld [vmem:[#allocation5 + $0xe0] sm:$0xff]
    %v179 = vld [vmem:[#allocation5 + $0xe8] sm:$0xff]
    %v180 = vld [vmem:[#allocation5 + $0xf0] sm:$0xff]
    %v181 = vld [vmem:[#allocation5 + $0xf8] sm:$0xff]
    %v182 = vld [vmem:[#allocation7] sm:$0xf]
    %v184 = vlaneseq
    %v185 = vshrl.u32 %v184, 7
    %v186 = vsub.s32 0, %v185
    %v187 = vrot.slane %v182, %v186
    %v188 = vlaneseq
    %v189 = vshrl.u32 %v188, 7
    %v190 = vsub.s32 1, %v189
    %v191 = vrot.slane %v182, %v190
    %v192 = vlaneseq
    %v193 = vshrl.u32 %v192, 7
    %v194 = vsub.s32 2, %v193
    %v195 = vrot.slane %v182, %v194
    %v196 = vlaneseq
    %v197 = vshrl.u32 %v196, 7
    %v198 = vsub.s32 3, %v197
    %v199 = vrot.slane %v182, %v198
    %v206 = vunpack.c.l.b16 %v148
    %v207 = vunpack.c.l.b16 %v149
    %v208 = vpack.c.b16 %v207, %v206
    %v242 = vunpack.c.l.b16 %v150
    %v243 = vunpack.c.h.b16 %v150
    %v244 = vunpack.c.l.b16 %v151
    %v245 = vunpack.c.h.b16 %v151
    %v246 = vunpack.c.l.b16 %v152
    %v247 = vunpack.c.h.b16 %v152
    %v248 = vunpack.c.l.b16 %v153
    %v249 = vunpack.c.h.b16 %v153
    %v250 = vunpack.c.l.b16 %v154
    %v251 = vunpack.c.h.b16 %v154
    %v252 = vunpack.c.l.b16 %v155
    %v253 = vunpack.c.h.b16 %v155
    %v254 = vunpack.c.l.b16 %v156
    %v255 = vunpack.c.h.b16 %v156
    %v256 = vunpack.c.l.b16 %v157
    %v257 = vunpack.c.h.b16 %v157
    %v258 = vunpack.c.l.b16 %v158
    %v259 = vunpack.c.h.b16 %v158
    %v260 = vunpack.c.l.b16 %v159
    %v261 = vunpack.c.h.b16 %v159
    %v262 = vunpack.c.l.b16 %v160
    %v263 = vunpack.c.h.b16 %v160
    %v264 = vunpack.c.l.b16 %v161
    %v265 = vunpack.c.h.b16 %v161
    %v266 = vunpack.c.l.b16 %v162
    %v267 = vunpack.c.h.b16 %v162
    %v268 = vunpack.c.l.b16 %v163
    %v269 = vunpack.c.h.b16 %v163
    %v270 = vunpack.c.l.b16 %v164
    %v271 = vunpack.c.h.b16 %v164
    %v272 = vunpack.c.l.b16 %v165
    %v273 = vunpack.c.h.b16 %v165
    %v274 = vunpack.c.l.b16 %v166
    %v275 = vunpack.c.h.b16 %v166
    %v276 = vunpack.c.l.b16 %v167
    %v277 = vunpack.c.h.b16 %v167
    %v278 = vunpack.c.l.b16 %v168
    %v279 = vunpack.c.h.b16 %v168
    %v280 = vunpack.c.l.b16 %v169
    %v281 = vunpack.c.h.b16 %v169
    %v282 = vunpack.c.l.b16 %v170
    %v283 = vunpack.c.h.b16 %v170
    %v284 = vunpack.c.l.b16 %v171
    %v285 = vunpack.c.h.b16 %v171
    %v286 = vunpack.c.l.b16 %v172
    %v287 = vunpack.c.h.b16 %v172
    %v288 = vunpack.c.l.b16 %v173
    %v289 = vunpack.c.h.b16 %v173
    %v290 = vunpack.c.l.b16 %v174
    %v291 = vunpack.c.h.b16 %v174
    %v292 = vunpack.c.l.b16 %v175
    %v293 = vunpack.c.h.b16 %v175
    %v294 = vunpack.c.l.b16 %v176
    %v295 = vunpack.c.h.b16 %v176
    %v296 = vunpack.c.l.b16 %v177
    %v297 = vunpack.c.h.b16 %v177
    %v298 = vunpack.c.l.b16 %v178
    %v299 = vunpack.c.h.b16 %v178
    %v300 = vunpack.c.l.b16 %v179
    %v301 = vunpack.c.h.b16 %v179
    %v302 = vunpack.c.l.b16 %v180
    %v303 = vunpack.c.h.b16 %v180
    %v304 = vunpack.c.l.b16 %v181
    %v305 = vunpack.c.h.b16 %v181
    %v306 = vpack.c.b16 %v246, %v242
    %v307 = vpack.c.b16 %v247, %v243
    %v308 = vpack.c.b16 %v248, %v244
    %v309 = vpack.c.b16 %v249, %v245
    %v310 = vpack.c.b16 %v254, %v250
    %v311 = vpack.c.b16 %v255, %v251
    %v312 = vpack.c.b16 %v256, %v252
    %v313 = vpack.c.b16 %v257, %v253
    %v314 = vpack.c.b16 %v262, %v258
    %v315 = vpack.c.b16 %v263, %v259
    %v316 = vpack.c.b16 %v264, %v260
    %v317 = vpack.c.b16 %v265, %v261
    %v318 = vpack.c.b16 %v270, %v266
    %v319 = vpack.c.b16 %v271, %v267
    %v320 = vpack.c.b16 %v272, %v268
    %v321 = vpack.c.b16 %v273, %v269
    %v322 = vpack.c.b16 %v278, %v274
    %v323 = vpack.c.b16 %v279, %v275
    %v324 = vpack.c.b16 %v280, %v276
    %v325 = vpack.c.b16 %v281, %v277
    %v326 = vpack.c.b16 %v286, %v282
    %v327 = vpack.c.b16 %v287, %v283
    %v328 = vpack.c.b16 %v288, %v284
    %v329 = vpack.c.b16 %v289, %v285
    %v330 = vpack.c.b16 %v294, %v290
    %v331 = vpack.c.b16 %v295, %v291
    %v332 = vpack.c.b16 %v296, %v292
    %v333 = vpack.c.b16 %v297, %v293
    %v334 = vpack.c.b16 %v302, %v298
    %v335 = vpack.c.b16 %v303, %v299
    %v336 = vpack.c.b16 %v304, %v300
    %v337 = vpack.c.b16 %v305, %v301
    %370 = vmatprep.subr.bf16.mxu0 %v335
    %371 = vmatpush1.bf16.msra.mxu0 %v334
    %372 = vmatprep.subr.bf16.mxu0 %v331
    %373 = vmatpush1.bf16.msra.mxu0 %v330
    %374 = vmatprep.subr.bf16.mxu0 %v327
    %375 = vmatpush1.bf16.msra.mxu0 %v326
    %376 = vmatprep.subr.bf16.mxu0 %v323
    %377 = vmatpush1.bf16.msra.mxu0 %v322
    %378 = vmatprep.subr.bf16.mxu0 %v319
    %379 = vmatpush1.bf16.msra.mxu0 %v318
    %380 = vmatprep.subr.bf16.mxu0 %v315
    %381 = vmatpush1.bf16.msra.mxu0 %v314
    %382 = vmatprep.subr.bf16.mxu0 %v311
    %383 = vmatpush1.bf16.msra.mxu0 %v310
    %384 = vmatprep.subr.bf16.mxu0 %v307
    %385 = vmatpush1.bf16.msra.mxu0 %v306
    %386 = vmatprep.subr.bf16.mxu0 0
    %387 = vmatpush2.bf16.msra.mxu0 0
    %388 = vmatprep.subr.bf16.mxu0 0
    %389 = vmatpush2.bf16.msra.mxu0 0
    %390 = vmatprep.subr.bf16.mxu0 0
    %391 = vmatpush2.bf16.msra.mxu0 0
    %392 = vmatprep.subr.bf16.mxu0 0
    %393 = vmatpush2.bf16.msra.mxu0 0
    %394 = vmatprep.subr.bf16.mxu0 0
    %395 = vmatpush2.bf16.msra.mxu0 0
    %396 = vmatprep.subr.bf16.mxu0 0
    %397 = vmatpush2.bf16.msra.mxu0 0
    %398 = vmatprep.subr.bf16.mxu0 0
    %399 = vmatpush2.bf16.msra.mxu0 0
    %400 = vmatprep.subr.bf16.mxu0 0
    %401 = vmatpush2.bf16.msra.mxu0 0
    %402 = vmatprep.mubr.bf16.mxu0 0
    %403 = vmatmul.mubr.bf16.gmra.mxu0 %v208
    %v404 = vpop.f32.mrf.mxu0
    %v405 = vadd.f32 %v187, %v404
    %v406 = vpop.f32.mrf.mxu0
    %v407 = vadd.f32 %v191, %v406
    %v408 = vpop.f32.mrf.mxu0
    %v409 = vadd.f32 %v187, %v408
    %v410 = vpop.f32.mrf.mxu0
    %v411 = vadd.f32 %v191, %v410
    %412 = vdwg.mxu0
    %413 = vmatprep.subr.bf16.mxu0 %v337
    %414 = vmatpush1.bf16.msra.mxu0 %v336
    %415 = vmatprep.subr.bf16.mxu0 %v333
    %416 = vmatpush1.bf16.msra.mxu0 %v332
    %417 = vmatprep.subr.bf16.mxu0 %v329
    %418 = vmatpush1.bf16.msra.mxu0 %v328
    %419 = vmatprep.subr.bf16.mxu0 %v325
    %420 = vmatpush1.bf16.msra.mxu0 %v324
    %421 = vmatprep.subr.bf16.mxu0 %v321
    %422 = vmatpush1.bf16.msra.mxu0 %v320
    %423 = vmatprep.subr.bf16.mxu0 %v317
    %424 = vmatpush1.bf16.msra.mxu0 %v316
    %425 = vmatprep.subr.bf16.mxu0 %v313
    %426 = vmatpush1.bf16.msra.mxu0 %v312
    %427 = vmatprep.subr.bf16.mxu0 %v309
    %428 = vmatpush1.bf16.msra.mxu0 %v308
    %429 = vmatprep.subr.bf16.mxu0 0
    %430 = vmatpush2.bf16.msra.mxu0 0
    %431 = vmatprep.subr.bf16.mxu0 0
    %432 = vmatpush2.bf16.msra.mxu0 0
    %433 = vmatprep.subr.bf16.mxu0 0
    %434 = vmatpush2.bf16.msra.mxu0 0
    %435 = vmatprep.subr.bf16.mxu0 0
    %436 = vmatpush2.bf16.msra.mxu0 0
    %437 = vmatprep.subr.bf16.mxu0 0
    %438 = vmatpush2.bf16.msra.mxu0 0
    %439 = vmatprep.subr.bf16.mxu0 0
    %440 = vmatpush2.bf16.msra.mxu0 0
    %441 = vmatprep.subr.bf16.mxu0 0
    %442 = vmatpush2.bf16.msra.mxu0 0
    %443 = vmatprep.subr.bf16.mxu0 0
    %444 = vmatpush2.bf16.msra.mxu0 0
    %445 = vmatprep.mubr.bf16.mxu0 0
    %446 = vmatmul.mubr.bf16.gmra.mxu0 %v208
    %v447 = vpop.f32.mrf.mxu0
    %v448 = vadd.f32 %v195, %v447
    %v449 = vpop.f32.mrf.mxu0
    %v450 = vadd.f32 %v199, %v449
    %v451 = vpop.f32.mrf.mxu0
    %v452 = vadd.f32 %v195, %v451
    %v453 = vpop.f32.mrf.mxu0
    %v454 = vadd.f32 %v199, %v453
    %455 = vdwg.mxu0
    %v456 = vmax.f32 %v405, 0.0
    %v457 = vmax.f32 %v407, 0.0
    %v458 = vmax.f32 %v448, 0.0
    %v459 = vmax.f32 %v450, 0.0
    %v460 = vmax.f32 %v409, 0.0
    %v461 = vmax.f32 %v411, 0.0
    %v462 = vmax.f32 %v452, 0.0
    %v463 = vmax.f32 %v454, 0.0
    %v464 = vpack.c.bf16 %v460, %v456
    %v465 = vpack.c.bf16 %v461, %v457
    %v466 = vpack.c.bf16 %v462, %v458
    %v467 = vpack.c.bf16 %v463, %v459
    %v468 = vld [vmem:[#allocation8] sm:$0xff]
    %v469 = vld [vmem:[#allocation8 + $0x8] sm:$0xff]
    %v470 = vld [vmem:[#allocation8 + $0x10] sm:$0xff]
    %v471 = vld [vmem:[#allocation8 + $0x18] sm:$0xff]
    %v472 = vld [vmem:[#allocation8 + $0x20] sm:$0xff]
    %v473 = vld [vmem:[#allocation8 + $0x28] sm:$0xff]
    %v474 = vld [vmem:[#allocation8 + $0x30] sm:$0xff]
    %v475 = vld [vmem:[#allocation8 + $0x38] sm:$0xff]
    %v476 = vld [vmem:[#allocation8 + $0x40] sm:$0xff]
    %v477 = vld [vmem:[#allocation8 + $0x48] sm:$0xff]
    %v478 = vld [vmem:[#allocation8 + $0x50] sm:$0xff]
    %v479 = vld [vmem:[#allocation8 + $0x58] sm:$0xff]
    %v480 = vld [vmem:[#allocation8 + $0x60] sm:$0xff]
    %v481 = vld [vmem:[#allocation8 + $0x68] sm:$0xff]
    %v482 = vld [vmem:[#allocation8 + $0x70] sm:$0xff]
    %v483 = vld [vmem:[#allocation8 + $0x78] sm:$0xff]
    %v484 = vld [vmem:[#allocation8 + $0x80] sm:$0xff]
    %v485 = vld [vmem:[#allocation8 + $0x88] sm:$0xff]
    %v486 = vld [vmem:[#allocation8 + $0x90] sm:$0xff]
    %v487 = vld [vmem:[#allocation8 + $0x98] sm:$0xff]
    %v488 = vld [vmem:[#allocation8 + $0xa0] sm:$0xff]
    %v489 = vld [vmem:[#allocation8 + $0xa8] sm:$0xff]
    %v490 = vld [vmem:[#allocation8 + $0xb0] sm:$0xff]
    %v491 = vld [vmem:[#allocation8 + $0xb8] sm:$0xff]
    %v492 = vld [vmem:[#allocation8 + $0xc0] sm:$0xff]
    %v493 = vld [vmem:[#allocation8 + $0xc8] sm:$0xff]
    %v494 = vld [vmem:[#allocation8 + $0xd0] sm:$0xff]
    %v495 = vld [vmem:[#allocation8 + $0xd8] sm:$0xff]
    %v496 = vld [vmem:[#allocation8 + $0xe0] sm:$0xff]
    %v497 = vld [vmem:[#allocation8 + $0xe8] sm:$0xff]
    %v498 = vld [vmem:[#allocation8 + $0xf0] sm:$0xff]
    %v499 = vld [vmem:[#allocation8 + $0xf8] sm:$0xff]
    %v500 = vld [vmem:[#allocation8 + $0x100] sm:$0xff]
    %v501 = vld [vmem:[#allocation8 + $0x108] sm:$0xff]
    %v502 = vld [vmem:[#allocation8 + $0x110] sm:$0xff]
    %v503 = vld [vmem:[#allocation8 + $0x118] sm:$0xff]
    %v504 = vld [vmem:[#allocation8 + $0x120] sm:$0xff]
    %v505 = vld [vmem:[#allocation8 + $0x128] sm:$0xff]
    %v506 = vld [vmem:[#allocation8 + $0x130] sm:$0xff]
    %v507 = vld [vmem:[#allocation8 + $0x138] sm:$0xff]
    %v508 = vld [vmem:[#allocation8 + $0x140] sm:$0xff]
    %v509 = vld [vmem:[#allocation8 + $0x148] sm:$0xff]
    %v510 = vld [vmem:[#allocation8 + $0x150] sm:$0xff]
    %v511 = vld [vmem:[#allocation8 + $0x158] sm:$0xff]
    %v512 = vld [vmem:[#allocation8 + $0x160] sm:$0xff]
    %v513 = vld [vmem:[#allocation8 + $0x168] sm:$0xff]
    %v514 = vld [vmem:[#allocation8 + $0x170] sm:$0xff]
    %v515 = vld [vmem:[#allocation8 + $0x178] sm:$0xff]
    %v516 = vld [vmem:[#allocation8 + $0x180] sm:$0xff]
    %v517 = vld [vmem:[#allocation8 + $0x188] sm:$0xff]
    %v518 = vld [vmem:[#allocation8 + $0x190] sm:$0xff]
    %v519 = vld [vmem:[#allocation8 + $0x198] sm:$0xff]
    %v520 = vld [vmem:[#allocation8 + $0x1a0] sm:$0xff]
    %v521 = vld [vmem:[#allocation8 + $0x1a8] sm:$0xff]
    %v522 = vld [vmem:[#allocation8 + $0x1b0] sm:$0xff]
    %v523 = vld [vmem:[#allocation8 + $0x1b8] sm:$0xff]
    %v524 = vld [vmem:[#allocation8 + $0x1c0] sm:$0xff]
    %v525 = vld [vmem:[#allocation8 + $0x1c8] sm:$0xff]
    %v526 = vld [vmem:[#allocation8 + $0x1d0] sm:$0xff]
    %v527 = vld [vmem:[#allocation8 + $0x1d8] sm:$0xff]
    %v528 = vld [vmem:[#allocation8 + $0x1e0] sm:$0xff]
    %v529 = vld [vmem:[#allocation8 + $0x1e8] sm:$0xff]
    %v530 = vld [vmem:[#allocation8 + $0x1f0] sm:$0xff]
    %v531 = vld [vmem:[#allocation8 + $0x1f8] sm:$0xff]
    %v532 = vld [vmem:[#allocation8 + $0x200] sm:$0xff]
    %v533 = vld [vmem:[#allocation8 + $0x208] sm:$0xff]
    %v534 = vld [vmem:[#allocation8 + $0x210] sm:$0xff]
    %v535 = vld [vmem:[#allocation8 + $0x218] sm:$0xff]
    %v536 = vld [vmem:[#allocation8 + $0x220] sm:$0xff]
    %v537 = vld [vmem:[#allocation8 + $0x228] sm:$0xff]
    %v538 = vld [vmem:[#allocation8 + $0x230] sm:$0xff]
    %v539 = vld [vmem:[#allocation8 + $0x238] sm:$0xff]
    %v540 = vld [vmem:[#allocation8 + $0x240] sm:$0xff]
    %v541 = vld [vmem:[#allocation8 + $0x248] sm:$0xff]
    %v542 = vld [vmem:[#allocation8 + $0x250] sm:$0xff]
    %v543 = vld [vmem:[#allocation8 + $0x258] sm:$0xff]
    %v544 = vld [vmem:[#allocation8 + $0x260] sm:$0xff]
    %v545 = vld [vmem:[#allocation8 + $0x268] sm:$0xff]
    %v546 = vld [vmem:[#allocation8 + $0x270] sm:$0xff]
    %v547 = vld [vmem:[#allocation8 + $0x278] sm:$0xff]
    %v548 = vld [vmem:[#allocation8 + $0x280] sm:$0xff]
    %v549 = vld [vmem:[#allocation8 + $0x288] sm:$0xff]
    %v550 = vld [vmem:[#allocation8 + $0x290] sm:$0xff]
    %v551 = vld [vmem:[#allocation8 + $0x298] sm:$0xff]
    %v552 = vld [vmem:[#allocation8 + $0x2a0] sm:$0xff]
    %v553 = vld [vmem:[#allocation8 + $0x2a8] sm:$0xff]
    %v554 = vld [vmem:[#allocation8 + $0x2b0] sm:$0xff]
    %v555 = vld [vmem:[#allocation8 + $0x2b8] sm:$0xff]
    %v556 = vld [vmem:[#allocation8 + $0x2c0] sm:$0xff]
    %v557 = vld [vmem:[#allocation8 + $0x2c8] sm:$0xff]
    %v558 = vld [vmem:[#allocation8 + $0x2d0] sm:$0xff]
    %v559 = vld [vmem:[#allocation8 + $0x2d8] sm:$0xff]
    %v560 = vld [vmem:[#allocation8 + $0x2e0] sm:$0xff]
    %v561 = vld [vmem:[#allocation8 + $0x2e8] sm:$0xff]
    %v562 = vld [vmem:[#allocation8 + $0x2f0] sm:$0xff]
    %v563 = vld [vmem:[#allocation8 + $0x2f8] sm:$0xff]
    %v564 = vld [vmem:[#allocation8 + $0x300] sm:$0xff]
    %v565 = vld [vmem:[#allocation8 + $0x308] sm:$0xff]
    %v566 = vld [vmem:[#allocation8 + $0x310] sm:$0xff]
    %v567 = vld [vmem:[#allocation8 + $0x318] sm:$0xff]
    %v568 = vld [vmem:[#allocation8 + $0x320] sm:$0xff]
    %v569 = vld [vmem:[#allocation8 + $0x328] sm:$0xff]
    %v570 = vld [vmem:[#allocation8 + $0x330] sm:$0xff]
    %v571 = vld [vmem:[#allocation8 + $0x338] sm:$0xff]
    %v572 = vld [vmem:[#allocation8 + $0x340] sm:$0xff]
    %v573 = vld [vmem:[#allocation8 + $0x348] sm:$0xff]
    %v574 = vld [vmem:[#allocation8 + $0x350] sm:$0xff]
    %v575 = vld [vmem:[#allocation8 + $0x358] sm:$0xff]
    %v576 = vld [vmem:[#allocation8 + $0x360] sm:$0xff]
    %v577 = vld [vmem:[#allocation8 + $0x368] sm:$0xff]
    %v578 = vld [vmem:[#allocation8 + $0x370] sm:$0xff]
    %v579 = vld [vmem:[#allocation8 + $0x378] sm:$0xff]
    %v580 = vld [vmem:[#allocation8 + $0x380] sm:$0xff]
    %v581 = vld [vmem:[#allocation8 + $0x388] sm:$0xff]
    %v582 = vld [vmem:[#allocation8 + $0x390] sm:$0xff]
    %v583 = vld [vmem:[#allocation8 + $0x398] sm:$0xff]
    %v584 = vld [vmem:[#allocation8 + $0x3a0] sm:$0xff]
    %v585 = vld [vmem:[#allocation8 + $0x3a8] sm:$0xff]
    %v586 = vld [vmem:[#allocation8 + $0x3b0] sm:$0xff]
    %v587 = vld [vmem:[#allocation8 + $0x3b8] sm:$0xff]
    %v588 = vld [vmem:[#allocation8 + $0x3c0] sm:$0xff]
    %v589 = vld [vmem:[#allocation8 + $0x3c8] sm:$0xff]
    %v590 = vld [vmem:[#allocation8 + $0x3d0] sm:$0xff]
    %v591 = vld [vmem:[#allocation8 + $0x3d8] sm:$0xff]
    %v592 = vld [vmem:[#allocation8 + $0x3e0] sm:$0xff]
    %v593 = vld [vmem:[#allocation8 + $0x3e8] sm:$0xff]
    %v594 = vld [vmem:[#allocation8 + $0x3f0] sm:$0xff]
    %v595 = vld [vmem:[#allocation8 + $0x3f8] sm:$0xff]
    %v596 = vld [vmem:[#allocation10] sm:$0xf]
    %v598 = vlaneseq
    %v599 = vshrl.u32 %v598, 7
    %v600 = vsub.s32 0, %v599
    %v601 = vrot.slane %v596, %v600
    %v602 = vlaneseq
    %v603 = vshrl.u32 %v602, 7
    %v604 = vsub.s32 1, %v603
    %v605 = vrot.slane %v596, %v604
    %v606 = vlaneseq
    %v607 = vshrl.u32 %v606, 7
    %v608 = vsub.s32 2, %v607
    %v609 = vrot.slane %v596, %v608
    %v610 = vlaneseq
    %v611 = vshrl.u32 %v610, 7
    %v612 = vsub.s32 3, %v611
    %v613 = vrot.slane %v596, %v612
    %v746 = vunpack.c.l.b16 %v468
    %v747 = vunpack.c.h.b16 %v468
    %v748 = vunpack.c.l.b16 %v469
    %v749 = vunpack.c.h.b16 %v469
    %v750 = vunpack.c.l.b16 %v470
    %v751 = vunpack.c.h.b16 %v470
    %v752 = vunpack.c.l.b16 %v471
    %v753 = vunpack.c.h.b16 %v471
    %v754 = vunpack.c.l.b16 %v472
    %v755 = vunpack.c.h.b16 %v472
    %v756 = vunpack.c.l.b16 %v473
    %v757 = vunpack.c.h.b16 %v473
    %v758 = vunpack.c.l.b16 %v474
    %v759 = vunpack.c.h.b16 %v474
    %v760 = vunpack.c.l.b16 %v475
    %v761 = vunpack.c.h.b16 %v475
    %v762 = vunpack.c.l.b16 %v476
    %v763 = vunpack.c.h.b16 %v476
    %v764 = vunpack.c.l.b16 %v477
    %v765 = vunpack.c.h.b16 %v477
    %v766 = vunpack.c.l.b16 %v478
    %v767 = vunpack.c.h.b16 %v478
    %v768 = vunpack.c.l.b16 %v479
    %v769 = vunpack.c.h.b16 %v479
    %v770 = vunpack.c.l.b16 %v480
    %v771 = vunpack.c.h.b16 %v480
    %v772 = vunpack.c.l.b16 %v481
    %v773 = vunpack.c.h.b16 %v481
    %v774 = vunpack.c.l.b16 %v482
    %v775 = vunpack.c.h.b16 %v482
    %v776 = vunpack.c.l.b16 %v483
    %v777 = vunpack.c.h.b16 %v483
    %v778 = vunpack.c.l.b16 %v484
    %v779 = vunpack.c.h.b16 %v484
    %v780 = vunpack.c.l.b16 %v485
    %v781 = vunpack.c.h.b16 %v485
    %v782 = vunpack.c.l.b16 %v486
    %v783 = vunpack.c.h.b16 %v486
    %v784 = vunpack.c.l.b16 %v487
    %v785 = vunpack.c.h.b16 %v487
    %v786 = vunpack.c.l.b16 %v488
    %v787 = vunpack.c.h.b16 %v488
    %v788 = vunpack.c.l.b16 %v489
    %v789 = vunpack.c.h.b16 %v489
    %v790 = vunpack.c.l.b16 %v490
    %v791 = vunpack.c.h.b16 %v490
    %v792 = vunpack.c.l.b16 %v491
    %v793 = vunpack.c.h.b16 %v491
    %v794 = vunpack.c.l.b16 %v492
    %v795 = vunpack.c.h.b16 %v492
    %v796 = vunpack.c.l.b16 %v493
    %v797 = vunpack.c.h.b16 %v493
    %v798 = vunpack.c.l.b16 %v494
    %v799 = vunpack.c.h.b16 %v494
    %v800 = vunpack.c.l.b16 %v495
    %v801 = vunpack.c.h.b16 %v495
    %v802 = vunpack.c.l.b16 %v496
    %v803 = vunpack.c.h.b16 %v496
    %v804 = vunpack.c.l.b16 %v497
    %v805 = vunpack.c.h.b16 %v497
    %v806 = vunpack.c.l.b16 %v498
    %v807 = vunpack.c.h.b16 %v498
    %v808 = vunpack.c.l.b16 %v499
    %v809 = vunpack.c.h.b16 %v499
    %v810 = vunpack.c.l.b16 %v500
    %v811 = vunpack.c.h.b16 %v500
    %v812 = vunpack.c.l.b16 %v501
    %v813 = vunpack.c.h.b16 %v501
    %v814 = vunpack.c.l.b16 %v502
    %v815 = vunpack.c.h.b16 %v502
    %v816 = vunpack.c.l.b16 %v503
    %v817 = vunpack.c.h.b16 %v503
    %v818 = vunpack.c.l.b16 %v504
    %v819 = vunpack.c.h.b16 %v504
    %v820 = vunpack.c.l.b16 %v505
    %v821 = vunpack.c.h.b16 %v505
    %v822 = vunpack.c.l.b16 %v506
    %v823 = vunpack.c.h.b16 %v506
    %v824 = vunpack.c.l.b16 %v507
    %v825 = vunpack.c.h.b16 %v507
    %v826 = vunpack.c.l.b16 %v508
    %v827 = vunpack.c.h.b16 %v508
    %v828 = vunpack.c.l.b16 %v509
    %v829 = vunpack.c.h.b16 %v509
    %v830 = vunpack.c.l.b16 %v510
    %v831 = vunpack.c.h.b16 %v510
    %v832 = vunpack.c.l.b16 %v511
    %v833 = vunpack.c.h.b16 %v511
    %v834 = vunpack.c.l.b16 %v512
    %v835 = vunpack.c.h.b16 %v512
    %v836 = vunpack.c.l.b16 %v513
    %v837 = vunpack.c.h.b16 %v513
    %v838 = vunpack.c.l.b16 %v514
    %v839 = vunpack.c.h.b16 %v514
    %v840 = vunpack.c.l.b16 %v515
    %v841 = vunpack.c.h.b16 %v515
    %v842 = vunpack.c.l.b16 %v516
    %v843 = vunpack.c.h.b16 %v516
    %v844 = vunpack.c.l.b16 %v517
    %v845 = vunpack.c.h.b16 %v517
    %v846 = vunpack.c.l.b16 %v518
    %v847 = vunpack.c.h.b16 %v518
    %v848 = vunpack.c.l.b16 %v519
    %v849 = vunpack.c.h.b16 %v519
    %v850 = vunpack.c.l.b16 %v520
    %v851 = vunpack.c.h.b16 %v520
    %v852 = vunpack.c.l.b16 %v521
    %v853 = vunpack.c.h.b16 %v521
    %v854 = vunpack.c.l.b16 %v522
    %v855 = vunpack.c.h.b16 %v522
    %v856 = vunpack.c.l.b16 %v523
    %v857 = vunpack.c.h.b16 %v523
    %v858 = vunpack.c.l.b16 %v524
    %v859 = vunpack.c.h.b16 %v524
    %v860 = vunpack.c.l.b16 %v525
    %v861 = vunpack.c.h.b16 %v525
    %v862 = vunpack.c.l.b16 %v526
    %v863 = vunpack.c.h.b16 %v526
    %v864 = vunpack.c.l.b16 %v527
    %v865 = vunpack.c.h.b16 %v527
    %v866 = vunpack.c.l.b16 %v528
    %v867 = vunpack.c.h.b16 %v528
    %v868 = vunpack.c.l.b16 %v529
    %v869 = vunpack.c.h.b16 %v529
    %v870 = vunpack.c.l.b16 %v530
    %v871 = vunpack.c.h.b16 %v530
    %v872 = vunpack.c.l.b16 %v531
    %v873 = vunpack.c.h.b16 %v531
    %v874 = vunpack.c.l.b16 %v532
    %v875 = vunpack.c.h.b16 %v532
    %v876 = vunpack.c.l.b16 %v533
    %v877 = vunpack.c.h.b16 %v533
    %v878 = vunpack.c.l.b16 %v534
    %v879 = vunpack.c.h.b16 %v534
    %v880 = vunpack.c.l.b16 %v535
    %v881 = vunpack.c.h.b16 %v535
    %v882 = vunpack.c.l.b16 %v536
    %v883 = vunpack.c.h.b16 %v536
    %v884 = vunpack.c.l.b16 %v537
    %v885 = vunpack.c.h.b16 %v537
    %v886 = vunpack.c.l.b16 %v538
    %v887 = vunpack.c.h.b16 %v538
    %v888 = vunpack.c.l.b16 %v539
    %v889 = vunpack.c.h.b16 %v539
    %v890 = vunpack.c.l.b16 %v540
    %v891 = vunpack.c.h.b16 %v540
    %v892 = vunpack.c.l.b16 %v541
    %v893 = vunpack.c.h.b16 %v541
    %v894 = vunpack.c.l.b16 %v542
    %v895 = vunpack.c.h.b16 %v542
    %v896 = vunpack.c.l.b16 %v543
    %v897 = vunpack.c.h.b16 %v543
    %v898 = vunpack.c.l.b16 %v544
    %v899 = vunpack.c.h.b16 %v544
    %v900 = vunpack.c.l.b16 %v545
    %v901 = vunpack.c.h.b16 %v545
    %v902 = vunpack.c.l.b16 %v546
    %v903 = vunpack.c.h.b16 %v546
    %v904 = vunpack.c.l.b16 %v547
    %v905 = vunpack.c.h.b16 %v547
    %v906 = vunpack.c.l.b16 %v548
    %v907 = vunpack.c.h.b16 %v548
    %v908 = vunpack.c.l.b16 %v549
    %v909 = vunpack.c.h.b16 %v549
    %v910 = vunpack.c.l.b16 %v550
    %v911 = vunpack.c.h.b16 %v550
    %v912 = vunpack.c.l.b16 %v551
    %v913 = vunpack.c.h.b16 %v551
    %v914 = vunpack.c.l.b16 %v552
    %v915 = vunpack.c.h.b16 %v552
    %v916 = vunpack.c.l.b16 %v553
    %v917 = vunpack.c.h.b16 %v553
    %v918 = vunpack.c.l.b16 %v554
    %v919 = vunpack.c.h.b16 %v554
    %v920 = vunpack.c.l.b16 %v555
    %v921 = vunpack.c.h.b16 %v555
    %v922 = vunpack.c.l.b16 %v556
    %v923 = vunpack.c.h.b16 %v556
    %v924 = vunpack.c.l.b16 %v557
    %v925 = vunpack.c.h.b16 %v557
    %v926 = vunpack.c.l.b16 %v558
    %v927 = vunpack.c.h.b16 %v558
    %v928 = vunpack.c.l.b16 %v559
    %v929 = vunpack.c.h.b16 %v559
    %v930 = vunpack.c.l.b16 %v560
    %v931 = vunpack.c.h.b16 %v560
    %v932 = vunpack.c.l.b16 %v561
    %v933 = vunpack.c.h.b16 %v561
    %v934 = vunpack.c.l.b16 %v562
    %v935 = vunpack.c.h.b16 %v562
    %v936 = vunpack.c.l.b16 %v563
    %v937 = vunpack.c.h.b16 %v563
    %v938 = vunpack.c.l.b16 %v564
    %v939 = vunpack.c.h.b16 %v564
    %v940 = vunpack.c.l.b16 %v565
    %v941 = vunpack.c.h.b16 %v565
    %v942 = vunpack.c.l.b16 %v566
    %v943 = vunpack.c.h.b16 %v566
    %v944 = vunpack.c.l.b16 %v567
    %v945 = vunpack.c.h.b16 %v567
    %v946 = vunpack.c.l.b16 %v568
    %v947 = vunpack.c.h.b16 %v568
    %v948 = vunpack.c.l.b16 %v569
    %v949 = vunpack.c.h.b16 %v569
    %v950 = vunpack.c.l.b16 %v570
    %v951 = vunpack.c.h.b16 %v570
    %v952 = vunpack.c.l.b16 %v571
    %v953 = vunpack.c.h.b16 %v571
    %v954 = vunpack.c.l.b16 %v572
    %v955 = vunpack.c.h.b16 %v572
    %v956 = vunpack.c.l.b16 %v573
    %v957 = vunpack.c.h.b16 %v573
    %v958 = vunpack.c.l.b16 %v574
    %v959 = vunpack.c.h.b16 %v574
    %v960 = vunpack.c.l.b16 %v575
    %v961 = vunpack.c.h.b16 %v575
    %v962 = vunpack.c.l.b16 %v576
    %v963 = vunpack.c.h.b16 %v576
    %v964 = vunpack.c.l.b16 %v577
    %v965 = vunpack.c.h.b16 %v577
    %v966 = vunpack.c.l.b16 %v578
    %v967 = vunpack.c.h.b16 %v578
    %v968 = vunpack.c.l.b16 %v579
    %v969 = vunpack.c.h.b16 %v579
    %v970 = vunpack.c.l.b16 %v580
    %v971 = vunpack.c.h.b16 %v580
    %v972 = vunpack.c.l.b16 %v581
    %v973 = vunpack.c.h.b16 %v581
    %v974 = vunpack.c.l.b16 %v582
    %v975 = vunpack.c.h.b16 %v582
    %v976 = vunpack.c.l.b16 %v583
    %v977 = vunpack.c.h.b16 %v583
    %v978 = vunpack.c.l.b16 %v584
    %v979 = vunpack.c.h.b16 %v584
    %v980 = vunpack.c.l.b16 %v585
    %v981 = vunpack.c.h.b16 %v585
    %v982 = vunpack.c.l.b16 %v586
    %v983 = vunpack.c.h.b16 %v586
    %v984 = vunpack.c.l.b16 %v587
    %v985 = vunpack.c.h.b16 %v587
    %v986 = vunpack.c.l.b16 %v588
    %v987 = vunpack.c.h.b16 %v588
    %v988 = vunpack.c.l.b16 %v589
    %v989 = vunpack.c.h.b16 %v589
    %v990 = vunpack.c.l.b16 %v590
    %v991 = vunpack.c.h.b16 %v590
    %v992 = vunpack.c.l.b16 %v591
    %v993 = vunpack.c.h.b16 %v591
    %v994 = vunpack.c.l.b16 %v592
    %v995 = vunpack.c.h.b16 %v592
    %v996 = vunpack.c.l.b16 %v593
    %v997 = vunpack.c.h.b16 %v593
    %v998 = vunpack.c.l.b16 %v594
    %v999 = vunpack.c.h.b16 %v594
    %v1000 = vunpack.c.l.b16 %v595
    %v1001 = vunpack.c.h.b16 %v595
    %v1002 = vpack.c.b16 %v750, %v746
    %v1003 = vpack.c.b16 %v751, %v747
    %v1004 = vpack.c.b16 %v752, %v748
    %v1005 = vpack.c.b16 %v753, %v749
    %v1006 = vpack.c.b16 %v758, %v754
    %v1007 = vpack.c.b16 %v759, %v755
    %v1008 = vpack.c.b16 %v760, %v756
    %v1009 = vpack.c.b16 %v761, %v757
    %v1010 = vpack.c.b16 %v766, %v762
    %v1011 = vpack.c.b16 %v767, %v763
    %v1012 = vpack.c.b16 %v768, %v764
    %v1013 = vpack.c.b16 %v769, %v765
    %v1014 = vpack.c.b16 %v774, %v770
    %v1015 = vpack.c.b16 %v775, %v771
    %v1016 = vpack.c.b16 %v776, %v772
    %v1017 = vpack.c.b16 %v777, %v773
    %v1018 = vpack.c.b16 %v782, %v778
    %v1019 = vpack.c.b16 %v783, %v779
    %v1020 = vpack.c.b16 %v784, %v780
    %v1021 = vpack.c.b16 %v785, %v781
    %v1022 = vpack.c.b16 %v790, %v786
    %v1023 = vpack.c.b16 %v791, %v787
    %v1024 = vpack.c.b16 %v792, %v788
    %v1025 = vpack.c.b16 %v793, %v789
    %v1026 = vpack.c.b16 %v798, %v794
    %v1027 = vpack.c.b16 %v799, %v795
    %v1028 = vpack.c.b16 %v800, %v796
    %v1029 = vpack.c.b16 %v801, %v797
    %v1030 = vpack.c.b16 %v806, %v802
    %v1031 = vpack.c.b16 %v807, %v803
    %v1032 = vpack.c.b16 %v808, %v804
    %v1033 = vpack.c.b16 %v809, %v805
    %v1034 = vpack.c.b16 %v814, %v810
    %v1035 = vpack.c.b16 %v815, %v811
    %v1036 = vpack.c.b16 %v816, %v812
    %v1037 = vpack.c.b16 %v817, %v813
    %v1038 = vpack.c.b16 %v822, %v818
    %v1039 = vpack.c.b16 %v823, %v819
    %v1040 = vpack.c.b16 %v824, %v820
    %v1041 = vpack.c.b16 %v825, %v821
    %v1042 = vpack.c.b16 %v830, %v826
    %v1043 = vpack.c.b16 %v831, %v827
    %v1044 = vpack.c.b16 %v832, %v828
    %v1045 = vpack.c.b16 %v833, %v829
    %v1046 = vpack.c.b16 %v838, %v834
    %v1047 = vpack.c.b16 %v839, %v835
    %v1048 = vpack.c.b16 %v840, %v836
    %v1049 = vpack.c.b16 %v841, %v837
    %v1050 = vpack.c.b16 %v846, %v842
    %v1051 = vpack.c.b16 %v847, %v843
    %v1052 = vpack.c.b16 %v848, %v844
    %v1053 = vpack.c.b16 %v849, %v845
    %v1054 = vpack.c.b16 %v854, %v850
    %v1055 = vpack.c.b16 %v855, %v851
    %v1056 = vpack.c.b16 %v856, %v852
    %v1057 = vpack.c.b16 %v857, %v853
    %v1058 = vpack.c.b16 %v862, %v858
    %v1059 = vpack.c.b16 %v863, %v859
    %v1060 = vpack.c.b16 %v864, %v860
    %v1061 = vpack.c.b16 %v865, %v861
    %v1062 = vpack.c.b16 %v870, %v866
    %v1063 = vpack.c.b16 %v871, %v867
    %v1064 = vpack.c.b16 %v872, %v868
    %v1065 = vpack.c.b16 %v873, %v869
    %v1066 = vpack.c.b16 %v878, %v874
    %v1067 = vpack.c.b16 %v879, %v875
    %v1068 = vpack.c.b16 %v880, %v876
    %v1069 = vpack.c.b16 %v881, %v877
    %v1070 = vpack.c.b16 %v886, %v882
    %v1071 = vpack.c.b16 %v887, %v883
    %v1072 = vpack.c.b16 %v888, %v884
    %v1073 = vpack.c.b16 %v889, %v885
    %v1074 = vpack.c.b16 %v894, %v890
    %v1075 = vpack.c.b16 %v895, %v891
    %v1076 = vpack.c.b16 %v896, %v892
    %v1077 = vpack.c.b16 %v897, %v893
    %v1078 = vpack.c.b16 %v902, %v898
    %v1079 = vpack.c.b16 %v903, %v899
    %v1080 = vpack.c.b16 %v904, %v900
    %v1081 = vpack.c.b16 %v905, %v901
    %v1082 = vpack.c.b16 %v910, %v906
    %v1083 = vpack.c.b16 %v911, %v907
    %v1084 = vpack.c.b16 %v912, %v908
    %v1085 = vpack.c.b16 %v913, %v909
    %v1086 = vpack.c.b16 %v918, %v914
    %v1087 = vpack.c.b16 %v919, %v915
    %v1088 = vpack.c.b16 %v920, %v916
    %v1089 = vpack.c.b16 %v921, %v917
    %v1090 = vpack.c.b16 %v926, %v922
    %v1091 = vpack.c.b16 %v927, %v923
    %v1092 = vpack.c.b16 %v928, %v924
    %v1093 = vpack.c.b16 %v929, %v925
    %v1094 = vpack.c.b16 %v934, %v930
    %v1095 = vpack.c.b16 %v935, %v931
    %v1096 = vpack.c.b16 %v936, %v932
    %v1097 = vpack.c.b16 %v937, %v933
    %v1098 = vpack.c.b16 %v942, %v938
    %v1099 = vpack.c.b16 %v943, %v939
    %v1100 = vpack.c.b16 %v944, %v940
    %v1101 = vpack.c.b16 %v945, %v941
    %v1102 = vpack.c.b16 %v950, %v946
    %v1103 = vpack.c.b16 %v951, %v947
    %v1104 = vpack.c.b16 %v952, %v948
    %v1105 = vpack.c.b16 %v953, %v949
    %v1106 = vpack.c.b16 %v958, %v954
    %v1107 = vpack.c.b16 %v959, %v955
    %v1108 = vpack.c.b16 %v960, %v956
    %v1109 = vpack.c.b16 %v961, %v957
    %v1110 = vpack.c.b16 %v966, %v962
    %v1111 = vpack.c.b16 %v967, %v963
    %v1112 = vpack.c.b16 %v968, %v964
    %v1113 = vpack.c.b16 %v969, %v965
    %v1114 = vpack.c.b16 %v974, %v970
    %v1115 = vpack.c.b16 %v975, %v971
    %v1116 = vpack.c.b16 %v976, %v972
    %v1117 = vpack.c.b16 %v977, %v973
    %v1118 = vpack.c.b16 %v982, %v978
    %v1119 = vpack.c.b16 %v983, %v979
    %v1120 = vpack.c.b16 %v984, %v980
    %v1121 = vpack.c.b16 %v985, %v981
    %v1122 = vpack.c.b16 %v990, %v986
    %v1123 = vpack.c.b16 %v991, %v987
    %v1124 = vpack.c.b16 %v992, %v988
    %v1125 = vpack.c.b16 %v993, %v989
    %v1126 = vpack.c.b16 %v998, %v994
    %v1127 = vpack.c.b16 %v999, %v995
    %v1128 = vpack.c.b16 %v1000, %v996
    %v1129 = vpack.c.b16 %v1001, %v997
    %1258 = vmatprep.subr.bf16.mxu0 %v1031
    %1259 = vmatpush1.bf16.msra.mxu0 %v1030
    %1260 = vmatprep.subr.bf16.mxu0 %v1027
    %1261 = vmatpush1.bf16.msra.mxu0 %v1026
    %1262 = vmatprep.subr.bf16.mxu0 %v1023
    %1263 = vmatpush1.bf16.msra.mxu0 %v1022
    %1264 = vmatprep.subr.bf16.mxu0 %v1019
    %1265 = vmatpush1.bf16.msra.mxu0 %v1018
    %1266 = vmatprep.subr.bf16.mxu0 %v1015
    %1267 = vmatpush1.bf16.msra.mxu0 %v1014
    %1268 = vmatprep.subr.bf16.mxu0 %v1011
    %1269 = vmatpush1.bf16.msra.mxu0 %v1010
    %1270 = vmatprep.subr.bf16.mxu0 %v1007
    %1271 = vmatpush1.bf16.msra.mxu0 %v1006
    %1272 = vmatprep.subr.bf16.mxu0 %v1003
    %1273 = vmatpush1.bf16.msra.mxu0 %v1002
    %1274 = vmatprep.subr.bf16.mxu0 %v1063
    %1275 = vmatpush2.bf16.msra.mxu0 %v1062
    %1276 = vmatprep.subr.bf16.mxu0 %v1059
    %1277 = vmatpush2.bf16.msra.mxu0 %v1058
    %1278 = vmatprep.subr.bf16.mxu0 %v1055
    %1279 = vmatpush2.bf16.msra.mxu0 %v1054
    %1280 = vmatprep.subr.bf16.mxu0 %v1051
    %1281 = vmatpush2.bf16.msra.mxu0 %v1050
    %1282 = vmatprep.subr.bf16.mxu0 %v1047
    %1283 = vmatpush2.bf16.msra.mxu0 %v1046
    %1284 = vmatprep.subr.bf16.mxu0 %v1043
    %1285 = vmatpush2.bf16.msra.mxu0 %v1042
    %1286 = vmatprep.subr.bf16.mxu0 %v1039
    %1287 = vmatpush2.bf16.msra.mxu0 %v1038
    %1288 = vmatprep.subr.bf16.mxu0 %v1035
    %1289 = vmatpush2.bf16.msra.mxu0 %v1034
    %1290 = vmatprep.mubr.bf16.mxu0 %v465
    %1291 = vmatmul.mubr.bf16.gmra.mxu0 %v464
    %v1292 = vpop.f32.mrf.mxu0
    %v1293 = vadd.f32 %v601, %v1292
    %v1294 = vpop.f32.mrf.mxu0
    %v1295 = vadd.f32 %v605, %v1294
    %v1296 = vpop.f32.mrf.mxu0
    %v1297 = vadd.f32 %v601, %v1296
    %v1298 = vpop.f32.mrf.mxu0
    %v1299 = vadd.f32 %v605, %v1298
    %1300 = vdwg.mxu0
    %1301 = vmatprep.subr.bf16.mxu0 %v1095
    %1302 = vmatpush1.bf16.msra.mxu0 %v1094
    %1303 = vmatprep.subr.bf16.mxu0 %v1091
    %1304 = vmatpush1.bf16.msra.mxu0 %v1090
    %1305 = vmatprep.subr.bf16.mxu0 %v1087
    %1306 = vmatpush1.bf16.msra.mxu0 %v1086
    %1307 = vmatprep.subr.bf16.mxu0 %v1083
    %1308 = vmatpush1.bf16.msra.mxu0 %v1082
    %1309 = vmatprep.subr.bf16.mxu0 %v1079
    %1310 = vmatpush1.bf16.msra.mxu0 %v1078
    %1311 = vmatprep.subr.bf16.mxu0 %v1075
    %1312 = vmatpush1.bf16.msra.mxu0 %v1074
    %1313 = vmatprep.subr.bf16.mxu0 %v1071
    %1314 = vmatpush1.bf16.msra.mxu0 %v1070
    %1315 = vmatprep.subr.bf16.mxu0 %v1067
    %1316 = vmatpush1.bf16.msra.mxu0 %v1066
    %1317 = vmatprep.subr.bf16.mxu0 %v1127
    %1318 = vmatpush2.bf16.msra.mxu0 %v1126
    %1319 = vmatprep.subr.bf16.mxu0 %v1123
    %1320 = vmatpush2.bf16.msra.mxu0 %v1122
    %1321 = vmatprep.subr.bf16.mxu0 %v1119
    %1322 = vmatpush2.bf16.msra.mxu0 %v1118
    %1323 = vmatprep.subr.bf16.mxu0 %v1115
    %1324 = vmatpush2.bf16.msra.mxu0 %v1114
    %1325 = vmatprep.subr.bf16.mxu0 %v1111
    %1326 = vmatpush2.bf16.msra.mxu0 %v1110
    %1327 = vmatprep.subr.bf16.mxu0 %v1107
    %1328 = vmatpush2.bf16.msra.mxu0 %v1106
    %1329 = vmatprep.subr.bf16.mxu0 %v1103
    %1330 = vmatpush2.bf16.msra.mxu0 %v1102
    %1331 = vmatprep.subr.bf16.mxu0 %v1099
    %1332 = vmatpush2.bf16.msra.mxu0 %v1098
    %1333 = vmatprep.mubr.bf16.mxu0 %v467
    %1334 = vmatmul.mubr.bf16.gmra.mxu0 %v466
    %v1335 = vpop.f32.mrf.mxu0
    %v1336 = vadd.f32 %v1293, %v1335
    %v1337 = vpop.f32.mrf.mxu0
    %v1338 = vadd.f32 %v1295, %v1337
    %v1339 = vpop.f32.mrf.mxu0
    %v1340 = vadd.f32 %v1297, %v1339
    %v1341 = vpop.f32.mrf.mxu0
    %v1342 = vadd.f32 %v1299, %v1341
    %1343 = vdwg.mxu0
    %1344 = vmatprep.subr.bf16.mxu0 %v1033
    %1345 = vmatpush1.bf16.msra.mxu0 %v1032
    %1346 = vmatprep.subr.bf16.mxu0 %v1029
    %1347 = vmatpush1.bf16.msra.mxu0 %v1028
    %1348 = vmatprep.subr.bf16.mxu0 %v1025
    %1349 = vmatpush1.bf16.msra.mxu0 %v1024
    %1350 = vmatprep.subr.bf16.mxu0 %v1021
    %1351 = vmatpush1.bf16.msra.mxu0 %v1020
    %1352 = vmatprep.subr.bf16.mxu0 %v1017
    %1353 = vmatpush1.bf16.msra.mxu0 %v1016
    %1354 = vmatprep.subr.bf16.mxu0 %v1013
    %1355 = vmatpush1.bf16.msra.mxu0 %v1012
    %1356 = vmatprep.subr.bf16.mxu0 %v1009
    %1357 = vmatpush1.bf16.msra.mxu0 %v1008
    %1358 = vmatprep.subr.bf16.mxu0 %v1005
    %1359 = vmatpush1.bf16.msra.mxu0 %v1004
    %1360 = vmatprep.subr.bf16.mxu0 %v1065
    %1361 = vmatpush2.bf16.msra.mxu0 %v1064
    %1362 = vmatprep.subr.bf16.mxu0 %v1061
    %1363 = vmatpush2.bf16.msra.mxu0 %v1060
    %1364 = vmatprep.subr.bf16.mxu0 %v1057
    %1365 = vmatpush2.bf16.msra.mxu0 %v1056
    %1366 = vmatprep.subr.bf16.mxu0 %v1053
    %1367 = vmatpush2.bf16.msra.mxu0 %v1052
    %1368 = vmatprep.subr.bf16.mxu0 %v1049
    %1369 = vmatpush2.bf16.msra.mxu0 %v1048
    %1370 = vmatprep.subr.bf16.mxu0 %v1045
    %1371 = vmatpush2.bf16.msra.mxu0 %v1044
    %1372 = vmatprep.subr.bf16.mxu0 %v1041
    %1373 = vmatpush2.bf16.msra.mxu0 %v1040
    %1374 = vmatprep.subr.bf16.mxu0 %v1037
    %1375 = vmatpush2.bf16.msra.mxu0 %v1036
    %1376 = vmatprep.mubr.bf16.mxu0 %v465
    %1377 = vmatmul.mubr.bf16.gmra.mxu0 %v464
    %v1378 = vpop.f32.mrf.mxu0
    %v1379 = vadd.f32 %v609, %v1378
    %v1380 = vpop.f32.mrf.mxu0
    %v1381 = vadd.f32 %v613, %v1380
    %v1382 = vpop.f32.mrf.mxu0
    %v1383 = vadd.f32 %v609, %v1382
    %v1384 = vpop.f32.mrf.mxu0
    %v1385 = vadd.f32 %v613, %v1384
    %1386 = vdwg.mxu0
    %1387 = vmatprep.subr.bf16.mxu0 %v1097
    %1388 = vmatpush1.bf16.msra.mxu0 %v1096
    %1389 = vmatprep.subr.bf16.mxu0 %v1093
    %1390 = vmatpush1.bf16.msra.mxu0 %v1092
    %1391 = vmatprep.subr.bf16.mxu0 %v1089
    %1392 = vmatpush1.bf16.msra.mxu0 %v1088
    %1393 = vmatprep.subr.bf16.mxu0 %v1085
    %1394 = vmatpush1.bf16.msra.mxu0 %v1084
    %1395 = vmatprep.subr.bf16.mxu0 %v1081
    %1396 = vmatpush1.bf16.msra.mxu0 %v1080
    %1397 = vmatprep.subr.bf16.mxu0 %v1077
    %1398 = vmatpush1.bf16.msra.mxu0 %v1076
    %1399 = vmatprep.subr.bf16.mxu0 %v1073
    %1400 = vmatpush1.bf16.msra.mxu0 %v1072
    %1401 = vmatprep.subr.bf16.mxu0 %v1069
    %1402 = vmatpush1.bf16.msra.mxu0 %v1068
    %1403 = vmatprep.subr.bf16.mxu0 %v1129
    %1404 = vmatpush2.bf16.msra.mxu0 %v1128
    %1405 = vmatprep.subr.bf16.mxu0 %v1125
    %1406 = vmatpush2.bf16.msra.mxu0 %v1124
    %1407 = vmatprep.subr.bf16.mxu0 %v1121
    %1408 = vmatpush2.bf16.msra.mxu0 %v1120
    %1409 = vmatprep.subr.bf16.mxu0 %v1117
    %1410 = vmatpush2.bf16.msra.mxu0 %v1116
    %1411 = vmatprep.subr.bf16.mxu0 %v1113
    %1412 = vmatpush2.bf16.msra.mxu0 %v1112
    %1413 = vmatprep.subr.bf16.mxu0 %v1109
    %1414 = vmatpush2.bf16.msra.mxu0 %v1108
    %1415 = vmatprep.subr.bf16.mxu0 %v1105
    %1416 = vmatpush2.bf16.msra.mxu0 %v1104
    %1417 = vmatprep.subr.bf16.mxu0 %v1101
    %1418 = vmatpush2.bf16.msra.mxu0 %v1100
    %1419 = vmatprep.mubr.bf16.mxu0 %v467
    %1420 = vmatmul.mubr.bf16.gmra.mxu0 %v466
    %v1421 = vpop.f32.mrf.mxu0
    %v1422 = vadd.f32 %v1379, %v1421
    %v1423 = vpop.f32.mrf.mxu0
    %v1424 = vadd.f32 %v1381, %v1423
    %v1425 = vpop.f32.mrf.mxu0
    %v1426 = vadd.f32 %v1383, %v1425
    %v1427 = vpop.f32.mrf.mxu0
    %v1428 = vadd.f32 %v1385, %v1427
    %1429 = vdwg.mxu0
    %v1430 = vmax.f32 %v1336, 0.0
    %v1431 = vmax.f32 %v1338, 0.0
    %v1432 = vmax.f32 %v1422, 0.0
    %v1433 = vmax.f32 %v1424, 0.0
    %v1434 = vmax.f32 %v1340, 0.0
    %v1435 = vmax.f32 %v1342, 0.0
    %v1436 = vmax.f32 %v1426, 0.0
    %v1437 = vmax.f32 %v1428, 0.0
    %v1438 = vpack.c.bf16 %v1434, %v1430
    %v1439 = vpack.c.bf16 %v1435, %v1431
    %v1440 = vpack.c.bf16 %v1436, %v1432
    %v1441 = vpack.c.bf16 %v1437, %v1433
    %v1442 = vld [vmem:[#allocation11] sm:$0xff]
    %v1443 = vld [vmem:[#allocation11 + $0x8] sm:$0xff]
    %v1444 = vld [vmem:[#allocation11 + $0x10] sm:$0xff]
    %v1445 = vld [vmem:[#allocation11 + $0x18] sm:$0xff]
    %v1446 = vld [vmem:[#allocation11 + $0x20] sm:$0xff]
    %v1447 = vld [vmem:[#allocation11 + $0x28] sm:$0xff]
    %v1448 = vld [vmem:[#allocation11 + $0x30] sm:$0xff]
    %v1449 = vld [vmem:[#allocation11 + $0x38] sm:$0xff]
    %v1450 = vld [vmem:[#allocation11 + $0x40] sm:$0xff]
    %v1451 = vld [vmem:[#allocation11 + $0x48] sm:$0xff]
    %v1452 = vld [vmem:[#allocation11 + $0x50] sm:$0xff]
    %v1453 = vld [vmem:[#allocation11 + $0x58] sm:$0xff]
    %v1454 = vld [vmem:[#allocation11 + $0x60] sm:$0xff]
    %v1455 = vld [vmem:[#allocation11 + $0x68] sm:$0xff]
    %v1456 = vld [vmem:[#allocation11 + $0x70] sm:$0xff]
    %v1457 = vld [vmem:[#allocation11 + $0x78] sm:$0xff]
    %v1458 = vld [vmem:[#allocation11 + $0x80] sm:$0xff]
    %v1459 = vld [vmem:[#allocation11 + $0x88] sm:$0xff]
    %v1460 = vld [vmem:[#allocation11 + $0x90] sm:$0xff]
    %v1461 = vld [vmem:[#allocation11 + $0x98] sm:$0xff]
    %v1462 = vld [vmem:[#allocation11 + $0xa0] sm:$0xff]
    %v1463 = vld [vmem:[#allocation11 + $0xa8] sm:$0xff]
    %v1464 = vld [vmem:[#allocation11 + $0xb0] sm:$0xff]
    %v1465 = vld [vmem:[#allocation11 + $0xb8] sm:$0xff]
    %v1466 = vld [vmem:[#allocation11 + $0xc0] sm:$0xff]
    %v1467 = vld [vmem:[#allocation11 + $0xc8] sm:$0xff]
    %v1468 = vld [vmem:[#allocation11 + $0xd0] sm:$0xff]
    %v1469 = vld [vmem:[#allocation11 + $0xd8] sm:$0xff]
    %v1470 = vld [vmem:[#allocation11 + $0xe0] sm:$0xff]
    %v1471 = vld [vmem:[#allocation11 + $0xe8] sm:$0xff]
    %v1472 = vld [vmem:[#allocation11 + $0xf0] sm:$0xff]
    %v1473 = vld [vmem:[#allocation11 + $0xf8] sm:$0xff]
    %v1474 = vld [vmem:[#allocation11 + $0x100] sm:$0xff]
    %v1475 = vld [vmem:[#allocation11 + $0x108] sm:$0xff]
    %v1476 = vld [vmem:[#allocation11 + $0x110] sm:$0xff]
    %v1477 = vld [vmem:[#allocation11 + $0x118] sm:$0xff]
    %v1478 = vld [vmem:[#allocation11 + $0x120] sm:$0xff]
    %v1479 = vld [vmem:[#allocation11 + $0x128] sm:$0xff]
    %v1480 = vld [vmem:[#allocation11 + $0x130] sm:$0xff]
    %v1481 = vld [vmem:[#allocation11 + $0x138] sm:$0xff]
    %v1482 = vld [vmem:[#allocation11 + $0x140] sm:$0xff]
    %v1483 = vld [vmem:[#allocation11 + $0x148] sm:$0xff]
    %v1484 = vld [vmem:[#allocation11 + $0x150] sm:$0xff]
    %v1485 = vld [vmem:[#allocation11 + $0x158] sm:$0xff]
    %v1486 = vld [vmem:[#allocation11 + $0x160] sm:$0xff]
    %v1487 = vld [vmem:[#allocation11 + $0x168] sm:$0xff]
    %v1488 = vld [vmem:[#allocation11 + $0x170] sm:$0xff]
    %v1489 = vld [vmem:[#allocation11 + $0x178] sm:$0xff]
    %v1490 = vld [vmem:[#allocation11 + $0x180] sm:$0xff]
    %v1491 = vld [vmem:[#allocation11 + $0x188] sm:$0xff]
    %v1492 = vld [vmem:[#allocation11 + $0x190] sm:$0xff]
    %v1493 = vld [vmem:[#allocation11 + $0x198] sm:$0xff]
    %v1494 = vld [vmem:[#allocation11 + $0x1a0] sm:$0xff]
    %v1495 = vld [vmem:[#allocation11 + $0x1a8] sm:$0xff]
    %v1496 = vld [vmem:[#allocation11 + $0x1b0] sm:$0xff]
    %v1497 = vld [vmem:[#allocation11 + $0x1b8] sm:$0xff]
    %v1498 = vld [vmem:[#allocation11 + $0x1c0] sm:$0xff]
    %v1499 = vld [vmem:[#allocation11 + $0x1c8] sm:$0xff]
    %v1500 = vld [vmem:[#allocation11 + $0x1d0] sm:$0xff]
    %v1501 = vld [vmem:[#allocation11 + $0x1d8] sm:$0xff]
    %v1502 = vld [vmem:[#allocation11 + $0x1e0] sm:$0xff]
    %v1503 = vld [vmem:[#allocation11 + $0x1e8] sm:$0xff]
    %v1504 = vld [vmem:[#allocation11 + $0x1f0] sm:$0xff]
    %v1505 = vld [vmem:[#allocation11 + $0x1f8] sm:$0xff]
    %v1506 = vld [vmem:[#allocation11 + $0x200] sm:$0xff]
    %v1507 = vld [vmem:[#allocation11 + $0x208] sm:$0xff]
    %v1508 = vld [vmem:[#allocation11 + $0x210] sm:$0xff]
    %v1509 = vld [vmem:[#allocation11 + $0x218] sm:$0xff]
    %v1510 = vld [vmem:[#allocation11 + $0x220] sm:$0xff]
    %v1511 = vld [vmem:[#allocation11 + $0x228] sm:$0xff]
    %v1512 = vld [vmem:[#allocation11 + $0x230] sm:$0xff]
    %v1513 = vld [vmem:[#allocation11 + $0x238] sm:$0xff]
    %v1514 = vld [vmem:[#allocation11 + $0x240] sm:$0xff]
    %v1515 = vld [vmem:[#allocation11 + $0x248] sm:$0xff]
    %v1516 = vld [vmem:[#allocation11 + $0x250] sm:$0xff]
    %v1517 = vld [vmem:[#allocation11 + $0x258] sm:$0xff]
    %v1518 = vld [vmem:[#allocation11 + $0x260] sm:$0xff]
    %v1519 = vld [vmem:[#allocation11 + $0x268] sm:$0xff]
    %v1520 = vld [vmem:[#allocation11 + $0x270] sm:$0xff]
    %v1521 = vld [vmem:[#allocation11 + $0x278] sm:$0xff]
    %v1522 = vld [vmem:[#allocation11 + $0x280] sm:$0xff]
    %v1523 = vld [vmem:[#allocation11 + $0x288] sm:$0xff]
    %v1524 = vld [vmem:[#allocation11 + $0x290] sm:$0xff]
    %v1525 = vld [vmem:[#allocation11 + $0x298] sm:$0xff]
    %v1526 = vld [vmem:[#allocation11 + $0x2a0] sm:$0xff]
    %v1527 = vld [vmem:[#allocation11 + $0x2a8] sm:$0xff]
    %v1528 = vld [vmem:[#allocation11 + $0x2b0] sm:$0xff]
    %v1529 = vld [vmem:[#allocation11 + $0x2b8] sm:$0xff]
    %v1530 = vld [vmem:[#allocation11 + $0x2c0] sm:$0xff]
    %v1531 = vld [vmem:[#allocation11 + $0x2c8] sm:$0xff]
    %v1532 = vld [vmem:[#allocation11 + $0x2d0] sm:$0xff]
    %v1533 = vld [vmem:[#allocation11 + $0x2d8] sm:$0xff]
    %v1534 = vld [vmem:[#allocation11 + $0x2e0] sm:$0xff]
    %v1535 = vld [vmem:[#allocation11 + $0x2e8] sm:$0xff]
    %v1536 = vld [vmem:[#allocation11 + $0x2f0] sm:$0xff]
    %v1537 = vld [vmem:[#allocation11 + $0x2f8] sm:$0xff]
    %v1538 = vld [vmem:[#allocation11 + $0x300] sm:$0xff]
    %v1539 = vld [vmem:[#allocation11 + $0x308] sm:$0xff]
    %v1540 = vld [vmem:[#allocation11 + $0x310] sm:$0xff]
    %v1541 = vld [vmem:[#allocation11 + $0x318] sm:$0xff]
    %v1542 = vld [vmem:[#allocation11 + $0x320] sm:$0xff]
    %v1543 = vld [vmem:[#allocation11 + $0x328] sm:$0xff]
    %v1544 = vld [vmem:[#allocation11 + $0x330] sm:$0xff]
    %v1545 = vld [vmem:[#allocation11 + $0x338] sm:$0xff]
    %v1546 = vld [vmem:[#allocation11 + $0x340] sm:$0xff]
    %v1547 = vld [vmem:[#allocation11 + $0x348] sm:$0xff]
    %v1548 = vld [vmem:[#allocation11 + $0x350] sm:$0xff]
    %v1549 = vld [vmem:[#allocation11 + $0x358] sm:$0xff]
    %v1550 = vld [vmem:[#allocation11 + $0x360] sm:$0xff]
    %v1551 = vld [vmem:[#allocation11 + $0x368] sm:$0xff]
    %v1552 = vld [vmem:[#allocation11 + $0x370] sm:$0xff]
    %v1553 = vld [vmem:[#allocation11 + $0x378] sm:$0xff]
    %v1554 = vld [vmem:[#allocation11 + $0x380] sm:$0xff]
    %v1555 = vld [vmem:[#allocation11 + $0x388] sm:$0xff]
    %v1556 = vld [vmem:[#allocation11 + $0x390] sm:$0xff]
    %v1557 = vld [vmem:[#allocation11 + $0x398] sm:$0xff]
    %v1558 = vld [vmem:[#allocation11 + $0x3a0] sm:$0xff]
    %v1559 = vld [vmem:[#allocation11 + $0x3a8] sm:$0xff]
    %v1560 = vld [vmem:[#allocation11 + $0x3b0] sm:$0xff]
    %v1561 = vld [vmem:[#allocation11 + $0x3b8] sm:$0xff]
    %v1562 = vld [vmem:[#allocation11 + $0x3c0] sm:$0xff]
    %v1563 = vld [vmem:[#allocation11 + $0x3c8] sm:$0xff]
    %v1564 = vld [vmem:[#allocation11 + $0x3d0] sm:$0xff]
    %v1565 = vld [vmem:[#allocation11 + $0x3d8] sm:$0xff]
    %v1566 = vld [vmem:[#allocation11 + $0x3e0] sm:$0xff]
    %v1567 = vld [vmem:[#allocation11 + $0x3e8] sm:$0xff]
    %v1568 = vld [vmem:[#allocation11 + $0x3f0] sm:$0xff]
    %v1569 = vld [vmem:[#allocation11 + $0x3f8] sm:$0xff]
    %v1570 = vld [vmem:[#allocation11 + $0x400] sm:$0xff]
    %v1571 = vld [vmem:[#allocation11 + $0x408] sm:$0xff]
    %v1572 = vld [vmem:[#allocation11 + $0x410] sm:$0xff]
    %v1573 = vld [vmem:[#allocation11 + $0x418] sm:$0xff]
    %v1574 = vld [vmem:[#allocation11 + $0x420] sm:$0xff]
    %v1575 = vld [vmem:[#allocation11 + $0x428] sm:$0xff]
    %v1576 = vld [vmem:[#allocation11 + $0x430] sm:$0xff]
    %v1577 = vld [vmem:[#allocation11 + $0x438] sm:$0xff]
    %v1578 = vld [vmem:[#allocation11 + $0x440] sm:$0xff]
    %v1579 = vld [vmem:[#allocation11 + $0x448] sm:$0xff]
    %v1580 = vld [vmem:[#allocation11 + $0x450] sm:$0xff]
    %v1581 = vld [vmem:[#allocation11 + $0x458] sm:$0xff]
    %v1582 = vld [vmem:[#allocation11 + $0x460] sm:$0xff]
    %v1583 = vld [vmem:[#allocation11 + $0x468] sm:$0xff]
    %v1584 = vld [vmem:[#allocation11 + $0x470] sm:$0xff]
    %v1585 = vld [vmem:[#allocation11 + $0x478] sm:$0xff]
    %v1586 = vld [vmem:[#allocation11 + $0x480] sm:$0xff]
    %v1587 = vld [vmem:[#allocation11 + $0x488] sm:$0xff]
    %v1588 = vld [vmem:[#allocation11 + $0x490] sm:$0xff]
    %v1589 = vld [vmem:[#allocation11 + $0x498] sm:$0xff]
    %v1590 = vld [vmem:[#allocation11 + $0x4a0] sm:$0xff]
    %v1591 = vld [vmem:[#allocation11 + $0x4a8] sm:$0xff]
    %v1592 = vld [vmem:[#allocation11 + $0x4b0] sm:$0xff]
    %v1593 = vld [vmem:[#allocation11 + $0x4b8] sm:$0xff]
    %v1594 = vld [vmem:[#allocation11 + $0x4c0] sm:$0xff]
    %v1595 = vld [vmem:[#allocation11 + $0x4c8] sm:$0xff]
    %v1596 = vld [vmem:[#allocation11 + $0x4d0] sm:$0xff]
    %v1597 = vld [vmem:[#allocation11 + $0x4d8] sm:$0xff]
    %v1598 = vld [vmem:[#allocation11 + $0x4e0] sm:$0xff]
    %v1599 = vld [vmem:[#allocation11 + $0x4e8] sm:$0xff]
    %v1600 = vld [vmem:[#allocation11 + $0x4f0] sm:$0xff]
    %v1601 = vld [vmem:[#allocation11 + $0x4f8] sm:$0xff]
    %v1602 = vld [vmem:[#allocation11 + $0x500] sm:$0xff]
    %v1603 = vld [vmem:[#allocation11 + $0x508] sm:$0xff]
    %v1604 = vld [vmem:[#allocation11 + $0x510] sm:$0xff]
    %v1605 = vld [vmem:[#allocation11 + $0x518] sm:$0xff]
    %v1606 = vld [vmem:[#allocation11 + $0x520] sm:$0xff]
    %v1607 = vld [vmem:[#allocation11 + $0x528] sm:$0xff]
    %v1608 = vld [vmem:[#allocation11 + $0x530] sm:$0xff]
    %v1609 = vld [vmem:[#allocation11 + $0x538] sm:$0xff]
    %v1610 = vld [vmem:[#allocation11 + $0x540] sm:$0xff]
    %v1611 = vld [vmem:[#allocation11 + $0x548] sm:$0xff]
    %v1612 = vld [vmem:[#allocation11 + $0x550] sm:$0xff]
    %v1613 = vld [vmem:[#allocation11 + $0x558] sm:$0xff]
    %v1614 = vld [vmem:[#allocation11 + $0x560] sm:$0xff]
    %v1615 = vld [vmem:[#allocation11 + $0x568] sm:$0xff]
    %v1616 = vld [vmem:[#allocation11 + $0x570] sm:$0xff]
    %v1617 = vld [vmem:[#allocation11 + $0x578] sm:$0xff]
    %v1618 = vld [vmem:[#allocation11 + $0x580] sm:$0xff]
    %v1619 = vld [vmem:[#allocation11 + $0x588] sm:$0xff]
    %v1620 = vld [vmem:[#allocation11 + $0x590] sm:$0xff]
    %v1621 = vld [vmem:[#allocation11 + $0x598] sm:$0xff]
    %v1622 = vld [vmem:[#allocation11 + $0x5a0] sm:$0xff]
    %v1623 = vld [vmem:[#allocation11 + $0x5a8] sm:$0xff]
    %v1624 = vld [vmem:[#allocation11 + $0x5b0] sm:$0xff]
    %v1625 = vld [vmem:[#allocation11 + $0x5b8] sm:$0xff]
    %v1626 = vld [vmem:[#allocation11 + $0x5c0] sm:$0xff]
    %v1627 = vld [vmem:[#allocation11 + $0x5c8] sm:$0xff]
    %v1628 = vld [vmem:[#allocation11 + $0x5d0] sm:$0xff]
    %v1629 = vld [vmem:[#allocation11 + $0x5d8] sm:$0xff]
    %v1630 = vld [vmem:[#allocation11 + $0x5e0] sm:$0xff]
    %v1631 = vld [vmem:[#allocation11 + $0x5e8] sm:$0xff]
    %v1632 = vld [vmem:[#allocation11 + $0x5f0] sm:$0xff]
    %v1633 = vld [vmem:[#allocation11 + $0x5f8] sm:$0xff]
    %v1634 = vld [vmem:[#allocation11 + $0x600] sm:$0xff]
    %v1635 = vld [vmem:[#allocation11 + $0x608] sm:$0xff]
    %v1636 = vld [vmem:[#allocation11 + $0x610] sm:$0xff]
    %v1637 = vld [vmem:[#allocation11 + $0x618] sm:$0xff]
    %v1638 = vld [vmem:[#allocation11 + $0x620] sm:$0xff]
    %v1639 = vld [vmem:[#allocation11 + $0x628] sm:$0xff]
    %v1640 = vld [vmem:[#allocation11 + $0x630] sm:$0xff]
    %v1641 = vld [vmem:[#allocation11 + $0x638] sm:$0xff]
    %v1642 = vld [vmem:[#allocation11 + $0x640] sm:$0xff]
    %v1643 = vld [vmem:[#allocation11 + $0x648] sm:$0xff]
    %v1644 = vld [vmem:[#allocation11 + $0x650] sm:$0xff]
    %v1645 = vld [vmem:[#allocation11 + $0x658] sm:$0xff]
    %v1646 = vld [vmem:[#allocation11 + $0x660] sm:$0xff]
    %v1647 = vld [vmem:[#allocation11 + $0x668] sm:$0xff]
    %v1648 = vld [vmem:[#allocation11 + $0x670] sm:$0xff]
    %v1649 = vld [vmem:[#allocation11 + $0x678] sm:$0xff]
    %v1650 = vld [vmem:[#allocation11 + $0x680] sm:$0xff]
    %v1651 = vld [vmem:[#allocation11 + $0x688] sm:$0xff]
    %v1652 = vld [vmem:[#allocation11 + $0x690] sm:$0xff]
    %v1653 = vld [vmem:[#allocation11 + $0x698] sm:$0xff]
    %v1654 = vld [vmem:[#allocation11 + $0x6a0] sm:$0xff]
    %v1655 = vld [vmem:[#allocation11 + $0x6a8] sm:$0xff]
    %v1656 = vld [vmem:[#allocation11 + $0x6b0] sm:$0xff]
    %v1657 = vld [vmem:[#allocation11 + $0x6b8] sm:$0xff]
    %v1658 = vld [vmem:[#allocation11 + $0x6c0] sm:$0xff]
    %v1659 = vld [vmem:[#allocation11 + $0x6c8] sm:$0xff]
    %v1660 = vld [vmem:[#allocation11 + $0x6d0] sm:$0xff]
    %v1661 = vld [vmem:[#allocation11 + $0x6d8] sm:$0xff]
    %v1662 = vld [vmem:[#allocation11 + $0x6e0] sm:$0xff]
    %v1663 = vld [vmem:[#allocation11 + $0x6e8] sm:$0xff]
    %v1664 = vld [vmem:[#allocation11 + $0x6f0] sm:$0xff]
    %v1665 = vld [vmem:[#allocation11 + $0x6f8] sm:$0xff]
    %v1666 = vld [vmem:[#allocation11 + $0x700] sm:$0xff]
    %v1667 = vld [vmem:[#allocation11 + $0x708] sm:$0xff]
    %v1668 = vld [vmem:[#allocation11 + $0x710] sm:$0xff]
    %v1669 = vld [vmem:[#allocation11 + $0x718] sm:$0xff]
    %v1670 = vld [vmem:[#allocation11 + $0x720] sm:$0xff]
    %v1671 = vld [vmem:[#allocation11 + $0x728] sm:$0xff]
    %v1672 = vld [vmem:[#allocation11 + $0x730] sm:$0xff]
    %v1673 = vld [vmem:[#allocation11 + $0x738] sm:$0xff]
    %v1674 = vld [vmem:[#allocation11 + $0x740] sm:$0xff]
    %v1675 = vld [vmem:[#allocation11 + $0x748] sm:$0xff]
    %v1676 = vld [vmem:[#allocation11 + $0x750] sm:$0xff]
    %v1677 = vld [vmem:[#allocation11 + $0x758] sm:$0xff]
    %v1678 = vld [vmem:[#allocation11 + $0x760] sm:$0xff]
    %v1679 = vld [vmem:[#allocation11 + $0x768] sm:$0xff]
    %v1680 = vld [vmem:[#allocation11 + $0x770] sm:$0xff]
    %v1681 = vld [vmem:[#allocation11 + $0x778] sm:$0xff]
    %v1682 = vld [vmem:[#allocation11 + $0x780] sm:$0xff]
    %v1683 = vld [vmem:[#allocation11 + $0x788] sm:$0xff]
    %v1684 = vld [vmem:[#allocation11 + $0x790] sm:$0xff]
    %v1685 = vld [vmem:[#allocation11 + $0x798] sm:$0xff]
    %v1686 = vld [vmem:[#allocation11 + $0x7a0] sm:$0xff]
    %v1687 = vld [vmem:[#allocation11 + $0x7a8] sm:$0xff]
    %v1688 = vld [vmem:[#allocation11 + $0x7b0] sm:$0xff]
    %v1689 = vld [vmem:[#allocation11 + $0x7b8] sm:$0xff]
    %v1690 = vld [vmem:[#allocation11 + $0x7c0] sm:$0xff]
    %v1691 = vld [vmem:[#allocation11 + $0x7c8] sm:$0xff]
    %v1692 = vld [vmem:[#allocation11 + $0x7d0] sm:$0xff]
    %v1693 = vld [vmem:[#allocation11 + $0x7d8] sm:$0xff]
    %v1694 = vld [vmem:[#allocation11 + $0x7e0] sm:$0xff]
    %v1695 = vld [vmem:[#allocation11 + $0x7e8] sm:$0xff]
    %v1696 = vld [vmem:[#allocation11 + $0x7f0] sm:$0xff]
    %v1697 = vld [vmem:[#allocation11 + $0x7f8] sm:$0xff]
    %v1698 = vld [vmem:[#allocation11 + $0x800] sm:$0xff]
    %v1699 = vld [vmem:[#allocation11 + $0x808] sm:$0xff]
    %v1700 = vld [vmem:[#allocation11 + $0x810] sm:$0xff]
    %v1701 = vld [vmem:[#allocation11 + $0x818] sm:$0xff]
    %v1702 = vld [vmem:[#allocation11 + $0x820] sm:$0xff]
    %v1703 = vld [vmem:[#allocation11 + $0x828] sm:$0xff]
    %v1704 = vld [vmem:[#allocation11 + $0x830] sm:$0xff]
    %v1705 = vld [vmem:[#allocation11 + $0x838] sm:$0xff]
    %v1706 = vld [vmem:[#allocation11 + $0x840] sm:$0xff]
    %v1707 = vld [vmem:[#allocation11 + $0x848] sm:$0xff]
    %v1708 = vld [vmem:[#allocation11 + $0x850] sm:$0xff]
    %v1709 = vld [vmem:[#allocation11 + $0x858] sm:$0xff]
    %v1710 = vld [vmem:[#allocation11 + $0x860] sm:$0xff]
    %v1711 = vld [vmem:[#allocation11 + $0x868] sm:$0xff]
    %v1712 = vld [vmem:[#allocation11 + $0x870] sm:$0xff]
    %v1713 = vld [vmem:[#allocation11 + $0x878] sm:$0xff]
    %v1714 = vld [vmem:[#allocation11 + $0x880] sm:$0xff]
    %v1715 = vld [vmem:[#allocation11 + $0x888] sm:$0xff]
    %v1716 = vld [vmem:[#allocation11 + $0x890] sm:$0xff]
    %v1717 = vld [vmem:[#allocation11 + $0x898] sm:$0xff]
    %v1718 = vld [vmem:[#allocation11 + $0x8a0] sm:$0xff]
    %v1719 = vld [vmem:[#allocation11 + $0x8a8] sm:$0xff]
    %v1720 = vld [vmem:[#allocation11 + $0x8b0] sm:$0xff]
    %v1721 = vld [vmem:[#allocation11 + $0x8b8] sm:$0xff]
    %v1722 = vld [vmem:[#allocation11 + $0x8c0] sm:$0xff]
    %v1723 = vld [vmem:[#allocation11 + $0x8c8] sm:$0xff]
    %v1724 = vld [vmem:[#allocation11 + $0x8d0] sm:$0xff]
    %v1725 = vld [vmem:[#allocation11 + $0x8d8] sm:$0xff]
    %v1726 = vld [vmem:[#allocation11 + $0x8e0] sm:$0xff]
    %v1727 = vld [vmem:[#allocation11 + $0x8e8] sm:$0xff]
    %v1728 = vld [vmem:[#allocation11 + $0x8f0] sm:$0xff]
    %v1729 = vld [vmem:[#allocation11 + $0x8f8] sm:$0xff]
    %v1730 = vld [vmem:[#allocation11 + $0x900] sm:$0xff]
    %v1731 = vld [vmem:[#allocation11 + $0x908] sm:$0xff]
    %v1732 = vld [vmem:[#allocation11 + $0x910] sm:$0xff]
    %v1733 = vld [vmem:[#allocation11 + $0x918] sm:$0xff]
    %v1734 = vld [vmem:[#allocation11 + $0x920] sm:$0xff]
    %v1735 = vld [vmem:[#allocation11 + $0x928] sm:$0xff]
    %v1736 = vld [vmem:[#allocation11 + $0x930] sm:$0xff]
    %v1737 = vld [vmem:[#allocation11 + $0x938] sm:$0xff]
    %v1738 = vld [vmem:[#allocation11 + $0x940] sm:$0xff]
    %v1739 = vld [vmem:[#allocation11 + $0x948] sm:$0xff]
    %v1740 = vld [vmem:[#allocation11 + $0x950] sm:$0xff]
    %v1741 = vld [vmem:[#allocation11 + $0x958] sm:$0xff]
    %v1742 = vld [vmem:[#allocation11 + $0x960] sm:$0xff]
    %v1743 = vld [vmem:[#allocation11 + $0x968] sm:$0xff]
    %v1744 = vld [vmem:[#allocation11 + $0x970] sm:$0xff]
    %v1745 = vld [vmem:[#allocation11 + $0x978] sm:$0xff]
    %v1746 = vld [vmem:[#allocation11 + $0x980] sm:$0xff]
    %v1747 = vld [vmem:[#allocation11 + $0x988] sm:$0xff]
    %v1748 = vld [vmem:[#allocation11 + $0x990] sm:$0xff]
    %v1749 = vld [vmem:[#allocation11 + $0x998] sm:$0xff]
    %v1750 = vld [vmem:[#allocation11 + $0x9a0] sm:$0xff]
    %v1751 = vld [vmem:[#allocation11 + $0x9a8] sm:$0xff]
    %v1752 = vld [vmem:[#allocation11 + $0x9b0] sm:$0xff]
    %v1753 = vld [vmem:[#allocation11 + $0x9b8] sm:$0xff]
    %v1754 = vld [vmem:[#allocation11 + $0x9c0] sm:$0xff]
    %v1755 = vld [vmem:[#allocation11 + $0x9c8] sm:$0xff]
    %v1756 = vld [vmem:[#allocation11 + $0x9d0] sm:$0xff]
    %v1757 = vld [vmem:[#allocation11 + $0x9d8] sm:$0xff]
    %v1758 = vld [vmem:[#allocation11 + $0x9e0] sm:$0xff]
    %v1759 = vld [vmem:[#allocation11 + $0x9e8] sm:$0xff]
    %v1760 = vld [vmem:[#allocation11 + $0x9f0] sm:$0xff]
    %v1761 = vld [vmem:[#allocation11 + $0x9f8] sm:$0xff]
    %v1762 = vld [vmem:[#allocation11 + $0xa00] sm:$0xff]
    %v1763 = vld [vmem:[#allocation11 + $0xa08] sm:$0xff]
    %v1764 = vld [vmem:[#allocation11 + $0xa10] sm:$0xff]
    %v1765 = vld [vmem:[#allocation11 + $0xa18] sm:$0xff]
    %v1766 = vld [vmem:[#allocation11 + $0xa20] sm:$0xff]
    %v1767 = vld [vmem:[#allocation11 + $0xa28] sm:$0xff]
    %v1768 = vld [vmem:[#allocation11 + $0xa30] sm:$0xff]
    %v1769 = vld [vmem:[#allocation11 + $0xa38] sm:$0xff]
    %v1770 = vld [vmem:[#allocation11 + $0xa40] sm:$0xff]
    %v1771 = vld [vmem:[#allocation11 + $0xa48] sm:$0xff]
    %v1772 = vld [vmem:[#allocation11 + $0xa50] sm:$0xff]
    %v1773 = vld [vmem:[#allocation11 + $0xa58] sm:$0xff]
    %v1774 = vld [vmem:[#allocation11 + $0xa60] sm:$0xff]
    %v1775 = vld [vmem:[#allocation11 + $0xa68] sm:$0xff]
    %v1776 = vld [vmem:[#allocation11 + $0xa70] sm:$0xff]
    %v1777 = vld [vmem:[#allocation11 + $0xa78] sm:$0xff]
    %v1778 = vld [vmem:[#allocation11 + $0xa80] sm:$0xff]
    %v1779 = vld [vmem:[#allocation11 + $0xa88] sm:$0xff]
    %v1780 = vld [vmem:[#allocation11 + $0xa90] sm:$0xff]
    %v1781 = vld [vmem:[#allocation11 + $0xa98] sm:$0xff]
    %v1782 = vld [vmem:[#allocation11 + $0xaa0] sm:$0xff]
    %v1783 = vld [vmem:[#allocation11 + $0xaa8] sm:$0xff]
    %v1784 = vld [vmem:[#allocation11 + $0xab0] sm:$0xff]
    %v1785 = vld [vmem:[#allocation11 + $0xab8] sm:$0xff]
    %v1786 = vld [vmem:[#allocation11 + $0xac0] sm:$0xff]
    %v1787 = vld [vmem:[#allocation11 + $0xac8] sm:$0xff]
    %v1788 = vld [vmem:[#allocation11 + $0xad0] sm:$0xff]
    %v1789 = vld [vmem:[#allocation11 + $0xad8] sm:$0xff]
    %v1790 = vld [vmem:[#allocation11 + $0xae0] sm:$0xff]
    %v1791 = vld [vmem:[#allocation11 + $0xae8] sm:$0xff]
    %v1792 = vld [vmem:[#allocation11 + $0xaf0] sm:$0xff]
    %v1793 = vld [vmem:[#allocation11 + $0xaf8] sm:$0xff]
    %v1794 = vld [vmem:[#allocation11 + $0xb00] sm:$0xff]
    %v1795 = vld [vmem:[#allocation11 + $0xb08] sm:$0xff]
    %v1796 = vld [vmem:[#allocation11 + $0xb10] sm:$0xff]
    %v1797 = vld [vmem:[#allocation11 + $0xb18] sm:$0xff]
    %v1798 = vld [vmem:[#allocation11 + $0xb20] sm:$0xff]
    %v1799 = vld [vmem:[#allocation11 + $0xb28] sm:$0xff]
    %v1800 = vld [vmem:[#allocation11 + $0xb30] sm:$0xff]
    %v1801 = vld [vmem:[#allocation11 + $0xb38] sm:$0xff]
    %v1802 = vld [vmem:[#allocation11 + $0xb40] sm:$0xff]
    %v1803 = vld [vmem:[#allocation11 + $0xb48] sm:$0xff]
    %v1804 = vld [vmem:[#allocation11 + $0xb50] sm:$0xff]
    %v1805 = vld [vmem:[#allocation11 + $0xb58] sm:$0xff]
    %v1806 = vld [vmem:[#allocation11 + $0xb60] sm:$0xff]
    %v1807 = vld [vmem:[#allocation11 + $0xb68] sm:$0xff]
    %v1808 = vld [vmem:[#allocation11 + $0xb70] sm:$0xff]
    %v1809 = vld [vmem:[#allocation11 + $0xb78] sm:$0xff]
    %v1810 = vld [vmem:[#allocation11 + $0xb80] sm:$0xff]
    %v1811 = vld [vmem:[#allocation11 + $0xb88] sm:$0xff]
    %v1812 = vld [vmem:[#allocation11 + $0xb90] sm:$0xff]
    %v1813 = vld [vmem:[#allocation11 + $0xb98] sm:$0xff]
    %v1814 = vld [vmem:[#allocation11 + $0xba0] sm:$0xff]
    %v1815 = vld [vmem:[#allocation11 + $0xba8] sm:$0xff]
    %v1816 = vld [vmem:[#allocation11 + $0xbb0] sm:$0xff]
    %v1817 = vld [vmem:[#allocation11 + $0xbb8] sm:$0xff]
    %v1818 = vld [vmem:[#allocation11 + $0xbc0] sm:$0xff]
    %v1819 = vld [vmem:[#allocation11 + $0xbc8] sm:$0xff]
    %v1820 = vld [vmem:[#allocation11 + $0xbd0] sm:$0xff]
    %v1821 = vld [vmem:[#allocation11 + $0xbd8] sm:$0xff]
    %v1822 = vld [vmem:[#allocation11 + $0xbe0] sm:$0xff]
    %v1823 = vld [vmem:[#allocation11 + $0xbe8] sm:$0xff]
    %v1824 = vld [vmem:[#allocation11 + $0xbf0] sm:$0xff]
    %v1825 = vld [vmem:[#allocation11 + $0xbf8] sm:$0xff]
    %v1826 = vld [vmem:[#allocation11 + $0xc00] sm:$0xff]
    %v1827 = vld [vmem:[#allocation11 + $0xc08] sm:$0xff]
    %v1828 = vld [vmem:[#allocation11 + $0xc10] sm:$0xff]
    %v1829 = vld [vmem:[#allocation11 + $0xc18] sm:$0xff]
    %v1830 = vld [vmem:[#allocation11 + $0xc20] sm:$0xff]
    %v1831 = vld [vmem:[#allocation11 + $0xc28] sm:$0xff]
    %v1832 = vld [vmem:[#allocation11 + $0xc30] sm:$0xff]
    %v1833 = vld [vmem:[#allocation11 + $0xc38] sm:$0xff]
    %v1834 = vld [vmem:[#allocation11 + $0xc40] sm:$0xff]
    %v1835 = vld [vmem:[#allocation11 + $0xc48] sm:$0xff]
    %v1836 = vld [vmem:[#allocation11 + $0xc50] sm:$0xff]
    %v1837 = vld [vmem:[#allocation11 + $0xc58] sm:$0xff]
    %v1838 = vld [vmem:[#allocation11 + $0xc60] sm:$0xff]
    %v1839 = vld [vmem:[#allocation11 + $0xc68] sm:$0xff]
    %v1840 = vld [vmem:[#allocation11 + $0xc70] sm:$0xff]
    %v1841 = vld [vmem:[#allocation11 + $0xc78] sm:$0xff]
    %v1842 = vld [vmem:[#allocation11 + $0xc80] sm:$0xff]
    %v1843 = vld [vmem:[#allocation11 + $0xc88] sm:$0xff]
    %v1844 = vld [vmem:[#allocation11 + $0xc90] sm:$0xff]
    %v1845 = vld [vmem:[#allocation11 + $0xc98] sm:$0xff]
    %v1846 = vld [vmem:[#allocation11 + $0xca0] sm:$0xff]
    %v1847 = vld [vmem:[#allocation11 + $0xca8] sm:$0xff]
    %v1848 = vld [vmem:[#allocation11 + $0xcb0] sm:$0xff]
    %v1849 = vld [vmem:[#allocation11 + $0xcb8] sm:$0xff]
    %v1850 = vld [vmem:[#allocation11 + $0xcc0] sm:$0xff]
    %v1851 = vld [vmem:[#allocation11 + $0xcc8] sm:$0xff]
    %v1852 = vld [vmem:[#allocation11 + $0xcd0] sm:$0xff]
    %v1853 = vld [vmem:[#allocation11 + $0xcd8] sm:$0xff]
    %v1854 = vld [vmem:[#allocation11 + $0xce0] sm:$0xff]
    %v1855 = vld [vmem:[#allocation11 + $0xce8] sm:$0xff]
    %v1856 = vld [vmem:[#allocation11 + $0xcf0] sm:$0xff]
    %v1857 = vld [vmem:[#allocation11 + $0xcf8] sm:$0xff]
    %v1858 = vld [vmem:[#allocation11 + $0xd00] sm:$0xff]
    %v1859 = vld [vmem:[#allocation11 + $0xd08] sm:$0xff]
    %v1860 = vld [vmem:[#allocation11 + $0xd10] sm:$0xff]
    %v1861 = vld [vmem:[#allocation11 + $0xd18] sm:$0xff]
    %v1862 = vld [vmem:[#allocation11 + $0xd20] sm:$0xff]
    %v1863 = vld [vmem:[#allocation11 + $0xd28] sm:$0xff]
    %v1864 = vld [vmem:[#allocation11 + $0xd30] sm:$0xff]
    %v1865 = vld [vmem:[#allocation11 + $0xd38] sm:$0xff]
    %v1866 = vld [vmem:[#allocation11 + $0xd40] sm:$0xff]
    %v1867 = vld [vmem:[#allocation11 + $0xd48] sm:$0xff]
    %v1868 = vld [vmem:[#allocation11 + $0xd50] sm:$0xff]
    %v1869 = vld [vmem:[#allocation11 + $0xd58] sm:$0xff]
    %v1870 = vld [vmem:[#allocation11 + $0xd60] sm:$0xff]
    %v1871 = vld [vmem:[#allocation11 + $0xd68] sm:$0xff]
    %v1872 = vld [vmem:[#allocation11 + $0xd70] sm:$0xff]
    %v1873 = vld [vmem:[#allocation11 + $0xd78] sm:$0xff]
    %v1874 = vld [vmem:[#allocation11 + $0xd80] sm:$0xff]
    %v1875 = vld [vmem:[#allocation11 + $0xd88] sm:$0xff]
    %v1876 = vld [vmem:[#allocation11 + $0xd90] sm:$0xff]
    %v1877 = vld [vmem:[#allocation11 + $0xd98] sm:$0xff]
    %v1878 = vld [vmem:[#allocation11 + $0xda0] sm:$0xff]
    %v1879 = vld [vmem:[#allocation11 + $0xda8] sm:$0xff]
    %v1880 = vld [vmem:[#allocation11 + $0xdb0] sm:$0xff]
    %v1881 = vld [vmem:[#allocation11 + $0xdb8] sm:$0xff]
    %v1882 = vld [vmem:[#allocation11 + $0xdc0] sm:$0xff]
    %v1883 = vld [vmem:[#allocation11 + $0xdc8] sm:$0xff]
    %v1884 = vld [vmem:[#allocation11 + $0xdd0] sm:$0xff]
    %v1885 = vld [vmem:[#allocation11 + $0xdd8] sm:$0xff]
    %v1886 = vld [vmem:[#allocation11 + $0xde0] sm:$0xff]
    %v1887 = vld [vmem:[#allocation11 + $0xde8] sm:$0xff]
    %v1888 = vld [vmem:[#allocation11 + $0xdf0] sm:$0xff]
    %v1889 = vld [vmem:[#allocation11 + $0xdf8] sm:$0xff]
    %v1890 = vld [vmem:[#allocation11 + $0xe00] sm:$0xff]
    %v1891 = vld [vmem:[#allocation11 + $0xe08] sm:$0xff]
    %v1892 = vld [vmem:[#allocation11 + $0xe10] sm:$0xff]
    %v1893 = vld [vmem:[#allocation11 + $0xe18] sm:$0xff]
    %v1894 = vld [vmem:[#allocation11 + $0xe20] sm:$0xff]
    %v1895 = vld [vmem:[#allocation11 + $0xe28] sm:$0xff]
    %v1896 = vld [vmem:[#allocation11 + $0xe30] sm:$0xff]
    %v1897 = vld [vmem:[#allocation11 + $0xe38] sm:$0xff]
    %v1898 = vld [vmem:[#allocation11 + $0xe40] sm:$0xff]
    %v1899 = vld [vmem:[#allocation11 + $0xe48] sm:$0xff]
    %v1900 = vld [vmem:[#allocation11 + $0xe50] sm:$0xff]
    %v1901 = vld [vmem:[#allocation11 + $0xe58] sm:$0xff]
    %v1902 = vld [vmem:[#allocation11 + $0xe60] sm:$0xff]
    %v1903 = vld [vmem:[#allocation11 + $0xe68] sm:$0xff]
    %v1904 = vld [vmem:[#allocation11 + $0xe70] sm:$0xff]
    %v1905 = vld [vmem:[#allocation11 + $0xe78] sm:$0xff]
    %v1906 = vld [vmem:[#allocation11 + $0xe80] sm:$0xff]
    %v1907 = vld [vmem:[#allocation11 + $0xe88] sm:$0xff]
    %v1908 = vld [vmem:[#allocation11 + $0xe90] sm:$0xff]
    %v1909 = vld [vmem:[#allocation11 + $0xe98] sm:$0xff]
    %v1910 = vld [vmem:[#allocation11 + $0xea0] sm:$0xff]
    %v1911 = vld [vmem:[#allocation11 + $0xea8] sm:$0xff]
    %v1912 = vld [vmem:[#allocation11 + $0xeb0] sm:$0xff]
    %v1913 = vld [vmem:[#allocation11 + $0xeb8] sm:$0xff]
    %v1914 = vld [vmem:[#allocation11 + $0xec0] sm:$0xff]
    %v1915 = vld [vmem:[#allocation11 + $0xec8] sm:$0xff]
    %v1916 = vld [vmem:[#allocation11 + $0xed0] sm:$0xff]
    %v1917 = vld [vmem:[#allocation11 + $0xed8] sm:$0xff]
    %v1918 = vld [vmem:[#allocation11 + $0xee0] sm:$0xff]
    %v1919 = vld [vmem:[#allocation11 + $0xee8] sm:$0xff]
    %v1920 = vld [vmem:[#allocation11 + $0xef0] sm:$0xff]
    %v1921 = vld [vmem:[#allocation11 + $0xef8] sm:$0xff]
    %v1922 = vld [vmem:[#allocation11 + $0xf00] sm:$0xff]
    %v1923 = vld [vmem:[#allocation11 + $0xf08] sm:$0xff]
    %v1924 = vld [vmem:[#allocation11 + $0xf10] sm:$0xff]
    %v1925 = vld [vmem:[#allocation11 + $0xf18] sm:$0xff]
    %v1926 = vld [vmem:[#allocation11 + $0xf20] sm:$0xff]
    %v1927 = vld [vmem:[#allocation11 + $0xf28] sm:$0xff]
    %v1928 = vld [vmem:[#allocation11 + $0xf30] sm:$0xff]
    %v1929 = vld [vmem:[#allocation11 + $0xf38] sm:$0xff]
    %v1930 = vld [vmem:[#allocation11 + $0xf40] sm:$0xff]
    %v1931 = vld [vmem:[#allocation11 + $0xf48] sm:$0xff]
    %v1932 = vld [vmem:[#allocation11 + $0xf50] sm:$0xff]
    %v1933 = vld [vmem:[#allocation11 + $0xf58] sm:$0xff]
    %v1934 = vld [vmem:[#allocation11 + $0xf60] sm:$0xff]
    %v1935 = vld [vmem:[#allocation11 + $0xf68] sm:$0xff]
    %v1936 = vld [vmem:[#allocation11 + $0xf70] sm:$0xff]
    %v1937 = vld [vmem:[#allocation11 + $0xf78] sm:$0xff]
    %v1938 = vld [vmem:[#allocation11 + $0xf80] sm:$0xff]
    %v1939 = vld [vmem:[#allocation11 + $0xf88] sm:$0xff]
    %v1940 = vld [vmem:[#allocation11 + $0xf90] sm:$0xff]
    %v1941 = vld [vmem:[#allocation11 + $0xf98] sm:$0xff]
    %v1942 = vld [vmem:[#allocation11 + $0xfa0] sm:$0xff]
    %v1943 = vld [vmem:[#allocation11 + $0xfa8] sm:$0xff]
    %v1944 = vld [vmem:[#allocation11 + $0xfb0] sm:$0xff]
    %v1945 = vld [vmem:[#allocation11 + $0xfb8] sm:$0xff]
    %v1946 = vld [vmem:[#allocation11 + $0xfc0] sm:$0xff]
    %v1947 = vld [vmem:[#allocation11 + $0xfc8] sm:$0xff]
    %v1948 = vld [vmem:[#allocation11 + $0xfd0] sm:$0xff]
    %v1949 = vld [vmem:[#allocation11 + $0xfd8] sm:$0xff]
    %v1950 = vld [vmem:[#allocation11 + $0xfe0] sm:$0xff]
    %v1951 = vld [vmem:[#allocation11 + $0xfe8] sm:$0xff]
    %v1952 = vld [vmem:[#allocation11 + $0xff0] sm:$0xff]
    %v1953 = vld [vmem:[#allocation11 + $0xff8] sm:$0xff]
    %v1954 = vld [vmem:[#allocation13] sm:$0xff]
    %v1955 = vld [vmem:[#allocation13 + $0x8] sm:$0xff]
    %v1958 = vlaneseq
    %v1959 = vshrl.u32 %v1958, 7
    %v1960 = vsub.s32 0, %v1959
    %v1961 = vrot.slane %v1954, %v1960
    %v1962 = vlaneseq
    %v1963 = vshrl.u32 %v1962, 7
    %v1964 = vsub.s32 1, %v1963
    %v1965 = vrot.slane %v1954, %v1964
    %v1966 = vlaneseq
    %v1967 = vshrl.u32 %v1966, 7
    %v1968 = vsub.s32 2, %v1967
    %v1969 = vrot.slane %v1954, %v1968
    %v1970 = vlaneseq
    %v1971 = vshrl.u32 %v1970, 7
    %v1972 = vsub.s32 3, %v1971
    %v1973 = vrot.slane %v1954, %v1972
    %v1974 = vlaneseq
    %v1975 = vshrl.u32 %v1974, 7
    %v1976 = vsub.s32 4, %v1975
    %v1977 = vrot.slane %v1954, %v1976
    %v1978 = vlaneseq
    %v1979 = vshrl.u32 %v1978, 7
    %v1980 = vsub.s32 5, %v1979
    %v1981 = vrot.slane %v1954, %v1980
    %v1982 = vlaneseq
    %v1983 = vshrl.u32 %v1982, 7
    %v1984 = vsub.s32 6, %v1983
    %v1985 = vrot.slane %v1954, %v1984
    %v1986 = vlaneseq
    %v1987 = vshrl.u32 %v1986, 7
    %v1988 = vsub.s32 7, %v1987
    %v1989 = vrot.slane %v1954, %v1988
    %v1990 = vlaneseq
    %v1991 = vshrl.u32 %v1990, 7
    %v1992 = vsub.s32 0, %v1991
    %v1993 = vrot.slane %v1955, %v1992
    %v1994 = vlaneseq
    %v1995 = vshrl.u32 %v1994, 7
    %v1996 = vsub.s32 1, %v1995
    %v1997 = vrot.slane %v1955, %v1996
    %v1998 = vlaneseq
    %v1999 = vshrl.u32 %v1998, 7
    %v2000 = vsub.s32 2, %v1999
    %v2001 = vrot.slane %v1955, %v2000
    %v2002 = vlaneseq
    %v2003 = vshrl.u32 %v2002, 7
    %v2004 = vsub.s32 3, %v2003
    %v2005 = vrot.slane %v1955, %v2004
    %v2006 = vlaneseq
    %v2007 = vshrl.u32 %v2006, 7
    %v2008 = vsub.s32 4, %v2007
    %v2009 = vrot.slane %v1955, %v2008
    %v2010 = vlaneseq
    %v2011 = vshrl.u32 %v2010, 7
    %v2012 = vsub.s32 5, %v2011
    %v2013 = vrot.slane %v1955, %v2012
    %v2014 = vlaneseq
    %v2015 = vshrl.u32 %v2014, 7
    %v2016 = vsub.s32 6, %v2015
    %v2017 = vrot.slane %v1955, %v2016
    %v2018 = vlaneseq
    %v2019 = vshrl.u32 %v2018, 7
    %v2020 = vsub.s32 7, %v2019
    %v2021 = vrot.slane %v1955, %v2020
    %v2550 = vunpack.c.l.b16 %v1442
    %v2551 = vunpack.c.h.b16 %v1442
    %v2552 = vunpack.c.l.b16 %v1443
    %v2553 = vunpack.c.h.b16 %v1443
    %v2554 = vunpack.c.l.b16 %v1444
    %v2555 = vunpack.c.h.b16 %v1444
    %v2556 = vunpack.c.l.b16 %v1445
    %v2557 = vunpack.c.h.b16 %v1445
    %v2558 = vunpack.c.l.b16 %v1446
    %v2559 = vunpack.c.h.b16 %v1446
    %v2560 = vunpack.c.l.b16 %v1447
    %v2561 = vunpack.c.h.b16 %v1447
    %v2562 = vunpack.c.l.b16 %v1448
    %v2563 = vunpack.c.h.b16 %v1448
    %v2564 = vunpack.c.l.b16 %v1449
    %v2565 = vunpack.c.h.b16 %v1449
    %v2566 = vunpack.c.l.b16 %v1450
    %v2567 = vunpack.c.h.b16 %v1450
    %v2568 = vunpack.c.l.b16 %v1451
    %v2569 = vunpack.c.h.b16 %v1451
    %v2570 = vunpack.c.l.b16 %v1452
    %v2571 = vunpack.c.h.b16 %v1452
    %v2572 = vunpack.c.l.b16 %v1453
    %v2573 = vunpack.c.h.b16 %v1453
    %v2574 = vunpack.c.l.b16 %v1454
    %v2575 = vunpack.c.h.b16 %v1454
    %v2576 = vunpack.c.l.b16 %v1455
    %v2577 = vunpack.c.h.b16 %v1455
    %v2578 = vunpack.c.l.b16 %v1456
    %v2579 = vunpack.c.h.b16 %v1456
    %v2580 = vunpack.c.l.b16 %v1457
    %v2581 = vunpack.c.h.b16 %v1457
    %v2582 = vunpack.c.l.b16 %v1458
    %v2583 = vunpack.c.h.b16 %v1458
    %v2584 = vunpack.c.l.b16 %v1459
    %v2585 = vunpack.c.h.b16 %v1459
    %v2586 = vunpack.c.l.b16 %v1460
    %v2587 = vunpack.c.h.b16 %v1460
    %v2588 = vunpack.c.l.b16 %v1461
    %v2589 = vunpack.c.h.b16 %v1461
    %v2590 = vunpack.c.l.b16 %v1462
    %v2591 = vunpack.c.h.b16 %v1462
    %v2592 = vunpack.c.l.b16 %v1463
    %v2593 = vunpack.c.h.b16 %v1463
    %v2594 = vunpack.c.l.b16 %v1464
    %v2595 = vunpack.c.h.b16 %v1464
    %v2596 = vunpack.c.l.b16 %v1465
    %v2597 = vunpack.c.h.b16 %v1465
    %v2598 = vunpack.c.l.b16 %v1466
    %v2599 = vunpack.c.h.b16 %v1466
    %v2600 = vunpack.c.l.b16 %v1467
    %v2601 = vunpack.c.h.b16 %v1467
    %v2602 = vunpack.c.l.b16 %v1468
    %v2603 = vunpack.c.h.b16 %v1468
    %v2604 = vunpack.c.l.b16 %v1469
    %v2605 = vunpack.c.h.b16 %v1469
    %v2606 = vunpack.c.l.b16 %v1470
    %v2607 = vunpack.c.h.b16 %v1470
    %v2608 = vunpack.c.l.b16 %v1471
    %v2609 = vunpack.c.h.b16 %v1471
    %v2610 = vunpack.c.l.b16 %v1472
    %v2611 = vunpack.c.h.b16 %v1472
    %v2612 = vunpack.c.l.b16 %v1473
    %v2613 = vunpack.c.h.b16 %v1473
    %v2614 = vunpack.c.l.b16 %v1474
    %v2615 = vunpack.c.h.b16 %v1474
    %v2616 = vunpack.c.l.b16 %v1475
    %v2617 = vunpack.c.h.b16 %v1475
    %v2618 = vunpack.c.l.b16 %v1476
    %v2619 = vunpack.c.h.b16 %v1476
    %v2620 = vunpack.c.l.b16 %v1477
    %v2621 = vunpack.c.h.b16 %v1477
    %v2622 = vunpack.c.l.b16 %v1478
    %v2623 = vunpack.c.h.b16 %v1478
    %v2624 = vunpack.c.l.b16 %v1479
    %v2625 = vunpack.c.h.b16 %v1479
    %v2626 = vunpack.c.l.b16 %v1480
    %v2627 = vunpack.c.h.b16 %v1480
    %v2628 = vunpack.c.l.b16 %v1481
    %v2629 = vunpack.c.h.b16 %v1481
    %v2630 = vunpack.c.l.b16 %v1482
    %v2631 = vunpack.c.h.b16 %v1482
    %v2632 = vunpack.c.l.b16 %v1483
    %v2633 = vunpack.c.h.b16 %v1483
    %v2634 = vunpack.c.l.b16 %v1484
    %v2635 = vunpack.c.h.b16 %v1484
    %v2636 = vunpack.c.l.b16 %v1485
    %v2637 = vunpack.c.h.b16 %v1485
    %v2638 = vunpack.c.l.b16 %v1486
    %v2639 = vunpack.c.h.b16 %v1486
    %v2640 = vunpack.c.l.b16 %v1487
    %v2641 = vunpack.c.h.b16 %v1487
    %v2642 = vunpack.c.l.b16 %v1488
    %v2643 = vunpack.c.h.b16 %v1488
    %v2644 = vunpack.c.l.b16 %v1489
    %v2645 = vunpack.c.h.b16 %v1489
    %v2646 = vunpack.c.l.b16 %v1490
    %v2647 = vunpack.c.h.b16 %v1490
    %v2648 = vunpack.c.l.b16 %v1491
    %v2649 = vunpack.c.h.b16 %v1491
    %v2650 = vunpack.c.l.b16 %v1492
    %v2651 = vunpack.c.h.b16 %v1492
    %v2652 = vunpack.c.l.b16 %v1493
    %v2653 = vunpack.c.h.b16 %v1493
    %v2654 = vunpack.c.l.b16 %v1494
    %v2655 = vunpack.c.h.b16 %v1494
    %v2656 = vunpack.c.l.b16 %v1495
    %v2657 = vunpack.c.h.b16 %v1495
    %v2658 = vunpack.c.l.b16 %v1496
    %v2659 = vunpack.c.h.b16 %v1496
    %v2660 = vunpack.c.l.b16 %v1497
    %v2661 = vunpack.c.h.b16 %v1497
    %v2662 = vunpack.c.l.b16 %v1498
    %v2663 = vunpack.c.h.b16 %v1498
    %v2664 = vunpack.c.l.b16 %v1499
    %v2665 = vunpack.c.h.b16 %v1499
    %v2666 = vunpack.c.l.b16 %v1500
    %v2667 = vunpack.c.h.b16 %v1500
    %v2668 = vunpack.c.l.b16 %v1501
    %v2669 = vunpack.c.h.b16 %v1501
    %v2670 = vunpack.c.l.b16 %v1502
    %v2671 = vunpack.c.h.b16 %v1502
    %v2672 = vunpack.c.l.b16 %v1503
    %v2673 = vunpack.c.h.b16 %v1503
    %v2674 = vunpack.c.l.b16 %v1504
    %v2675 = vunpack.c.h.b16 %v1504
    %v2676 = vunpack.c.l.b16 %v1505
    %v2677 = vunpack.c.h.b16 %v1505
    %v2678 = vunpack.c.l.b16 %v1506
    %v2679 = vunpack.c.h.b16 %v1506
    %v2680 = vunpack.c.l.b16 %v1507
    %v2681 = vunpack.c.h.b16 %v1507
    %v2682 = vunpack.c.l.b16 %v1508
    %v2683 = vunpack.c.h.b16 %v1508
    %v2684 = vunpack.c.l.b16 %v1509
    %v2685 = vunpack.c.h.b16 %v1509
    %v2686 = vunpack.c.l.b16 %v1510
    %v2687 = vunpack.c.h.b16 %v1510
    %v2688 = vunpack.c.l.b16 %v1511
    %v2689 = vunpack.c.h.b16 %v1511
    %v2690 = vunpack.c.l.b16 %v1512
    %v2691 = vunpack.c.h.b16 %v1512
    %v2692 = vunpack.c.l.b16 %v1513
    %v2693 = vunpack.c.h.b16 %v1513
    %v2694 = vunpack.c.l.b16 %v1514
    %v2695 = vunpack.c.h.b16 %v1514
    %v2696 = vunpack.c.l.b16 %v1515
    %v2697 = vunpack.c.h.b16 %v1515
    %v2698 = vunpack.c.l.b16 %v1516
    %v2699 = vunpack.c.h.b16 %v1516
    %v2700 = vunpack.c.l.b16 %v1517
    %v2701 = vunpack.c.h.b16 %v1517
    %v2702 = vunpack.c.l.b16 %v1518
    %v2703 = vunpack.c.h.b16 %v1518
    %v2704 = vunpack.c.l.b16 %v1519
    %v2705 = vunpack.c.h.b16 %v1519
    %v2706 = vunpack.c.l.b16 %v1520
    %v2707 = vunpack.c.h.b16 %v1520
    %v2708 = vunpack.c.l.b16 %v1521
    %v2709 = vunpack.c.h.b16 %v1521
    %v2710 = vunpack.c.l.b16 %v1522
    %v2711 = vunpack.c.h.b16 %v1522
    %v2712 = vunpack.c.l.b16 %v1523
    %v2713 = vunpack.c.h.b16 %v1523
    %v2714 = vunpack.c.l.b16 %v1524
    %v2715 = vunpack.c.h.b16 %v1524
    %v2716 = vunpack.c.l.b16 %v1525
    %v2717 = vunpack.c.h.b16 %v1525
    %v2718 = vunpack.c.l.b16 %v1526
    %v2719 = vunpack.c.h.b16 %v1526
    %v2720 = vunpack.c.l.b16 %v1527
    %v2721 = vunpack.c.h.b16 %v1527
    %v2722 = vunpack.c.l.b16 %v1528
    %v2723 = vunpack.c.h.b16 %v1528
    %v2724 = vunpack.c.l.b16 %v1529
    %v2725 = vunpack.c.h.b16 %v1529
    %v2726 = vunpack.c.l.b16 %v1530
    %v2727 = vunpack.c.h.b16 %v1530
    %v2728 = vunpack.c.l.b16 %v1531
    %v2729 = vunpack.c.h.b16 %v1531
    %v2730 = vunpack.c.l.b16 %v1532
    %v2731 = vunpack.c.h.b16 %v1532
    %v2732 = vunpack.c.l.b16 %v1533
    %v2733 = vunpack.c.h.b16 %v1533
    %v2734 = vunpack.c.l.b16 %v1534
    %v2735 = vunpack.c.h.b16 %v1534
    %v2736 = vunpack.c.l.b16 %v1535
    %v2737 = vunpack.c.h.b16 %v1535
    %v2738 = vunpack.c.l.b16 %v1536
    %v2739 = vunpack.c.h.b16 %v1536
    %v2740 = vunpack.c.l.b16 %v1537
    %v2741 = vunpack.c.h.b16 %v1537
    %v2742 = vunpack.c.l.b16 %v1538
    %v2743 = vunpack.c.h.b16 %v1538
    %v2744 = vunpack.c.l.b16 %v1539
    %v2745 = vunpack.c.h.b16 %v1539
    %v2746 = vunpack.c.l.b16 %v1540
    %v2747 = vunpack.c.h.b16 %v1540
    %v2748 = vunpack.c.l.b16 %v1541
    %v2749 = vunpack.c.h.b16 %v1541
    %v2750 = vunpack.c.l.b16 %v1542
    %v2751 = vunpack.c.h.b16 %v1542
    %v2752 = vunpack.c.l.b16 %v1543
    %v2753 = vunpack.c.h.b16 %v1543
    %v2754 = vunpack.c.l.b16 %v1544
    %v2755 = vunpack.c.h.b16 %v1544
    %v2756 = vunpack.c.l.b16 %v1545
    %v2757 = vunpack.c.h.b16 %v1545
    %v2758 = vunpack.c.l.b16 %v1546
    %v2759 = vunpack.c.h.b16 %v1546
    %v2760 = vunpack.c.l.b16 %v1547
    %v2761 = vunpack.c.h.b16 %v1547
    %v2762 = vunpack.c.l.b16 %v1548
    %v2763 = vunpack.c.h.b16 %v1548
    %v2764 = vunpack.c.l.b16 %v1549
    %v2765 = vunpack.c.h.b16 %v1549
    %v2766 = vunpack.c.l.b16 %v1550
    %v2767 = vunpack.c.h.b16 %v1550
    %v2768 = vunpack.c.l.b16 %v1551
    %v2769 = vunpack.c.h.b16 %v1551
    %v2770 = vunpack.c.l.b16 %v1552
    %v2771 = vunpack.c.h.b16 %v1552
    %v2772 = vunpack.c.l.b16 %v1553
    %v2773 = vunpack.c.h.b16 %v1553
    %v2774 = vunpack.c.l.b16 %v1554
    %v2775 = vunpack.c.h.b16 %v1554
    %v2776 = vunpack.c.l.b16 %v1555
    %v2777 = vunpack.c.h.b16 %v1555
    %v2778 = vunpack.c.l.b16 %v1556
    %v2779 = vunpack.c.h.b16 %v1556
    %v2780 = vunpack.c.l.b16 %v1557
    %v2781 = vunpack.c.h.b16 %v1557
    %v2782 = vunpack.c.l.b16 %v1558
    %v2783 = vunpack.c.h.b16 %v1558
    %v2784 = vunpack.c.l.b16 %v1559
    %v2785 = vunpack.c.h.b16 %v1559
    %v2786 = vunpack.c.l.b16 %v1560
    %v2787 = vunpack.c.h.b16 %v1560
    %v2788 = vunpack.c.l.b16 %v1561
    %v2789 = vunpack.c.h.b16 %v1561
    %v2790 = vunpack.c.l.b16 %v1562
    %v2791 = vunpack.c.h.b16 %v1562
    %v2792 = vunpack.c.l.b16 %v1563
    %v2793 = vunpack.c.h.b16 %v1563
    %v2794 = vunpack.c.l.b16 %v1564
    %v2795 = vunpack.c.h.b16 %v1564
    %v2796 = vunpack.c.l.b16 %v1565
    %v2797 = vunpack.c.h.b16 %v1565
    %v2798 = vunpack.c.l.b16 %v1566
    %v2799 = vunpack.c.h.b16 %v1566
    %v2800 = vunpack.c.l.b16 %v1567
    %v2801 = vunpack.c.h.b16 %v1567
    %v2802 = vunpack.c.l.b16 %v1568
    %v2803 = vunpack.c.h.b16 %v1568
    %v2804 = vunpack.c.l.b16 %v1569
    %v2805 = vunpack.c.h.b16 %v1569
    %v2806 = vunpack.c.l.b16 %v1570
    %v2807 = vunpack.c.h.b16 %v1570
    %v2808 = vunpack.c.l.b16 %v1571
    %v2809 = vunpack.c.h.b16 %v1571
    %v2810 = vunpack.c.l.b16 %v1572
    %v2811 = vunpack.c.h.b16 %v1572
    %v2812 = vunpack.c.l.b16 %v1573
    %v2813 = vunpack.c.h.b16 %v1573
    %v2814 = vunpack.c.l.b16 %v1574
    %v2815 = vunpack.c.h.b16 %v1574
    %v2816 = vunpack.c.l.b16 %v1575
    %v2817 = vunpack.c.h.b16 %v1575
    %v2818 = vunpack.c.l.b16 %v1576
    %v2819 = vunpack.c.h.b16 %v1576
    %v2820 = vunpack.c.l.b16 %v1577
    %v2821 = vunpack.c.h.b16 %v1577
    %v2822 = vunpack.c.l.b16 %v1578
    %v2823 = vunpack.c.h.b16 %v1578
    %v2824 = vunpack.c.l.b16 %v1579
    %v2825 = vunpack.c.h.b16 %v1579
    %v2826 = vunpack.c.l.b16 %v1580
    %v2827 = vunpack.c.h.b16 %v1580
    %v2828 = vunpack.c.l.b16 %v1581
    %v2829 = vunpack.c.h.b16 %v1581
    %v2830 = vunpack.c.l.b16 %v1582
    %v2831 = vunpack.c.h.b16 %v1582
    %v2832 = vunpack.c.l.b16 %v1583
    %v2833 = vunpack.c.h.b16 %v1583
    %v2834 = vunpack.c.l.b16 %v1584
    %v2835 = vunpack.c.h.b16 %v1584
    %v2836 = vunpack.c.l.b16 %v1585
    %v2837 = vunpack.c.h.b16 %v1585
    %v2838 = vunpack.c.l.b16 %v1586
    %v2839 = vunpack.c.h.b16 %v1586
    %v2840 = vunpack.c.l.b16 %v1587
    %v2841 = vunpack.c.h.b16 %v1587
    %v2842 = vunpack.c.l.b16 %v1588
    %v2843 = vunpack.c.h.b16 %v1588
    %v2844 = vunpack.c.l.b16 %v1589
    %v2845 = vunpack.c.h.b16 %v1589
    %v2846 = vunpack.c.l.b16 %v1590
    %v2847 = vunpack.c.h.b16 %v1590
    %v2848 = vunpack.c.l.b16 %v1591
    %v2849 = vunpack.c.h.b16 %v1591
    %v2850 = vunpack.c.l.b16 %v1592
    %v2851 = vunpack.c.h.b16 %v1592
    %v2852 = vunpack.c.l.b16 %v1593
    %v2853 = vunpack.c.h.b16 %v1593
    %v2854 = vunpack.c.l.b16 %v1594
    %v2855 = vunpack.c.h.b16 %v1594
    %v2856 = vunpack.c.l.b16 %v1595
    %v2857 = vunpack.c.h.b16 %v1595
    %v2858 = vunpack.c.l.b16 %v1596
    %v2859 = vunpack.c.h.b16 %v1596
    %v2860 = vunpack.c.l.b16 %v1597
    %v2861 = vunpack.c.h.b16 %v1597
    %v2862 = vunpack.c.l.b16 %v1598
    %v2863 = vunpack.c.h.b16 %v1598
    %v2864 = vunpack.c.l.b16 %v1599
    %v2865 = vunpack.c.h.b16 %v1599
    %v2866 = vunpack.c.l.b16 %v1600
    %v2867 = vunpack.c.h.b16 %v1600
    %v2868 = vunpack.c.l.b16 %v1601
    %v2869 = vunpack.c.h.b16 %v1601
    %v2870 = vunpack.c.l.b16 %v1602
    %v2871 = vunpack.c.h.b16 %v1602
    %v2872 = vunpack.c.l.b16 %v1603
    %v2873 = vunpack.c.h.b16 %v1603
    %v2874 = vunpack.c.l.b16 %v1604
    %v2875 = vunpack.c.h.b16 %v1604
    %v2876 = vunpack.c.l.b16 %v1605
    %v2877 = vunpack.c.h.b16 %v1605
    %v2878 = vunpack.c.l.b16 %v1606
    %v2879 = vunpack.c.h.b16 %v1606
    %v2880 = vunpack.c.l.b16 %v1607
    %v2881 = vunpack.c.h.b16 %v1607
    %v2882 = vunpack.c.l.b16 %v1608
    %v2883 = vunpack.c.h.b16 %v1608
    %v2884 = vunpack.c.l.b16 %v1609
    %v2885 = vunpack.c.h.b16 %v1609
    %v2886 = vunpack.c.l.b16 %v1610
    %v2887 = vunpack.c.h.b16 %v1610
    %v2888 = vunpack.c.l.b16 %v1611
    %v2889 = vunpack.c.h.b16 %v1611
    %v2890 = vunpack.c.l.b16 %v1612
    %v2891 = vunpack.c.h.b16 %v1612
    %v2892 = vunpack.c.l.b16 %v1613
    %v2893 = vunpack.c.h.b16 %v1613
    %v2894 = vunpack.c.l.b16 %v1614
    %v2895 = vunpack.c.h.b16 %v1614
    %v2896 = vunpack.c.l.b16 %v1615
    %v2897 = vunpack.c.h.b16 %v1615
    %v2898 = vunpack.c.l.b16 %v1616
    %v2899 = vunpack.c.h.b16 %v1616
    %v2900 = vunpack.c.l.b16 %v1617
    %v2901 = vunpack.c.h.b16 %v1617
    %v2902 = vunpack.c.l.b16 %v1618
    %v2903 = vunpack.c.h.b16 %v1618
    %v2904 = vunpack.c.l.b16 %v1619
    %v2905 = vunpack.c.h.b16 %v1619
    %v2906 = vunpack.c.l.b16 %v1620
    %v2907 = vunpack.c.h.b16 %v1620
    %v2908 = vunpack.c.l.b16 %v1621
    %v2909 = vunpack.c.h.b16 %v1621
    %v2910 = vunpack.c.l.b16 %v1622
    %v2911 = vunpack.c.h.b16 %v1622
    %v2912 = vunpack.c.l.b16 %v1623
    %v2913 = vunpack.c.h.b16 %v1623
    %v2914 = vunpack.c.l.b16 %v1624
    %v2915 = vunpack.c.h.b16 %v1624
    %v2916 = vunpack.c.l.b16 %v1625
    %v2917 = vunpack.c.h.b16 %v1625
    %v2918 = vunpack.c.l.b16 %v1626
    %v2919 = vunpack.c.h.b16 %v1626
    %v2920 = vunpack.c.l.b16 %v1627
    %v2921 = vunpack.c.h.b16 %v1627
    %v2922 = vunpack.c.l.b16 %v1628
    %v2923 = vunpack.c.h.b16 %v1628
    %v2924 = vunpack.c.l.b16 %v1629
    %v2925 = vunpack.c.h.b16 %v1629
    %v2926 = vunpack.c.l.b16 %v1630
    %v2927 = vunpack.c.h.b16 %v1630
    %v2928 = vunpack.c.l.b16 %v1631
    %v2929 = vunpack.c.h.b16 %v1631
    %v2930 = vunpack.c.l.b16 %v1632
    %v2931 = vunpack.c.h.b16 %v1632
    %v2932 = vunpack.c.l.b16 %v1633
    %v2933 = vunpack.c.h.b16 %v1633
    %v2934 = vunpack.c.l.b16 %v1634
    %v2935 = vunpack.c.h.b16 %v1634
    %v2936 = vunpack.c.l.b16 %v1635
    %v2937 = vunpack.c.h.b16 %v1635
    %v2938 = vunpack.c.l.b16 %v1636
    %v2939 = vunpack.c.h.b16 %v1636
    %v2940 = vunpack.c.l.b16 %v1637
    %v2941 = vunpack.c.h.b16 %v1637
    %v2942 = vunpack.c.l.b16 %v1638
    %v2943 = vunpack.c.h.b16 %v1638
    %v2944 = vunpack.c.l.b16 %v1639
    %v2945 = vunpack.c.h.b16 %v1639
    %v2946 = vunpack.c.l.b16 %v1640
    %v2947 = vunpack.c.h.b16 %v1640
    %v2948 = vunpack.c.l.b16 %v1641
    %v2949 = vunpack.c.h.b16 %v1641
    %v2950 = vunpack.c.l.b16 %v1642
    %v2951 = vunpack.c.h.b16 %v1642
    %v2952 = vunpack.c.l.b16 %v1643
    %v2953 = vunpack.c.h.b16 %v1643
    %v2954 = vunpack.c.l.b16 %v1644
    %v2955 = vunpack.c.h.b16 %v1644
    %v2956 = vunpack.c.l.b16 %v1645
    %v2957 = vunpack.c.h.b16 %v1645
    %v2958 = vunpack.c.l.b16 %v1646
    %v2959 = vunpack.c.h.b16 %v1646
    %v2960 = vunpack.c.l.b16 %v1647
    %v2961 = vunpack.c.h.b16 %v1647
    %v2962 = vunpack.c.l.b16 %v1648
    %v2963 = vunpack.c.h.b16 %v1648
    %v2964 = vunpack.c.l.b16 %v1649
    %v2965 = vunpack.c.h.b16 %v1649
    %v2966 = vunpack.c.l.b16 %v1650
    %v2967 = vunpack.c.h.b16 %v1650
    %v2968 = vunpack.c.l.b16 %v1651
    %v2969 = vunpack.c.h.b16 %v1651
    %v2970 = vunpack.c.l.b16 %v1652
    %v2971 = vunpack.c.h.b16 %v1652
    %v2972 = vunpack.c.l.b16 %v1653
    %v2973 = vunpack.c.h.b16 %v1653
    %v2974 = vunpack.c.l.b16 %v1654
    %v2975 = vunpack.c.h.b16 %v1654
    %v2976 = vunpack.c.l.b16 %v1655
    %v2977 = vunpack.c.h.b16 %v1655
    %v2978 = vunpack.c.l.b16 %v1656
    %v2979 = vunpack.c.h.b16 %v1656
    %v2980 = vunpack.c.l.b16 %v1657
    %v2981 = vunpack.c.h.b16 %v1657
    %v2982 = vunpack.c.l.b16 %v1658
    %v2983 = vunpack.c.h.b16 %v1658
    %v2984 = vunpack.c.l.b16 %v1659
    %v2985 = vunpack.c.h.b16 %v1659
    %v2986 = vunpack.c.l.b16 %v1660
    %v2987 = vunpack.c.h.b16 %v1660
    %v2988 = vunpack.c.l.b16 %v1661
    %v2989 = vunpack.c.h.b16 %v1661
    %v2990 = vunpack.c.l.b16 %v1662
    %v2991 = vunpack.c.h.b16 %v1662
    %v2992 = vunpack.c.l.b16 %v1663
    %v2993 = vunpack.c.h.b16 %v1663
    %v2994 = vunpack.c.l.b16 %v1664
    %v2995 = vunpack.c.h.b16 %v1664
    %v2996 = vunpack.c.l.b16 %v1665
    %v2997 = vunpack.c.h.b16 %v1665
    %v2998 = vunpack.c.l.b16 %v1666
    %v2999 = vunpack.c.h.b16 %v1666
    %v3000 = vunpack.c.l.b16 %v1667
    %v3001 = vunpack.c.h.b16 %v1667
    %v3002 = vunpack.c.l.b16 %v1668
    %v3003 = vunpack.c.h.b16 %v1668
    %v3004 = vunpack.c.l.b16 %v1669
    %v3005 = vunpack.c.h.b16 %v1669
    %v3006 = vunpack.c.l.b16 %v1670
    %v3007 = vunpack.c.h.b16 %v1670
    %v3008 = vunpack.c.l.b16 %v1671
    %v3009 = vunpack.c.h.b16 %v1671
    %v3010 = vunpack.c.l.b16 %v1672
    %v3011 = vunpack.c.h.b16 %v1672
    %v3012 = vunpack.c.l.b16 %v1673
    %v3013 = vunpack.c.h.b16 %v1673
    %v3014 = vunpack.c.l.b16 %v1674
    %v3015 = vunpack.c.h.b16 %v1674
    %v3016 = vunpack.c.l.b16 %v1675
    %v3017 = vunpack.c.h.b16 %v1675
    %v3018 = vunpack.c.l.b16 %v1676
    %v3019 = vunpack.c.h.b16 %v1676
    %v3020 = vunpack.c.l.b16 %v1677
    %v3021 = vunpack.c.h.b16 %v1677
    %v3022 = vunpack.c.l.b16 %v1678
    %v3023 = vunpack.c.h.b16 %v1678
    %v3024 = vunpack.c.l.b16 %v1679
    %v3025 = vunpack.c.h.b16 %v1679
    %v3026 = vunpack.c.l.b16 %v1680
    %v3027 = vunpack.c.h.b16 %v1680
    %v3028 = vunpack.c.l.b16 %v1681
    %v3029 = vunpack.c.h.b16 %v1681
    %v3030 = vunpack.c.l.b16 %v1682
    %v3031 = vunpack.c.h.b16 %v1682
    %v3032 = vunpack.c.l.b16 %v1683
    %v3033 = vunpack.c.h.b16 %v1683
    %v3034 = vunpack.c.l.b16 %v1684
    %v3035 = vunpack.c.h.b16 %v1684
    %v3036 = vunpack.c.l.b16 %v1685
    %v3037 = vunpack.c.h.b16 %v1685
    %v3038 = vunpack.c.l.b16 %v1686
    %v3039 = vunpack.c.h.b16 %v1686
    %v3040 = vunpack.c.l.b16 %v1687
    %v3041 = vunpack.c.h.b16 %v1687
    %v3042 = vunpack.c.l.b16 %v1688
    %v3043 = vunpack.c.h.b16 %v1688
    %v3044 = vunpack.c.l.b16 %v1689
    %v3045 = vunpack.c.h.b16 %v1689
    %v3046 = vunpack.c.l.b16 %v1690
    %v3047 = vunpack.c.h.b16 %v1690
    %v3048 = vunpack.c.l.b16 %v1691
    %v3049 = vunpack.c.h.b16 %v1691
    %v3050 = vunpack.c.l.b16 %v1692
    %v3051 = vunpack.c.h.b16 %v1692
    %v3052 = vunpack.c.l.b16 %v1693
    %v3053 = vunpack.c.h.b16 %v1693
    %v3054 = vunpack.c.l.b16 %v1694
    %v3055 = vunpack.c.h.b16 %v1694
    %v3056 = vunpack.c.l.b16 %v1695
    %v3057 = vunpack.c.h.b16 %v1695
    %v3058 = vunpack.c.l.b16 %v1696
    %v3059 = vunpack.c.h.b16 %v1696
    %v3060 = vunpack.c.l.b16 %v1697
    %v3061 = vunpack.c.h.b16 %v1697
    %v3062 = vunpack.c.l.b16 %v1698
    %v3063 = vunpack.c.h.b16 %v1698
    %v3064 = vunpack.c.l.b16 %v1699
    %v3065 = vunpack.c.h.b16 %v1699
    %v3066 = vunpack.c.l.b16 %v1700
    %v3067 = vunpack.c.h.b16 %v1700
    %v3068 = vunpack.c.l.b16 %v1701
    %v3069 = vunpack.c.h.b16 %v1701
    %v3070 = vunpack.c.l.b16 %v1702
    %v3071 = vunpack.c.h.b16 %v1702
    %v3072 = vunpack.c.l.b16 %v1703
    %v3073 = vunpack.c.h.b16 %v1703
    %v3074 = vunpack.c.l.b16 %v1704
    %v3075 = vunpack.c.h.b16 %v1704
    %v3076 = vunpack.c.l.b16 %v1705
    %v3077 = vunpack.c.h.b16 %v1705
    %v3078 = vunpack.c.l.b16 %v1706
    %v3079 = vunpack.c.h.b16 %v1706
    %v3080 = vunpack.c.l.b16 %v1707
    %v3081 = vunpack.c.h.b16 %v1707
    %v3082 = vunpack.c.l.b16 %v1708
    %v3083 = vunpack.c.h.b16 %v1708
    %v3084 = vunpack.c.l.b16 %v1709
    %v3085 = vunpack.c.h.b16 %v1709
    %v3086 = vunpack.c.l.b16 %v1710
    %v3087 = vunpack.c.h.b16 %v1710
    %v3088 = vunpack.c.l.b16 %v1711
    %v3089 = vunpack.c.h.b16 %v1711
    %v3090 = vunpack.c.l.b16 %v1712
    %v3091 = vunpack.c.h.b16 %v1712
    %v3092 = vunpack.c.l.b16 %v1713
    %v3093 = vunpack.c.h.b16 %v1713
    %v3094 = vunpack.c.l.b16 %v1714
    %v3095 = vunpack.c.h.b16 %v1714
    %v3096 = vunpack.c.l.b16 %v1715
    %v3097 = vunpack.c.h.b16 %v1715
    %v3098 = vunpack.c.l.b16 %v1716
    %v3099 = vunpack.c.h.b16 %v1716
    %v3100 = vunpack.c.l.b16 %v1717
    %v3101 = vunpack.c.h.b16 %v1717
    %v3102 = vunpack.c.l.b16 %v1718
    %v3103 = vunpack.c.h.b16 %v1718
    %v3104 = vunpack.c.l.b16 %v1719
    %v3105 = vunpack.c.h.b16 %v1719
    %v3106 = vunpack.c.l.b16 %v1720
    %v3107 = vunpack.c.h.b16 %v1720
    %v3108 = vunpack.c.l.b16 %v1721
    %v3109 = vunpack.c.h.b16 %v1721
    %v3110 = vunpack.c.l.b16 %v1722
    %v3111 = vunpack.c.h.b16 %v1722
    %v3112 = vunpack.c.l.b16 %v1723
    %v3113 = vunpack.c.h.b16 %v1723
    %v3114 = vunpack.c.l.b16 %v1724
    %v3115 = vunpack.c.h.b16 %v1724
    %v3116 = vunpack.c.l.b16 %v1725
    %v3117 = vunpack.c.h.b16 %v1725
    %v3118 = vunpack.c.l.b16 %v1726
    %v3119 = vunpack.c.h.b16 %v1726
    %v3120 = vunpack.c.l.b16 %v1727
    %v3121 = vunpack.c.h.b16 %v1727
    %v3122 = vunpack.c.l.b16 %v1728
    %v3123 = vunpack.c.h.b16 %v1728
    %v3124 = vunpack.c.l.b16 %v1729
    %v3125 = vunpack.c.h.b16 %v1729
    %v3126 = vunpack.c.l.b16 %v1730
    %v3127 = vunpack.c.h.b16 %v1730
    %v3128 = vunpack.c.l.b16 %v1731
    %v3129 = vunpack.c.h.b16 %v1731
    %v3130 = vunpack.c.l.b16 %v1732
    %v3131 = vunpack.c.h.b16 %v1732
    %v3132 = vunpack.c.l.b16 %v1733
    %v3133 = vunpack.c.h.b16 %v1733
    %v3134 = vunpack.c.l.b16 %v1734
    %v3135 = vunpack.c.h.b16 %v1734
    %v3136 = vunpack.c.l.b16 %v1735
    %v3137 = vunpack.c.h.b16 %v1735
    %v3138 = vunpack.c.l.b16 %v1736
    %v3139 = vunpack.c.h.b16 %v1736
    %v3140 = vunpack.c.l.b16 %v1737
    %v3141 = vunpack.c.h.b16 %v1737
    %v3142 = vunpack.c.l.b16 %v1738
    %v3143 = vunpack.c.h.b16 %v1738
    %v3144 = vunpack.c.l.b16 %v1739
    %v3145 = vunpack.c.h.b16 %v1739
    %v3146 = vunpack.c.l.b16 %v1740
    %v3147 = vunpack.c.h.b16 %v1740
    %v3148 = vunpack.c.l.b16 %v1741
    %v3149 = vunpack.c.h.b16 %v1741
    %v3150 = vunpack.c.l.b16 %v1742
    %v3151 = vunpack.c.h.b16 %v1742
    %v3152 = vunpack.c.l.b16 %v1743
    %v3153 = vunpack.c.h.b16 %v1743
    %v3154 = vunpack.c.l.b16 %v1744
    %v3155 = vunpack.c.h.b16 %v1744
    %v3156 = vunpack.c.l.b16 %v1745
    %v3157 = vunpack.c.h.b16 %v1745
    %v3158 = vunpack.c.l.b16 %v1746
    %v3159 = vunpack.c.h.b16 %v1746
    %v3160 = vunpack.c.l.b16 %v1747
    %v3161 = vunpack.c.h.b16 %v1747
    %v3162 = vunpack.c.l.b16 %v1748
    %v3163 = vunpack.c.h.b16 %v1748
    %v3164 = vunpack.c.l.b16 %v1749
    %v3165 = vunpack.c.h.b16 %v1749
    %v3166 = vunpack.c.l.b16 %v1750
    %v3167 = vunpack.c.h.b16 %v1750
    %v3168 = vunpack.c.l.b16 %v1751
    %v3169 = vunpack.c.h.b16 %v1751
    %v3170 = vunpack.c.l.b16 %v1752
    %v3171 = vunpack.c.h.b16 %v1752
    %v3172 = vunpack.c.l.b16 %v1753
    %v3173 = vunpack.c.h.b16 %v1753
    %v3174 = vunpack.c.l.b16 %v1754
    %v3175 = vunpack.c.h.b16 %v1754
    %v3176 = vunpack.c.l.b16 %v1755
    %v3177 = vunpack.c.h.b16 %v1755
    %v3178 = vunpack.c.l.b16 %v1756
    %v3179 = vunpack.c.h.b16 %v1756
    %v3180 = vunpack.c.l.b16 %v1757
    %v3181 = vunpack.c.h.b16 %v1757
    %v3182 = vunpack.c.l.b16 %v1758
    %v3183 = vunpack.c.h.b16 %v1758
    %v3184 = vunpack.c.l.b16 %v1759
    %v3185 = vunpack.c.h.b16 %v1759
    %v3186 = vunpack.c.l.b16 %v1760
    %v3187 = vunpack.c.h.b16 %v1760
    %v3188 = vunpack.c.l.b16 %v1761
    %v3189 = vunpack.c.h.b16 %v1761
    %v3190 = vunpack.c.l.b16 %v1762
    %v3191 = vunpack.c.h.b16 %v1762
    %v3192 = vunpack.c.l.b16 %v1763
    %v3193 = vunpack.c.h.b16 %v1763
    %v3194 = vunpack.c.l.b16 %v1764
    %v3195 = vunpack.c.h.b16 %v1764
    %v3196 = vunpack.c.l.b16 %v1765
    %v3197 = vunpack.c.h.b16 %v1765
    %v3198 = vunpack.c.l.b16 %v1766
    %v3199 = vunpack.c.h.b16 %v1766
    %v3200 = vunpack.c.l.b16 %v1767
    %v3201 = vunpack.c.h.b16 %v1767
    %v3202 = vunpack.c.l.b16 %v1768
    %v3203 = vunpack.c.h.b16 %v1768
    %v3204 = vunpack.c.l.b16 %v1769
    %v3205 = vunpack.c.h.b16 %v1769
    %v3206 = vunpack.c.l.b16 %v1770
    %v3207 = vunpack.c.h.b16 %v1770
    %v3208 = vunpack.c.l.b16 %v1771
    %v3209 = vunpack.c.h.b16 %v1771
    %v3210 = vunpack.c.l.b16 %v1772
    %v3211 = vunpack.c.h.b16 %v1772
    %v3212 = vunpack.c.l.b16 %v1773
    %v3213 = vunpack.c.h.b16 %v1773
    %v3214 = vunpack.c.l.b16 %v1774
    %v3215 = vunpack.c.h.b16 %v1774
    %v3216 = vunpack.c.l.b16 %v1775
    %v3217 = vunpack.c.h.b16 %v1775
    %v3218 = vunpack.c.l.b16 %v1776
    %v3219 = vunpack.c.h.b16 %v1776
    %v3220 = vunpack.c.l.b16 %v1777
    %v3221 = vunpack.c.h.b16 %v1777
    %v3222 = vunpack.c.l.b16 %v1778
    %v3223 = vunpack.c.h.b16 %v1778
    %v3224 = vunpack.c.l.b16 %v1779
    %v3225 = vunpack.c.h.b16 %v1779
    %v3226 = vunpack.c.l.b16 %v1780
    %v3227 = vunpack.c.h.b16 %v1780
    %v3228 = vunpack.c.l.b16 %v1781
    %v3229 = vunpack.c.h.b16 %v1781
    %v3230 = vunpack.c.l.b16 %v1782
    %v3231 = vunpack.c.h.b16 %v1782
    %v3232 = vunpack.c.l.b16 %v1783
    %v3233 = vunpack.c.h.b16 %v1783
    %v3234 = vunpack.c.l.b16 %v1784
    %v3235 = vunpack.c.h.b16 %v1784
    %v3236 = vunpack.c.l.b16 %v1785
    %v3237 = vunpack.c.h.b16 %v1785
    %v3238 = vunpack.c.l.b16 %v1786
    %v3239 = vunpack.c.h.b16 %v1786
    %v3240 = vunpack.c.l.b16 %v1787
    %v3241 = vunpack.c.h.b16 %v1787
    %v3242 = vunpack.c.l.b16 %v1788
    %v3243 = vunpack.c.h.b16 %v1788
    %v3244 = vunpack.c.l.b16 %v1789
    %v3245 = vunpack.c.h.b16 %v1789
    %v3246 = vunpack.c.l.b16 %v1790
    %v3247 = vunpack.c.h.b16 %v1790
    %v3248 = vunpack.c.l.b16 %v1791
    %v3249 = vunpack.c.h.b16 %v1791
    %v3250 = vunpack.c.l.b16 %v1792
    %v3251 = vunpack.c.h.b16 %v1792
    %v3252 = vunpack.c.l.b16 %v1793
    %v3253 = vunpack.c.h.b16 %v1793
    %v3254 = vunpack.c.l.b16 %v1794
    %v3255 = vunpack.c.h.b16 %v1794
    %v3256 = vunpack.c.l.b16 %v1795
    %v3257 = vunpack.c.h.b16 %v1795
    %v3258 = vunpack.c.l.b16 %v1796
    %v3259 = vunpack.c.h.b16 %v1796
    %v3260 = vunpack.c.l.b16 %v1797
    %v3261 = vunpack.c.h.b16 %v1797
    %v3262 = vunpack.c.l.b16 %v1798
    %v3263 = vunpack.c.h.b16 %v1798
    %v3264 = vunpack.c.l.b16 %v1799
    %v3265 = vunpack.c.h.b16 %v1799
    %v3266 = vunpack.c.l.b16 %v1800
    %v3267 = vunpack.c.h.b16 %v1800
    %v3268 = vunpack.c.l.b16 %v1801
    %v3269 = vunpack.c.h.b16 %v1801
    %v3270 = vunpack.c.l.b16 %v1802
    %v3271 = vunpack.c.h.b16 %v1802
    %v3272 = vunpack.c.l.b16 %v1803
    %v3273 = vunpack.c.h.b16 %v1803
    %v3274 = vunpack.c.l.b16 %v1804
    %v3275 = vunpack.c.h.b16 %v1804
    %v3276 = vunpack.c.l.b16 %v1805
    %v3277 = vunpack.c.h.b16 %v1805
    %v3278 = vunpack.c.l.b16 %v1806
    %v3279 = vunpack.c.h.b16 %v1806
    %v3280 = vunpack.c.l.b16 %v1807
    %v3281 = vunpack.c.h.b16 %v1807
    %v3282 = vunpack.c.l.b16 %v1808
    %v3283 = vunpack.c.h.b16 %v1808
    %v3284 = vunpack.c.l.b16 %v1809
    %v3285 = vunpack.c.h.b16 %v1809
    %v3286 = vunpack.c.l.b16 %v1810
    %v3287 = vunpack.c.h.b16 %v1810
    %v3288 = vunpack.c.l.b16 %v1811
    %v3289 = vunpack.c.h.b16 %v1811
    %v3290 = vunpack.c.l.b16 %v1812
    %v3291 = vunpack.c.h.b16 %v1812
    %v3292 = vunpack.c.l.b16 %v1813
    %v3293 = vunpack.c.h.b16 %v1813
    %v3294 = vunpack.c.l.b16 %v1814
    %v3295 = vunpack.c.h.b16 %v1814
    %v3296 = vunpack.c.l.b16 %v1815
    %v3297 = vunpack.c.h.b16 %v1815
    %v3298 = vunpack.c.l.b16 %v1816
    %v3299 = vunpack.c.h.b16 %v1816
    %v3300 = vunpack.c.l.b16 %v1817
    %v3301 = vunpack.c.h.b16 %v1817
    %v3302 = vunpack.c.l.b16 %v1818
    %v3303 = vunpack.c.h.b16 %v1818
    %v3304 = vunpack.c.l.b16 %v1819
    %v3305 = vunpack.c.h.b16 %v1819
    %v3306 = vunpack.c.l.b16 %v1820
    %v3307 = vunpack.c.h.b16 %v1820
    %v3308 = vunpack.c.l.b16 %v1821
    %v3309 = vunpack.c.h.b16 %v1821
    %v3310 = vunpack.c.l.b16 %v1822
    %v3311 = vunpack.c.h.b16 %v1822
    %v3312 = vunpack.c.l.b16 %v1823
    %v3313 = vunpack.c.h.b16 %v1823
    %v3314 = vunpack.c.l.b16 %v1824
    %v3315 = vunpack.c.h.b16 %v1824
    %v3316 = vunpack.c.l.b16 %v1825
    %v3317 = vunpack.c.h.b16 %v1825
    %v3318 = vunpack.c.l.b16 %v1826
    %v3319 = vunpack.c.h.b16 %v1826
    %v3320 = vunpack.c.l.b16 %v1827
    %v3321 = vunpack.c.h.b16 %v1827
    %v3322 = vunpack.c.l.b16 %v1828
    %v3323 = vunpack.c.h.b16 %v1828
    %v3324 = vunpack.c.l.b16 %v1829
    %v3325 = vunpack.c.h.b16 %v1829
    %v3326 = vunpack.c.l.b16 %v1830
    %v3327 = vunpack.c.h.b16 %v1830
    %v3328 = vunpack.c.l.b16 %v1831
    %v3329 = vunpack.c.h.b16 %v1831
    %v3330 = vunpack.c.l.b16 %v1832
    %v3331 = vunpack.c.h.b16 %v1832
    %v3332 = vunpack.c.l.b16 %v1833
    %v3333 = vunpack.c.h.b16 %v1833
    %v3334 = vunpack.c.l.b16 %v1834
    %v3335 = vunpack.c.h.b16 %v1834
    %v3336 = vunpack.c.l.b16 %v1835
    %v3337 = vunpack.c.h.b16 %v1835
    %v3338 = vunpack.c.l.b16 %v1836
    %v3339 = vunpack.c.h.b16 %v1836
    %v3340 = vunpack.c.l.b16 %v1837
    %v3341 = vunpack.c.h.b16 %v1837
    %v3342 = vunpack.c.l.b16 %v1838
    %v3343 = vunpack.c.h.b16 %v1838
    %v3344 = vunpack.c.l.b16 %v1839
    %v3345 = vunpack.c.h.b16 %v1839
    %v3346 = vunpack.c.l.b16 %v1840
    %v3347 = vunpack.c.h.b16 %v1840
    %v3348 = vunpack.c.l.b16 %v1841
    %v3349 = vunpack.c.h.b16 %v1841
    %v3350 = vunpack.c.l.b16 %v1842
    %v3351 = vunpack.c.h.b16 %v1842
    %v3352 = vunpack.c.l.b16 %v1843
    %v3353 = vunpack.c.h.b16 %v1843
    %v3354 = vunpack.c.l.b16 %v1844
    %v3355 = vunpack.c.h.b16 %v1844
    %v3356 = vunpack.c.l.b16 %v1845
    %v3357 = vunpack.c.h.b16 %v1845
    %v3358 = vunpack.c.l.b16 %v1846
    %v3359 = vunpack.c.h.b16 %v1846
    %v3360 = vunpack.c.l.b16 %v1847
    %v3361 = vunpack.c.h.b16 %v1847
    %v3362 = vunpack.c.l.b16 %v1848
    %v3363 = vunpack.c.h.b16 %v1848
    %v3364 = vunpack.c.l.b16 %v1849
    %v3365 = vunpack.c.h.b16 %v1849
    %v3366 = vunpack.c.l.b16 %v1850
    %v3367 = vunpack.c.h.b16 %v1850
    %v3368 = vunpack.c.l.b16 %v1851
    %v3369 = vunpack.c.h.b16 %v1851
    %v3370 = vunpack.c.l.b16 %v1852
    %v3371 = vunpack.c.h.b16 %v1852
    %v3372 = vunpack.c.l.b16 %v1853
    %v3373 = vunpack.c.h.b16 %v1853
    %v3374 = vunpack.c.l.b16 %v1854
    %v3375 = vunpack.c.h.b16 %v1854
    %v3376 = vunpack.c.l.b16 %v1855
    %v3377 = vunpack.c.h.b16 %v1855
    %v3378 = vunpack.c.l.b16 %v1856
    %v3379 = vunpack.c.h.b16 %v1856
    %v3380 = vunpack.c.l.b16 %v1857
    %v3381 = vunpack.c.h.b16 %v1857
    %v3382 = vunpack.c.l.b16 %v1858
    %v3383 = vunpack.c.h.b16 %v1858
    %v3384 = vunpack.c.l.b16 %v1859
    %v3385 = vunpack.c.h.b16 %v1859
    %v3386 = vunpack.c.l.b16 %v1860
    %v3387 = vunpack.c.h.b16 %v1860
    %v3388 = vunpack.c.l.b16 %v1861
    %v3389 = vunpack.c.h.b16 %v1861
    %v3390 = vunpack.c.l.b16 %v1862
    %v3391 = vunpack.c.h.b16 %v1862
    %v3392 = vunpack.c.l.b16 %v1863
    %v3393 = vunpack.c.h.b16 %v1863
    %v3394 = vunpack.c.l.b16 %v1864
    %v3395 = vunpack.c.h.b16 %v1864
    %v3396 = vunpack.c.l.b16 %v1865
    %v3397 = vunpack.c.h.b16 %v1865
    %v3398 = vunpack.c.l.b16 %v1866
    %v3399 = vunpack.c.h.b16 %v1866
    %v3400 = vunpack.c.l.b16 %v1867
    %v3401 = vunpack.c.h.b16 %v1867
    %v3402 = vunpack.c.l.b16 %v1868
    %v3403 = vunpack.c.h.b16 %v1868
    %v3404 = vunpack.c.l.b16 %v1869
    %v3405 = vunpack.c.h.b16 %v1869
    %v3406 = vunpack.c.l.b16 %v1870
    %v3407 = vunpack.c.h.b16 %v1870
    %v3408 = vunpack.c.l.b16 %v1871
    %v3409 = vunpack.c.h.b16 %v1871
    %v3410 = vunpack.c.l.b16 %v1872
    %v3411 = vunpack.c.h.b16 %v1872
    %v3412 = vunpack.c.l.b16 %v1873
    %v3413 = vunpack.c.h.b16 %v1873
    %v3414 = vunpack.c.l.b16 %v1874
    %v3415 = vunpack.c.h.b16 %v1874
    %v3416 = vunpack.c.l.b16 %v1875
    %v3417 = vunpack.c.h.b16 %v1875
    %v3418 = vunpack.c.l.b16 %v1876
    %v3419 = vunpack.c.h.b16 %v1876
    %v3420 = vunpack.c.l.b16 %v1877
    %v3421 = vunpack.c.h.b16 %v1877
    %v3422 = vunpack.c.l.b16 %v1878
    %v3423 = vunpack.c.h.b16 %v1878
    %v3424 = vunpack.c.l.b16 %v1879
    %v3425 = vunpack.c.h.b16 %v1879
    %v3426 = vunpack.c.l.b16 %v1880
    %v3427 = vunpack.c.h.b16 %v1880
    %v3428 = vunpack.c.l.b16 %v1881
    %v3429 = vunpack.c.h.b16 %v1881
    %v3430 = vunpack.c.l.b16 %v1882
    %v3431 = vunpack.c.h.b16 %v1882
    %v3432 = vunpack.c.l.b16 %v1883
    %v3433 = vunpack.c.h.b16 %v1883
    %v3434 = vunpack.c.l.b16 %v1884
    %v3435 = vunpack.c.h.b16 %v1884
    %v3436 = vunpack.c.l.b16 %v1885
    %v3437 = vunpack.c.h.b16 %v1885
    %v3438 = vunpack.c.l.b16 %v1886
    %v3439 = vunpack.c.h.b16 %v1886
    %v3440 = vunpack.c.l.b16 %v1887
    %v3441 = vunpack.c.h.b16 %v1887
    %v3442 = vunpack.c.l.b16 %v1888
    %v3443 = vunpack.c.h.b16 %v1888
    %v3444 = vunpack.c.l.b16 %v1889
    %v3445 = vunpack.c.h.b16 %v1889
    %v3446 = vunpack.c.l.b16 %v1890
    %v3447 = vunpack.c.h.b16 %v1890
    %v3448 = vunpack.c.l.b16 %v1891
    %v3449 = vunpack.c.h.b16 %v1891
    %v3450 = vunpack.c.l.b16 %v1892
    %v3451 = vunpack.c.h.b16 %v1892
    %v3452 = vunpack.c.l.b16 %v1893
    %v3453 = vunpack.c.h.b16 %v1893
    %v3454 = vunpack.c.l.b16 %v1894
    %v3455 = vunpack.c.h.b16 %v1894
    %v3456 = vunpack.c.l.b16 %v1895
    %v3457 = vunpack.c.h.b16 %v1895
    %v3458 = vunpack.c.l.b16 %v1896
    %v3459 = vunpack.c.h.b16 %v1896
    %v3460 = vunpack.c.l.b16 %v1897
    %v3461 = vunpack.c.h.b16 %v1897
    %v3462 = vunpack.c.l.b16 %v1898
    %v3463 = vunpack.c.h.b16 %v1898
    %v3464 = vunpack.c.l.b16 %v1899
    %v3465 = vunpack.c.h.b16 %v1899
    %v3466 = vunpack.c.l.b16 %v1900
    %v3467 = vunpack.c.h.b16 %v1900
    %v3468 = vunpack.c.l.b16 %v1901
    %v3469 = vunpack.c.h.b16 %v1901
    %v3470 = vunpack.c.l.b16 %v1902
    %v3471 = vunpack.c.h.b16 %v1902
    %v3472 = vunpack.c.l.b16 %v1903
    %v3473 = vunpack.c.h.b16 %v1903
    %v3474 = vunpack.c.l.b16 %v1904
    %v3475 = vunpack.c.h.b16 %v1904
    %v3476 = vunpack.c.l.b16 %v1905
    %v3477 = vunpack.c.h.b16 %v1905
    %v3478 = vunpack.c.l.b16 %v1906
    %v3479 = vunpack.c.h.b16 %v1906
    %v3480 = vunpack.c.l.b16 %v1907
    %v3481 = vunpack.c.h.b16 %v1907
    %v3482 = vunpack.c.l.b16 %v1908
    %v3483 = vunpack.c.h.b16 %v1908
    %v3484 = vunpack.c.l.b16 %v1909
    %v3485 = vunpack.c.h.b16 %v1909
    %v3486 = vunpack.c.l.b16 %v1910
    %v3487 = vunpack.c.h.b16 %v1910
    %v3488 = vunpack.c.l.b16 %v1911
    %v3489 = vunpack.c.h.b16 %v1911
    %v3490 = vunpack.c.l.b16 %v1912
    %v3491 = vunpack.c.h.b16 %v1912
    %v3492 = vunpack.c.l.b16 %v1913
    %v3493 = vunpack.c.h.b16 %v1913
    %v3494 = vunpack.c.l.b16 %v1914
    %v3495 = vunpack.c.h.b16 %v1914
    %v3496 = vunpack.c.l.b16 %v1915
    %v3497 = vunpack.c.h.b16 %v1915
    %v3498 = vunpack.c.l.b16 %v1916
    %v3499 = vunpack.c.h.b16 %v1916
    %v3500 = vunpack.c.l.b16 %v1917
    %v3501 = vunpack.c.h.b16 %v1917
    %v3502 = vunpack.c.l.b16 %v1918
    %v3503 = vunpack.c.h.b16 %v1918
    %v3504 = vunpack.c.l.b16 %v1919
    %v3505 = vunpack.c.h.b16 %v1919
    %v3506 = vunpack.c.l.b16 %v1920
    %v3507 = vunpack.c.h.b16 %v1920
    %v3508 = vunpack.c.l.b16 %v1921
    %v3509 = vunpack.c.h.b16 %v1921
    %v3510 = vunpack.c.l.b16 %v1922
    %v3511 = vunpack.c.h.b16 %v1922
    %v3512 = vunpack.c.l.b16 %v1923
    %v3513 = vunpack.c.h.b16 %v1923
    %v3514 = vunpack.c.l.b16 %v1924
    %v3515 = vunpack.c.h.b16 %v1924
    %v3516 = vunpack.c.l.b16 %v1925
    %v3517 = vunpack.c.h.b16 %v1925
    %v3518 = vunpack.c.l.b16 %v1926
    %v3519 = vunpack.c.h.b16 %v1926
    %v3520 = vunpack.c.l.b16 %v1927
    %v3521 = vunpack.c.h.b16 %v1927
    %v3522 = vunpack.c.l.b16 %v1928
    %v3523 = vunpack.c.h.b16 %v1928
    %v3524 = vunpack.c.l.b16 %v1929
    %v3525 = vunpack.c.h.b16 %v1929
    %v3526 = vunpack.c.l.b16 %v1930
    %v3527 = vunpack.c.h.b16 %v1930
    %v3528 = vunpack.c.l.b16 %v1931
    %v3529 = vunpack.c.h.b16 %v1931
    %v3530 = vunpack.c.l.b16 %v1932
    %v3531 = vunpack.c.h.b16 %v1932
    %v3532 = vunpack.c.l.b16 %v1933
    %v3533 = vunpack.c.h.b16 %v1933
    %v3534 = vunpack.c.l.b16 %v1934
    %v3535 = vunpack.c.h.b16 %v1934
    %v3536 = vunpack.c.l.b16 %v1935
    %v3537 = vunpack.c.h.b16 %v1935
    %v3538 = vunpack.c.l.b16 %v1936
    %v3539 = vunpack.c.h.b16 %v1936
    %v3540 = vunpack.c.l.b16 %v1937
    %v3541 = vunpack.c.h.b16 %v1937
    %v3542 = vunpack.c.l.b16 %v1938
    %v3543 = vunpack.c.h.b16 %v1938
    %v3544 = vunpack.c.l.b16 %v1939
    %v3545 = vunpack.c.h.b16 %v1939
    %v3546 = vunpack.c.l.b16 %v1940
    %v3547 = vunpack.c.h.b16 %v1940
    %v3548 = vunpack.c.l.b16 %v1941
    %v3549 = vunpack.c.h.b16 %v1941
    %v3550 = vunpack.c.l.b16 %v1942
    %v3551 = vunpack.c.h.b16 %v1942
    %v3552 = vunpack.c.l.b16 %v1943
    %v3553 = vunpack.c.h.b16 %v1943
    %v3554 = vunpack.c.l.b16 %v1944
    %v3555 = vunpack.c.h.b16 %v1944
    %v3556 = vunpack.c.l.b16 %v1945
    %v3557 = vunpack.c.h.b16 %v1945
    %v3558 = vunpack.c.l.b16 %v1946
    %v3559 = vunpack.c.h.b16 %v1946
    %v3560 = vunpack.c.l.b16 %v1947
    %v3561 = vunpack.c.h.b16 %v1947
    %v3562 = vunpack.c.l.b16 %v1948
    %v3563 = vunpack.c.h.b16 %v1948
    %v3564 = vunpack.c.l.b16 %v1949
    %v3565 = vunpack.c.h.b16 %v1949
    %v3566 = vunpack.c.l.b16 %v1950
    %v3567 = vunpack.c.h.b16 %v1950
    %v3568 = vunpack.c.l.b16 %v1951
    %v3569 = vunpack.c.h.b16 %v1951
    %v3570 = vunpack.c.l.b16 %v1952
    %v3571 = vunpack.c.h.b16 %v1952
    %v3572 = vunpack.c.l.b16 %v1953
    %v3573 = vunpack.c.h.b16 %v1953
    %v3574 = vpack.c.b16 %v2566, %v2550
    %v3575 = vpack.c.b16 %v2567, %v2551
    %v3576 = vpack.c.b16 %v2568, %v2552
    %v3577 = vpack.c.b16 %v2569, %v2553
    %v3578 = vpack.c.b16 %v2570, %v2554
    %v3579 = vpack.c.b16 %v2571, %v2555
    %v3580 = vpack.c.b16 %v2572, %v2556
    %v3581 = vpack.c.b16 %v2573, %v2557
    %v3582 = vpack.c.b16 %v2574, %v2558
    %v3583 = vpack.c.b16 %v2575, %v2559
    %v3584 = vpack.c.b16 %v2576, %v2560
    %v3585 = vpack.c.b16 %v2577, %v2561
    %v3586 = vpack.c.b16 %v2578, %v2562
    %v3587 = vpack.c.b16 %v2579, %v2563
    %v3588 = vpack.c.b16 %v2580, %v2564
    %v3589 = vpack.c.b16 %v2581, %v2565
    %v3590 = vpack.c.b16 %v2598, %v2582
    %v3591 = vpack.c.b16 %v2599, %v2583
    %v3592 = vpack.c.b16 %v2600, %v2584
    %v3593 = vpack.c.b16 %v2601, %v2585
    %v3594 = vpack.c.b16 %v2602, %v2586
    %v3595 = vpack.c.b16 %v2603, %v2587
    %v3596 = vpack.c.b16 %v2604, %v2588
    %v3597 = vpack.c.b16 %v2605, %v2589
    %v3598 = vpack.c.b16 %v2606, %v2590
    %v3599 = vpack.c.b16 %v2607, %v2591
    %v3600 = vpack.c.b16 %v2608, %v2592
    %v3601 = vpack.c.b16 %v2609, %v2593
    %v3602 = vpack.c.b16 %v2610, %v2594
    %v3603 = vpack.c.b16 %v2611, %v2595
    %v3604 = vpack.c.b16 %v2612, %v2596
    %v3605 = vpack.c.b16 %v2613, %v2597
    %v3606 = vpack.c.b16 %v2630, %v2614
    %v3607 = vpack.c.b16 %v2631, %v2615
    %v3608 = vpack.c.b16 %v2632, %v2616
    %v3609 = vpack.c.b16 %v2633, %v2617
    %v3610 = vpack.c.b16 %v2634, %v2618
    %v3611 = vpack.c.b16 %v2635, %v2619
    %v3612 = vpack.c.b16 %v2636, %v2620
    %v3613 = vpack.c.b16 %v2637, %v2621
    %v3614 = vpack.c.b16 %v2638, %v2622
    %v3615 = vpack.c.b16 %v2639, %v2623
    %v3616 = vpack.c.b16 %v2640, %v2624
    %v3617 = vpack.c.b16 %v2641, %v2625
    %v3618 = vpack.c.b16 %v2642, %v2626
    %v3619 = vpack.c.b16 %v2643, %v2627
    %v3620 = vpack.c.b16 %v2644, %v2628
    %v3621 = vpack.c.b16 %v2645, %v2629
    %v3622 = vpack.c.b16 %v2662, %v2646
    %v3623 = vpack.c.b16 %v2663, %v2647
    %v3624 = vpack.c.b16 %v2664, %v2648
    %v3625 = vpack.c.b16 %v2665, %v2649
    %v3626 = vpack.c.b16 %v2666, %v2650
    %v3627 = vpack.c.b16 %v2667, %v2651
    %v3628 = vpack.c.b16 %v2668, %v2652
    %v3629 = vpack.c.b16 %v2669, %v2653
    %v3630 = vpack.c.b16 %v2670, %v2654
    %v3631 = vpack.c.b16 %v2671, %v2655
    %v3632 = vpack.c.b16 %v2672, %v2656
    %v3633 = vpack.c.b16 %v2673, %v2657
    %v3634 = vpack.c.b16 %v2674, %v2658
    %v3635 = vpack.c.b16 %v2675, %v2659
    %v3636 = vpack.c.b16 %v2676, %v2660
    %v3637 = vpack.c.b16 %v2677, %v2661
    %v3638 = vpack.c.b16 %v2694, %v2678
    %v3639 = vpack.c.b16 %v2695, %v2679
    %v3640 = vpack.c.b16 %v2696, %v2680
    %v3641 = vpack.c.b16 %v2697, %v2681
    %v3642 = vpack.c.b16 %v2698, %v2682
    %v3643 = vpack.c.b16 %v2699, %v2683
    %v3644 = vpack.c.b16 %v2700, %v2684
    %v3645 = vpack.c.b16 %v2701, %v2685
    %v3646 = vpack.c.b16 %v2702, %v2686
    %v3647 = vpack.c.b16 %v2703, %v2687
    %v3648 = vpack.c.b16 %v2704, %v2688
    %v3649 = vpack.c.b16 %v2705, %v2689
    %v3650 = vpack.c.b16 %v2706, %v2690
    %v3651 = vpack.c.b16 %v2707, %v2691
    %v3652 = vpack.c.b16 %v2708, %v2692
    %v3653 = vpack.c.b16 %v2709, %v2693
    %v3654 = vpack.c.b16 %v2726, %v2710
    %v3655 = vpack.c.b16 %v2727, %v2711
    %v3656 = vpack.c.b16 %v2728, %v2712
    %v3657 = vpack.c.b16 %v2729, %v2713
    %v3658 = vpack.c.b16 %v2730, %v2714
    %v3659 = vpack.c.b16 %v2731, %v2715
    %v3660 = vpack.c.b16 %v2732, %v2716
    %v3661 = vpack.c.b16 %v2733, %v2717
    %v3662 = vpack.c.b16 %v2734, %v2718
    %v3663 = vpack.c.b16 %v2735, %v2719
    %v3664 = vpack.c.b16 %v2736, %v2720
    %v3665 = vpack.c.b16 %v2737, %v2721
    %v3666 = vpack.c.b16 %v2738, %v2722
    %v3667 = vpack.c.b16 %v2739, %v2723
    %v3668 = vpack.c.b16 %v2740, %v2724
    %v3669 = vpack.c.b16 %v2741, %v2725
    %v3670 = vpack.c.b16 %v2758, %v2742
    %v3671 = vpack.c.b16 %v2759, %v2743
    %v3672 = vpack.c.b16 %v2760, %v2744
    %v3673 = vpack.c.b16 %v2761, %v2745
    %v3674 = vpack.c.b16 %v2762, %v2746
    %v3675 = vpack.c.b16 %v2763, %v2747
    %v3676 = vpack.c.b16 %v2764, %v2748
    %v3677 = vpack.c.b16 %v2765, %v2749
    %v3678 = vpack.c.b16 %v2766, %v2750
    %v3679 = vpack.c.b16 %v2767, %v2751
    %v3680 = vpack.c.b16 %v2768, %v2752
    %v3681 = vpack.c.b16 %v2769, %v2753
    %v3682 = vpack.c.b16 %v2770, %v2754
    %v3683 = vpack.c.b16 %v2771, %v2755
    %v3684 = vpack.c.b16 %v2772, %v2756
    %v3685 = vpack.c.b16 %v2773, %v2757
    %v3686 = vpack.c.b16 %v2790, %v2774
    %v3687 = vpack.c.b16 %v2791, %v2775
    %v3688 = vpack.c.b16 %v2792, %v2776
    %v3689 = vpack.c.b16 %v2793, %v2777
    %v3690 = vpack.c.b16 %v2794, %v2778
    %v3691 = vpack.c.b16 %v2795, %v2779
    %v3692 = vpack.c.b16 %v2796, %v2780
    %v3693 = vpack.c.b16 %v2797, %v2781
    %v3694 = vpack.c.b16 %v2798, %v2782
    %v3695 = vpack.c.b16 %v2799, %v2783
    %v3696 = vpack.c.b16 %v2800, %v2784
    %v3697 = vpack.c.b16 %v2801, %v2785
    %v3698 = vpack.c.b16 %v2802, %v2786
    %v3699 = vpack.c.b16 %v2803, %v2787
    %v3700 = vpack.c.b16 %v2804, %v2788
    %v3701 = vpack.c.b16 %v2805, %v2789
    %v3702 = vpack.c.b16 %v2822, %v2806
    %v3703 = vpack.c.b16 %v2823, %v2807
    %v3704 = vpack.c.b16 %v2824, %v2808
    %v3705 = vpack.c.b16 %v2825, %v2809
    %v3706 = vpack.c.b16 %v2826, %v2810
    %v3707 = vpack.c.b16 %v2827, %v2811
    %v3708 = vpack.c.b16 %v2828, %v2812
    %v3709 = vpack.c.b16 %v2829, %v2813
    %v3710 = vpack.c.b16 %v2830, %v2814
    %v3711 = vpack.c.b16 %v2831, %v2815
    %v3712 = vpack.c.b16 %v2832, %v2816
    %v3713 = vpack.c.b16 %v2833, %v2817
    %v3714 = vpack.c.b16 %v2834, %v2818
    %v3715 = vpack.c.b16 %v2835, %v2819
    %v3716 = vpack.c.b16 %v2836, %v2820
    %v3717 = vpack.c.b16 %v2837, %v2821
    %v3718 = vpack.c.b16 %v2854, %v2838
    %v3719 = vpack.c.b16 %v2855, %v2839
    %v3720 = vpack.c.b16 %v2856, %v2840
    %v3721 = vpack.c.b16 %v2857, %v2841
    %v3722 = vpack.c.b16 %v2858, %v2842
    %v3723 = vpack.c.b16 %v2859, %v2843
    %v3724 = vpack.c.b16 %v2860, %v2844
    %v3725 = vpack.c.b16 %v2861, %v2845
    %v3726 = vpack.c.b16 %v2862, %v2846
    %v3727 = vpack.c.b16 %v2863, %v2847
    %v3728 = vpack.c.b16 %v2864, %v2848
    %v3729 = vpack.c.b16 %v2865, %v2849
    %v3730 = vpack.c.b16 %v2866, %v2850
    %v3731 = vpack.c.b16 %v2867, %v2851
    %v3732 = vpack.c.b16 %v2868, %v2852
    %v3733 = vpack.c.b16 %v2869, %v2853
    %v3734 = vpack.c.b16 %v2886, %v2870
    %v3735 = vpack.c.b16 %v2887, %v2871
    %v3736 = vpack.c.b16 %v2888, %v2872
    %v3737 = vpack.c.b16 %v2889, %v2873
    %v3738 = vpack.c.b16 %v2890, %v2874
    %v3739 = vpack.c.b16 %v2891, %v2875
    %v3740 = vpack.c.b16 %v2892, %v2876
    %v3741 = vpack.c.b16 %v2893, %v2877
    %v3742 = vpack.c.b16 %v2894, %v2878
    %v3743 = vpack.c.b16 %v2895, %v2879
    %v3744 = vpack.c.b16 %v2896, %v2880
    %v3745 = vpack.c.b16 %v2897, %v2881
    %v3746 = vpack.c.b16 %v2898, %v2882
    %v3747 = vpack.c.b16 %v2899, %v2883
    %v3748 = vpack.c.b16 %v2900, %v2884
    %v3749 = vpack.c.b16 %v2901, %v2885
    %v3750 = vpack.c.b16 %v2918, %v2902
    %v3751 = vpack.c.b16 %v2919, %v2903
    %v3752 = vpack.c.b16 %v2920, %v2904
    %v3753 = vpack.c.b16 %v2921, %v2905
    %v3754 = vpack.c.b16 %v2922, %v2906
    %v3755 = vpack.c.b16 %v2923, %v2907
    %v3756 = vpack.c.b16 %v2924, %v2908
    %v3757 = vpack.c.b16 %v2925, %v2909
    %v3758 = vpack.c.b16 %v2926, %v2910
    %v3759 = vpack.c.b16 %v2927, %v2911
    %v3760 = vpack.c.b16 %v2928, %v2912
    %v3761 = vpack.c.b16 %v2929, %v2913
    %v3762 = vpack.c.b16 %v2930, %v2914
    %v3763 = vpack.c.b16 %v2931, %v2915
    %v3764 = vpack.c.b16 %v2932, %v2916
    %v3765 = vpack.c.b16 %v2933, %v2917
    %v3766 = vpack.c.b16 %v2950, %v2934
    %v3767 = vpack.c.b16 %v2951, %v2935
    %v3768 = vpack.c.b16 %v2952, %v2936
    %v3769 = vpack.c.b16 %v2953, %v2937
    %v3770 = vpack.c.b16 %v2954, %v2938
    %v3771 = vpack.c.b16 %v2955, %v2939
    %v3772 = vpack.c.b16 %v2956, %v2940
    %v3773 = vpack.c.b16 %v2957, %v2941
    %v3774 = vpack.c.b16 %v2958, %v2942
    %v3775 = vpack.c.b16 %v2959, %v2943
    %v3776 = vpack.c.b16 %v2960, %v2944
    %v3777 = vpack.c.b16 %v2961, %v2945
    %v3778 = vpack.c.b16 %v2962, %v2946
    %v3779 = vpack.c.b16 %v2963, %v2947
    %v3780 = vpack.c.b16 %v2964, %v2948
    %v3781 = vpack.c.b16 %v2965, %v2949
    %v3782 = vpack.c.b16 %v2982, %v2966
    %v3783 = vpack.c.b16 %v2983, %v2967
    %v3784 = vpack.c.b16 %v2984, %v2968
    %v3785 = vpack.c.b16 %v2985, %v2969
    %v3786 = vpack.c.b16 %v2986, %v2970
    %v3787 = vpack.c.b16 %v2987, %v2971
    %v3788 = vpack.c.b16 %v2988, %v2972
    %v3789 = vpack.c.b16 %v2989, %v2973
    %v3790 = vpack.c.b16 %v2990, %v2974
    %v3791 = vpack.c.b16 %v2991, %v2975
    %v3792 = vpack.c.b16 %v2992, %v2976
    %v3793 = vpack.c.b16 %v2993, %v2977
    %v3794 = vpack.c.b16 %v2994, %v2978
    %v3795 = vpack.c.b16 %v2995, %v2979
    %v3796 = vpack.c.b16 %v2996, %v2980
    %v3797 = vpack.c.b16 %v2997, %v2981
    %v3798 = vpack.c.b16 %v3014, %v2998
    %v3799 = vpack.c.b16 %v3015, %v2999
    %v3800 = vpack.c.b16 %v3016, %v3000
    %v3801 = vpack.c.b16 %v3017, %v3001
    %v3802 = vpack.c.b16 %v3018, %v3002
    %v3803 = vpack.c.b16 %v3019, %v3003
    %v3804 = vpack.c.b16 %v3020, %v3004
    %v3805 = vpack.c.b16 %v3021, %v3005
    %v3806 = vpack.c.b16 %v3022, %v3006
    %v3807 = vpack.c.b16 %v3023, %v3007
    %v3808 = vpack.c.b16 %v3024, %v3008
    %v3809 = vpack.c.b16 %v3025, %v3009
    %v3810 = vpack.c.b16 %v3026, %v3010
    %v3811 = vpack.c.b16 %v3027, %v3011
    %v3812 = vpack.c.b16 %v3028, %v3012
    %v3813 = vpack.c.b16 %v3029, %v3013
    %v3814 = vpack.c.b16 %v3046, %v3030
    %v3815 = vpack.c.b16 %v3047, %v3031
    %v3816 = vpack.c.b16 %v3048, %v3032
    %v3817 = vpack.c.b16 %v3049, %v3033
    %v3818 = vpack.c.b16 %v3050, %v3034
    %v3819 = vpack.c.b16 %v3051, %v3035
    %v3820 = vpack.c.b16 %v3052, %v3036
    %v3821 = vpack.c.b16 %v3053, %v3037
    %v3822 = vpack.c.b16 %v3054, %v3038
    %v3823 = vpack.c.b16 %v3055, %v3039
    %v3824 = vpack.c.b16 %v3056, %v3040
    %v3825 = vpack.c.b16 %v3057, %v3041
    %v3826 = vpack.c.b16 %v3058, %v3042
    %v3827 = vpack.c.b16 %v3059, %v3043
    %v3828 = vpack.c.b16 %v3060, %v3044
    %v3829 = vpack.c.b16 %v3061, %v3045
    %v3830 = vpack.c.b16 %v3078, %v3062
    %v3831 = vpack.c.b16 %v3079, %v3063
    %v3832 = vpack.c.b16 %v3080, %v3064
    %v3833 = vpack.c.b16 %v3081, %v3065
    %v3834 = vpack.c.b16 %v3082, %v3066
    %v3835 = vpack.c.b16 %v3083, %v3067
    %v3836 = vpack.c.b16 %v3084, %v3068
    %v3837 = vpack.c.b16 %v3085, %v3069
    %v3838 = vpack.c.b16 %v3086, %v3070
    %v3839 = vpack.c.b16 %v3087, %v3071
    %v3840 = vpack.c.b16 %v3088, %v3072
    %v3841 = vpack.c.b16 %v3089, %v3073
    %v3842 = vpack.c.b16 %v3090, %v3074
    %v3843 = vpack.c.b16 %v3091, %v3075
    %v3844 = vpack.c.b16 %v3092, %v3076
    %v3845 = vpack.c.b16 %v3093, %v3077
    %v3846 = vpack.c.b16 %v3110, %v3094
    %v3847 = vpack.c.b16 %v3111, %v3095
    %v3848 = vpack.c.b16 %v3112, %v3096
    %v3849 = vpack.c.b16 %v3113, %v3097
    %v3850 = vpack.c.b16 %v3114, %v3098
    %v3851 = vpack.c.b16 %v3115, %v3099
    %v3852 = vpack.c.b16 %v3116, %v3100
    %v3853 = vpack.c.b16 %v3117, %v3101
    %v3854 = vpack.c.b16 %v3118, %v3102
    %v3855 = vpack.c.b16 %v3119, %v3103
    %v3856 = vpack.c.b16 %v3120, %v3104
    %v3857 = vpack.c.b16 %v3121, %v3105
    %v3858 = vpack.c.b16 %v3122, %v3106
    %v3859 = vpack.c.b16 %v3123, %v3107
    %v3860 = vpack.c.b16 %v3124, %v3108
    %v3861 = vpack.c.b16 %v3125, %v3109
    %v3862 = vpack.c.b16 %v3142, %v3126
    %v3863 = vpack.c.b16 %v3143, %v3127
    %v3864 = vpack.c.b16 %v3144, %v3128
    %v3865 = vpack.c.b16 %v3145, %v3129
    %v3866 = vpack.c.b16 %v3146, %v3130
    %v3867 = vpack.c.b16 %v3147, %v3131
    %v3868 = vpack.c.b16 %v3148, %v3132
    %v3869 = vpack.c.b16 %v3149, %v3133
    %v3870 = vpack.c.b16 %v3150, %v3134
    %v3871 = vpack.c.b16 %v3151, %v3135
    %v3872 = vpack.c.b16 %v3152, %v3136
    %v3873 = vpack.c.b16 %v3153, %v3137
    %v3874 = vpack.c.b16 %v3154, %v3138
    %v3875 = vpack.c.b16 %v3155, %v3139
    %v3876 = vpack.c.b16 %v3156, %v3140
    %v3877 = vpack.c.b16 %v3157, %v3141
    %v3878 = vpack.c.b16 %v3174, %v3158
    %v3879 = vpack.c.b16 %v3175, %v3159
    %v3880 = vpack.c.b16 %v3176, %v3160
    %v3881 = vpack.c.b16 %v3177, %v3161
    %v3882 = vpack.c.b16 %v3178, %v3162
    %v3883 = vpack.c.b16 %v3179, %v3163
    %v3884 = vpack.c.b16 %v3180, %v3164
    %v3885 = vpack.c.b16 %v3181, %v3165
    %v3886 = vpack.c.b16 %v3182, %v3166
    %v3887 = vpack.c.b16 %v3183, %v3167
    %v3888 = vpack.c.b16 %v3184, %v3168
    %v3889 = vpack.c.b16 %v3185, %v3169
    %v3890 = vpack.c.b16 %v3186, %v3170
    %v3891 = vpack.c.b16 %v3187, %v3171
    %v3892 = vpack.c.b16 %v3188, %v3172
    %v3893 = vpack.c.b16 %v3189, %v3173
    %v3894 = vpack.c.b16 %v3206, %v3190
    %v3895 = vpack.c.b16 %v3207, %v3191
    %v3896 = vpack.c.b16 %v3208, %v3192
    %v3897 = vpack.c.b16 %v3209, %v3193
    %v3898 = vpack.c.b16 %v3210, %v3194
    %v3899 = vpack.c.b16 %v3211, %v3195
    %v3900 = vpack.c.b16 %v3212, %v3196
    %v3901 = vpack.c.b16 %v3213, %v3197
    %v3902 = vpack.c.b16 %v3214, %v3198
    %v3903 = vpack.c.b16 %v3215, %v3199
    %v3904 = vpack.c.b16 %v3216, %v3200
    %v3905 = vpack.c.b16 %v3217, %v3201
    %v3906 = vpack.c.b16 %v3218, %v3202
    %v3907 = vpack.c.b16 %v3219, %v3203
    %v3908 = vpack.c.b16 %v3220, %v3204
    %v3909 = vpack.c.b16 %v3221, %v3205
    %v3910 = vpack.c.b16 %v3238, %v3222
    %v3911 = vpack.c.b16 %v3239, %v3223
    %v3912 = vpack.c.b16 %v3240, %v3224
    %v3913 = vpack.c.b16 %v3241, %v3225
    %v3914 = vpack.c.b16 %v3242, %v3226
    %v3915 = vpack.c.b16 %v3243, %v3227
    %v3916 = vpack.c.b16 %v3244, %v3228
    %v3917 = vpack.c.b16 %v3245, %v3229
    %v3918 = vpack.c.b16 %v3246, %v3230
    %v3919 = vpack.c.b16 %v3247, %v3231
    %v3920 = vpack.c.b16 %v3248, %v3232
    %v3921 = vpack.c.b16 %v3249, %v3233
    %v3922 = vpack.c.b16 %v3250, %v3234
    %v3923 = vpack.c.b16 %v3251, %v3235
    %v3924 = vpack.c.b16 %v3252, %v3236
    %v3925 = vpack.c.b16 %v3253, %v3237
    %v3926 = vpack.c.b16 %v3270, %v3254
    %v3927 = vpack.c.b16 %v3271, %v3255
    %v3928 = vpack.c.b16 %v3272, %v3256
    %v3929 = vpack.c.b16 %v3273, %v3257
    %v3930 = vpack.c.b16 %v3274, %v3258
    %v3931 = vpack.c.b16 %v3275, %v3259
    %v3932 = vpack.c.b16 %v3276, %v3260
    %v3933 = vpack.c.b16 %v3277, %v3261
    %v3934 = vpack.c.b16 %v3278, %v3262
    %v3935 = vpack.c.b16 %v3279, %v3263
    %v3936 = vpack.c.b16 %v3280, %v3264
    %v3937 = vpack.c.b16 %v3281, %v3265
    %v3938 = vpack.c.b16 %v3282, %v3266
    %v3939 = vpack.c.b16 %v3283, %v3267
    %v3940 = vpack.c.b16 %v3284, %v3268
    %v3941 = vpack.c.b16 %v3285, %v3269
    %v3942 = vpack.c.b16 %v3302, %v3286
    %v3943 = vpack.c.b16 %v3303, %v3287
    %v3944 = vpack.c.b16 %v3304, %v3288
    %v3945 = vpack.c.b16 %v3305, %v3289
    %v3946 = vpack.c.b16 %v3306, %v3290
    %v3947 = vpack.c.b16 %v3307, %v3291
    %v3948 = vpack.c.b16 %v3308, %v3292
    %v3949 = vpack.c.b16 %v3309, %v3293
    %v3950 = vpack.c.b16 %v3310, %v3294
    %v3951 = vpack.c.b16 %v3311, %v3295
    %v3952 = vpack.c.b16 %v3312, %v3296
    %v3953 = vpack.c.b16 %v3313, %v3297
    %v3954 = vpack.c.b16 %v3314, %v3298
    %v3955 = vpack.c.b16 %v3315, %v3299
    %v3956 = vpack.c.b16 %v3316, %v3300
    %v3957 = vpack.c.b16 %v3317, %v3301
    %v3958 = vpack.c.b16 %v3334, %v3318
    %v3959 = vpack.c.b16 %v3335, %v3319
    %v3960 = vpack.c.b16 %v3336, %v3320
    %v3961 = vpack.c.b16 %v3337, %v3321
    %v3962 = vpack.c.b16 %v3338, %v3322
    %v3963 = vpack.c.b16 %v3339, %v3323
    %v3964 = vpack.c.b16 %v3340, %v3324
    %v3965 = vpack.c.b16 %v3341, %v3325
    %v3966 = vpack.c.b16 %v3342, %v3326
    %v3967 = vpack.c.b16 %v3343, %v3327
    %v3968 = vpack.c.b16 %v3344, %v3328
    %v3969 = vpack.c.b16 %v3345, %v3329
    %v3970 = vpack.c.b16 %v3346, %v3330
    %v3971 = vpack.c.b16 %v3347, %v3331
    %v3972 = vpack.c.b16 %v3348, %v3332
    %v3973 = vpack.c.b16 %v3349, %v3333
    %v3974 = vpack.c.b16 %v3366, %v3350
    %v3975 = vpack.c.b16 %v3367, %v3351
    %v3976 = vpack.c.b16 %v3368, %v3352
    %v3977 = vpack.c.b16 %v3369, %v3353
    %v3978 = vpack.c.b16 %v3370, %v3354
    %v3979 = vpack.c.b16 %v3371, %v3355
    %v3980 = vpack.c.b16 %v3372, %v3356
    %v3981 = vpack.c.b16 %v3373, %v3357
    %v3982 = vpack.c.b16 %v3374, %v3358
    %v3983 = vpack.c.b16 %v3375, %v3359
    %v3984 = vpack.c.b16 %v3376, %v3360
    %v3985 = vpack.c.b16 %v3377, %v3361
    %v3986 = vpack.c.b16 %v3378, %v3362
    %v3987 = vpack.c.b16 %v3379, %v3363
    %v3988 = vpack.c.b16 %v3380, %v3364
    %v3989 = vpack.c.b16 %v3381, %v3365
    %v3990 = vpack.c.b16 %v3398, %v3382
    %v3991 = vpack.c.b16 %v3399, %v3383
    %v3992 = vpack.c.b16 %v3400, %v3384
    %v3993 = vpack.c.b16 %v3401, %v3385
    %v3994 = vpack.c.b16 %v3402, %v3386
    %v3995 = vpack.c.b16 %v3403, %v3387
    %v3996 = vpack.c.b16 %v3404, %v3388
    %v3997 = vpack.c.b16 %v3405, %v3389
    %v3998 = vpack.c.b16 %v3406, %v3390
    %v3999 = vpack.c.b16 %v3407, %v3391
    %v4000 = vpack.c.b16 %v3408, %v3392
    %v4001 = vpack.c.b16 %v3409, %v3393
    %v4002 = vpack.c.b16 %v3410, %v3394
    %v4003 = vpack.c.b16 %v3411, %v3395
    %v4004 = vpack.c.b16 %v3412, %v3396
    %v4005 = vpack.c.b16 %v3413, %v3397
    %v4006 = vpack.c.b16 %v3430, %v3414
    %v4007 = vpack.c.b16 %v3431, %v3415
    %v4008 = vpack.c.b16 %v3432, %v3416
    %v4009 = vpack.c.b16 %v3433, %v3417
    %v4010 = vpack.c.b16 %v3434, %v3418
    %v4011 = vpack.c.b16 %v3435, %v3419
    %v4012 = vpack.c.b16 %v3436, %v3420
    %v4013 = vpack.c.b16 %v3437, %v3421
    %v4014 = vpack.c.b16 %v3438, %v3422
    %v4015 = vpack.c.b16 %v3439, %v3423
    %v4016 = vpack.c.b16 %v3440, %v3424
    %v4017 = vpack.c.b16 %v3441, %v3425
    %v4018 = vpack.c.b16 %v3442, %v3426
    %v4019 = vpack.c.b16 %v3443, %v3427
    %v4020 = vpack.c.b16 %v3444, %v3428
    %v4021 = vpack.c.b16 %v3445, %v3429
    %v4022 = vpack.c.b16 %v3462, %v3446
    %v4023 = vpack.c.b16 %v3463, %v3447
    %v4024 = vpack.c.b16 %v3464, %v3448
    %v4025 = vpack.c.b16 %v3465, %v3449
    %v4026 = vpack.c.b16 %v3466, %v3450
    %v4027 = vpack.c.b16 %v3467, %v3451
    %v4028 = vpack.c.b16 %v3468, %v3452
    %v4029 = vpack.c.b16 %v3469, %v3453
    %v4030 = vpack.c.b16 %v3470, %v3454
    %v4031 = vpack.c.b16 %v3471, %v3455
    %v4032 = vpack.c.b16 %v3472, %v3456
    %v4033 = vpack.c.b16 %v3473, %v3457
    %v4034 = vpack.c.b16 %v3474, %v3458
    %v4035 = vpack.c.b16 %v3475, %v3459
    %v4036 = vpack.c.b16 %v3476, %v3460
    %v4037 = vpack.c.b16 %v3477, %v3461
    %v4038 = vpack.c.b16 %v3494, %v3478
    %v4039 = vpack.c.b16 %v3495, %v3479
    %v4040 = vpack.c.b16 %v3496, %v3480
    %v4041 = vpack.c.b16 %v3497, %v3481
    %v4042 = vpack.c.b16 %v3498, %v3482
    %v4043 = vpack.c.b16 %v3499, %v3483
    %v4044 = vpack.c.b16 %v3500, %v3484
    %v4045 = vpack.c.b16 %v3501, %v3485
    %v4046 = vpack.c.b16 %v3502, %v3486
    %v4047 = vpack.c.b16 %v3503, %v3487
    %v4048 = vpack.c.b16 %v3504, %v3488
    %v4049 = vpack.c.b16 %v3505, %v3489
    %v4050 = vpack.c.b16 %v3506, %v3490
    %v4051 = vpack.c.b16 %v3507, %v3491
    %v4052 = vpack.c.b16 %v3508, %v3492
    %v4053 = vpack.c.b16 %v3509, %v3493
    %v4054 = vpack.c.b16 %v3526, %v3510
    %v4055 = vpack.c.b16 %v3527, %v3511
    %v4056 = vpack.c.b16 %v3528, %v3512
    %v4057 = vpack.c.b16 %v3529, %v3513
    %v4058 = vpack.c.b16 %v3530, %v3514
    %v4059 = vpack.c.b16 %v3531, %v3515
    %v4060 = vpack.c.b16 %v3532, %v3516
    %v4061 = vpack.c.b16 %v3533, %v3517
    %v4062 = vpack.c.b16 %v3534, %v3518
    %v4063 = vpack.c.b16 %v3535, %v3519
    %v4064 = vpack.c.b16 %v3536, %v3520
    %v4065 = vpack.c.b16 %v3537, %v3521
    %v4066 = vpack.c.b16 %v3538, %v3522
    %v4067 = vpack.c.b16 %v3539, %v3523
    %v4068 = vpack.c.b16 %v3540, %v3524
    %v4069 = vpack.c.b16 %v3541, %v3525
    %v4070 = vpack.c.b16 %v3558, %v3542
    %v4071 = vpack.c.b16 %v3559, %v3543
    %v4072 = vpack.c.b16 %v3560, %v3544
    %v4073 = vpack.c.b16 %v3561, %v3545
    %v4074 = vpack.c.b16 %v3562, %v3546
    %v4075 = vpack.c.b16 %v3563, %v3547
    %v4076 = vpack.c.b16 %v3564, %v3548
    %v4077 = vpack.c.b16 %v3565, %v3549
    %v4078 = vpack.c.b16 %v3566, %v3550
    %v4079 = vpack.c.b16 %v3567, %v3551
    %v4080 = vpack.c.b16 %v3568, %v3552
    %v4081 = vpack.c.b16 %v3569, %v3553
    %v4082 = vpack.c.b16 %v3570, %v3554
    %v4083 = vpack.c.b16 %v3571, %v3555
    %v4084 = vpack.c.b16 %v3572, %v3556
    %v4085 = vpack.c.b16 %v3573, %v3557
    %4598 = vmatprep.subr.bf16.mxu0 %v3687
    %4599 = vmatpush1.bf16.msra.mxu0 %v3686
    %4600 = vmatprep.subr.bf16.mxu0 %v3671
    %4601 = vmatpush1.bf16.msra.mxu0 %v3670
    %4602 = vmatprep.subr.bf16.mxu0 %v3655
    %4603 = vmatpush1.bf16.msra.mxu0 %v3654
    %4604 = vmatprep.subr.bf16.mxu0 %v3639
    %4605 = vmatpush1.bf16.msra.mxu0 %v3638
    %4606 = vmatprep.subr.bf16.mxu0 %v3623
    %4607 = vmatpush1.bf16.msra.mxu0 %v3622
    %4608 = vmatprep.subr.bf16.mxu0 %v3607
    %4609 = vmatpush1.bf16.msra.mxu0 %v3606
    %4610 = vmatprep.subr.bf16.mxu0 %v3591
    %4611 = vmatpush1.bf16.msra.mxu0 %v3590
    %4612 = vmatprep.subr.bf16.mxu0 %v3575
    %4613 = vmatpush1.bf16.msra.mxu0 %v3574
    %4614 = vmatprep.subr.bf16.mxu0 %v3815
    %4615 = vmatpush2.bf16.msra.mxu0 %v3814
    %4616 = vmatprep.subr.bf16.mxu0 %v3799
    %4617 = vmatpush2.bf16.msra.mxu0 %v3798
    %4618 = vmatprep.subr.bf16.mxu0 %v3783
    %4619 = vmatpush2.bf16.msra.mxu0 %v3782
    %4620 = vmatprep.subr.bf16.mxu0 %v3767
    %4621 = vmatpush2.bf16.msra.mxu0 %v3766
    %4622 = vmatprep.subr.bf16.mxu0 %v3751
    %4623 = vmatpush2.bf16.msra.mxu0 %v3750
    %4624 = vmatprep.subr.bf16.mxu0 %v3735
    %4625 = vmatpush2.bf16.msra.mxu0 %v3734
    %4626 = vmatprep.subr.bf16.mxu0 %v3719
    %4627 = vmatpush2.bf16.msra.mxu0 %v3718
    %4628 = vmatprep.subr.bf16.mxu0 %v3703
    %4629 = vmatpush2.bf16.msra.mxu0 %v3702
    %4630 = vmatprep.mubr.bf16.mxu0 %v1439
    %4631 = vmatmul.mubr.bf16.gmra.mxu0 %v1438
    %v4632 = vpop.f32.mrf.mxu0
    %v4633 = vadd.f32 %v1961, %v4632
    %v4634 = vpop.f32.mrf.mxu0
    %v4635 = vadd.f32 %v1965, %v4634
    %v4636 = vpop.f32.mrf.mxu0
    %v4637 = vadd.f32 %v1961, %v4636
    %v4638 = vpop.f32.mrf.mxu0
    %v4639 = vadd.f32 %v1965, %v4638
    %4640 = vdwg.mxu0
    %4641 = vmatprep.subr.bf16.mxu0 %v3943
    %4642 = vmatpush1.bf16.msra.mxu0 %v3942
    %4643 = vmatprep.subr.bf16.mxu0 %v3927
    %4644 = vmatpush1.bf16.msra.mxu0 %v3926
    %4645 = vmatprep.subr.bf16.mxu0 %v3911
    %4646 = vmatpush1.bf16.msra.mxu0 %v3910
    %4647 = vmatprep.subr.bf16.mxu0 %v3895
    %4648 = vmatpush1.bf16.msra.mxu0 %v3894
    %4649 = vmatprep.subr.bf16.mxu0 %v3879
    %4650 = vmatpush1.bf16.msra.mxu0 %v3878
    %4651 = vmatprep.subr.bf16.mxu0 %v3863
    %4652 = vmatpush1.bf16.msra.mxu0 %v3862
    %4653 = vmatprep.subr.bf16.mxu0 %v3847
    %4654 = vmatpush1.bf16.msra.mxu0 %v3846
    %4655 = vmatprep.subr.bf16.mxu0 %v3831
    %4656 = vmatpush1.bf16.msra.mxu0 %v3830
    %4657 = vmatprep.subr.bf16.mxu0 %v4071
    %4658 = vmatpush2.bf16.msra.mxu0 %v4070
    %4659 = vmatprep.subr.bf16.mxu0 %v4055
    %4660 = vmatpush2.bf16.msra.mxu0 %v4054
    %4661 = vmatprep.subr.bf16.mxu0 %v4039
    %4662 = vmatpush2.bf16.msra.mxu0 %v4038
    %4663 = vmatprep.subr.bf16.mxu0 %v4023
    %4664 = vmatpush2.bf16.msra.mxu0 %v4022
    %4665 = vmatprep.subr.bf16.mxu0 %v4007
    %4666 = vmatpush2.bf16.msra.mxu0 %v4006
    %4667 = vmatprep.subr.bf16.mxu0 %v3991
    %4668 = vmatpush2.bf16.msra.mxu0 %v3990
    %4669 = vmatprep.subr.bf16.mxu0 %v3975
    %4670 = vmatpush2.bf16.msra.mxu0 %v3974
    %4671 = vmatprep.subr.bf16.mxu0 %v3959
    %4672 = vmatpush2.bf16.msra.mxu0 %v3958
    %4673 = vmatprep.mubr.bf16.mxu0 %v1441
    %4674 = vmatmul.mubr.bf16.gmra.mxu0 %v1440
    %v4675 = vpop.f32.mrf.mxu0
    %v4676 = vadd.f32 %v4633, %v4675
    %v4677 = vpop.f32.mrf.mxu0
    %v4678 = vadd.f32 %v4635, %v4677
    %v4679 = vpop.f32.mrf.mxu0
    %v4680 = vadd.f32 %v4637, %v4679
    %v4681 = vpop.f32.mrf.mxu0
    %v4682 = vadd.f32 %v4639, %v4681
    %4683 = vdwg.mxu0
    %4684 = vmatprep.subr.bf16.mxu0 %v3689
    %4685 = vmatpush1.bf16.msra.mxu0 %v3688
    %4686 = vmatprep.subr.bf16.mxu0 %v3673
    %4687 = vmatpush1.bf16.msra.mxu0 %v3672
    %4688 = vmatprep.subr.bf16.mxu0 %v3657
    %4689 = vmatpush1.bf16.msra.mxu0 %v3656
    %4690 = vmatprep.subr.bf16.mxu0 %v3641
    %4691 = vmatpush1.bf16.msra.mxu0 %v3640
    %4692 = vmatprep.subr.bf16.mxu0 %v3625
    %4693 = vmatpush1.bf16.msra.mxu0 %v3624
    %4694 = vmatprep.subr.bf16.mxu0 %v3609
    %4695 = vmatpush1.bf16.msra.mxu0 %v3608
    %4696 = vmatprep.subr.bf16.mxu0 %v3593
    %4697 = vmatpush1.bf16.msra.mxu0 %v3592
    %4698 = vmatprep.subr.bf16.mxu0 %v3577
    %4699 = vmatpush1.bf16.msra.mxu0 %v3576
    %4700 = vmatprep.subr.bf16.mxu0 %v3817
    %4701 = vmatpush2.bf16.msra.mxu0 %v3816
    %4702 = vmatprep.subr.bf16.mxu0 %v3801
    %4703 = vmatpush2.bf16.msra.mxu0 %v3800
    %4704 = vmatprep.subr.bf16.mxu0 %v3785
    %4705 = vmatpush2.bf16.msra.mxu0 %v3784
    %4706 = vmatprep.subr.bf16.mxu0 %v3769
    %4707 = vmatpush2.bf16.msra.mxu0 %v3768
    %4708 = vmatprep.subr.bf16.mxu0 %v3753
    %4709 = vmatpush2.bf16.msra.mxu0 %v3752
    %4710 = vmatprep.subr.bf16.mxu0 %v3737
    %4711 = vmatpush2.bf16.msra.mxu0 %v3736
    %4712 = vmatprep.subr.bf16.mxu0 %v3721
    %4713 = vmatpush2.bf16.msra.mxu0 %v3720
    %4714 = vmatprep.subr.bf16.mxu0 %v3705
    %4715 = vmatpush2.bf16.msra.mxu0 %v3704
    %4716 = vmatprep.mubr.bf16.mxu0 %v1439
    %4717 = vmatmul.mubr.bf16.gmra.mxu0 %v1438
    %v4718 = vpop.f32.mrf.mxu0
    %v4719 = vadd.f32 %v1969, %v4718
    %v4720 = vpop.f32.mrf.mxu0
    %v4721 = vadd.f32 %v1973, %v4720
    %v4722 = vpop.f32.mrf.mxu0
    %v4723 = vadd.f32 %v1969, %v4722
    %v4724 = vpop.f32.mrf.mxu0
    %v4725 = vadd.f32 %v1973, %v4724
    %4726 = vdwg.mxu0
    %4727 = vmatprep.subr.bf16.mxu0 %v3945
    %4728 = vmatpush1.bf16.msra.mxu0 %v3944
    %4729 = vmatprep.subr.bf16.mxu0 %v3929
    %4730 = vmatpush1.bf16.msra.mxu0 %v3928
    %4731 = vmatprep.subr.bf16.mxu0 %v3913
    %4732 = vmatpush1.bf16.msra.mxu0 %v3912
    %4733 = vmatprep.subr.bf16.mxu0 %v3897
    %4734 = vmatpush1.bf16.msra.mxu0 %v3896
    %4735 = vmatprep.subr.bf16.mxu0 %v3881
    %4736 = vmatpush1.bf16.msra.mxu0 %v3880
    %4737 = vmatprep.subr.bf16.mxu0 %v3865
    %4738 = vmatpush1.bf16.msra.mxu0 %v3864
    %4739 = vmatprep.subr.bf16.mxu0 %v3849
    %4740 = vmatpush1.bf16.msra.mxu0 %v3848
    %4741 = vmatprep.subr.bf16.mxu0 %v3833
    %4742 = vmatpush1.bf16.msra.mxu0 %v3832
    %4743 = vmatprep.subr.bf16.mxu0 %v4073
    %4744 = vmatpush2.bf16.msra.mxu0 %v4072
    %4745 = vmatprep.subr.bf16.mxu0 %v4057
    %4746 = vmatpush2.bf16.msra.mxu0 %v4056
    %4747 = vmatprep.subr.bf16.mxu0 %v4041
    %4748 = vmatpush2.bf16.msra.mxu0 %v4040
    %4749 = vmatprep.subr.bf16.mxu0 %v4025
    %4750 = vmatpush2.bf16.msra.mxu0 %v4024
    %4751 = vmatprep.subr.bf16.mxu0 %v4009
    %4752 = vmatpush2.bf16.msra.mxu0 %v4008
    %4753 = vmatprep.subr.bf16.mxu0 %v3993
    %4754 = vmatpush2.bf16.msra.mxu0 %v3992
    %4755 = vmatprep.subr.bf16.mxu0 %v3977
    %4756 = vmatpush2.bf16.msra.mxu0 %v3976
    %4757 = vmatprep.subr.bf16.mxu0 %v3961
    %4758 = vmatpush2.bf16.msra.mxu0 %v3960
    %4759 = vmatprep.mubr.bf16.mxu0 %v1441
    %4760 = vmatmul.mubr.bf16.gmra.mxu0 %v1440
    %v4761 = vpop.f32.mrf.mxu0
    %v4762 = vadd.f32 %v4719, %v4761
    %v4763 = vpop.f32.mrf.mxu0
    %v4764 = vadd.f32 %v4721, %v4763
    %v4765 = vpop.f32.mrf.mxu0
    %v4766 = vadd.f32 %v4723, %v4765
    %v4767 = vpop.f32.mrf.mxu0
    %v4768 = vadd.f32 %v4725, %v4767
    %4769 = vdwg.mxu0
    %4770 = vmatprep.subr.bf16.mxu0 %v3691
    %4771 = vmatpush1.bf16.msra.mxu0 %v3690
    %4772 = vmatprep.subr.bf16.mxu0 %v3675
    %4773 = vmatpush1.bf16.msra.mxu0 %v3674
    %4774 = vmatprep.subr.bf16.mxu0 %v3659
    %4775 = vmatpush1.bf16.msra.mxu0 %v3658
    %4776 = vmatprep.subr.bf16.mxu0 %v3643
    %4777 = vmatpush1.bf16.msra.mxu0 %v3642
    %4778 = vmatprep.subr.bf16.mxu0 %v3627
    %4779 = vmatpush1.bf16.msra.mxu0 %v3626
    %4780 = vmatprep.subr.bf16.mxu0 %v3611
    %4781 = vmatpush1.bf16.msra.mxu0 %v3610
    %4782 = vmatprep.subr.bf16.mxu0 %v3595
    %4783 = vmatpush1.bf16.msra.mxu0 %v3594
    %4784 = vmatprep.subr.bf16.mxu0 %v3579
    %4785 = vmatpush1.bf16.msra.mxu0 %v3578
    %4786 = vmatprep.subr.bf16.mxu0 %v3819
    %4787 = vmatpush2.bf16.msra.mxu0 %v3818
    %4788 = vmatprep.subr.bf16.mxu0 %v3803
    %4789 = vmatpush2.bf16.msra.mxu0 %v3802
    %4790 = vmatprep.subr.bf16.mxu0 %v3787
    %4791 = vmatpush2.bf16.msra.mxu0 %v3786
    %4792 = vmatprep.subr.bf16.mxu0 %v3771
    %4793 = vmatpush2.bf16.msra.mxu0 %v3770
    %4794 = vmatprep.subr.bf16.mxu0 %v3755
    %4795 = vmatpush2.bf16.msra.mxu0 %v3754
    %4796 = vmatprep.subr.bf16.mxu0 %v3739
    %4797 = vmatpush2.bf16.msra.mxu0 %v3738
    %4798 = vmatprep.subr.bf16.mxu0 %v3723
    %4799 = vmatpush2.bf16.msra.mxu0 %v3722
    %4800 = vmatprep.subr.bf16.mxu0 %v3707
    %4801 = vmatpush2.bf16.msra.mxu0 %v3706
    %4802 = vmatprep.mubr.bf16.mxu0 %v1439
    %4803 = vmatmul.mubr.bf16.gmra.mxu0 %v1438
    %v4804 = vpop.f32.mrf.mxu0
    %v4805 = vadd.f32 %v1977, %v4804
    %v4806 = vpop.f32.mrf.mxu0
    %v4807 = vadd.f32 %v1981, %v4806
    %v4808 = vpop.f32.mrf.mxu0
    %v4809 = vadd.f32 %v1977, %v4808
    %v4810 = vpop.f32.mrf.mxu0
    %v4811 = vadd.f32 %v1981, %v4810
    %4812 = vdwg.mxu0
    %4813 = vmatprep.subr.bf16.mxu0 %v3947
    %4814 = vmatpush1.bf16.msra.mxu0 %v3946
    %4815 = vmatprep.subr.bf16.mxu0 %v3931
    %4816 = vmatpush1.bf16.msra.mxu0 %v3930
    %4817 = vmatprep.subr.bf16.mxu0 %v3915
    %4818 = vmatpush1.bf16.msra.mxu0 %v3914
    %4819 = vmatprep.subr.bf16.mxu0 %v3899
    %4820 = vmatpush1.bf16.msra.mxu0 %v3898
    %4821 = vmatprep.subr.bf16.mxu0 %v3883
    %4822 = vmatpush1.bf16.msra.mxu0 %v3882
    %4823 = vmatprep.subr.bf16.mxu0 %v3867
    %4824 = vmatpush1.bf16.msra.mxu0 %v3866
    %4825 = vmatprep.subr.bf16.mxu0 %v3851
    %4826 = vmatpush1.bf16.msra.mxu0 %v3850
    %4827 = vmatprep.subr.bf16.mxu0 %v3835
    %4828 = vmatpush1.bf16.msra.mxu0 %v3834
    %4829 = vmatprep.subr.bf16.mxu0 %v4075
    %4830 = vmatpush2.bf16.msra.mxu0 %v4074
    %4831 = vmatprep.subr.bf16.mxu0 %v4059
    %4832 = vmatpush2.bf16.msra.mxu0 %v4058
    %4833 = vmatprep.subr.bf16.mxu0 %v4043
    %4834 = vmatpush2.bf16.msra.mxu0 %v4042
    %4835 = vmatprep.subr.bf16.mxu0 %v4027
    %4836 = vmatpush2.bf16.msra.mxu0 %v4026
    %4837 = vmatprep.subr.bf16.mxu0 %v4011
    %4838 = vmatpush2.bf16.msra.mxu0 %v4010
    %4839 = vmatprep.subr.bf16.mxu0 %v3995
    %4840 = vmatpush2.bf16.msra.mxu0 %v3994
    %4841 = vmatprep.subr.bf16.mxu0 %v3979
    %4842 = vmatpush2.bf16.msra.mxu0 %v3978
    %4843 = vmatprep.subr.bf16.mxu0 %v3963
    %4844 = vmatpush2.bf16.msra.mxu0 %v3962
    %4845 = vmatprep.mubr.bf16.mxu0 %v1441
    %4846 = vmatmul.mubr.bf16.gmra.mxu0 %v1440
    %v4847 = vpop.f32.mrf.mxu0
    %v4848 = vadd.f32 %v4805, %v4847
    %v4849 = vpop.f32.mrf.mxu0
    %v4850 = vadd.f32 %v4807, %v4849
    %v4851 = vpop.f32.mrf.mxu0
    %v4852 = vadd.f32 %v4809, %v4851
    %v4853 = vpop.f32.mrf.mxu0
    %v4854 = vadd.f32 %v4811, %v4853
    %4855 = vdwg.mxu0
    %4856 = vmatprep.subr.bf16.mxu0 %v3693
    %4857 = vmatpush1.bf16.msra.mxu0 %v3692
    %4858 = vmatprep.subr.bf16.mxu0 %v3677
    %4859 = vmatpush1.bf16.msra.mxu0 %v3676
    %4860 = vmatprep.subr.bf16.mxu0 %v3661
    %4861 = vmatpush1.bf16.msra.mxu0 %v3660
    %4862 = vmatprep.subr.bf16.mxu0 %v3645
    %4863 = vmatpush1.bf16.msra.mxu0 %v3644
    %4864 = vmatprep.subr.bf16.mxu0 %v3629
    %4865 = vmatpush1.bf16.msra.mxu0 %v3628
    %4866 = vmatprep.subr.bf16.mxu0 %v3613
    %4867 = vmatpush1.bf16.msra.mxu0 %v3612
    %4868 = vmatprep.subr.bf16.mxu0 %v3597
    %4869 = vmatpush1.bf16.msra.mxu0 %v3596
    %4870 = vmatprep.subr.bf16.mxu0 %v3581
    %4871 = vmatpush1.bf16.msra.mxu0 %v3580
    %4872 = vmatprep.subr.bf16.mxu0 %v3821
    %4873 = vmatpush2.bf16.msra.mxu0 %v3820
    %4874 = vmatprep.subr.bf16.mxu0 %v3805
    %4875 = vmatpush2.bf16.msra.mxu0 %v3804
    %4876 = vmatprep.subr.bf16.mxu0 %v3789
    %4877 = vmatpush2.bf16.msra.mxu0 %v3788
    %4878 = vmatprep.subr.bf16.mxu0 %v3773
    %4879 = vmatpush2.bf16.msra.mxu0 %v3772
    %4880 = vmatprep.subr.bf16.mxu0 %v3757
    %4881 = vmatpush2.bf16.msra.mxu0 %v3756
    %4882 = vmatprep.subr.bf16.mxu0 %v3741
    %4883 = vmatpush2.bf16.msra.mxu0 %v3740
    %4884 = vmatprep.subr.bf16.mxu0 %v3725
    %4885 = vmatpush2.bf16.msra.mxu0 %v3724
    %4886 = vmatprep.subr.bf16.mxu0 %v3709
    %4887 = vmatpush2.bf16.msra.mxu0 %v3708
    %4888 = vmatprep.mubr.bf16.mxu0 %v1439
    %4889 = vmatmul.mubr.bf16.gmra.mxu0 %v1438
    %v4890 = vpop.f32.mrf.mxu0
    %v4891 = vadd.f32 %v1985, %v4890
    %v4892 = vpop.f32.mrf.mxu0
    %v4893 = vadd.f32 %v1989, %v4892
    %v4894 = vpop.f32.mrf.mxu0
    %v4895 = vadd.f32 %v1985, %v4894
    %v4896 = vpop.f32.mrf.mxu0
    %v4897 = vadd.f32 %v1989, %v4896
    %4898 = vdwg.mxu0
    %4899 = vmatprep.subr.bf16.mxu0 %v3949
    %4900 = vmatpush1.bf16.msra.mxu0 %v3948
    %4901 = vmatprep.subr.bf16.mxu0 %v3933
    %4902 = vmatpush1.bf16.msra.mxu0 %v3932
    %4903 = vmatprep.subr.bf16.mxu0 %v3917
    %4904 = vmatpush1.bf16.msra.mxu0 %v3916
    %4905 = vmatprep.subr.bf16.mxu0 %v3901
    %4906 = vmatpush1.bf16.msra.mxu0 %v3900
    %4907 = vmatprep.subr.bf16.mxu0 %v3885
    %4908 = vmatpush1.bf16.msra.mxu0 %v3884
    %4909 = vmatprep.subr.bf16.mxu0 %v3869
    %4910 = vmatpush1.bf16.msra.mxu0 %v3868
    %4911 = vmatprep.subr.bf16.mxu0 %v3853
    %4912 = vmatpush1.bf16.msra.mxu0 %v3852
    %4913 = vmatprep.subr.bf16.mxu0 %v3837
    %4914 = vmatpush1.bf16.msra.mxu0 %v3836
    %4915 = vmatprep.subr.bf16.mxu0 %v4077
    %4916 = vmatpush2.bf16.msra.mxu0 %v4076
    %4917 = vmatprep.subr.bf16.mxu0 %v4061
    %4918 = vmatpush2.bf16.msra.mxu0 %v4060
    %4919 = vmatprep.subr.bf16.mxu0 %v4045
    %4920 = vmatpush2.bf16.msra.mxu0 %v4044
    %4921 = vmatprep.subr.bf16.mxu0 %v4029
    %4922 = vmatpush2.bf16.msra.mxu0 %v4028
    %4923 = vmatprep.subr.bf16.mxu0 %v4013
    %4924 = vmatpush2.bf16.msra.mxu0 %v4012
    %4925 = vmatprep.subr.bf16.mxu0 %v3997
    %4926 = vmatpush2.bf16.msra.mxu0 %v3996
    %4927 = vmatprep.subr.bf16.mxu0 %v3981
    %4928 = vmatpush2.bf16.msra.mxu0 %v3980
    %4929 = vmatprep.subr.bf16.mxu0 %v3965
    %4930 = vmatpush2.bf16.msra.mxu0 %v3964
    %4931 = vmatprep.mubr.bf16.mxu0 %v1441
    %4932 = vmatmul.mubr.bf16.gmra.mxu0 %v1440
    %v4933 = vpop.f32.mrf.mxu0
    %v4934 = vadd.f32 %v4891, %v4933
    %v4935 = vpop.f32.mrf.mxu0
    %v4936 = vadd.f32 %v4893, %v4935
    %v4937 = vpop.f32.mrf.mxu0
    %v4938 = vadd.f32 %v4895, %v4937
    %v4939 = vpop.f32.mrf.mxu0
    %v4940 = vadd.f32 %v4897, %v4939
    %4941 = vdwg.mxu0
    %4942 = vmatprep.subr.bf16.mxu0 %v3695
    %4943 = vmatpush1.bf16.msra.mxu0 %v3694
    %4944 = vmatprep.subr.bf16.mxu0 %v3679
    %4945 = vmatpush1.bf16.msra.mxu0 %v3678
    %4946 = vmatprep.subr.bf16.mxu0 %v3663
    %4947 = vmatpush1.bf16.msra.mxu0 %v3662
    %4948 = vmatprep.subr.bf16.mxu0 %v3647
    %4949 = vmatpush1.bf16.msra.mxu0 %v3646
    %4950 = vmatprep.subr.bf16.mxu0 %v3631
    %4951 = vmatpush1.bf16.msra.mxu0 %v3630
    %4952 = vmatprep.subr.bf16.mxu0 %v3615
    %4953 = vmatpush1.bf16.msra.mxu0 %v3614
    %4954 = vmatprep.subr.bf16.mxu0 %v3599
    %4955 = vmatpush1.bf16.msra.mxu0 %v3598
    %4956 = vmatprep.subr.bf16.mxu0 %v3583
    %4957 = vmatpush1.bf16.msra.mxu0 %v3582
    %4958 = vmatprep.subr.bf16.mxu0 %v3823
    %4959 = vmatpush2.bf16.msra.mxu0 %v3822
    %4960 = vmatprep.subr.bf16.mxu0 %v3807
    %4961 = vmatpush2.bf16.msra.mxu0 %v3806
    %4962 = vmatprep.subr.bf16.mxu0 %v3791
    %4963 = vmatpush2.bf16.msra.mxu0 %v3790
    %4964 = vmatprep.subr.bf16.mxu0 %v3775
    %4965 = vmatpush2.bf16.msra.mxu0 %v3774
    %4966 = vmatprep.subr.bf16.mxu0 %v3759
    %4967 = vmatpush2.bf16.msra.mxu0 %v3758
    %4968 = vmatprep.subr.bf16.mxu0 %v3743
    %4969 = vmatpush2.bf16.msra.mxu0 %v3742
    %4970 = vmatprep.subr.bf16.mxu0 %v3727
    %4971 = vmatpush2.bf16.msra.mxu0 %v3726
    %4972 = vmatprep.subr.bf16.mxu0 %v3711
    %4973 = vmatpush2.bf16.msra.mxu0 %v3710
    %4974 = vmatprep.mubr.bf16.mxu0 %v1439
    %4975 = vmatmul.mubr.bf16.gmra.mxu0 %v1438
    %v4976 = vpop.f32.mrf.mxu0
    %v4977 = vadd.f32 %v1993, %v4976
    %v4978 = vpop.f32.mrf.mxu0
    %v4979 = vadd.f32 %v1997, %v4978
    %v4980 = vpop.f32.mrf.mxu0
    %v4981 = vadd.f32 %v1993, %v4980
    %v4982 = vpop.f32.mrf.mxu0
    %v4983 = vadd.f32 %v1997, %v4982
    %4984 = vdwg.mxu0
    %4985 = vmatprep.subr.bf16.mxu0 %v3951
    %4986 = vmatpush1.bf16.msra.mxu0 %v3950
    %4987 = vmatprep.subr.bf16.mxu0 %v3935
    %4988 = vmatpush1.bf16.msra.mxu0 %v3934
    %4989 = vmatprep.subr.bf16.mxu0 %v3919
    %4990 = vmatpush1.bf16.msra.mxu0 %v3918
    %4991 = vmatprep.subr.bf16.mxu0 %v3903
    %4992 = vmatpush1.bf16.msra.mxu0 %v3902
    %4993 = vmatprep.subr.bf16.mxu0 %v3887
    %4994 = vmatpush1.bf16.msra.mxu0 %v3886
    %4995 = vmatprep.subr.bf16.mxu0 %v3871
    %4996 = vmatpush1.bf16.msra.mxu0 %v3870
    %4997 = vmatprep.subr.bf16.mxu0 %v3855
    %4998 = vmatpush1.bf16.msra.mxu0 %v3854
    %4999 = vmatprep.subr.bf16.mxu0 %v3839
    %5000 = vmatpush1.bf16.msra.mxu0 %v3838
    %5001 = vmatprep.subr.bf16.mxu0 %v4079
    %5002 = vmatpush2.bf16.msra.mxu0 %v4078
    %5003 = vmatprep.subr.bf16.mxu0 %v4063
    %5004 = vmatpush2.bf16.msra.mxu0 %v4062
    %5005 = vmatprep.subr.bf16.mxu0 %v4047
    %5006 = vmatpush2.bf16.msra.mxu0 %v4046
    %5007 = vmatprep.subr.bf16.mxu0 %v4031
    %5008 = vmatpush2.bf16.msra.mxu0 %v4030
    %5009 = vmatprep.subr.bf16.mxu0 %v4015
    %5010 = vmatpush2.bf16.msra.mxu0 %v4014
    %5011 = vmatprep.subr.bf16.mxu0 %v3999
    %5012 = vmatpush2.bf16.msra.mxu0 %v3998
    %5013 = vmatprep.subr.bf16.mxu0 %v3983
    %5014 = vmatpush2.bf16.msra.mxu0 %v3982
    %5015 = vmatprep.subr.bf16.mxu0 %v3967
    %5016 = vmatpush2.bf16.msra.mxu0 %v3966
    %5017 = vmatprep.mubr.bf16.mxu0 %v1441
    %5018 = vmatmul.mubr.bf16.gmra.mxu0 %v1440
    %v5019 = vpop.f32.mrf.mxu0
    %v5020 = vadd.f32 %v4977, %v5019
    %v5021 = vpop.f32.mrf.mxu0
    %v5022 = vadd.f32 %v4979, %v5021
    %v5023 = vpop.f32.mrf.mxu0
    %v5024 = vadd.f32 %v4981, %v5023
    %v5025 = vpop.f32.mrf.mxu0
    %v5026 = vadd.f32 %v4983, %v5025
    %5027 = vdwg.mxu0
    %5028 = vmatprep.subr.bf16.mxu0 %v3697
    %5029 = vmatpush1.bf16.msra.mxu0 %v3696
    %5030 = vmatprep.subr.bf16.mxu0 %v3681
    %5031 = vmatpush1.bf16.msra.mxu0 %v3680
    %5032 = vmatprep.subr.bf16.mxu0 %v3665
    %5033 = vmatpush1.bf16.msra.mxu0 %v3664
    %5034 = vmatprep.subr.bf16.mxu0 %v3649
    %5035 = vmatpush1.bf16.msra.mxu0 %v3648
    %5036 = vmatprep.subr.bf16.mxu0 %v3633
    %5037 = vmatpush1.bf16.msra.mxu0 %v3632
    %5038 = vmatprep.subr.bf16.mxu0 %v3617
    %5039 = vmatpush1.bf16.msra.mxu0 %v3616
    %5040 = vmatprep.subr.bf16.mxu0 %v3601
    %5041 = vmatpush1.bf16.msra.mxu0 %v3600
    %5042 = vmatprep.subr.bf16.mxu0 %v3585
    %5043 = vmatpush1.bf16.msra.mxu0 %v3584
    %5044 = vmatprep.subr.bf16.mxu0 %v3825
    %5045 = vmatpush2.bf16.msra.mxu0 %v3824
    %5046 = vmatprep.subr.bf16.mxu0 %v3809
    %5047 = vmatpush2.bf16.msra.mxu0 %v3808
    %5048 = vmatprep.subr.bf16.mxu0 %v3793
    %5049 = vmatpush2.bf16.msra.mxu0 %v3792
    %5050 = vmatprep.subr.bf16.mxu0 %v3777
    %5051 = vmatpush2.bf16.msra.mxu0 %v3776
    %5052 = vmatprep.subr.bf16.mxu0 %v3761
    %5053 = vmatpush2.bf16.msra.mxu0 %v3760
    %5054 = vmatprep.subr.bf16.mxu0 %v3745
    %5055 = vmatpush2.bf16.msra.mxu0 %v3744
    %5056 = vmatprep.subr.bf16.mxu0 %v3729
    %5057 = vmatpush2.bf16.msra.mxu0 %v3728
    %5058 = vmatprep.subr.bf16.mxu0 %v3713
    %5059 = vmatpush2.bf16.msra.mxu0 %v3712
    %5060 = vmatprep.mubr.bf16.mxu0 %v1439
    %5061 = vmatmul.mubr.bf16.gmra.mxu0 %v1438
    %v5062 = vpop.f32.mrf.mxu0
    %v5063 = vadd.f32 %v2001, %v5062
    %v5064 = vpop.f32.mrf.mxu0
    %v5065 = vadd.f32 %v2005, %v5064
    %v5066 = vpop.f32.mrf.mxu0
    %v5067 = vadd.f32 %v2001, %v5066
    %v5068 = vpop.f32.mrf.mxu0
    %v5069 = vadd.f32 %v2005, %v5068
    %5070 = vdwg.mxu0
    %5071 = vmatprep.subr.bf16.mxu0 %v3953
    %5072 = vmatpush1.bf16.msra.mxu0 %v3952
    %5073 = vmatprep.subr.bf16.mxu0 %v3937
    %5074 = vmatpush1.bf16.msra.mxu0 %v3936
    %5075 = vmatprep.subr.bf16.mxu0 %v3921
    %5076 = vmatpush1.bf16.msra.mxu0 %v3920
    %5077 = vmatprep.subr.bf16.mxu0 %v3905
    %5078 = vmatpush1.bf16.msra.mxu0 %v3904
    %5079 = vmatprep.subr.bf16.mxu0 %v3889
    %5080 = vmatpush1.bf16.msra.mxu0 %v3888
    %5081 = vmatprep.subr.bf16.mxu0 %v3873
    %5082 = vmatpush1.bf16.msra.mxu0 %v3872
    %5083 = vmatprep.subr.bf16.mxu0 %v3857
    %5084 = vmatpush1.bf16.msra.mxu0 %v3856
    %5085 = vmatprep.subr.bf16.mxu0 %v3841
    %5086 = vmatpush1.bf16.msra.mxu0 %v3840
    %5087 = vmatprep.subr.bf16.mxu0 %v4081
    %5088 = vmatpush2.bf16.msra.mxu0 %v4080
    %5089 = vmatprep.subr.bf16.mxu0 %v4065
    %5090 = vmatpush2.bf16.msra.mxu0 %v4064
    %5091 = vmatprep.subr.bf16.mxu0 %v4049
    %5092 = vmatpush2.bf16.msra.mxu0 %v4048
    %5093 = vmatprep.subr.bf16.mxu0 %v4033
    %5094 = vmatpush2.bf16.msra.mxu0 %v4032
    %5095 = vmatprep.subr.bf16.mxu0 %v4017
    %5096 = vmatpush2.bf16.msra.mxu0 %v4016
    %5097 = vmatprep.subr.bf16.mxu0 %v4001
    %5098 = vmatpush2.bf16.msra.mxu0 %v4000
    %5099 = vmatprep.subr.bf16.mxu0 %v3985
    %5100 = vmatpush2.bf16.msra.mxu0 %v3984
    %5101 = vmatprep.subr.bf16.mxu0 %v3969
    %5102 = vmatpush2.bf16.msra.mxu0 %v3968
    %5103 = vmatprep.mubr.bf16.mxu0 %v1441
    %5104 = vmatmul.mubr.bf16.gmra.mxu0 %v1440
    %v5105 = vpop.f32.mrf.mxu0
    %v5106 = vadd.f32 %v5063, %v5105
    %v5107 = vpop.f32.mrf.mxu0
    %v5108 = vadd.f32 %v5065, %v5107
    %v5109 = vpop.f32.mrf.mxu0
    %v5110 = vadd.f32 %v5067, %v5109
    %v5111 = vpop.f32.mrf.mxu0
    %v5112 = vadd.f32 %v5069, %v5111
    %5113 = vdwg.mxu0
    %5114 = vmatprep.subr.bf16.mxu0 %v3699
    %5115 = vmatpush1.bf16.msra.mxu0 %v3698
    %5116 = vmatprep.subr.bf16.mxu0 %v3683
    %5117 = vmatpush1.bf16.msra.mxu0 %v3682
    %5118 = vmatprep.subr.bf16.mxu0 %v3667
    %5119 = vmatpush1.bf16.msra.mxu0 %v3666
    %5120 = vmatprep.subr.bf16.mxu0 %v3651
    %5121 = vmatpush1.bf16.msra.mxu0 %v3650
    %5122 = vmatprep.subr.bf16.mxu0 %v3635
    %5123 = vmatpush1.bf16.msra.mxu0 %v3634
    %5124 = vmatprep.subr.bf16.mxu0 %v3619
    %5125 = vmatpush1.bf16.msra.mxu0 %v3618
    %5126 = vmatprep.subr.bf16.mxu0 %v3603
    %5127 = vmatpush1.bf16.msra.mxu0 %v3602
    %5128 = vmatprep.subr.bf16.mxu0 %v3587
    %5129 = vmatpush1.bf16.msra.mxu0 %v3586
    %5130 = vmatprep.subr.bf16.mxu0 %v3827
    %5131 = vmatpush2.bf16.msra.mxu0 %v3826
    %5132 = vmatprep.subr.bf16.mxu0 %v3811
    %5133 = vmatpush2.bf16.msra.mxu0 %v3810
    %5134 = vmatprep.subr.bf16.mxu0 %v3795
    %5135 = vmatpush2.bf16.msra.mxu0 %v3794
    %5136 = vmatprep.subr.bf16.mxu0 %v3779
    %5137 = vmatpush2.bf16.msra.mxu0 %v3778
    %5138 = vmatprep.subr.bf16.mxu0 %v3763
    %5139 = vmatpush2.bf16.msra.mxu0 %v3762
    %5140 = vmatprep.subr.bf16.mxu0 %v3747
    %5141 = vmatpush2.bf16.msra.mxu0 %v3746
    %5142 = vmatprep.subr.bf16.mxu0 %v3731
    %5143 = vmatpush2.bf16.msra.mxu0 %v3730
    %5144 = vmatprep.subr.bf16.mxu0 %v3715
    %5145 = vmatpush2.bf16.msra.mxu0 %v3714
    %5146 = vmatprep.mubr.bf16.mxu0 %v1439
    %5147 = vmatmul.mubr.bf16.gmra.mxu0 %v1438
    %v5148 = vpop.f32.mrf.mxu0
    %v5149 = vadd.f32 %v2009, %v5148
    %v5150 = vpop.f32.mrf.mxu0
    %v5151 = vadd.f32 %v2013, %v5150
    %v5152 = vpop.f32.mrf.mxu0
    %v5153 = vadd.f32 %v2009, %v5152
    %v5154 = vpop.f32.mrf.mxu0
    %v5155 = vadd.f32 %v2013, %v5154
    %5156 = vdwg.mxu0
    %5157 = vmatprep.subr.bf16.mxu0 %v3955
    %5158 = vmatpush1.bf16.msra.mxu0 %v3954
    %5159 = vmatprep.subr.bf16.mxu0 %v3939
    %5160 = vmatpush1.bf16.msra.mxu0 %v3938
    %5161 = vmatprep.subr.bf16.mxu0 %v3923
    %5162 = vmatpush1.bf16.msra.mxu0 %v3922
    %5163 = vmatprep.subr.bf16.mxu0 %v3907
    %5164 = vmatpush1.bf16.msra.mxu0 %v3906
    %5165 = vmatprep.subr.bf16.mxu0 %v3891
    %5166 = vmatpush1.bf16.msra.mxu0 %v3890
    %5167 = vmatprep.subr.bf16.mxu0 %v3875
    %5168 = vmatpush1.bf16.msra.mxu0 %v3874
    %5169 = vmatprep.subr.bf16.mxu0 %v3859
    %5170 = vmatpush1.bf16.msra.mxu0 %v3858
    %5171 = vmatprep.subr.bf16.mxu0 %v3843
    %5172 = vmatpush1.bf16.msra.mxu0 %v3842
    %5173 = vmatprep.subr.bf16.mxu0 %v4083
    %5174 = vmatpush2.bf16.msra.mxu0 %v4082
    %5175 = vmatprep.subr.bf16.mxu0 %v4067
    %5176 = vmatpush2.bf16.msra.mxu0 %v4066
    %5177 = vmatprep.subr.bf16.mxu0 %v4051
    %5178 = vmatpush2.bf16.msra.mxu0 %v4050
    %5179 = vmatprep.subr.bf16.mxu0 %v4035
    %5180 = vmatpush2.bf16.msra.mxu0 %v4034
    %5181 = vmatprep.subr.bf16.mxu0 %v4019
    %5182 = vmatpush2.bf16.msra.mxu0 %v4018
    %5183 = vmatprep.subr.bf16.mxu0 %v4003
    %5184 = vmatpush2.bf16.msra.mxu0 %v4002
    %5185 = vmatprep.subr.bf16.mxu0 %v3987
    %5186 = vmatpush2.bf16.msra.mxu0 %v3986
    %5187 = vmatprep.subr.bf16.mxu0 %v3971
    %5188 = vmatpush2.bf16.msra.mxu0 %v3970
    %5189 = vmatprep.mubr.bf16.mxu0 %v1441
    %5190 = vmatmul.mubr.bf16.gmra.mxu0 %v1440
    %v5191 = vpop.f32.mrf.mxu0
    %v5192 = vadd.f32 %v5149, %v5191
    %v5193 = vpop.f32.mrf.mxu0
    %v5194 = vadd.f32 %v5151, %v5193
    %v5195 = vpop.f32.mrf.mxu0
    %v5196 = vadd.f32 %v5153, %v5195
    %v5197 = vpop.f32.mrf.mxu0
    %v5198 = vadd.f32 %v5155, %v5197
    %5199 = vdwg.mxu0
    %5200 = vmatprep.subr.bf16.mxu0 %v3701
    %5201 = vmatpush1.bf16.msra.mxu0 %v3700
    %5202 = vmatprep.subr.bf16.mxu0 %v3685
    %5203 = vmatpush1.bf16.msra.mxu0 %v3684
    %5204 = vmatprep.subr.bf16.mxu0 %v3669
    %5205 = vmatpush1.bf16.msra.mxu0 %v3668
    %5206 = vmatprep.subr.bf16.mxu0 %v3653
    %5207 = vmatpush1.bf16.msra.mxu0 %v3652
    %5208 = vmatprep.subr.bf16.mxu0 %v3637
    %5209 = vmatpush1.bf16.msra.mxu0 %v3636
    %5210 = vmatprep.subr.bf16.mxu0 %v3621
    %5211 = vmatpush1.bf16.msra.mxu0 %v3620
    %5212 = vmatprep.subr.bf16.mxu0 %v3605
    %5213 = vmatpush1.bf16.msra.mxu0 %v3604
    %5214 = vmatprep.subr.bf16.mxu0 %v3589
    %5215 = vmatpush1.bf16.msra.mxu0 %v3588
    %5216 = vmatprep.subr.bf16.mxu0 %v3829
    %5217 = vmatpush2.bf16.msra.mxu0 %v3828
    %5218 = vmatprep.subr.bf16.mxu0 %v3813
    %5219 = vmatpush2.bf16.msra.mxu0 %v3812
    %5220 = vmatprep.subr.bf16.mxu0 %v3797
    %5221 = vmatpush2.bf16.msra.mxu0 %v3796
    %5222 = vmatprep.subr.bf16.mxu0 %v3781
    %5223 = vmatpush2.bf16.msra.mxu0 %v3780
    %5224 = vmatprep.subr.bf16.mxu0 %v3765
    %5225 = vmatpush2.bf16.msra.mxu0 %v3764
    %5226 = vmatprep.subr.bf16.mxu0 %v3749
    %5227 = vmatpush2.bf16.msra.mxu0 %v3748
    %5228 = vmatprep.subr.bf16.mxu0 %v3733
    %5229 = vmatpush2.bf16.msra.mxu0 %v3732
    %5230 = vmatprep.subr.bf16.mxu0 %v3717
    %5231 = vmatpush2.bf16.msra.mxu0 %v3716
    %5232 = vmatprep.mubr.bf16.mxu0 %v1439
    %5233 = vmatmul.mubr.bf16.gmra.mxu0 %v1438
    %v5234 = vpop.f32.mrf.mxu0
    %v5235 = vadd.f32 %v2017, %v5234
    %v5236 = vpop.f32.mrf.mxu0
    %v5237 = vadd.f32 %v2021, %v5236
    %v5238 = vpop.f32.mrf.mxu0
    %v5239 = vadd.f32 %v2017, %v5238
    %v5240 = vpop.f32.mrf.mxu0
    %v5241 = vadd.f32 %v2021, %v5240
    %5242 = vdwg.mxu0
    %5243 = vmatprep.subr.bf16.mxu0 %v3957
    %5244 = vmatpush1.bf16.msra.mxu0 %v3956
    %5245 = vmatprep.subr.bf16.mxu0 %v3941
    %5246 = vmatpush1.bf16.msra.mxu0 %v3940
    %5247 = vmatprep.subr.bf16.mxu0 %v3925
    %5248 = vmatpush1.bf16.msra.mxu0 %v3924
    %5249 = vmatprep.subr.bf16.mxu0 %v3909
    %5250 = vmatpush1.bf16.msra.mxu0 %v3908
    %5251 = vmatprep.subr.bf16.mxu0 %v3893
    %5252 = vmatpush1.bf16.msra.mxu0 %v3892
    %5253 = vmatprep.subr.bf16.mxu0 %v3877
    %5254 = vmatpush1.bf16.msra.mxu0 %v3876
    %5255 = vmatprep.subr.bf16.mxu0 %v3861
    %5256 = vmatpush1.bf16.msra.mxu0 %v3860
    %5257 = vmatprep.subr.bf16.mxu0 %v3845
    %5258 = vmatpush1.bf16.msra.mxu0 %v3844
    %5259 = vmatprep.subr.bf16.mxu0 %v4085
    %5260 = vmatpush2.bf16.msra.mxu0 %v4084
    %5261 = vmatprep.subr.bf16.mxu0 %v4069
    %5262 = vmatpush2.bf16.msra.mxu0 %v4068
    %5263 = vmatprep.subr.bf16.mxu0 %v4053
    %5264 = vmatpush2.bf16.msra.mxu0 %v4052
    %5265 = vmatprep.subr.bf16.mxu0 %v4037
    %5266 = vmatpush2.bf16.msra.mxu0 %v4036
    %5267 = vmatprep.subr.bf16.mxu0 %v4021
    %5268 = vmatpush2.bf16.msra.mxu0 %v4020
    %5269 = vmatprep.subr.bf16.mxu0 %v4005
    %5270 = vmatpush2.bf16.msra.mxu0 %v4004
    %5271 = vmatprep.subr.bf16.mxu0 %v3989
    %5272 = vmatpush2.bf16.msra.mxu0 %v3988
    %5273 = vmatprep.subr.bf16.mxu0 %v3973
    %5274 = vmatpush2.bf16.msra.mxu0 %v3972
    %5275 = vmatprep.mubr.bf16.mxu0 %v1441
    %5276 = vmatmul.mubr.bf16.gmra.mxu0 %v1440
    %v5277 = vpop.f32.mrf.mxu0
    %v5278 = vadd.f32 %v5235, %v5277
    %v5279 = vpop.f32.mrf.mxu0
    %v5280 = vadd.f32 %v5237, %v5279
    %v5281 = vpop.f32.mrf.mxu0
    %v5282 = vadd.f32 %v5239, %v5281
    %v5283 = vpop.f32.mrf.mxu0
    %v5284 = vadd.f32 %v5241, %v5283
    %5285 = vdwg.mxu0
    %v5286 = vmax.f32 %v4676, 0.0
    %v5287 = vmax.f32 %v4678, 0.0
    %v5288 = vmax.f32 %v4762, 0.0
    %v5289 = vmax.f32 %v4764, 0.0
    %v5290 = vmax.f32 %v4848, 0.0
    %v5291 = vmax.f32 %v4850, 0.0
    %v5292 = vmax.f32 %v4934, 0.0
    %v5293 = vmax.f32 %v4936, 0.0
    %v5294 = vmax.f32 %v5020, 0.0
    %v5295 = vmax.f32 %v5022, 0.0
    %v5296 = vmax.f32 %v5106, 0.0
    %v5297 = vmax.f32 %v5108, 0.0
    %v5298 = vmax.f32 %v5192, 0.0
    %v5299 = vmax.f32 %v5194, 0.0
    %v5300 = vmax.f32 %v5278, 0.0
    %v5301 = vmax.f32 %v5280, 0.0
    %v5302 = vmax.f32 %v4680, 0.0
    %v5303 = vmax.f32 %v4682, 0.0
    %v5304 = vmax.f32 %v4766, 0.0
    %v5305 = vmax.f32 %v4768, 0.0
    %v5306 = vmax.f32 %v4852, 0.0
    %v5307 = vmax.f32 %v4854, 0.0
    %v5308 = vmax.f32 %v4938, 0.0
    %v5309 = vmax.f32 %v4940, 0.0
    %v5310 = vmax.f32 %v5024, 0.0
    %v5311 = vmax.f32 %v5026, 0.0
    %v5312 = vmax.f32 %v5110, 0.0
    %v5313 = vmax.f32 %v5112, 0.0
    %v5314 = vmax.f32 %v5196, 0.0
    %v5315 = vmax.f32 %v5198, 0.0
    %v5316 = vmax.f32 %v5282, 0.0
    %v5317 = vmax.f32 %v5284, 0.0
    %v5318 = vpack.c.bf16 %v5302, %v5286
    %v5319 = vpack.c.bf16 %v5303, %v5287
    %v5320 = vpack.c.bf16 %v5304, %v5288
    %v5321 = vpack.c.bf16 %v5305, %v5289
    %v5322 = vpack.c.bf16 %v5306, %v5290
    %v5323 = vpack.c.bf16 %v5307, %v5291
    %v5324 = vpack.c.bf16 %v5308, %v5292
    %v5325 = vpack.c.bf16 %v5309, %v5293
    %v5326 = vpack.c.bf16 %v5310, %v5294
    %v5327 = vpack.c.bf16 %v5311, %v5295
    %v5328 = vpack.c.bf16 %v5312, %v5296
    %v5329 = vpack.c.bf16 %v5313, %v5297
    %v5330 = vpack.c.bf16 %v5314, %v5298
    %v5331 = vpack.c.bf16 %v5315, %v5299
    %v5332 = vpack.c.bf16 %v5316, %v5300
    %v5333 = vpack.c.bf16 %v5317, %v5301
    %v5334 = vld [vmem:[#allocation14] sm:$0xf]
    %v5335 = vld [vmem:[#allocation14 + $0x4] sm:$0xf]
    %v5336 = vld [vmem:[#allocation14 + $0x8] sm:$0xf]
    %v5337 = vld [vmem:[#allocation14 + $0xc] sm:$0xf]
    %v5338 = vld [vmem:[#allocation14 + $0x10] sm:$0xf]
    %v5339 = vld [vmem:[#allocation14 + $0x14] sm:$0xf]
    %v5340 = vld [vmem:[#allocation14 + $0x18] sm:$0xf]
    %v5341 = vld [vmem:[#allocation14 + $0x1c] sm:$0xf]
    %v5342 = vld [vmem:[#allocation14 + $0x20] sm:$0xf]
    %v5343 = vld [vmem:[#allocation14 + $0x24] sm:$0xf]
    %v5344 = vld [vmem:[#allocation14 + $0x28] sm:$0xf]
    %v5345 = vld [vmem:[#allocation14 + $0x2c] sm:$0xf]
    %v5346 = vld [vmem:[#allocation14 + $0x30] sm:$0xf]
    %v5347 = vld [vmem:[#allocation14 + $0x34] sm:$0xf]
    %v5348 = vld [vmem:[#allocation14 + $0x38] sm:$0xf]
    %v5349 = vld [vmem:[#allocation14 + $0x3c] sm:$0xf]
    %v5350 = vld [vmem:[#allocation14 + $0x40] sm:$0xf]
    %v5351 = vld [vmem:[#allocation14 + $0x44] sm:$0xf]
    %v5352 = vld [vmem:[#allocation14 + $0x48] sm:$0xf]
    %v5353 = vld [vmem:[#allocation14 + $0x4c] sm:$0xf]
    %v5354 = vld [vmem:[#allocation14 + $0x50] sm:$0xf]
    %v5355 = vld [vmem:[#allocation14 + $0x54] sm:$0xf]
    %v5356 = vld [vmem:[#allocation14 + $0x58] sm:$0xf]
    %v5357 = vld [vmem:[#allocation14 + $0x5c] sm:$0xf]
    %v5358 = vld [vmem:[#allocation14 + $0x60] sm:$0xf]
    %v5359 = vld [vmem:[#allocation14 + $0x64] sm:$0xf]
    %v5360 = vld [vmem:[#allocation14 + $0x68] sm:$0xf]
    %v5361 = vld [vmem:[#allocation14 + $0x6c] sm:$0xf]
    %v5362 = vld [vmem:[#allocation14 + $0x70] sm:$0xf]
    %v5363 = vld [vmem:[#allocation14 + $0x74] sm:$0xf]
    %v5364 = vld [vmem:[#allocation14 + $0x78] sm:$0xf]
    %v5365 = vld [vmem:[#allocation14 + $0x7c] sm:$0xf]
    %v5366 = vld [vmem:[#allocation14 + $0x80] sm:$0xf]
    %v5367 = vld [vmem:[#allocation14 + $0x84] sm:$0xf]
    %v5368 = vld [vmem:[#allocation14 + $0x88] sm:$0xf]
    %v5369 = vld [vmem:[#allocation14 + $0x8c] sm:$0xf]
    %v5370 = vld [vmem:[#allocation14 + $0x90] sm:$0xf]
    %v5371 = vld [vmem:[#allocation14 + $0x94] sm:$0xf]
    %v5372 = vld [vmem:[#allocation14 + $0x98] sm:$0xf]
    %v5373 = vld [vmem:[#allocation14 + $0x9c] sm:$0xf]
    %v5374 = vld [vmem:[#allocation14 + $0xa0] sm:$0xf]
    %v5375 = vld [vmem:[#allocation14 + $0xa4] sm:$0xf]
    %v5376 = vld [vmem:[#allocation14 + $0xa8] sm:$0xf]
    %v5377 = vld [vmem:[#allocation14 + $0xac] sm:$0xf]
    %v5378 = vld [vmem:[#allocation14 + $0xb0] sm:$0xf]
    %v5379 = vld [vmem:[#allocation14 + $0xb4] sm:$0xf]
    %v5380 = vld [vmem:[#allocation14 + $0xb8] sm:$0xf]
    %v5381 = vld [vmem:[#allocation14 + $0xbc] sm:$0xf]
    %v5382 = vld [vmem:[#allocation14 + $0xc0] sm:$0xf]
    %v5383 = vld [vmem:[#allocation14 + $0xc4] sm:$0xf]
    %v5384 = vld [vmem:[#allocation14 + $0xc8] sm:$0xf]
    %v5385 = vld [vmem:[#allocation14 + $0xcc] sm:$0xf]
    %v5386 = vld [vmem:[#allocation14 + $0xd0] sm:$0xf]
    %v5387 = vld [vmem:[#allocation14 + $0xd4] sm:$0xf]
    %v5388 = vld [vmem:[#allocation14 + $0xd8] sm:$0xf]
    %v5389 = vld [vmem:[#allocation14 + $0xdc] sm:$0xf]
    %v5390 = vld [vmem:[#allocation14 + $0xe0] sm:$0xf]
    %v5391 = vld [vmem:[#allocation14 + $0xe4] sm:$0xf]
    %v5392 = vld [vmem:[#allocation14 + $0xe8] sm:$0xf]
    %v5393 = vld [vmem:[#allocation14 + $0xec] sm:$0xf]
    %v5394 = vld [vmem:[#allocation14 + $0xf0] sm:$0xf]
    %v5395 = vld [vmem:[#allocation14 + $0xf4] sm:$0xf]
    %v5396 = vld [vmem:[#allocation14 + $0xf8] sm:$0xf]
    %v5397 = vld [vmem:[#allocation14 + $0xfc] sm:$0xf]
    %v5398 = vld [vmem:[#allocation14 + $0x100] sm:$0xf]
    %v5399 = vld [vmem:[#allocation14 + $0x104] sm:$0xf]
    %v5400 = vld [vmem:[#allocation14 + $0x108] sm:$0xf]
    %v5401 = vld [vmem:[#allocation14 + $0x10c] sm:$0xf]
    %v5402 = vld [vmem:[#allocation14 + $0x110] sm:$0xf]
    %v5403 = vld [vmem:[#allocation14 + $0x114] sm:$0xf]
    %v5404 = vld [vmem:[#allocation14 + $0x118] sm:$0xf]
    %v5405 = vld [vmem:[#allocation14 + $0x11c] sm:$0xf]
    %v5406 = vld [vmem:[#allocation14 + $0x120] sm:$0xf]
    %v5407 = vld [vmem:[#allocation14 + $0x124] sm:$0xf]
    %v5408 = vld [vmem:[#allocation14 + $0x128] sm:$0xf]
    %v5409 = vld [vmem:[#allocation14 + $0x12c] sm:$0xf]
    %v5410 = vld [vmem:[#allocation14 + $0x130] sm:$0xf]
    %v5411 = vld [vmem:[#allocation14 + $0x134] sm:$0xf]
    %v5412 = vld [vmem:[#allocation14 + $0x138] sm:$0xf]
    %v5413 = vld [vmem:[#allocation14 + $0x13c] sm:$0xf]
    %v5414 = vld [vmem:[#allocation14 + $0x140] sm:$0xf]
    %v5415 = vld [vmem:[#allocation14 + $0x144] sm:$0xf]
    %v5416 = vld [vmem:[#allocation14 + $0x148] sm:$0xf]
    %v5417 = vld [vmem:[#allocation14 + $0x14c] sm:$0xf]
    %v5418 = vld [vmem:[#allocation14 + $0x150] sm:$0xf]
    %v5419 = vld [vmem:[#allocation14 + $0x154] sm:$0xf]
    %v5420 = vld [vmem:[#allocation14 + $0x158] sm:$0xf]
    %v5421 = vld [vmem:[#allocation14 + $0x15c] sm:$0xf]
    %v5422 = vld [vmem:[#allocation14 + $0x160] sm:$0xf]
    %v5423 = vld [vmem:[#allocation14 + $0x164] sm:$0xf]
    %v5424 = vld [vmem:[#allocation14 + $0x168] sm:$0xf]
    %v5425 = vld [vmem:[#allocation14 + $0x16c] sm:$0xf]
    %v5426 = vld [vmem:[#allocation14 + $0x170] sm:$0xf]
    %v5427 = vld [vmem:[#allocation14 + $0x174] sm:$0xf]
    %v5428 = vld [vmem:[#allocation14 + $0x178] sm:$0xf]
    %v5429 = vld [vmem:[#allocation14 + $0x17c] sm:$0xf]
    %v5430 = vld [vmem:[#allocation14 + $0x180] sm:$0xf]
    %v5431 = vld [vmem:[#allocation14 + $0x184] sm:$0xf]
    %v5432 = vld [vmem:[#allocation14 + $0x188] sm:$0xf]
    %v5433 = vld [vmem:[#allocation14 + $0x18c] sm:$0xf]
    %v5434 = vld [vmem:[#allocation14 + $0x190] sm:$0xf]
    %v5435 = vld [vmem:[#allocation14 + $0x194] sm:$0xf]
    %v5436 = vld [vmem:[#allocation14 + $0x198] sm:$0xf]
    %v5437 = vld [vmem:[#allocation14 + $0x19c] sm:$0xf]
    %v5438 = vld [vmem:[#allocation14 + $0x1a0] sm:$0xf]
    %v5439 = vld [vmem:[#allocation14 + $0x1a4] sm:$0xf]
    %v5440 = vld [vmem:[#allocation14 + $0x1a8] sm:$0xf]
    %v5441 = vld [vmem:[#allocation14 + $0x1ac] sm:$0xf]
    %v5442 = vld [vmem:[#allocation14 + $0x1b0] sm:$0xf]
    %v5443 = vld [vmem:[#allocation14 + $0x1b4] sm:$0xf]
    %v5444 = vld [vmem:[#allocation14 + $0x1b8] sm:$0xf]
    %v5445 = vld [vmem:[#allocation14 + $0x1bc] sm:$0xf]
    %v5446 = vld [vmem:[#allocation14 + $0x1c0] sm:$0xf]
    %v5447 = vld [vmem:[#allocation14 + $0x1c4] sm:$0xf]
    %v5448 = vld [vmem:[#allocation14 + $0x1c8] sm:$0xf]
    %v5449 = vld [vmem:[#allocation14 + $0x1cc] sm:$0xf]
    %v5450 = vld [vmem:[#allocation14 + $0x1d0] sm:$0xf]
    %v5451 = vld [vmem:[#allocation14 + $0x1d4] sm:$0xf]
    %v5452 = vld [vmem:[#allocation14 + $0x1d8] sm:$0xf]
    %v5453 = vld [vmem:[#allocation14 + $0x1dc] sm:$0xf]
    %v5454 = vld [vmem:[#allocation14 + $0x1e0] sm:$0xf]
    %v5455 = vld [vmem:[#allocation14 + $0x1e4] sm:$0xf]
    %v5456 = vld [vmem:[#allocation14 + $0x1e8] sm:$0xf]
    %v5457 = vld [vmem:[#allocation14 + $0x1ec] sm:$0xf]
    %v5458 = vld [vmem:[#allocation14 + $0x1f0] sm:$0xf]
    %v5459 = vld [vmem:[#allocation14 + $0x1f4] sm:$0xf]
    %v5460 = vld [vmem:[#allocation14 + $0x1f8] sm:$0xf]
    %v5461 = vld [vmem:[#allocation14 + $0x1fc] sm:$0xf]
    %v5462 = vld [vmem:[#allocation14 + $0x200] sm:$0xf]
    %v5463 = vld [vmem:[#allocation14 + $0x204] sm:$0xf]
    %v5464 = vld [vmem:[#allocation14 + $0x208] sm:$0xf]
    %v5465 = vld [vmem:[#allocation14 + $0x20c] sm:$0xf]
    %v5466 = vld [vmem:[#allocation14 + $0x210] sm:$0xf]
    %v5467 = vld [vmem:[#allocation14 + $0x214] sm:$0xf]
    %v5468 = vld [vmem:[#allocation14 + $0x218] sm:$0xf]
    %v5469 = vld [vmem:[#allocation14 + $0x21c] sm:$0xf]
    %v5470 = vld [vmem:[#allocation14 + $0x220] sm:$0xf]
    %v5471 = vld [vmem:[#allocation14 + $0x224] sm:$0xf]
    %v5472 = vld [vmem:[#allocation14 + $0x228] sm:$0xf]
    %v5473 = vld [vmem:[#allocation14 + $0x22c] sm:$0xf]
    %v5474 = vld [vmem:[#allocation14 + $0x230] sm:$0xf]
    %v5475 = vld [vmem:[#allocation14 + $0x234] sm:$0xf]
    %v5476 = vld [vmem:[#allocation14 + $0x238] sm:$0xf]
    %v5477 = vld [vmem:[#allocation14 + $0x23c] sm:$0xf]
    %v5478 = vld [vmem:[#allocation14 + $0x240] sm:$0xf]
    %v5479 = vld [vmem:[#allocation14 + $0x244] sm:$0xf]
    %v5480 = vld [vmem:[#allocation14 + $0x248] sm:$0xf]
    %v5481 = vld [vmem:[#allocation14 + $0x24c] sm:$0xf]
    %v5482 = vld [vmem:[#allocation14 + $0x250] sm:$0xf]
    %v5483 = vld [vmem:[#allocation14 + $0x254] sm:$0xf]
    %v5484 = vld [vmem:[#allocation14 + $0x258] sm:$0xf]
    %v5485 = vld [vmem:[#allocation14 + $0x25c] sm:$0xf]
    %v5486 = vld [vmem:[#allocation14 + $0x260] sm:$0xf]
    %v5487 = vld [vmem:[#allocation14 + $0x264] sm:$0xf]
    %v5488 = vld [vmem:[#allocation14 + $0x268] sm:$0xf]
    %v5489 = vld [vmem:[#allocation14 + $0x26c] sm:$0xf]
    %v5490 = vld [vmem:[#allocation14 + $0x270] sm:$0xf]
    %v5491 = vld [vmem:[#allocation14 + $0x274] sm:$0xf]
    %v5492 = vld [vmem:[#allocation14 + $0x278] sm:$0xf]
    %v5493 = vld [vmem:[#allocation14 + $0x27c] sm:$0xf]
    %v5494 = vld [vmem:[#allocation14 + $0x280] sm:$0xf]
    %v5495 = vld [vmem:[#allocation14 + $0x284] sm:$0xf]
    %v5496 = vld [vmem:[#allocation14 + $0x288] sm:$0xf]
    %v5497 = vld [vmem:[#allocation14 + $0x28c] sm:$0xf]
    %v5498 = vld [vmem:[#allocation14 + $0x290] sm:$0xf]
    %v5499 = vld [vmem:[#allocation14 + $0x294] sm:$0xf]
    %v5500 = vld [vmem:[#allocation14 + $0x298] sm:$0xf]
    %v5501 = vld [vmem:[#allocation14 + $0x29c] sm:$0xf]
    %v5502 = vld [vmem:[#allocation14 + $0x2a0] sm:$0xf]
    %v5503 = vld [vmem:[#allocation14 + $0x2a4] sm:$0xf]
    %v5504 = vld [vmem:[#allocation14 + $0x2a8] sm:$0xf]
    %v5505 = vld [vmem:[#allocation14 + $0x2ac] sm:$0xf]
    %v5506 = vld [vmem:[#allocation14 + $0x2b0] sm:$0xf]
    %v5507 = vld [vmem:[#allocation14 + $0x2b4] sm:$0xf]
    %v5508 = vld [vmem:[#allocation14 + $0x2b8] sm:$0xf]
    %v5509 = vld [vmem:[#allocation14 + $0x2bc] sm:$0xf]
    %v5510 = vld [vmem:[#allocation14 + $0x2c0] sm:$0xf]
    %v5511 = vld [vmem:[#allocation14 + $0x2c4] sm:$0xf]
    %v5512 = vld [vmem:[#allocation14 + $0x2c8] sm:$0xf]
    %v5513 = vld [vmem:[#allocation14 + $0x2cc] sm:$0xf]
    %v5514 = vld [vmem:[#allocation14 + $0x2d0] sm:$0xf]
    %v5515 = vld [vmem:[#allocation14 + $0x2d4] sm:$0xf]
    %v5516 = vld [vmem:[#allocation14 + $0x2d8] sm:$0xf]
    %v5517 = vld [vmem:[#allocation14 + $0x2dc] sm:$0xf]
    %v5518 = vld [vmem:[#allocation14 + $0x2e0] sm:$0xf]
    %v5519 = vld [vmem:[#allocation14 + $0x2e4] sm:$0xf]
    %v5520 = vld [vmem:[#allocation14 + $0x2e8] sm:$0xf]
    %v5521 = vld [vmem:[#allocation14 + $0x2ec] sm:$0xf]
    %v5522 = vld [vmem:[#allocation14 + $0x2f0] sm:$0xf]
    %v5523 = vld [vmem:[#allocation14 + $0x2f4] sm:$0xf]
    %v5524 = vld [vmem:[#allocation14 + $0x2f8] sm:$0xf]
    %v5525 = vld [vmem:[#allocation14 + $0x2fc] sm:$0xf]
    %v5526 = vld [vmem:[#allocation14 + $0x300] sm:$0xf]
    %v5527 = vld [vmem:[#allocation14 + $0x304] sm:$0xf]
    %v5528 = vld [vmem:[#allocation14 + $0x308] sm:$0xf]
    %v5529 = vld [vmem:[#allocation14 + $0x30c] sm:$0xf]
    %v5530 = vld [vmem:[#allocation14 + $0x310] sm:$0xf]
    %v5531 = vld [vmem:[#allocation14 + $0x314] sm:$0xf]
    %v5532 = vld [vmem:[#allocation14 + $0x318] sm:$0xf]
    %v5533 = vld [vmem:[#allocation14 + $0x31c] sm:$0xf]
    %v5534 = vld [vmem:[#allocation14 + $0x320] sm:$0xf]
    %v5535 = vld [vmem:[#allocation14 + $0x324] sm:$0xf]
    %v5536 = vld [vmem:[#allocation14 + $0x328] sm:$0xf]
    %v5537 = vld [vmem:[#allocation14 + $0x32c] sm:$0xf]
    %v5538 = vld [vmem:[#allocation14 + $0x330] sm:$0xf]
    %v5539 = vld [vmem:[#allocation14 + $0x334] sm:$0xf]
    %v5540 = vld [vmem:[#allocation14 + $0x338] sm:$0xf]
    %v5541 = vld [vmem:[#allocation14 + $0x33c] sm:$0xf]
    %v5542 = vld [vmem:[#allocation14 + $0x340] sm:$0xf]
    %v5543 = vld [vmem:[#allocation14 + $0x344] sm:$0xf]
    %v5544 = vld [vmem:[#allocation14 + $0x348] sm:$0xf]
    %v5545 = vld [vmem:[#allocation14 + $0x34c] sm:$0xf]
    %v5546 = vld [vmem:[#allocation14 + $0x350] sm:$0xf]
    %v5547 = vld [vmem:[#allocation14 + $0x354] sm:$0xf]
    %v5548 = vld [vmem:[#allocation14 + $0x358] sm:$0xf]
    %v5549 = vld [vmem:[#allocation14 + $0x35c] sm:$0xf]
    %v5550 = vld [vmem:[#allocation14 + $0x360] sm:$0xf]
    %v5551 = vld [vmem:[#allocation14 + $0x364] sm:$0xf]
    %v5552 = vld [vmem:[#allocation14 + $0x368] sm:$0xf]
    %v5553 = vld [vmem:[#allocation14 + $0x36c] sm:$0xf]
    %v5554 = vld [vmem:[#allocation14 + $0x370] sm:$0xf]
    %v5555 = vld [vmem:[#allocation14 + $0x374] sm:$0xf]
    %v5556 = vld [vmem:[#allocation14 + $0x378] sm:$0xf]
    %v5557 = vld [vmem:[#allocation14 + $0x37c] sm:$0xf]
    %v5558 = vld [vmem:[#allocation14 + $0x380] sm:$0xf]
    %v5559 = vld [vmem:[#allocation14 + $0x384] sm:$0xf]
    %v5560 = vld [vmem:[#allocation14 + $0x388] sm:$0xf]
    %v5561 = vld [vmem:[#allocation14 + $0x38c] sm:$0xf]
    %v5562 = vld [vmem:[#allocation14 + $0x390] sm:$0xf]
    %v5563 = vld [vmem:[#allocation14 + $0x394] sm:$0xf]
    %v5564 = vld [vmem:[#allocation14 + $0x398] sm:$0xf]
    %v5565 = vld [vmem:[#allocation14 + $0x39c] sm:$0xf]
    %v5566 = vld [vmem:[#allocation14 + $0x3a0] sm:$0xf]
    %v5567 = vld [vmem:[#allocation14 + $0x3a4] sm:$0xf]
    %v5568 = vld [vmem:[#allocation14 + $0x3a8] sm:$0xf]
    %v5569 = vld [vmem:[#allocation14 + $0x3ac] sm:$0xf]
    %v5570 = vld [vmem:[#allocation14 + $0x3b0] sm:$0xf]
    %v5571 = vld [vmem:[#allocation14 + $0x3b4] sm:$0xf]
    %v5572 = vld [vmem:[#allocation14 + $0x3b8] sm:$0xf]
    %v5573 = vld [vmem:[#allocation14 + $0x3bc] sm:$0xf]
    %v5574 = vld [vmem:[#allocation14 + $0x3c0] sm:$0xf]
    %v5575 = vld [vmem:[#allocation14 + $0x3c4] sm:$0xf]
    %v5576 = vld [vmem:[#allocation14 + $0x3c8] sm:$0xf]
    %v5577 = vld [vmem:[#allocation14 + $0x3cc] sm:$0xf]
    %v5578 = vld [vmem:[#allocation14 + $0x3d0] sm:$0xf]
    %v5579 = vld [vmem:[#allocation14 + $0x3d4] sm:$0xf]
    %v5580 = vld [vmem:[#allocation14 + $0x3d8] sm:$0xf]
    %v5581 = vld [vmem:[#allocation14 + $0x3dc] sm:$0xf]
    %v5582 = vld [vmem:[#allocation14 + $0x3e0] sm:$0xf]
    %v5583 = vld [vmem:[#allocation14 + $0x3e4] sm:$0xf]
    %v5584 = vld [vmem:[#allocation14 + $0x3e8] sm:$0xf]
    %v5585 = vld [vmem:[#allocation14 + $0x3ec] sm:$0xf]
    %v5586 = vld [vmem:[#allocation14 + $0x3f0] sm:$0xf]
    %v5587 = vld [vmem:[#allocation14 + $0x3f4] sm:$0xf]
    %v5588 = vld [vmem:[#allocation14 + $0x3f8] sm:$0xf]
    %v5589 = vld [vmem:[#allocation14 + $0x3fc] sm:$0xf]
    %v5590 = vld [vmem:[#allocation16] sm:$0x1]
    %v5592 = vlaneseq
    %v5593 = vshrl.u32 %v5592, 7
    %v5594 = vsub.s32 0, %v5593
    %v5595 = vrot.slane %v5590, %v5594
    %v5853 = vunpack.c.l.b16 %v5334
    %v5854 = vunpack.c.l.b16 %v5335
    %v5855 = vunpack.c.l.b16 %v5336
    %v5856 = vunpack.c.l.b16 %v5337
    %v5857 = vunpack.c.l.b16 %v5338
    %v5858 = vunpack.c.l.b16 %v5339
    %v5859 = vunpack.c.l.b16 %v5340
    %v5860 = vunpack.c.l.b16 %v5341
    %v5861 = vunpack.c.l.b16 %v5342
    %v5862 = vunpack.c.l.b16 %v5343
    %v5863 = vunpack.c.l.b16 %v5344
    %v5864 = vunpack.c.l.b16 %v5345
    %v5865 = vunpack.c.l.b16 %v5346
    %v5866 = vunpack.c.l.b16 %v5347
    %v5867 = vunpack.c.l.b16 %v5348
    %v5868 = vunpack.c.l.b16 %v5349
    %v5869 = vunpack.c.l.b16 %v5350
    %v5870 = vunpack.c.l.b16 %v5351
    %v5871 = vunpack.c.l.b16 %v5352
    %v5872 = vunpack.c.l.b16 %v5353
    %v5873 = vunpack.c.l.b16 %v5354
    %v5874 = vunpack.c.l.b16 %v5355
    %v5875 = vunpack.c.l.b16 %v5356
    %v5876 = vunpack.c.l.b16 %v5357
    %v5877 = vunpack.c.l.b16 %v5358
    %v5878 = vunpack.c.l.b16 %v5359
    %v5879 = vunpack.c.l.b16 %v5360
    %v5880 = vunpack.c.l.b16 %v5361
    %v5881 = vunpack.c.l.b16 %v5362
    %v5882 = vunpack.c.l.b16 %v5363
    %v5883 = vunpack.c.l.b16 %v5364
    %v5884 = vunpack.c.l.b16 %v5365
    %v5885 = vunpack.c.l.b16 %v5366
    %v5886 = vunpack.c.l.b16 %v5367
    %v5887 = vunpack.c.l.b16 %v5368
    %v5888 = vunpack.c.l.b16 %v5369
    %v5889 = vunpack.c.l.b16 %v5370
    %v5890 = vunpack.c.l.b16 %v5371
    %v5891 = vunpack.c.l.b16 %v5372
    %v5892 = vunpack.c.l.b16 %v5373
    %v5893 = vunpack.c.l.b16 %v5374
    %v5894 = vunpack.c.l.b16 %v5375
    %v5895 = vunpack.c.l.b16 %v5376
    %v5896 = vunpack.c.l.b16 %v5377
    %v5897 = vunpack.c.l.b16 %v5378
    %v5898 = vunpack.c.l.b16 %v5379
    %v5899 = vunpack.c.l.b16 %v5380
    %v5900 = vunpack.c.l.b16 %v5381
    %v5901 = vunpack.c.l.b16 %v5382
    %v5902 = vunpack.c.l.b16 %v5383
    %v5903 = vunpack.c.l.b16 %v5384
    %v5904 = vunpack.c.l.b16 %v5385
    %v5905 = vunpack.c.l.b16 %v5386
    %v5906 = vunpack.c.l.b16 %v5387
    %v5907 = vunpack.c.l.b16 %v5388
    %v5908 = vunpack.c.l.b16 %v5389
    %v5909 = vunpack.c.l.b16 %v5390
    %v5910 = vunpack.c.l.b16 %v5391
    %v5911 = vunpack.c.l.b16 %v5392
    %v5912 = vunpack.c.l.b16 %v5393
    %v5913 = vunpack.c.l.b16 %v5394
    %v5914 = vunpack.c.l.b16 %v5395
    %v5915 = vunpack.c.l.b16 %v5396
    %v5916 = vunpack.c.l.b16 %v5397
    %v5917 = vunpack.c.l.b16 %v5398
    %v5918 = vunpack.c.l.b16 %v5399
    %v5919 = vunpack.c.l.b16 %v5400
    %v5920 = vunpack.c.l.b16 %v5401
    %v5921 = vunpack.c.l.b16 %v5402
    %v5922 = vunpack.c.l.b16 %v5403
    %v5923 = vunpack.c.l.b16 %v5404
    %v5924 = vunpack.c.l.b16 %v5405
    %v5925 = vunpack.c.l.b16 %v5406
    %v5926 = vunpack.c.l.b16 %v5407
    %v5927 = vunpack.c.l.b16 %v5408
    %v5928 = vunpack.c.l.b16 %v5409
    %v5929 = vunpack.c.l.b16 %v5410
    %v5930 = vunpack.c.l.b16 %v5411
    %v5931 = vunpack.c.l.b16 %v5412
    %v5932 = vunpack.c.l.b16 %v5413
    %v5933 = vunpack.c.l.b16 %v5414
    %v5934 = vunpack.c.l.b16 %v5415
    %v5935 = vunpack.c.l.b16 %v5416
    %v5936 = vunpack.c.l.b16 %v5417
    %v5937 = vunpack.c.l.b16 %v5418
    %v5938 = vunpack.c.l.b16 %v5419
    %v5939 = vunpack.c.l.b16 %v5420
    %v5940 = vunpack.c.l.b16 %v5421
    %v5941 = vunpack.c.l.b16 %v5422
    %v5942 = vunpack.c.l.b16 %v5423
    %v5943 = vunpack.c.l.b16 %v5424
    %v5944 = vunpack.c.l.b16 %v5425
    %v5945 = vunpack.c.l.b16 %v5426
    %v5946 = vunpack.c.l.b16 %v5427
    %v5947 = vunpack.c.l.b16 %v5428
    %v5948 = vunpack.c.l.b16 %v5429
    %v5949 = vunpack.c.l.b16 %v5430
    %v5950 = vunpack.c.l.b16 %v5431
    %v5951 = vunpack.c.l.b16 %v5432
    %v5952 = vunpack.c.l.b16 %v5433
    %v5953 = vunpack.c.l.b16 %v5434
    %v5954 = vunpack.c.l.b16 %v5435
    %v5955 = vunpack.c.l.b16 %v5436
    %v5956 = vunpack.c.l.b16 %v5437
    %v5957 = vunpack.c.l.b16 %v5438
    %v5958 = vunpack.c.l.b16 %v5439
    %v5959 = vunpack.c.l.b16 %v5440
    %v5960 = vunpack.c.l.b16 %v5441
    %v5961 = vunpack.c.l.b16 %v5442
    %v5962 = vunpack.c.l.b16 %v5443
    %v5963 = vunpack.c.l.b16 %v5444
    %v5964 = vunpack.c.l.b16 %v5445
    %v5965 = vunpack.c.l.b16 %v5446
    %v5966 = vunpack.c.l.b16 %v5447
    %v5967 = vunpack.c.l.b16 %v5448
    %v5968 = vunpack.c.l.b16 %v5449
    %v5969 = vunpack.c.l.b16 %v5450
    %v5970 = vunpack.c.l.b16 %v5451
    %v5971 = vunpack.c.l.b16 %v5452
    %v5972 = vunpack.c.l.b16 %v5453
    %v5973 = vunpack.c.l.b16 %v5454
    %v5974 = vunpack.c.l.b16 %v5455
    %v5975 = vunpack.c.l.b16 %v5456
    %v5976 = vunpack.c.l.b16 %v5457
    %v5977 = vunpack.c.l.b16 %v5458
    %v5978 = vunpack.c.l.b16 %v5459
    %v5979 = vunpack.c.l.b16 %v5460
    %v5980 = vunpack.c.l.b16 %v5461
    %v5981 = vunpack.c.l.b16 %v5462
    %v5982 = vunpack.c.l.b16 %v5463
    %v5983 = vunpack.c.l.b16 %v5464
    %v5984 = vunpack.c.l.b16 %v5465
    %v5985 = vunpack.c.l.b16 %v5466
    %v5986 = vunpack.c.l.b16 %v5467
    %v5987 = vunpack.c.l.b16 %v5468
    %v5988 = vunpack.c.l.b16 %v5469
    %v5989 = vunpack.c.l.b16 %v5470
    %v5990 = vunpack.c.l.b16 %v5471
    %v5991 = vunpack.c.l.b16 %v5472
    %v5992 = vunpack.c.l.b16 %v5473
    %v5993 = vunpack.c.l.b16 %v5474
    %v5994 = vunpack.c.l.b16 %v5475
    %v5995 = vunpack.c.l.b16 %v5476
    %v5996 = vunpack.c.l.b16 %v5477
    %v5997 = vunpack.c.l.b16 %v5478
    %v5998 = vunpack.c.l.b16 %v5479
    %v5999 = vunpack.c.l.b16 %v5480
    %v6000 = vunpack.c.l.b16 %v5481
    %v6001 = vunpack.c.l.b16 %v5482
    %v6002 = vunpack.c.l.b16 %v5483
    %v6003 = vunpack.c.l.b16 %v5484
    %v6004 = vunpack.c.l.b16 %v5485
    %v6005 = vunpack.c.l.b16 %v5486
    %v6006 = vunpack.c.l.b16 %v5487
    %v6007 = vunpack.c.l.b16 %v5488
    %v6008 = vunpack.c.l.b16 %v5489
    %v6009 = vunpack.c.l.b16 %v5490
    %v6010 = vunpack.c.l.b16 %v5491
    %v6011 = vunpack.c.l.b16 %v5492
    %v6012 = vunpack.c.l.b16 %v5493
    %v6013 = vunpack.c.l.b16 %v5494
    %v6014 = vunpack.c.l.b16 %v5495
    %v6015 = vunpack.c.l.b16 %v5496
    %v6016 = vunpack.c.l.b16 %v5497
    %v6017 = vunpack.c.l.b16 %v5498
    %v6018 = vunpack.c.l.b16 %v5499
    %v6019 = vunpack.c.l.b16 %v5500
    %v6020 = vunpack.c.l.b16 %v5501
    %v6021 = vunpack.c.l.b16 %v5502
    %v6022 = vunpack.c.l.b16 %v5503
    %v6023 = vunpack.c.l.b16 %v5504
    %v6024 = vunpack.c.l.b16 %v5505
    %v6025 = vunpack.c.l.b16 %v5506
    %v6026 = vunpack.c.l.b16 %v5507
    %v6027 = vunpack.c.l.b16 %v5508
    %v6028 = vunpack.c.l.b16 %v5509
    %v6029 = vunpack.c.l.b16 %v5510
    %v6030 = vunpack.c.l.b16 %v5511
    %v6031 = vunpack.c.l.b16 %v5512
    %v6032 = vunpack.c.l.b16 %v5513
    %v6033 = vunpack.c.l.b16 %v5514
    %v6034 = vunpack.c.l.b16 %v5515
    %v6035 = vunpack.c.l.b16 %v5516
    %v6036 = vunpack.c.l.b16 %v5517
    %v6037 = vunpack.c.l.b16 %v5518
    %v6038 = vunpack.c.l.b16 %v5519
    %v6039 = vunpack.c.l.b16 %v5520
    %v6040 = vunpack.c.l.b16 %v5521
    %v6041 = vunpack.c.l.b16 %v5522
    %v6042 = vunpack.c.l.b16 %v5523
    %v6043 = vunpack.c.l.b16 %v5524
    %v6044 = vunpack.c.l.b16 %v5525
    %v6045 = vunpack.c.l.b16 %v5526
    %v6046 = vunpack.c.l.b16 %v5527
    %v6047 = vunpack.c.l.b16 %v5528
    %v6048 = vunpack.c.l.b16 %v5529
    %v6049 = vunpack.c.l.b16 %v5530
    %v6050 = vunpack.c.l.b16 %v5531
    %v6051 = vunpack.c.l.b16 %v5532
    %v6052 = vunpack.c.l.b16 %v5533
    %v6053 = vunpack.c.l.b16 %v5534
    %v6054 = vunpack.c.l.b16 %v5535
    %v6055 = vunpack.c.l.b16 %v5536
    %v6056 = vunpack.c.l.b16 %v5537
    %v6057 = vunpack.c.l.b16 %v5538
    %v6058 = vunpack.c.l.b16 %v5539
    %v6059 = vunpack.c.l.b16 %v5540
    %v6060 = vunpack.c.l.b16 %v5541
    %v6061 = vunpack.c.l.b16 %v5542
    %v6062 = vunpack.c.l.b16 %v5543
    %v6063 = vunpack.c.l.b16 %v5544
    %v6064 = vunpack.c.l.b16 %v5545
    %v6065 = vunpack.c.l.b16 %v5546
    %v6066 = vunpack.c.l.b16 %v5547
    %v6067 = vunpack.c.l.b16 %v5548
    %v6068 = vunpack.c.l.b16 %v5549
    %v6069 = vunpack.c.l.b16 %v5550
    %v6070 = vunpack.c.l.b16 %v5551
    %v6071 = vunpack.c.l.b16 %v5552
    %v6072 = vunpack.c.l.b16 %v5553
    %v6073 = vunpack.c.l.b16 %v5554
    %v6074 = vunpack.c.l.b16 %v5555
    %v6075 = vunpack.c.l.b16 %v5556
    %v6076 = vunpack.c.l.b16 %v5557
    %v6077 = vunpack.c.l.b16 %v5558
    %v6078 = vunpack.c.l.b16 %v5559
    %v6079 = vunpack.c.l.b16 %v5560
    %v6080 = vunpack.c.l.b16 %v5561
    %v6081 = vunpack.c.l.b16 %v5562
    %v6082 = vunpack.c.l.b16 %v5563
    %v6083 = vunpack.c.l.b16 %v5564
    %v6084 = vunpack.c.l.b16 %v5565
    %v6085 = vunpack.c.l.b16 %v5566
    %v6086 = vunpack.c.l.b16 %v5567
    %v6087 = vunpack.c.l.b16 %v5568
    %v6088 = vunpack.c.l.b16 %v5569
    %v6089 = vunpack.c.l.b16 %v5570
    %v6090 = vunpack.c.l.b16 %v5571
    %v6091 = vunpack.c.l.b16 %v5572
    %v6092 = vunpack.c.l.b16 %v5573
    %v6093 = vunpack.c.l.b16 %v5574
    %v6094 = vunpack.c.l.b16 %v5575
    %v6095 = vunpack.c.l.b16 %v5576
    %v6096 = vunpack.c.l.b16 %v5577
    %v6097 = vunpack.c.l.b16 %v5578
    %v6098 = vunpack.c.l.b16 %v5579
    %v6099 = vunpack.c.l.b16 %v5580
    %v6100 = vunpack.c.l.b16 %v5581
    %v6101 = vunpack.c.l.b16 %v5582
    %v6102 = vunpack.c.l.b16 %v5583
    %v6103 = vunpack.c.l.b16 %v5584
    %v6104 = vunpack.c.l.b16 %v5585
    %v6105 = vunpack.c.l.b16 %v5586
    %v6106 = vunpack.c.l.b16 %v5587
    %v6107 = vunpack.c.l.b16 %v5588
    %v6108 = vunpack.c.l.b16 %v5589
    %v6109 = vpack.c.b16 %v5854, %v5853
    %v6110 = vpack.c.b16 %v5856, %v5855
    %v6111 = vpack.c.b16 %v5858, %v5857
    %v6112 = vpack.c.b16 %v5860, %v5859
    %v6113 = vpack.c.b16 %v5862, %v5861
    %v6114 = vpack.c.b16 %v5864, %v5863
    %v6115 = vpack.c.b16 %v5866, %v5865
    %v6116 = vpack.c.b16 %v5868, %v5867
    %v6117 = vpack.c.b16 %v5870, %v5869
    %v6118 = vpack.c.b16 %v5872, %v5871
    %v6119 = vpack.c.b16 %v5874, %v5873
    %v6120 = vpack.c.b16 %v5876, %v5875
    %v6121 = vpack.c.b16 %v5878, %v5877
    %v6122 = vpack.c.b16 %v5880, %v5879
    %v6123 = vpack.c.b16 %v5882, %v5881
    %v6124 = vpack.c.b16 %v5884, %v5883
    %v6125 = vpack.c.b16 %v5886, %v5885
    %v6126 = vpack.c.b16 %v5888, %v5887
    %v6127 = vpack.c.b16 %v5890, %v5889
    %v6128 = vpack.c.b16 %v5892, %v5891
    %v6129 = vpack.c.b16 %v5894, %v5893
    %v6130 = vpack.c.b16 %v5896, %v5895
    %v6131 = vpack.c.b16 %v5898, %v5897
    %v6132 = vpack.c.b16 %v5900, %v5899
    %v6133 = vpack.c.b16 %v5902, %v5901
    %v6134 = vpack.c.b16 %v5904, %v5903
    %v6135 = vpack.c.b16 %v5906, %v5905
    %v6136 = vpack.c.b16 %v5908, %v5907
    %v6137 = vpack.c.b16 %v5910, %v5909
    %v6138 = vpack.c.b16 %v5912, %v5911
    %v6139 = vpack.c.b16 %v5914, %v5913
    %v6140 = vpack.c.b16 %v5916, %v5915
    %v6141 = vpack.c.b16 %v5918, %v5917
    %v6142 = vpack.c.b16 %v5920, %v5919
    %v6143 = vpack.c.b16 %v5922, %v5921
    %v6144 = vpack.c.b16 %v5924, %v5923
    %v6145 = vpack.c.b16 %v5926, %v5925
    %v6146 = vpack.c.b16 %v5928, %v5927
    %v6147 = vpack.c.b16 %v5930, %v5929
    %v6148 = vpack.c.b16 %v5932, %v5931
    %v6149 = vpack.c.b16 %v5934, %v5933
    %v6150 = vpack.c.b16 %v5936, %v5935
    %v6151 = vpack.c.b16 %v5938, %v5937
    %v6152 = vpack.c.b16 %v5940, %v5939
    %v6153 = vpack.c.b16 %v5942, %v5941
    %v6154 = vpack.c.b16 %v5944, %v5943
    %v6155 = vpack.c.b16 %v5946, %v5945
    %v6156 = vpack.c.b16 %v5948, %v5947
    %v6157 = vpack.c.b16 %v5950, %v5949
    %v6158 = vpack.c.b16 %v5952, %v5951
    %v6159 = vpack.c.b16 %v5954, %v5953
    %v6160 = vpack.c.b16 %v5956, %v5955
    %v6161 = vpack.c.b16 %v5958, %v5957
    %v6162 = vpack.c.b16 %v5960, %v5959
    %v6163 = vpack.c.b16 %v5962, %v5961
    %v6164 = vpack.c.b16 %v5964, %v5963
    %v6165 = vpack.c.b16 %v5966, %v5965
    %v6166 = vpack.c.b16 %v5968, %v5967
    %v6167 = vpack.c.b16 %v5970, %v5969
    %v6168 = vpack.c.b16 %v5972, %v5971
    %v6169 = vpack.c.b16 %v5974, %v5973
    %v6170 = vpack.c.b16 %v5976, %v5975
    %v6171 = vpack.c.b16 %v5978, %v5977
    %v6172 = vpack.c.b16 %v5980, %v5979
    %v6173 = vpack.c.b16 %v5982, %v5981
    %v6174 = vpack.c.b16 %v5984, %v5983
    %v6175 = vpack.c.b16 %v5986, %v5985
    %v6176 = vpack.c.b16 %v5988, %v5987
    %v6177 = vpack.c.b16 %v5990, %v5989
    %v6178 = vpack.c.b16 %v5992, %v5991
    %v6179 = vpack.c.b16 %v5994, %v5993
    %v6180 = vpack.c.b16 %v5996, %v5995
    %v6181 = vpack.c.b16 %v5998, %v5997
    %v6182 = vpack.c.b16 %v6000, %v5999
    %v6183 = vpack.c.b16 %v6002, %v6001
    %v6184 = vpack.c.b16 %v6004, %v6003
    %v6185 = vpack.c.b16 %v6006, %v6005
    %v6186 = vpack.c.b16 %v6008, %v6007
    %v6187 = vpack.c.b16 %v6010, %v6009
    %v6188 = vpack.c.b16 %v6012, %v6011
    %v6189 = vpack.c.b16 %v6014, %v6013
    %v6190 = vpack.c.b16 %v6016, %v6015
    %v6191 = vpack.c.b16 %v6018, %v6017
    %v6192 = vpack.c.b16 %v6020, %v6019
    %v6193 = vpack.c.b16 %v6022, %v6021
    %v6194 = vpack.c.b16 %v6024, %v6023
    %v6195 = vpack.c.b16 %v6026, %v6025
    %v6196 = vpack.c.b16 %v6028, %v6027
    %v6197 = vpack.c.b16 %v6030, %v6029
    %v6198 = vpack.c.b16 %v6032, %v6031
    %v6199 = vpack.c.b16 %v6034, %v6033
    %v6200 = vpack.c.b16 %v6036, %v6035
    %v6201 = vpack.c.b16 %v6038, %v6037
    %v6202 = vpack.c.b16 %v6040, %v6039
    %v6203 = vpack.c.b16 %v6042, %v6041
    %v6204 = vpack.c.b16 %v6044, %v6043
    %v6205 = vpack.c.b16 %v6046, %v6045
    %v6206 = vpack.c.b16 %v6048, %v6047
    %v6207 = vpack.c.b16 %v6050, %v6049
    %v6208 = vpack.c.b16 %v6052, %v6051
    %v6209 = vpack.c.b16 %v6054, %v6053
    %v6210 = vpack.c.b16 %v6056, %v6055
    %v6211 = vpack.c.b16 %v6058, %v6057
    %v6212 = vpack.c.b16 %v6060, %v6059
    %v6213 = vpack.c.b16 %v6062, %v6061
    %v6214 = vpack.c.b16 %v6064, %v6063
    %v6215 = vpack.c.b16 %v6066, %v6065
    %v6216 = vpack.c.b16 %v6068, %v6067
    %v6217 = vpack.c.b16 %v6070, %v6069
    %v6218 = vpack.c.b16 %v6072, %v6071
    %v6219 = vpack.c.b16 %v6074, %v6073
    %v6220 = vpack.c.b16 %v6076, %v6075
    %v6221 = vpack.c.b16 %v6078, %v6077
    %v6222 = vpack.c.b16 %v6080, %v6079
    %v6223 = vpack.c.b16 %v6082, %v6081
    %v6224 = vpack.c.b16 %v6084, %v6083
    %v6225 = vpack.c.b16 %v6086, %v6085
    %v6226 = vpack.c.b16 %v6088, %v6087
    %v6227 = vpack.c.b16 %v6090, %v6089
    %v6228 = vpack.c.b16 %v6092, %v6091
    %v6229 = vpack.c.b16 %v6094, %v6093
    %v6230 = vpack.c.b16 %v6096, %v6095
    %v6231 = vpack.c.b16 %v6098, %v6097
    %v6232 = vpack.c.b16 %v6100, %v6099
    %v6233 = vpack.c.b16 %v6102, %v6101
    %v6234 = vpack.c.b16 %v6104, %v6103
    %v6235 = vpack.c.b16 %v6106, %v6105
    %v6236 = vpack.c.b16 %v6108, %v6107
    %6365 = vmatprep.subr.bf16.mxu0 0
    %6366 = vmatpush1.bf16.msra.mxu0 %v6116
    %6367 = vmatprep.subr.bf16.mxu0 0
    %6368 = vmatpush1.bf16.msra.mxu0 %v6115
    %6369 = vmatprep.subr.bf16.mxu0 0
    %6370 = vmatpush1.bf16.msra.mxu0 %v6114
    %6371 = vmatprep.subr.bf16.mxu0 0
    %6372 = vmatpush1.bf16.msra.mxu0 %v6113
    %6373 = vmatprep.subr.bf16.mxu0 0
    %6374 = vmatpush1.bf16.msra.mxu0 %v6112
    %6375 = vmatprep.subr.bf16.mxu0 0
    %6376 = vmatpush1.bf16.msra.mxu0 %v6111
    %6377 = vmatprep.subr.bf16.mxu0 0
    %6378 = vmatpush1.bf16.msra.mxu0 %v6110
    %6379 = vmatprep.subr.bf16.mxu0 0
    %6380 = vmatpush1.bf16.msra.mxu0 %v6109
    %6381 = vmatprep.subr.bf16.mxu0 0
    %6382 = vmatpush2.bf16.msra.mxu0 %v6124
    %6383 = vmatprep.subr.bf16.mxu0 0
    %6384 = vmatpush2.bf16.msra.mxu0 %v6123
    %6385 = vmatprep.subr.bf16.mxu0 0
    %6386 = vmatpush2.bf16.msra.mxu0 %v6122
    %6387 = vmatprep.subr.bf16.mxu0 0
    %6388 = vmatpush2.bf16.msra.mxu0 %v6121
    %6389 = vmatprep.subr.bf16.mxu0 0
    %6390 = vmatpush2.bf16.msra.mxu0 %v6120
    %6391 = vmatprep.subr.bf16.mxu0 0
    %6392 = vmatpush2.bf16.msra.mxu0 %v6119
    %6393 = vmatprep.subr.bf16.mxu0 0
    %6394 = vmatpush2.bf16.msra.mxu0 %v6118
    %6395 = vmatprep.subr.bf16.mxu0 0
    %6396 = vmatpush2.bf16.msra.mxu0 %v6117
    %6397 = vmatprep.mubr.bf16.mxu0 %v5319
    %6398 = vmatmul.mubr.bf16.gmra.mxu0 %v5318
    %v6399 = vpop.f32.mrf.mxu0
    %v6400 = vadd.f32 %v5595, %v6399
    %v6401 = vpop.f32.mrf.mxu0
    %v6402 = vpop.f32.mrf.mxu0
    %v6403 = vadd.f32 %v5595, %v6402
    %v6404 = vpop.f32.mrf.mxu0
    %6405 = vdwg.mxu0
    %6406 = vmatprep.subr.bf16.mxu0 0
    %6407 = vmatpush1.bf16.msra.mxu0 %v6132
    %6408 = vmatprep.subr.bf16.mxu0 0
    %6409 = vmatpush1.bf16.msra.mxu0 %v6131
    %6410 = vmatprep.subr.bf16.mxu0 0
    %6411 = vmatpush1.bf16.msra.mxu0 %v6130
    %6412 = vmatprep.subr.bf16.mxu0 0
    %6413 = vmatpush1.bf16.msra.mxu0 %v6129
    %6414 = vmatprep.subr.bf16.mxu0 0
    %6415 = vmatpush1.bf16.msra.mxu0 %v6128
    %6416 = vmatprep.subr.bf16.mxu0 0
    %6417 = vmatpush1.bf16.msra.mxu0 %v6127
    %6418 = vmatprep.subr.bf16.mxu0 0
    %6419 = vmatpush1.bf16.msra.mxu0 %v6126
    %6420 = vmatprep.subr.bf16.mxu0 0
    %6421 = vmatpush1.bf16.msra.mxu0 %v6125
    %6422 = vmatprep.subr.bf16.mxu0 0
    %6423 = vmatpush2.bf16.msra.mxu0 %v6140
    %6424 = vmatprep.subr.bf16.mxu0 0
    %6425 = vmatpush2.bf16.msra.mxu0 %v6139
    %6426 = vmatprep.subr.bf16.mxu0 0
    %6427 = vmatpush2.bf16.msra.mxu0 %v6138
    %6428 = vmatprep.subr.bf16.mxu0 0
    %6429 = vmatpush2.bf16.msra.mxu0 %v6137
    %6430 = vmatprep.subr.bf16.mxu0 0
    %6431 = vmatpush2.bf16.msra.mxu0 %v6136
    %6432 = vmatprep.subr.bf16.mxu0 0
    %6433 = vmatpush2.bf16.msra.mxu0 %v6135
    %6434 = vmatprep.subr.bf16.mxu0 0
    %6435 = vmatpush2.bf16.msra.mxu0 %v6134
    %6436 = vmatprep.subr.bf16.mxu0 0
    %6437 = vmatpush2.bf16.msra.mxu0 %v6133
    %6438 = vmatprep.mubr.bf16.mxu0 %v5321
    %6439 = vmatmul.mubr.bf16.gmra.mxu0 %v5320
    %v6440 = vpop.f32.mrf.mxu0
    %v6441 = vadd.f32 %v6400, %v6440
    %v6442 = vpop.f32.mrf.mxu0
    %v6443 = vpop.f32.mrf.mxu0
    %v6444 = vadd.f32 %v6403, %v6443
    %v6445 = vpop.f32.mrf.mxu0
    %6446 = vdwg.mxu0
    %6447 = vmatprep.subr.bf16.mxu0 0
    %6448 = vmatpush1.bf16.msra.mxu0 %v6148
    %6449 = vmatprep.subr.bf16.mxu0 0
    %6450 = vmatpush1.bf16.msra.mxu0 %v6147
    %6451 = vmatprep.subr.bf16.mxu0 0
    %6452 = vmatpush1.bf16.msra.mxu0 %v6146
    %6453 = vmatprep.subr.bf16.mxu0 0
    %6454 = vmatpush1.bf16.msra.mxu0 %v6145
    %6455 = vmatprep.subr.bf16.mxu0 0
    %6456 = vmatpush1.bf16.msra.mxu0 %v6144
    %6457 = vmatprep.subr.bf16.mxu0 0
    %6458 = vmatpush1.bf16.msra.mxu0 %v6143
    %6459 = vmatprep.subr.bf16.mxu0 0
    %6460 = vmatpush1.bf16.msra.mxu0 %v6142
    %6461 = vmatprep.subr.bf16.mxu0 0
    %6462 = vmatpush1.bf16.msra.mxu0 %v6141
    %6463 = vmatprep.subr.bf16.mxu0 0
    %6464 = vmatpush2.bf16.msra.mxu0 %v6156
    %6465 = vmatprep.subr.bf16.mxu0 0
    %6466 = vmatpush2.bf16.msra.mxu0 %v6155
    %6467 = vmatprep.subr.bf16.mxu0 0
    %6468 = vmatpush2.bf16.msra.mxu0 %v6154
    %6469 = vmatprep.subr.bf16.mxu0 0
    %6470 = vmatpush2.bf16.msra.mxu0 %v6153
    %6471 = vmatprep.subr.bf16.mxu0 0
    %6472 = vmatpush2.bf16.msra.mxu0 %v6152
    %6473 = vmatprep.subr.bf16.mxu0 0
    %6474 = vmatpush2.bf16.msra.mxu0 %v6151
    %6475 = vmatprep.subr.bf16.mxu0 0
    %6476 = vmatpush2.bf16.msra.mxu0 %v6150
    %6477 = vmatprep.subr.bf16.mxu0 0
    %6478 = vmatpush2.bf16.msra.mxu0 %v6149
    %6479 = vmatprep.mubr.bf16.mxu0 %v5323
    %6480 = vmatmul.mubr.bf16.gmra.mxu0 %v5322
    %v6481 = vpop.f32.mrf.mxu0
    %v6482 = vadd.f32 %v6441, %v6481
    %v6483 = vpop.f32.mrf.mxu0
    %v6484 = vpop.f32.mrf.mxu0
    %v6485 = vadd.f32 %v6444, %v6484
    %v6486 = vpop.f32.mrf.mxu0
    %6487 = vdwg.mxu0
    %6488 = vmatprep.subr.bf16.mxu0 0
    %6489 = vmatpush1.bf16.msra.mxu0 %v6164
    %6490 = vmatprep.subr.bf16.mxu0 0
    %6491 = vmatpush1.bf16.msra.mxu0 %v6163
    %6492 = vmatprep.subr.bf16.mxu0 0
    %6493 = vmatpush1.bf16.msra.mxu0 %v6162
    %6494 = vmatprep.subr.bf16.mxu0 0
    %6495 = vmatpush1.bf16.msra.mxu0 %v6161
    %6496 = vmatprep.subr.bf16.mxu0 0
    %6497 = vmatpush1.bf16.msra.mxu0 %v6160
    %6498 = vmatprep.subr.bf16.mxu0 0
    %6499 = vmatpush1.bf16.msra.mxu0 %v6159
    %6500 = vmatprep.subr.bf16.mxu0 0
    %6501 = vmatpush1.bf16.msra.mxu0 %v6158
    %6502 = vmatprep.subr.bf16.mxu0 0
    %6503 = vmatpush1.bf16.msra.mxu0 %v6157
    %6504 = vmatprep.subr.bf16.mxu0 0
    %6505 = vmatpush2.bf16.msra.mxu0 %v6172
    %6506 = vmatprep.subr.bf16.mxu0 0
    %6507 = vmatpush2.bf16.msra.mxu0 %v6171
    %6508 = vmatprep.subr.bf16.mxu0 0
    %6509 = vmatpush2.bf16.msra.mxu0 %v6170
    %6510 = vmatprep.subr.bf16.mxu0 0
    %6511 = vmatpush2.bf16.msra.mxu0 %v6169
    %6512 = vmatprep.subr.bf16.mxu0 0
    %6513 = vmatpush2.bf16.msra.mxu0 %v6168
    %6514 = vmatprep.subr.bf16.mxu0 0
    %6515 = vmatpush2.bf16.msra.mxu0 %v6167
    %6516 = vmatprep.subr.bf16.mxu0 0
    %6517 = vmatpush2.bf16.msra.mxu0 %v6166
    %6518 = vmatprep.subr.bf16.mxu0 0
    %6519 = vmatpush2.bf16.msra.mxu0 %v6165
    %6520 = vmatprep.mubr.bf16.mxu0 %v5325
    %6521 = vmatmul.mubr.bf16.gmra.mxu0 %v5324
    %v6522 = vpop.f32.mrf.mxu0
    %v6523 = vadd.f32 %v6482, %v6522
    %v6524 = vpop.f32.mrf.mxu0
    %v6525 = vpop.f32.mrf.mxu0
    %v6526 = vadd.f32 %v6485, %v6525
    %v6527 = vpop.f32.mrf.mxu0
    %6528 = vdwg.mxu0
    %6529 = vmatprep.subr.bf16.mxu0 0
    %6530 = vmatpush1.bf16.msra.mxu0 %v6180
    %6531 = vmatprep.subr.bf16.mxu0 0
    %6532 = vmatpush1.bf16.msra.mxu0 %v6179
    %6533 = vmatprep.subr.bf16.mxu0 0
    %6534 = vmatpush1.bf16.msra.mxu0 %v6178
    %6535 = vmatprep.subr.bf16.mxu0 0
    %6536 = vmatpush1.bf16.msra.mxu0 %v6177
    %6537 = vmatprep.subr.bf16.mxu0 0
    %6538 = vmatpush1.bf16.msra.mxu0 %v6176
    %6539 = vmatprep.subr.bf16.mxu0 0
    %6540 = vmatpush1.bf16.msra.mxu0 %v6175
    %6541 = vmatprep.subr.bf16.mxu0 0
    %6542 = vmatpush1.bf16.msra.mxu0 %v6174
    %6543 = vmatprep.subr.bf16.mxu0 0
    %6544 = vmatpush1.bf16.msra.mxu0 %v6173
    %6545 = vmatprep.subr.bf16.mxu0 0
    %6546 = vmatpush2.bf16.msra.mxu0 %v6188
    %6547 = vmatprep.subr.bf16.mxu0 0
    %6548 = vmatpush2.bf16.msra.mxu0 %v6187
    %6549 = vmatprep.subr.bf16.mxu0 0
    %6550 = vmatpush2.bf16.msra.mxu0 %v6186
    %6551 = vmatprep.subr.bf16.mxu0 0
    %6552 = vmatpush2.bf16.msra.mxu0 %v6185
    %6553 = vmatprep.subr.bf16.mxu0 0
    %6554 = vmatpush2.bf16.msra.mxu0 %v6184
    %6555 = vmatprep.subr.bf16.mxu0 0
    %6556 = vmatpush2.bf16.msra.mxu0 %v6183
    %6557 = vmatprep.subr.bf16.mxu0 0
    %6558 = vmatpush2.bf16.msra.mxu0 %v6182
    %6559 = vmatprep.subr.bf16.mxu0 0
    %6560 = vmatpush2.bf16.msra.mxu0 %v6181
    %6561 = vmatprep.mubr.bf16.mxu0 %v5327
    %6562 = vmatmul.mubr.bf16.gmra.mxu0 %v5326
    %v6563 = vpop.f32.mrf.mxu0
    %v6564 = vadd.f32 %v6523, %v6563
    %v6565 = vpop.f32.mrf.mxu0
    %v6566 = vpop.f32.mrf.mxu0
    %v6567 = vadd.f32 %v6526, %v6566
    %v6568 = vpop.f32.mrf.mxu0
    %6569 = vdwg.mxu0
    %6570 = vmatprep.subr.bf16.mxu0 0
    %6571 = vmatpush1.bf16.msra.mxu0 %v6196
    %6572 = vmatprep.subr.bf16.mxu0 0
    %6573 = vmatpush1.bf16.msra.mxu0 %v6195
    %6574 = vmatprep.subr.bf16.mxu0 0
    %6575 = vmatpush1.bf16.msra.mxu0 %v6194
    %6576 = vmatprep.subr.bf16.mxu0 0
    %6577 = vmatpush1.bf16.msra.mxu0 %v6193
    %6578 = vmatprep.subr.bf16.mxu0 0
    %6579 = vmatpush1.bf16.msra.mxu0 %v6192
    %6580 = vmatprep.subr.bf16.mxu0 0
    %6581 = vmatpush1.bf16.msra.mxu0 %v6191
    %6582 = vmatprep.subr.bf16.mxu0 0
    %6583 = vmatpush1.bf16.msra.mxu0 %v6190
    %6584 = vmatprep.subr.bf16.mxu0 0
    %6585 = vmatpush1.bf16.msra.mxu0 %v6189
    %6586 = vmatprep.subr.bf16.mxu0 0
    %6587 = vmatpush2.bf16.msra.mxu0 %v6204
    %6588 = vmatprep.subr.bf16.mxu0 0
    %6589 = vmatpush2.bf16.msra.mxu0 %v6203
    %6590 = vmatprep.subr.bf16.mxu0 0
    %6591 = vmatpush2.bf16.msra.mxu0 %v6202
    %6592 = vmatprep.subr.bf16.mxu0 0
    %6593 = vmatpush2.bf16.msra.mxu0 %v6201
    %6594 = vmatprep.subr.bf16.mxu0 0
    %6595 = vmatpush2.bf16.msra.mxu0 %v6200
    %6596 = vmatprep.subr.bf16.mxu0 0
    %6597 = vmatpush2.bf16.msra.mxu0 %v6199
    %6598 = vmatprep.subr.bf16.mxu0 0
    %6599 = vmatpush2.bf16.msra.mxu0 %v6198
    %6600 = vmatprep.subr.bf16.mxu0 0
    %6601 = vmatpush2.bf16.msra.mxu0 %v6197
    %6602 = vmatprep.mubr.bf16.mxu0 %v5329
    %6603 = vmatmul.mubr.bf16.gmra.mxu0 %v5328
    %v6604 = vpop.f32.mrf.mxu0
    %v6605 = vadd.f32 %v6564, %v6604
    %v6606 = vpop.f32.mrf.mxu0
    %v6607 = vpop.f32.mrf.mxu0
    %v6608 = vadd.f32 %v6567, %v6607
    %v6609 = vpop.f32.mrf.mxu0
    %6610 = vdwg.mxu0
    %6611 = vmatprep.subr.bf16.mxu0 0
    %6612 = vmatpush1.bf16.msra.mxu0 %v6212
    %6613 = vmatprep.subr.bf16.mxu0 0
    %6614 = vmatpush1.bf16.msra.mxu0 %v6211
    %6615 = vmatprep.subr.bf16.mxu0 0
    %6616 = vmatpush1.bf16.msra.mxu0 %v6210
    %6617 = vmatprep.subr.bf16.mxu0 0
    %6618 = vmatpush1.bf16.msra.mxu0 %v6209
    %6619 = vmatprep.subr.bf16.mxu0 0
    %6620 = vmatpush1.bf16.msra.mxu0 %v6208
    %6621 = vmatprep.subr.bf16.mxu0 0
    %6622 = vmatpush1.bf16.msra.mxu0 %v6207
    %6623 = vmatprep.subr.bf16.mxu0 0
    %6624 = vmatpush1.bf16.msra.mxu0 %v6206
    %6625 = vmatprep.subr.bf16.mxu0 0
    %6626 = vmatpush1.bf16.msra.mxu0 %v6205
    %6627 = vmatprep.subr.bf16.mxu0 0
    %6628 = vmatpush2.bf16.msra.mxu0 %v6220
    %6629 = vmatprep.subr.bf16.mxu0 0
    %6630 = vmatpush2.bf16.msra.mxu0 %v6219
    %6631 = vmatprep.subr.bf16.mxu0 0
    %6632 = vmatpush2.bf16.msra.mxu0 %v6218
    %6633 = vmatprep.subr.bf16.mxu0 0
    %6634 = vmatpush2.bf16.msra.mxu0 %v6217
    %6635 = vmatprep.subr.bf16.mxu0 0
    %6636 = vmatpush2.bf16.msra.mxu0 %v6216
    %6637 = vmatprep.subr.bf16.mxu0 0
    %6638 = vmatpush2.bf16.msra.mxu0 %v6215
    %6639 = vmatprep.subr.bf16.mxu0 0
    %6640 = vmatpush2.bf16.msra.mxu0 %v6214
    %6641 = vmatprep.subr.bf16.mxu0 0
    %6642 = vmatpush2.bf16.msra.mxu0 %v6213
    %6643 = vmatprep.mubr.bf16.mxu0 %v5331
    %6644 = vmatmul.mubr.bf16.gmra.mxu0 %v5330
    %v6645 = vpop.f32.mrf.mxu0
    %v6646 = vadd.f32 %v6605, %v6645
    %v6647 = vpop.f32.mrf.mxu0
    %v6648 = vpop.f32.mrf.mxu0
    %v6649 = vadd.f32 %v6608, %v6648
    %v6650 = vpop.f32.mrf.mxu0
    %6651 = vdwg.mxu0
    %6652 = vmatprep.subr.bf16.mxu0 0
    %6653 = vmatpush1.bf16.msra.mxu0 %v6228
    %6654 = vmatprep.subr.bf16.mxu0 0
    %6655 = vmatpush1.bf16.msra.mxu0 %v6227
    %6656 = vmatprep.subr.bf16.mxu0 0
    %6657 = vmatpush1.bf16.msra.mxu0 %v6226
    %6658 = vmatprep.subr.bf16.mxu0 0
    %6659 = vmatpush1.bf16.msra.mxu0 %v6225
    %6660 = vmatprep.subr.bf16.mxu0 0
    %6661 = vmatpush1.bf16.msra.mxu0 %v6224
    %6662 = vmatprep.subr.bf16.mxu0 0
    %6663 = vmatpush1.bf16.msra.mxu0 %v6223
    %6664 = vmatprep.subr.bf16.mxu0 0
    %6665 = vmatpush1.bf16.msra.mxu0 %v6222
    %6666 = vmatprep.subr.bf16.mxu0 0
    %6667 = vmatpush1.bf16.msra.mxu0 %v6221
    %6668 = vmatprep.subr.bf16.mxu0 0
    %6669 = vmatpush2.bf16.msra.mxu0 %v6236
    %6670 = vmatprep.subr.bf16.mxu0 0
    %6671 = vmatpush2.bf16.msra.mxu0 %v6235
    %6672 = vmatprep.subr.bf16.mxu0 0
    %6673 = vmatpush2.bf16.msra.mxu0 %v6234
    %6674 = vmatprep.subr.bf16.mxu0 0
    %6675 = vmatpush2.bf16.msra.mxu0 %v6233
    %6676 = vmatprep.subr.bf16.mxu0 0
    %6677 = vmatpush2.bf16.msra.mxu0 %v6232
    %6678 = vmatprep.subr.bf16.mxu0 0
    %6679 = vmatpush2.bf16.msra.mxu0 %v6231
    %6680 = vmatprep.subr.bf16.mxu0 0
    %6681 = vmatpush2.bf16.msra.mxu0 %v6230
    %6682 = vmatprep.subr.bf16.mxu0 0
    %6683 = vmatpush2.bf16.msra.mxu0 %v6229
    %6684 = vmatprep.mubr.bf16.mxu0 %v5333
    %6685 = vmatmul.mubr.bf16.gmra.mxu0 %v5332
    %v6686 = vpop.f32.mrf.mxu0
    %v6687 = vadd.f32 %v6646, %v6686
    %v6688 = vpop.f32.mrf.mxu0
    %v6689 = vpop.f32.mrf.mxu0
    %v6690 = vadd.f32 %v6649, %v6689
    %v6691 = vpop.f32.mrf.mxu0
    %6692 = vdwg.mxu0
    %v6693 = vmax.f32 %v6687, 0.0
    %v6694 = vmax.f32 %v6690, 0.0
    %6695 = vst [vmem:[#allocation17] sm:$0xff] %v6693
    %6696 = vst [vmem:[#allocation17 + $0x8] sm:$0xff] %v6694
    // Predicated region
    $region74: #{tpu_custom_call.1} parent=1 // pred_check
      _
    $region75: #{tpu_custom_call.1} parent=1 // pred_check_branch
      %6698 = sbr.rel (0) target = $region77
    $region76: #{tpu_custom_call.1} parent=1 // pred_region
      %s6700 = ssub.s32 256, 256
      %6701 = vsyncadd [#allocation4], %s6700
      %s6702 = sshll.u32 [#allocation17], 4
      %s6703 = int_to_ptr.vmem [resolvable:$true] %s6702
      %6708 = dma.vmem_to_hbm [thread:$0]  %s6703, 256, %s9, [#allocation4], 128, 128, 8
    $region77: #{tpu_custom_call.1} parent=1 // pred_fallthru
      _
    // Predicated region
    $region78: #{tpu_custom_call.1} parent=1 // pred_check
      _
    $region79: #{tpu_custom_call.1} parent=1 // pred_check_branch
      %6710 = sbr.rel (0) target = $region81
    $region80: #{tpu_custom_call.1} parent=1 // pred_region
      %6711 = dma.done [#allocation4], 256
    $region81: #{tpu_custom_call.1} parent=1 // pred_fallthru
      _
    %6712 = vsyncpa [#allocation3], 1
    %6713 = vsyncpa [#allocation6], 1
    %6714 = vsyncpa [#allocation9], 1
    %6715 = vsyncpa [#allocation12], 1
    %6716 = vsyncpa [#allocation15], 1
    %6717 = vsyncpa [#allocation4], 1

// kernel: tpu_custom_call.1
$region0: #{tpu_custom_call.1}
  #allocation0 [shape = 'u32[]', space=smem, size = 0x4, offset = 0x4, fixed_abs, tag = 'smem constant byte address 0x4 - core index']
  #allocation1 [shape = 'u32[144,128]{1,0:T(1,128)}', space=vmem, size = 0x12000, scoped, tag = 'internal scratch']
  %s0 = inlined_call_operand.hbm [shape: bf16[16,128], index: 0, kind: input, shape index: {}]
  %s1 = inlined_call_operand.hbm [shape: bf16[128,512], index: 1, kind: input, shape index: {}]
  %s2 = inlined_call_operand.hbm [shape: f32[1,512], index: 2, kind: input, shape index: {}]
  %s3 = inlined_call_operand.hbm [shape: bf16[512,512], index: 3, kind: input, shape index: {}]
  %s4 = inlined_call_operand.hbm [shape: f32[1,512], index: 4, kind: input, shape index: {}]
  %s5 = inlined_call_operand.hbm [shape: bf16[512,2048], index: 5, kind: input, shape index: {}]
  %s6 = inlined_call_operand.hbm [shape: f32[1,2048], index: 6, kind: input, shape index: {}]
  %s7 = inlined_call_operand.hbm [shape: bf16[2048,128], index: 7, kind: input, shape index: {}]
  %s8 = inlined_call_operand.hbm [shape: f32[1,128], index: 8, kind: input, shape index: {}]
  %s9 = inlined_call_operand.hbm [shape: f32[16,128], index: 9, kind: output, shape index: {}]
  %s10 = sld [smem:[#allocation0]]
  $region82: #{tpu_custom_call.1} parent=0
    _
  %s12 = ssub.s32 1, %s10
  %s13 = scalar_select 0, %s12, %s10
  $region1: #{tpu_custom_call.1} parent=0
    #allocation2 [shape = 'u8[4096]{0}', space=vmem, size = 0x1000, scoped, tag = 'input window, operand 0, single buffered']
    #allocation3 [shape = 's32[1]{0}', space=sflag, size = 0x4, scoped, tag = 'scoped memory for tpu_custom_call.1']
    #allocation4 [shape = 's32[1]{0}', space=sflag, size = 0x4, scoped, tag = 'scoped memory for tpu_custom_call.1']
    #allocation5 [shape = 'u8[131072]{0}', space=vmem, size = 0x20000, scoped, tag = 'input window, operand 1, single buffered']
    #allocation6 [shape = 's32[1]{0}', space=sflag, size = 0x4, scoped, tag = 'scoped memory for tpu_custom_call.1']
    #allocation7 [shape = 'u8[2048]{0}', space=vmem, size = 0x800, scoped, tag = 'input window, operand 2, single buffered']
    #allocation8 [shape = 'u8[524288]{0}', space=vmem, size = 0x80000, scoped, tag = 'input window, operand 3, single buffered']
    #allocation9 [shape = 's32[1]{0}', space=sflag, size = 0x4, scoped, tag = 'scoped memory for tpu_custom_call.1']
    #allocation10 [shape = 'u8[2048]{0}', space=vmem, size = 0x800, scoped, tag = 'input window, operand 4, single buffered']
    #allocation11 [shape = 'u8[2097152]{0}', space=vmem, size = 0x200000, scoped, tag = 'input window, operand 5, single buffered']
    #allocation12 [shape = 's32[1]{0}', space=sflag, size = 0x4, scoped, tag = 'scoped memory for tpu_custom_call.1']
    #allocation13 [shape = 'u8[8192]{0}', space=vmem, size = 0x2000, scoped, tag = 'input window, operand 6, single buffered']
    #allocation14 [shape = 'u8[524288]{0}', space=vmem, size = 0x80000, scoped, tag = 'input window, operand 7, single buffered']
    #allocation15 [shape = 's32[1]{0}', space=sflag, size = 0x4, scoped, tag = 'scoped memory for tpu_custom_call.1']
    #allocation16 [shape = 'u8[512]{0}', space=vmem, size = 0x400, scoped, tag = 'input window, operand 8, single buffered']
    #allocation17 [shape = 'u8[8192]{0}', space=vmem, size = 0x2000, scoped, tag = 'output window, operand 0, single buffered']
    %14 = vsyncpa [#allocation3], 0
    %15 = vsyncpa [#allocation6], 0
    %16 = vsyncpa [#allocation9], 0
    %17 = vsyncpa [#allocation12], 0
    %18 = vsyncpa [#allocation15], 0
    %19 = vsyncpa [#allocation4], 0
    // Predicated region
    $region2: #{tpu_custom_call.1} parent=1 // pred_check
      _
    $region3: #{tpu_custom_call.1} parent=1 // pred_check_branch
      %21 = sbr.rel (0) target = $region5
    $region4: #{tpu_custom_call.1} parent=1 // pred_region
      %s23 = ssub.s32 128, 128
      %24 = vsyncadd [#allocation3], %s23
      %s25 = sshll.u32 [#allocation2], 4
      %s26 = int_to_ptr.vmem [resolvable:$true] %s25
      %31 = dma.hbm_to_vmem [thread:$0]  %s0, 128, %s26, [#allocation3], 64, 64, 4
    $region5: #{tpu_custom_call.1} parent=1 // pred_fallthru
      _
    // Predicated region
    $region6: #{tpu_custom_call.1} parent=1 // pred_check
      _
    $region7: #{tpu_custom_call.1} parent=1 // pred_check_branch
      %33 = sbr.rel (0) target = $region9
    $region8: #{tpu_custom_call.1} parent=1 // pred_region
      %s35 = ssub.s32 4096, 4096
      %36 = vsyncadd [#allocation6], %s35
      %s37 = sshll.u32 [#allocation5], 4
      %s38 = int_to_ptr.vmem [resolvable:$true] %s37
      %43 = dma.hbm_to_vmem [thread:$0]  %s1, 4096, %s38, [#allocation6], 256, 256, 16
    $region9: #{tpu_custom_call.1} parent=1 // pred_fallthru
      _
    // Predicated region
    $region10: #{tpu_custom_call.1} parent=1 // pred_check
      _
    $region11: #{tpu_custom_call.1} parent=1 // pred_check_branch
      %45 = sbr.rel (0) target = $region13
    $region12: #{tpu_custom_call.1} parent=1 // pred_region
      %s47 = ssub.s32 64, 64
      %48 = vsyncadd [#allocation6], %s47
      %s50 = sshll.u32 [#allocation7], 4
      %s51 = int_to_ptr.vmem [resolvable:$true] %s50
      %53 = dma.hbm_to_vmem [thread:$0]  %s2, 64, %s51, [#allocation6]
    $region13: #{tpu_custom_call.1} parent=1 // pred_fallthru
      _
    // Predicated region
    $region14: #{tpu_custom_call.1} parent=1 // pred_check
      _
    $region15: #{tpu_custom_call.1} parent=1 // pred_check_branch
      %55 = sbr.rel (0) target = $region17
    $region16: #{tpu_custom_call.1} parent=1 // pred_region
      %s57 = ssub.s32 16384, 16384
      %58 = vsyncadd [#allocation9], %s57
      %s59 = sshll.u32 [#allocation8], 4
      %s60 = int_to_ptr.vmem [resolvable:$true] %s59
      %65 = dma.hbm_to_vmem [thread:$0]  %s3, 16384, %s60, [#allocation9], 256, 256, 16
    $region17: #{tpu_custom_call.1} parent=1 // pred_fallthru
      _
    // Predicated region
    $region18: #{tpu_custom_call.1} parent=1 // pred_check
      _
    $region19: #{tpu_custom_call.1} parent=1 // pred_check_branch
      %67 = sbr.rel (0) target = $region21
    $region20: #{tpu_custom_call.1} parent=1 // pred_region
      %s69 = ssub.s32 64, 64
      %70 = vsyncadd [#allocation9], %s69
      %s72 = sshll.u32 [#allocation10], 4
      %s73 = int_to_ptr.vmem [resolvable:$true] %s72
      %75 = dma.hbm_to_vmem [thread:$0]  %s4, 64, %s73, [#allocation9]
    $region21: #{tpu_custom_call.1} parent=1 // pred_fallthru
      _
    // Predicated region
    $region22: #{tpu_custom_call.1} parent=1 // pred_check
      _
    $region23: #{tpu_custom_call.1} parent=1 // pred_check_branch
      %77 = sbr.rel (0) target = $region25
    $region24: #{tpu_custom_call.1} parent=1 // pred_region
      %s79 = ssub.s32 65536, 65536
      %80 = vsyncadd [#allocation12], %s79
      %s81 = sshll.u32 [#allocation11], 4
      %s82 = int_to_ptr.vmem [resolvable:$true] %s81
      %87 = dma.hbm_to_vmem [thread:$0]  %s5, 65536, %s82, [#allocation12], 1024, 1024, 64
    $region25: #{tpu_custom_call.1} parent=1 // pred_fallthru
      _
    // Predicated region
    $region26: #{tpu_custom_call.1} parent=1 // pred_check
      _
    $region27: #{tpu_custom_call.1} parent=1 // pred_check_branch
      %89 = sbr.rel (0) target = $region29
    $region28: #{tpu_custom_call.1} parent=1 // pred_region
      %s91 = ssub.s32 256, 256
      %92 = vsyncadd [#allocation12], %s91
      %s94 = sshll.u32 [#allocation13], 4
      %s95 = int_to_ptr.vmem [resolvable:$true] %s94
      %97 = dma.hbm_to_vmem [thread:$0]  %s6, 256, %s95, [#allocation12]
    $region29: #{tpu_custom_call.1} parent=1 // pred_fallthru
      _
    // Predicated region
    $region30: #{tpu_custom_call.1} parent=1 // pred_check
      _
    $region31: #{tpu_custom_call.1} parent=1 // pred_check_branch
      %99 = sbr.rel (0) target = $region33
    $region32: #{tpu_custom_call.1} parent=1 // pred_region
      %s101 = ssub.s32 16384, 16384
      %102 = vsyncadd [#allocation15], %s101
      %s103 = sshll.u32 [#allocation14], 4
      %s104 = int_to_ptr.vmem [resolvable:$true] %s103
      %109 = dma.hbm_to_vmem [thread:$0]  %s7, 16384, %s104, [#allocation15], 64, 64, 4
    $region33: #{tpu_custom_call.1} parent=1 // pred_fallthru
      _
    // Predicated region
    $region34: #{tpu_custom_call.1} parent=1 // pred_check
      _
    $region35: #{tpu_custom_call.1} parent=1 // pred_check_branch
      %111 = sbr.rel (0) target = $region37
    $region36: #{tpu_custom_call.1} parent=1 // pred_region
      %s113 = ssub.s32 16, 16
      %114 = vsyncadd [#allocation15], %s113
      %s116 = sshll.u32 [#allocation16], 4
      %s117 = int_to_ptr.vmem [resolvable:$true] %s116
      %119 = dma.hbm_to_vmem [thread:$0]  %s8, 16, %s117, [#allocation15]
    $region37: #{tpu_custom_call.1} parent=1 // pred_fallthru
      _
    // Predicated region
    $region38: #{tpu_custom_call.1} parent=1 // pred_check
      _
    $region39: #{tpu_custom_call.1} parent=1 // pred_check_branch
      %121 = sbr.rel (0) target = $region41
    $region40: #{tpu_custom_call.1} parent=1 // pred_region
      %122 = dma.done [#allocation3], 128
    $region41: #{tpu_custom_call.1} parent=1 // pred_fallthru
      _
    // Predicated region
    $region42: #{tpu_custom_call.1} parent=1 // pred_check
      _
    $region43: #{tpu_custom_call.1} parent=1 // pred_check_branch
      %124 = sbr.rel (0) target = $region45
    $region44: #{tpu_custom_call.1} parent=1 // pred_region
      %125 = dma.done [#allocation6], 4096
    $region45: #{tpu_custom_call.1} parent=1 // pred_fallthru
      _
    // Predicated region
    $region46: #{tpu_custom_call.1} parent=1 // pred_check
      _
    $region47: #{tpu_custom_call.1} parent=1 // pred_check_branch
      %127 = sbr.rel (0) target = $region49
    $region48: #{tpu_custom_call.1} parent=1 // pred_region
      %128 = dma.done [#allocation6], 64
    $region49: #{tpu_custom_call.1} parent=1 // pred_fallthru
      _
    // Predicated region
    $region50: #{tpu_custom_call.1} parent=1 // pred_check
      _
    $region51: #{tpu_custom_call.1} parent=1 // pred_check_branch
      %130 = sbr.rel (0) target = $region53
    $region52: #{tpu_custom_call.1} parent=1 // pred_region
      %131 = dma.done [#allocation9], 16384
    $region53: #{tpu_custom_call.1} parent=1 // pred_fallthru
      _
    // Predicated region
    $region54: #{tpu_custom_call.1} parent=1 // pred_check
      _
    $region55: #{tpu_custom_call.1} parent=1 // pred_check_branch
      %133 = sbr.rel (0) target = $region57
    $region56: #{tpu_custom_call.1} parent=1 // pred_region
      %134 = dma.done [#allocation9], 64
    $region57: #{tpu_custom_call.1} parent=1 // pred_fallthru
      _
    // Predicated region
    $region58: #{tpu_custom_call.1} parent=1 // pred_check
      _
    $region59: #{tpu_custom_call.1} parent=1 // pred_check_branch
      %136 = sbr.rel (0) target = $region61
    $region60: #{tpu_custom_call.1} parent=1 // pred_region
      %137 = dma.done [#allocation12], 65536
    $region61: #{tpu_custom_call.1} parent=1 // pred_fallthru
      _
    // Predicated region
    $region62: #{tpu_custom_call.1} parent=1 // pred_check
      _
    $region63: #{tpu_custom_call.1} parent=1 // pred_check_branch
      %139 = sbr.rel (0) target = $region65
    $region64: #{tpu_custom_call.1} parent=1 // pred_region
      %140 = dma.done [#allocation12], 256
    $region65: #{tpu_custom_call.1} parent=1 // pred_fallthru
      _
    // Predicated region
    $region66: #{tpu_custom_call.1} parent=1 // pred_check
      _
    $region67: #{tpu_custom_call.1} parent=1 // pred_check_branch
      %142 = sbr.rel (0) target = $region69
    $region68: #{tpu_custom_call.1} parent=1 // pred_region
      %143 = dma.done [#allocation15], 16384
    $region69: #{tpu_custom_call.1} parent=1 // pred_fallthru
      _
    // Predicated region
    $region70: #{tpu_custom_call.1} parent=1 // pred_check
      _
    $region71: #{tpu_custom_call.1} parent=1 // pred_check_branch
      %145 = sbr.rel (0) target = $region73
    $region72: #{tpu_custom_call.1} parent=1 // pred_region
      %146 = dma.done [#allocation15], 16
    $region73: #{tpu_custom_call.1} parent=1 // pred_fallthru
      _
    %v148 = vld [vmem:[#allocation2] sm:$0xf]
    %v149 = vld [vmem:[#allocation2 + $0x4] sm:$0xf]
    %v150 = vld [vmem:[#allocation5] sm:$0xff]
    %v151 = vld [vmem:[#allocation5 + $0x8] sm:$0xff]
    %v152 = vld [vmem:[#allocation5 + $0x10] sm:$0xff]
    %v153 = vld [vmem:[#allocation5 + $0x18] sm:$0xff]
    %v154 = vld [vmem:[#allocation5 + $0x20] sm:$0xff]
    %v155 = vld [vmem:[#allocation5 + $0x28] sm:$0xff]
    %v156 = vld [vmem:[#allocation5 + $0x30] sm:$0xff]
    %v157 = vld [vmem:[#allocation5 + $0x38] sm:$0xff]
    %v158 = vld [vmem:[#allocation5 + $0x40] sm:$0xff]
    %v159 = vld [vmem:[#allocation5 + $0x48] sm:$0xff]
    %v160 = vld [vmem:[#allocation5 + $0x50] sm:$0xff]
    %v161 = vld [vmem:[#allocation5 + $0x58] sm:$0xff]
    %v162 = vld [vmem:[#allocation5 + $0x60] sm:$0xff]
    %v163 = vld [vmem:[#allocation5 + $0x68] sm:$0xff]
    %v164 = vld [vmem:[#allocation5 + $0x70] sm:$0xff]
    %v165 = vld [vmem:[#allocation5 + $0x78] sm:$0xff]
    %v166 = vld [vmem:[#allocation5 + $0x80] sm:$0xff]
    %v167 = vld [vmem:[#allocation5 + $0x88] sm:$0xff]
    %v168 = vld [vmem:[#allocation5 + $0x90] sm:$0xff]
    %v169 = vld [vmem:[#allocation5 + $0x98] sm:$0xff]
    %v170 = vld [vmem:[#allocation5 + $0xa0] sm:$0xff]
    %v171 = vld [vmem:[#allocation5 + $0xa8] sm:$0xff]
    %v172 = vld [vmem:[#allocation5 + $0xb0] sm:$0xff]
    %v173 = vld [vmem:[#allocation5 + $0xb8] sm:$0xff]
    %v174 = vld [vmem:[#allocation5 + $0xc0] sm:$0xff]
    %v175 = vld [vmem:[#allocation5 + $0xc8] sm:$0xff]
    %v176 = vld [vmem:[#allocation5 + $0xd0] sm:$0xff]
    %v177 = vld [vmem:[#allocation5 + $0xd8] sm:$0xff]
    %v178 = vld [vmem:[#allocation5 + $0xe0] sm:$0xff]
    %v179 = vld [vmem:[#allocation5 + $0xe8] sm:$0xff]
    %v180 = vld [vmem:[#allocation5 + $0xf0] sm:$0xff]
    %v181 = vld [vmem:[#allocation5 + $0xf8] sm:$0xff]
    %v182 = vld [vmem:[#allocation7] sm:$0xf]
    %v184 = vlaneseq
    %v185 = vshrl.u32 %v184, 7
    %v186 = vsub.s32 0, %v185
    %v187 = vrot.slane %v182, %v186
    %v188 = vlaneseq
    %v189 = vshrl.u32 %v188, 7
    %v190 = vsub.s32 1, %v189
    %v191 = vrot.slane %v182, %v190
    %v192 = vlaneseq
    %v193 = vshrl.u32 %v192, 7
    %v194 = vsub.s32 2, %v193
    %v195 = vrot.slane %v182, %v194
    %v196 = vlaneseq
    %v197 = vshrl.u32 %v196, 7
    %v198 = vsub.s32 3, %v197
    %v199 = vrot.slane %v182, %v198
    %v206 = vunpack.c.l.b16 %v148
    %v207 = vunpack.c.l.b16 %v149
    %v208 = vpack.c.b16 %v207, %v206
    %v242 = vunpack.c.l.b16 %v150
    %v243 = vunpack.c.h.b16 %v150
    %v244 = vunpack.c.l.b16 %v151
    %v245 = vunpack.c.h.b16 %v151
    %v246 = vunpack.c.l.b16 %v152
    %v247 = vunpack.c.h.b16 %v152
    %v248 = vunpack.c.l.b16 %v153
    %v249 = vunpack.c.h.b16 %v153
    %v250 = vunpack.c.l.b16 %v154
    %v251 = vunpack.c.h.b16 %v154
    %v252 = vunpack.c.l.b16 %v155
    %v253 = vunpack.c.h.b16 %v155
    %v254 = vunpack.c.l.b16 %v156
    %v255 = vunpack.c.h.b16 %v156
    %v256 = vunpack.c.l.b16 %v157
    %v257 = vunpack.c.h.b16 %v157
    %v258 = vunpack.c.l.b16 %v158
    %v259 = vunpack.c.h.b16 %v158
    %v260 = vunpack.c.l.b16 %v159
    %v261 = vunpack.c.h.b16 %v159
    %v262 = vunpack.c.l.b16 %v160
    %v263 = vunpack.c.h.b16 %v160
    %v264 = vunpack.c.l.b16 %v161
    %v265 = vunpack.c.h.b16 %v161
    %v266 = vunpack.c.l.b16 %v162
    %v267 = vunpack.c.h.b16 %v162
    %v268 = vunpack.c.l.b16 %v163
    %v269 = vunpack.c.h.b16 %v163
    %v270 = vunpack.c.l.b16 %v164
    %v271 = vunpack.c.h.b16 %v164
    %v272 = vunpack.c.l.b16 %v165
    %v273 = vunpack.c.h.b16 %v165
    %v274 = vunpack.c.l.b16 %v166
    %v275 = vunpack.c.h.b16 %v166
    %v276 = vunpack.c.l.b16 %v167
    %v277 = vunpack.c.h.b16 %v167
    %v278 = vunpack.c.l.b16 %v168
    %v279 = vunpack.c.h.b16 %v168
    %v280 = vunpack.c.l.b16 %v169
    %v281 = vunpack.c.h.b16 %v169
    %v282 = vunpack.c.l.b16 %v170
    %v283 = vunpack.c.h.b16 %v170
    %v284 = vunpack.c.l.b16 %v171
    %v285 = vunpack.c.h.b16 %v171
    %v286 = vunpack.c.l.b16 %v172
    %v287 = vunpack.c.h.b16 %v172
    %v288 = vunpack.c.l.b16 %v173
    %v289 = vunpack.c.h.b16 %v173
    %v290 = vunpack.c.l.b16 %v174
    %v291 = vunpack.c.h.b16 %v174
    %v292 = vunpack.c.l.b16 %v175
    %v293 = vunpack.c.h.b16 %v175
    %v294 = vunpack.c.l.b16 %v176
    %v295 = vunpack.c.h.b16 %v176
    %v296 = vunpack.c.l.b16 %v177
    %v297 = vunpack.c.h.b16 %v177
    %v298 = vunpack.c.l.b16 %v178
    %v299 = vunpack.c.h.b16 %v178
    %v300 = vunpack.c.l.b16 %v179
    %v301 = vunpack.c.h.b16 %v179
    %v302 = vunpack.c.l.b16 %v180
    %v303 = vunpack.c.h.b16 %v180
    %v304 = vunpack.c.l.b16 %v181
    %v305 = vunpack.c.h.b16 %v181
    %v306 = vpack.c.b16 %v246, %v242
    %v307 = vpack.c.b16 %v247, %v243
    %v308 = vpack.c.b16 %v248, %v244
    %v309 = vpack.c.b16 %v249, %v245
    %v310 = vpack.c.b16 %v254, %v250
    %v311 = vpack.c.b16 %v255, %v251
    %v312 = vpack.c.b16 %v256, %v252
    %v313 = vpack.c.b16 %v257, %v253
    %v314 = vpack.c.b16 %v262, %v258
    %v315 = vpack.c.b16 %v263, %v259
    %v316 = vpack.c.b16 %v264, %v260
    %v317 = vpack.c.b16 %v265, %v261
    %v318 = vpack.c.b16 %v270, %v266
    %v319 = vpack.c.b16 %v271, %v267
    %v320 = vpack.c.b16 %v272, %v268
    %v321 = vpack.c.b16 %v273, %v269
    %v322 = vpack.c.b16 %v278, %v274
    %v323 = vpack.c.b16 %v279, %v275
    %v324 = vpack.c.b16 %v280, %v276
    %v325 = vpack.c.b16 %v281, %v277
    %v326 = vpack.c.b16 %v286, %v282
    %v327 = vpack.c.b16 %v287, %v283
    %v328 = vpack.c.b16 %v288, %v284
    %v329 = vpack.c.b16 %v289, %v285
    %v330 = vpack.c.b16 %v294, %v290
    %v331 = vpack.c.b16 %v295, %v291
    %v332 = vpack.c.b16 %v296, %v292
    %v333 = vpack.c.b16 %v297, %v293
    %v334 = vpack.c.b16 %v302, %v298
    %v335 = vpack.c.b16 %v303, %v299
    %v336 = vpack.c.b16 %v304, %v300
    %v337 = vpack.c.b16 %v305, %v301
    %370 = vmatprep.subr.bf16.mxu0 %v335
    %371 = vmatpush1.bf16.msra.mxu0 %v334
    %372 = vmatprep.subr.bf16.mxu0 %v331
    %373 = vmatpush1.bf16.msra.mxu0 %v330
    %374 = vmatprep.subr.bf16.mxu0 %v327
    %375 = vmatpush1.bf16.msra.mxu0 %v326
    %376 = vmatprep.subr.bf16.mxu0 %v323
    %377 = vmatpush1.bf16.msra.mxu0 %v322
    %378 = vmatprep.subr.bf16.mxu0 %v319
    %379 = vmatpush1.bf16.msra.mxu0 %v318
    %380 = vmatprep.subr.bf16.mxu0 %v315
    %381 = vmatpush1.bf16.msra.mxu0 %v314
    %382 = vmatprep.subr.bf16.mxu0 %v311
    %383 = vmatpush1.bf16.msra.mxu0 %v310
    %384 = vmatprep.subr.bf16.mxu0 %v307
    %385 = vmatpush1.bf16.msra.mxu0 %v306
    %386 = vmatprep.subr.bf16.mxu0 0
    %387 = vmatpush2.bf16.msra.mxu0 0
    %388 = vmatprep.subr.bf16.mxu0 0
    %389 = vmatpush2.bf16.msra.mxu0 0
    %390 = vmatprep.subr.bf16.mxu0 0
    %391 = vmatpush2.bf16.msra.mxu0 0
    %392 = vmatprep.subr.bf16.mxu0 0
    %393 = vmatpush2.bf16.msra.mxu0 0
    %394 = vmatprep.subr.bf16.mxu0 0
    %395 = vmatpush2.bf16.msra.mxu0 0
    %396 = vmatprep.subr.bf16.mxu0 0
    %397 = vmatpush2.bf16.msra.mxu0 0
    %398 = vmatprep.subr.bf16.mxu0 0
    %399 = vmatpush2.bf16.msra.mxu0 0
    %400 = vmatprep.subr.bf16.mxu0 0
    %401 = vmatpush2.bf16.msra.mxu0 0
    %402 = vmatprep.mubr.bf16.mxu0 0
    %403 = vmatmul.mubr.bf16.gmra.mxu0 %v208
    %v404 = vpop.f32.mrf.mxu0
    %v405 = vadd.f32 %v187, %v404
    %v406 = vpop.f32.mrf.mxu0
    %v407 = vadd.f32 %v191, %v406
    %v408 = vpop.f32.mrf.mxu0
    %v409 = vadd.f32 %v187, %v408
    %v410 = vpop.f32.mrf.mxu0
    %v411 = vadd.f32 %v191, %v410
    %412 = vdwg.mxu0
    %413 = vmatprep.subr.bf16.mxu0 %v337
    %414 = vmatpush1.bf16.msra.mxu0 %v336
    %415 = vmatprep.subr.bf16.mxu0 %v333
    %416 = vmatpush1.bf16.msra.mxu0 %v332
    %417 = vmatprep.subr.bf16.mxu0 %v329
    %418 = vmatpush1.bf16.msra.mxu0 %v328
    %419 = vmatprep.subr.bf16.mxu0 %v325
    %420 = vmatpush1.bf16.msra.mxu0 %v324
    %421 = vmatprep.subr.bf16.mxu0 %v321
    %422 = vmatpush1.bf16.msra.mxu0 %v320
    %423 = vmatprep.subr.bf16.mxu0 %v317
    %424 = vmatpush1.bf16.msra.mxu0 %v316
    %425 = vmatprep.subr.bf16.mxu0 %v313
    %426 = vmatpush1.bf16.msra.mxu0 %v312
    %427 = vmatprep.subr.bf16.mxu0 %v309
    %428 = vmatpush1.bf16.msra.mxu0 %v308
    %429 = vmatprep.subr.bf16.mxu0 0
    %430 = vmatpush2.bf16.msra.mxu0 0
    %431 = vmatprep.subr.bf16.mxu0 0
    %432 = vmatpush2.bf16.msra.mxu0 0
    %433 = vmatprep.subr.bf16.mxu0 0
    %434 = vmatpush2.bf16.msra.mxu0 0
    %435 = vmatprep.subr.bf16.mxu0 0
    %436 = vmatpush2.bf16.msra.mxu0 0
    %437 = vmatprep.subr.bf16.mxu0 0
    %438 = vmatpush2.bf16.msra.mxu0 0
    %439 = vmatprep.subr.bf16.mxu0 0
    %440 = vmatpush2.bf16.msra.mxu0 0
    %441 = vmatprep.subr.bf16.mxu0 0
    %442 = vmatpush2.bf16.msra.mxu0 0
    %443 = vmatprep.subr.bf16.mxu0 0
    %444 = vmatpush2.bf16.msra.mxu0 0
    %445 = vmatprep.mubr.bf16.mxu0 0
    %446 = vmatmul.mubr.bf16.gmra.mxu0 %v208
    %v447 = vpop.f32.mrf.mxu0
    %v448 = vadd.f32 %v195, %v447
    %v449 = vpop.f32.mrf.mxu0
    %v450 = vadd.f32 %v199, %v449
    %v451 = vpop.f32.mrf.mxu0
    %v452 = vadd.f32 %v195, %v451
    %v453 = vpop.f32.mrf.mxu0
    %v454 = vadd.f32 %v199, %v453
    %455 = vdwg.mxu0
    %v456 = vmax.f32 %v405, 0.0
    %v457 = vmax.f32 %v407, 0.0
    %v458 = vmax.f32 %v448, 0.0
    %v459 = vmax.f32 %v450, 0.0
    %v460 = vmax.f32 %v409, 0.0
    %v461 = vmax.f32 %v411, 0.0
    %v462 = vmax.f32 %v452, 0.0
    %v463 = vmax.f32 %v454, 0.0
    %v464 = vpack.c.bf16 %v460, %v456
    %v465 = vpack.c.bf16 %v461, %v457
    %v466 = vpack.c.bf16 %v462, %v458
    %v467 = vpack.c.bf16 %v463, %v459
    %v468 = vld [vmem:[#allocation8] sm:$0xff]
    %v469 = vld [vmem:[#allocation8 + $0x8] sm:$0xff]
    %v470 = vld [vmem:[#allocation8 + $0x10] sm:$0xff]
    %v471 = vld [vmem:[#allocation8 + $0x18] sm:$0xff]
    %v472 = vld [vmem:[#allocation8 + $0x20] sm:$0xff]
    %v473 = vld [vmem:[#allocation8 + $0x28] sm:$0xff]
    %v474 = vld [vmem:[#allocation8 + $0x30] sm:$0xff]
    %v475 = vld [vmem:[#allocation8 + $0x38] sm:$0xff]
    %v476 = vld [vmem:[#allocation8 + $0x40] sm:$0xff]
    %v477 = vld [vmem:[#allocation8 + $0x48] sm:$0xff]
    %v478 = vld [vmem:[#allocation8 + $0x50] sm:$0xff]
    %v479 = vld [vmem:[#allocation8 + $0x58] sm:$0xff]
    %v480 = vld [vmem:[#allocation8 + $0x60] sm:$0xff]
    %v481 = vld [vmem:[#allocation8 + $0x68] sm:$0xff]
    %v482 = vld [vmem:[#allocation8 + $0x70] sm:$0xff]
    %v483 = vld [vmem:[#allocation8 + $0x78] sm:$0xff]
    %v484 = vld [vmem:[#allocation8 + $0x80] sm:$0xff]
    %v485 = vld [vmem:[#allocation8 + $0x88] sm:$0xff]
    %v486 = vld [vmem:[#allocation8 + $0x90] sm:$0xff]
    %v487 = vld [vmem:[#allocation8 + $0x98] sm:$0xff]
    %v488 = vld [vmem:[#allocation8 + $0xa0] sm:$0xff]
    %v489 = vld [vmem:[#allocation8 + $0xa8] sm:$0xff]
    %v490 = vld [vmem:[#allocation8 + $0xb0] sm:$0xff]
    %v491 = vld [vmem:[#allocation8 + $0xb8] sm:$0xff]
    %v492 = vld [vmem:[#allocation8 + $0xc0] sm:$0xff]
    %v493 = vld [vmem:[#allocation8 + $0xc8] sm:$0xff]
    %v494 = vld [vmem:[#allocation8 + $0xd0] sm:$0xff]
    %v495 = vld [vmem:[#allocation8 + $0xd8] sm:$0xff]
    %v496 = vld [vmem:[#allocation8 + $0xe0] sm:$0xff]
    %v497 = vld [vmem:[#allocation8 + $0xe8] sm:$0xff]
    %v498 = vld [vmem:[#allocation8 + $0xf0] sm:$0xff]
    %v499 = vld [vmem:[#allocation8 + $0xf8] sm:$0xff]
    %v500 = vld [vmem:[#allocation8 + $0x100] sm:$0xff]
    %v501 = vld [vmem:[#allocation8 + $0x108] sm:$0xff]
    %v502 = vld [vmem:[#allocation8 + $0x110] sm:$0xff]
    %v503 = vld [vmem:[#allocation8 + $0x118] sm:$0xff]
    %v504 = vld [vmem:[#allocation8 + $0x120] sm:$0xff]
    %v505 = vld [vmem:[#allocation8 + $0x128] sm:$0xff]
    %v506 = vld [vmem:[#allocation8 + $0x130] sm:$0xff]
    %v507 = vld [vmem:[#allocation8 + $0x138] sm:$0xff]
    %v508 = vld [vmem:[#allocation8 + $0x140] sm:$0xff]
    %v509 = vld [vmem:[#allocation8 + $0x148] sm:$0xff]
    %v510 = vld [vmem:[#allocation8 + $0x150] sm:$0xff]
    %v511 = vld [vmem:[#allocation8 + $0x158] sm:$0xff]
    %v512 = vld [vmem:[#allocation8 + $0x160] sm:$0xff]
    %v513 = vld [vmem:[#allocation8 + $0x168] sm:$0xff]
    %v514 = vld [vmem:[#allocation8 + $0x170] sm:$0xff]
    %v515 = vld [vmem:[#allocation8 + $0x178] sm:$0xff]
    %v516 = vld [vmem:[#allocation8 + $0x180] sm:$0xff]
    %v517 = vld [vmem:[#allocation8 + $0x188] sm:$0xff]
    %v518 = vld [vmem:[#allocation8 + $0x190] sm:$0xff]
    %v519 = vld [vmem:[#allocation8 + $0x198] sm:$0xff]
    %v520 = vld [vmem:[#allocation8 + $0x1a0] sm:$0xff]
    %v521 = vld [vmem:[#allocation8 + $0x1a8] sm:$0xff]
    %v522 = vld [vmem:[#allocation8 + $0x1b0] sm:$0xff]
    %v523 = vld [vmem:[#allocation8 + $0x1b8] sm:$0xff]
    %v524 = vld [vmem:[#allocation8 + $0x1c0] sm:$0xff]
    %v525 = vld [vmem:[#allocation8 + $0x1c8] sm:$0xff]
    %v526 = vld [vmem:[#allocation8 + $0x1d0] sm:$0xff]
    %v527 = vld [vmem:[#allocation8 + $0x1d8] sm:$0xff]
    %v528 = vld [vmem:[#allocation8 + $0x1e0] sm:$0xff]
    %v529 = vld [vmem:[#allocation8 + $0x1e8] sm:$0xff]
    %v530 = vld [vmem:[#allocation8 + $0x1f0] sm:$0xff]
    %v531 = vld [vmem:[#allocation8 + $0x1f8] sm:$0xff]
    %v532 = vld [vmem:[#allocation8 + $0x200] sm:$0xff]
    %v533 = vld [vmem:[#allocation8 + $0x208] sm:$0xff]
    %v534 = vld [vmem:[#allocation8 + $0x210] sm:$0xff]
    %v535 = vld [vmem:[#allocation8 + $0x218] sm:$0xff]
    %v536 = vld [vmem:[#allocation8 + $0x220] sm:$0xff]
    %v537 = vld [vmem:[#allocation8 + $0x228] sm:$0xff]
    %v538 = vld [vmem:[#allocation8 + $0x230] sm:$0xff]
    %v539 = vld [vmem:[#allocation8 + $0x238] sm:$0xff]
    %v540 = vld [vmem:[#allocation8 + $0x240] sm:$0xff]
    %v541 = vld [vmem:[#allocation8 + $0x248] sm:$0xff]
    %v542 = vld [vmem:[#allocation8 + $0x250] sm:$0xff]
    %v543 = vld [vmem:[#allocation8 + $0x258] sm:$0xff]
    %v544 = vld [vmem:[#allocation8 + $0x260] sm:$0xff]
    %v545 = vld [vmem:[#allocation8 + $0x268] sm:$0xff]
    %v546 = vld [vmem:[#allocation8 + $0x270] sm:$0xff]
    %v547 = vld [vmem:[#allocation8 + $0x278] sm:$0xff]
    %v548 = vld [vmem:[#allocation8 + $0x280] sm:$0xff]
    %v549 = vld [vmem:[#allocation8 + $0x288] sm:$0xff]
    %v550 = vld [vmem:[#allocation8 + $0x290] sm:$0xff]
    %v551 = vld [vmem:[#allocation8 + $0x298] sm:$0xff]
    %v552 = vld [vmem:[#allocation8 + $0x2a0] sm:$0xff]
    %v553 = vld [vmem:[#allocation8 + $0x2a8] sm:$0xff]
    %v554 = vld [vmem:[#allocation8 + $0x2b0] sm:$0xff]
    %v555 = vld [vmem:[#allocation8 + $0x2b8] sm:$0xff]
    %v556 = vld [vmem:[#allocation8 + $0x2c0] sm:$0xff]
    %v557 = vld [vmem:[#allocation8 + $0x2c8] sm:$0xff]
    %v558 = vld [vmem:[#allocation8 + $0x2d0] sm:$0xff]
    %v559 = vld [vmem:[#allocation8 + $0x2d8] sm:$0xff]
    %v560 = vld [vmem:[#allocation8 + $0x2e0] sm:$0xff]
    %v561 = vld [vmem:[#allocation8 + $0x2e8] sm:$0xff]
    %v562 = vld [vmem:[#allocation8 + $0x2f0] sm:$0xff]
    %v563 = vld [vmem:[#allocation8 + $0x2f8] sm:$0xff]
    %v564 = vld [vmem:[#allocation8 + $0x300] sm:$0xff]
    %v565 = vld [vmem:[#allocation8 + $0x308] sm:$0xff]
    %v566 = vld [vmem:[#allocation8 + $0x310] sm:$0xff]
    %v567 = vld [vmem:[#allocation8 + $0x318] sm:$0xff]
    %v568 = vld [vmem:[#allocation8 + $0x320] sm:$0xff]
    %v569 = vld [vmem:[#allocation8 + $0x328] sm:$0xff]
    %v570 = vld [vmem:[#allocation8 + $0x330] sm:$0xff]
    %v571 = vld [vmem:[#allocation8 + $0x338] sm:$0xff]
    %v572 = vld [vmem:[#allocation8 + $0x340] sm:$0xff]
    %v573 = vld [vmem:[#allocation8 + $0x348] sm:$0xff]
    %v574 = vld [vmem:[#allocation8 + $0x350] sm:$0xff]
    %v575 = vld [vmem:[#allocation8 + $0x358] sm:$0xff]
    %v576 = vld [vmem:[#allocation8 + $0x360] sm:$0xff]
    %v577 = vld [vmem:[#allocation8 + $0x368] sm:$0xff]
    %v578 = vld [vmem:[#allocation8 + $0x370] sm:$0xff]
    %v579 = vld [vmem:[#allocation8 + $0x378] sm:$0xff]
    %v580 = vld [vmem:[#allocation8 + $0x380] sm:$0xff]
    %v581 = vld [vmem:[#allocation8 + $0x388] sm:$0xff]
    %v582 = vld [vmem:[#allocation8 + $0x390] sm:$0xff]
    %v583 = vld [vmem:[#allocation8 + $0x398] sm:$0xff]
    %v584 = vld [vmem:[#allocation8 + $0x3a0] sm:$0xff]
    %v585 = vld [vmem:[#allocation8 + $0x3a8] sm:$0xff]
    %v586 = vld [vmem:[#allocation8 + $0x3b0] sm:$0xff]
    %v587 = vld [vmem:[#allocation8 + $0x3b8] sm:$0xff]
    %v588 = vld [vmem:[#allocation8 + $0x3c0] sm:$0xff]
    %v589 = vld [vmem:[#allocation8 + $0x3c8] sm:$0xff]
    %v590 = vld [vmem:[#allocation8 + $0x3d0] sm:$0xff]
    %v591 = vld [vmem:[#allocation8 + $0x3d8] sm:$0xff]
    %v592 = vld [vmem:[#allocation8 + $0x3e0] sm:$0xff]
    %v593 = vld [vmem:[#allocation8 + $0x3e8] sm:$0xff]
    %v594 = vld [vmem:[#allocation8 + $0x3f0] sm:$0xff]
    %v595 = vld [vmem:[#allocation8 + $0x3f8] sm:$0xff]
    %v596 = vld [vmem:[#allocation10] sm:$0xf]
    %v598 = vlaneseq
    %v599 = vshrl.u32 %v598, 7
    %v600 = vsub.s32 0, %v599
    %v601 = vrot.slane %v596, %v600
    %v602 = vlaneseq
    %v603 = vshrl.u32 %v602, 7
    %v604 = vsub.s32 1, %v603
    %v605 = vrot.slane %v596, %v604
    %v606 = vlaneseq
    %v607 = vshrl.u32 %v606, 7
    %v608 = vsub.s32 2, %v607
    %v609 = vrot.slane %v596, %v608
    %v610 = vlaneseq
    %v611 = vshrl.u32 %v610, 7
    %v612 = vsub.s32 3, %v611
    %v613 = vrot.slane %v596, %v612
    %v746 = vunpack.c.l.b16 %v468
    %v747 = vunpack.c.h.b16 %v468
    %v748 = vunpack.c.l.b16 %v469
    %v749 = vunpack.c.h.b16 %v469
    %v750 = vunpack.c.l.b16 %v470
    %v751 = vunpack.c.h.b16 %v470
    %v752 = vunpack.c.l.b16 %v471
    %v753 = vunpack.c.h.b16 %v471
    %v754 = vunpack.c.l.b16 %v472
    %v755 = vunpack.c.h.b16 %v472
    %v756 = vunpack.c.l.b16 %v473
    %v757 = vunpack.c.h.b16 %v473
    %v758 = vunpack.c.l.b16 %v474
    %v759 = vunpack.c.h.b16 %v474
    %v760 = vunpack.c.l.b16 %v475
    %v761 = vunpack.c.h.b16 %v475
    %v762 = vunpack.c.l.b16 %v476
    %v763 = vunpack.c.h.b16 %v476
    %v764 = vunpack.c.l.b16 %v477
    %v765 = vunpack.c.h.b16 %v477
    %v766 = vunpack.c.l.b16 %v478
    %v767 = vunpack.c.h.b16 %v478
    %v768 = vunpack.c.l.b16 %v479
    %v769 = vunpack.c.h.b16 %v479
    %v770 = vunpack.c.l.b16 %v480
    %v771 = vunpack.c.h.b16 %v480
    %v772 = vunpack.c.l.b16 %v481
    %v773 = vunpack.c.h.b16 %v481
    %v774 = vunpack.c.l.b16 %v482
    %v775 = vunpack.c.h.b16 %v482
    %v776 = vunpack.c.l.b16 %v483
    %v777 = vunpack.c.h.b16 %v483
    %v778 = vunpack.c.l.b16 %v484
    %v779 = vunpack.c.h.b16 %v484
    %v780 = vunpack.c.l.b16 %v485
    %v781 = vunpack.c.h.b16 %v485
    %v782 = vunpack.c.l.b16 %v486
    %v783 = vunpack.c.h.b16 %v486
    %v784 = vunpack.c.l.b16 %v487
    %v785 = vunpack.c.h.b16 %v487
    %v786 = vunpack.c.l.b16 %v488
    %v787 = vunpack.c.h.b16 %v488
    %v788 = vunpack.c.l.b16 %v489
    %v789 = vunpack.c.h.b16 %v489
    %v790 = vunpack.c.l.b16 %v490
    %v791 = vunpack.c.h.b16 %v490
    %v792 = vunpack.c.l.b16 %v491
    %v793 = vunpack.c.h.b16 %v491
    %v794 = vunpack.c.l.b16 %v492
    %v795 = vunpack.c.h.b16 %v492
    %v796 = vunpack.c.l.b16 %v493
    %v797 = vunpack.c.h.b16 %v493
    %v798 = vunpack.c.l.b16 %v494
    %v799 = vunpack.c.h.b16 %v494
    %v800 = vunpack.c.l.b16 %v495
    %v801 = vunpack.c.h.b16 %v495
    %v802 = vunpack.c.l.b16 %v496
    %v803 = vunpack.c.h.b16 %v496
    %v804 = vunpack.c.l.b16 %v497
    %v805 = vunpack.c.h.b16 %v497
    %v806 = vunpack.c.l.b16 %v498
    %v807 = vunpack.c.h.b16 %v498
    %v808 = vunpack.c.l.b16 %v499
    %v809 = vunpack.c.h.b16 %v499
    %v810 = vunpack.c.l.b16 %v500
    %v811 = vunpack.c.h.b16 %v500
    %v812 = vunpack.c.l.b16 %v501
    %v813 = vunpack.c.h.b16 %v501
    %v814 = vunpack.c.l.b16 %v502
    %v815 = vunpack.c.h.b16 %v502
    %v816 = vunpack.c.l.b16 %v503
    %v817 = vunpack.c.h.b16 %v503
    %v818 = vunpack.c.l.b16 %v504
    %v819 = vunpack.c.h.b16 %v504
    %v820 = vunpack.c.l.b16 %v505
    %v821 = vunpack.c.h.b16 %v505
    %v822 = vunpack.c.l.b16 %v506
    %v823 = vunpack.c.h.b16 %v506
    %v824 = vunpack.c.l.b16 %v507
    %v825 = vunpack.c.h.b16 %v507
    %v826 = vunpack.c.l.b16 %v508
    %v827 = vunpack.c.h.b16 %v508
    %v828 = vunpack.c.l.b16 %v509
    %v829 = vunpack.c.h.b16 %v509
    %v830 = vunpack.c.l.b16 %v510
    %v831 = vunpack.c.h.b16 %v510
    %v832 = vunpack.c.l.b16 %v511
    %v833 = vunpack.c.h.b16 %v511
    %v834 = vunpack.c.l.b16 %v512
    %v835 = vunpack.c.h.b16 %v512
    %v836 = vunpack.c.l.b16 %v513
    %v837 = vunpack.c.h.b16 %v513
    %v838 = vunpack.c.l.b16 %v514
    %v839 = vunpack.c.h.b16 %v514
    %v840 = vunpack.c.l.b16 %v515
    %v841 = vunpack.c.h.b16 %v515
    %v842 = vunpack.c.l.b16 %v516
    %v843 = vunpack.c.h.b16 %v516
    %v844 = vunpack.c.l.b16 %v517
    %v845 = vunpack.c.h.b16 %v517
    %v846 = vunpack.c.l.b16 %v518
    %v847 = vunpack.c.h.b16 %v518
    %v848 = vunpack.c.l.b16 %v519
    %v849 = vunpack.c.h.b16 %v519
    %v850 = vunpack.c.l.b16 %v520
    %v851 = vunpack.c.h.b16 %v520
    %v852 = vunpack.c.l.b16 %v521
    %v853 = vunpack.c.h.b16 %v521
    %v854 = vunpack.c.l.b16 %v522
    %v855 = vunpack.c.h.b16 %v522
    %v856 = vunpack.c.l.b16 %v523
    %v857 = vunpack.c.h.b16 %v523
    %v858 = vunpack.c.l.b16 %v524
    %v859 = vunpack.c.h.b16 %v524
    %v860 = vunpack.c.l.b16 %v525
    %v861 = vunpack.c.h.b16 %v525
    %v862 = vunpack.c.l.b16 %v526
    %v863 = vunpack.c.h.b16 %v526
    %v864 = vunpack.c.l.b16 %v527
    %v865 = vunpack.c.h.b16 %v527
    %v866 = vunpack.c.l.b16 %v528
    %v867 = vunpack.c.h.b16 %v528
    %v868 = vunpack.c.l.b16 %v529
    %v869 = vunpack.c.h.b16 %v529
    %v870 = vunpack.c.l.b16 %v530
    %v871 = vunpack.c.h.b16 %v530
    %v872 = vunpack.c.l.b16 %v531
    %v873 = vunpack.c.h.b16 %v531
    %v874 = vunpack.c.l.b16 %v532
    %v875 = vunpack.c.h.b16 %v532
    %v876 = vunpack.c.l.b16 %v533
    %v877 = vunpack.c.h.b16 %v533
    %v878 = vunpack.c.l.b16 %v534
    %v879 = vunpack.c.h.b16 %v534
    %v880 = vunpack.c.l.b16 %v535
    %v881 = vunpack.c.h.b16 %v535
    %v882 = vunpack.c.l.b16 %v536
    %v883 = vunpack.c.h.b16 %v536
    %v884 = vunpack.c.l.b16 %v537
    %v885 = vunpack.c.h.b16 %v537
    %v886 = vunpack.c.l.b16 %v538
    %v887 = vunpack.c.h.b16 %v538
    %v888 = vunpack.c.l.b16 %v539
    %v889 = vunpack.c.h.b16 %v539
    %v890 = vunpack.c.l.b16 %v540
    %v891 = vunpack.c.h.b16 %v540
    %v892 = vunpack.c.l.b16 %v541
    %v893 = vunpack.c.h.b16 %v541
    %v894 = vunpack.c.l.b16 %v542
    %v895 = vunpack.c.h.b16 %v542
    %v896 = vunpack.c.l.b16 %v543
    %v897 = vunpack.c.h.b16 %v543
    %v898 = vunpack.c.l.b16 %v544
    %v899 = vunpack.c.h.b16 %v544
    %v900 = vunpack.c.l.b16 %v545
    %v901 = vunpack.c.h.b16 %v545
    %v902 = vunpack.c.l.b16 %v546
    %v903 = vunpack.c.h.b16 %v546
    %v904 = vunpack.c.l.b16 %v547
    %v905 = vunpack.c.h.b16 %v547
    %v906 = vunpack.c.l.b16 %v548
    %v907 = vunpack.c.h.b16 %v548
    %v908 = vunpack.c.l.b16 %v549
    %v909 = vunpack.c.h.b16 %v549
    %v910 = vunpack.c.l.b16 %v550
    %v911 = vunpack.c.h.b16 %v550
    %v912 = vunpack.c.l.b16 %v551
    %v913 = vunpack.c.h.b16 %v551
    %v914 = vunpack.c.l.b16 %v552
    %v915 = vunpack.c.h.b16 %v552
    %v916 = vunpack.c.l.b16 %v553
    %v917 = vunpack.c.h.b16 %v553
    %v918 = vunpack.c.l.b16 %v554
    %v919 = vunpack.c.h.b16 %v554
    %v920 = vunpack.c.l.b16 %v555
    %v921 = vunpack.c.h.b16 %v555
    %v922 = vunpack.c.l.b16 %v556
    %v923 = vunpack.c.h.b16 %v556
    %v924 = vunpack.c.l.b16 %v557
    %v925 = vunpack.c.h.b16 %v557
    %v926 = vunpack.c.l.b16 %v558
    %v927 = vunpack.c.h.b16 %v558
    %v928 = vunpack.c.l.b16 %v559
    %v929 = vunpack.c.h.b16 %v559
    %v930 = vunpack.c.l.b16 %v560
    %v931 = vunpack.c.h.b16 %v560
    %v932 = vunpack.c.l.b16 %v561
    %v933 = vunpack.c.h.b16 %v561
    %v934 = vunpack.c.l.b16 %v562
    %v935 = vunpack.c.h.b16 %v562
    %v936 = vunpack.c.l.b16 %v563
    %v937 = vunpack.c.h.b16 %v563
    %v938 = vunpack.c.l.b16 %v564
    %v939 = vunpack.c.h.b16 %v564
    %v940 = vunpack.c.l.b16 %v565
    %v941 = vunpack.c.h.b16 %v565
    %v942 = vunpack.c.l.b16 %v566
    %v943 = vunpack.c.h.b16 %v566
    %v944 = vunpack.c.l.b16 %v567
    %v945 = vunpack.c.h.b16 %v567
    %v946 = vunpack.c.l.b16 %v568
    %v947 = vunpack.c.h.b16 %v568
    %v948 = vunpack.c.l.b16 %v569
    %v949 = vunpack.c.h.b16 %v569
    %v950 = vunpack.c.l.b16 %v570
    %v951 = vunpack.c.h.b16 %v570
    %v952 = vunpack.c.l.b16 %v571
    %v953 = vunpack.c.h.b16 %v571
    %v954 = vunpack.c.l.b16 %v572
    %v955 = vunpack.c.h.b16 %v572
    %v956 = vunpack.c.l.b16 %v573
    %v957 = vunpack.c.h.b16 %v573
    %v958 = vunpack.c.l.b16 %v574
    %v959 = vunpack.c.h.b16 %v574
    %v960 = vunpack.c.l.b16 %v575
    %v961 = vunpack.c.h.b16 %v575
    %v962 = vunpack.c.l.b16 %v576
    %v963 = vunpack.c.h.b16 %v576
    %v964 = vunpack.c.l.b16 %v577
    %v965 = vunpack.c.h.b16 %v577
    %v966 = vunpack.c.l.b16 %v578
    %v967 = vunpack.c.h.b16 %v578
    %v968 = vunpack.c.l.b16 %v579
    %v969 = vunpack.c.h.b16 %v579
    %v970 = vunpack.c.l.b16 %v580
    %v971 = vunpack.c.h.b16 %v580
    %v972 = vunpack.c.l.b16 %v581
    %v973 = vunpack.c.h.b16 %v581
    %v974 = vunpack.c.l.b16 %v582
    %v975 = vunpack.c.h.b16 %v582
    %v976 = vunpack.c.l.b16 %v583
    %v977 = vunpack.c.h.b16 %v583
    %v978 = vunpack.c.l.b16 %v584
    %v979 = vunpack.c.h.b16 %v584
    %v980 = vunpack.c.l.b16 %v585
    %v981 = vunpack.c.h.b16 %v585
    %v982 = vunpack.c.l.b16 %v586
    %v983 = vunpack.c.h.b16 %v586
    %v984 = vunpack.c.l.b16 %v587
    %v985 = vunpack.c.h.b16 %v587
    %v986 = vunpack.c.l.b16 %v588
    %v987 = vunpack.c.h.b16 %v588
    %v988 = vunpack.c.l.b16 %v589
    %v989 = vunpack.c.h.b16 %v589
    %v990 = vunpack.c.l.b16 %v590
    %v991 = vunpack.c.h.b16 %v590
    %v992 = vunpack.c.l.b16 %v591
    %v993 = vunpack.c.h.b16 %v591
    %v994 = vunpack.c.l.b16 %v592
    %v995 = vunpack.c.h.b16 %v592
    %v996 = vunpack.c.l.b16 %v593
    %v997 = vunpack.c.h.b16 %v593
    %v998 = vunpack.c.l.b16 %v594
    %v999 = vunpack.c.h.b16 %v594
    %v1000 = vunpack.c.l.b16 %v595
    %v1001 = vunpack.c.h.b16 %v595
    %v1002 = vpack.c.b16 %v750, %v746
    %v1003 = vpack.c.b16 %v751, %v747
    %v1004 = vpack.c.b16 %v752, %v748
    %v1005 = vpack.c.b16 %v753, %v749
    %v1006 = vpack.c.b16 %v758, %v754
    %v1007 = vpack.c.b16 %v759, %v755
    %v1008 = vpack.c.b16 %v760, %v756
    %v1009 = vpack.c.b16 %v761, %v757
    %v1010 = vpack.c.b16 %v766, %v762
    %v1011 = vpack.c.b16 %v767, %v763
    %v1012 = vpack.c.b16 %v768, %v764
    %v1013 = vpack.c.b16 %v769, %v765
    %v1014 = vpack.c.b16 %v774, %v770
    %v1015 = vpack.c.b16 %v775, %v771
    %v1016 = vpack.c.b16 %v776, %v772
    %v1017 = vpack.c.b16 %v777, %v773
    %v1018 = vpack.c.b16 %v782, %v778
    %v1019 = vpack.c.b16 %v783, %v779
    %v1020 = vpack.c.b16 %v784, %v780
    %v1021 = vpack.c.b16 %v785, %v781
    %v1022 = vpack.c.b16 %v790, %v786
    %v1023 = vpack.c.b16 %v791, %v787
    %v1024 = vpack.c.b16 %v792, %v788
    %v1025 = vpack.c.b16 %v793, %v789
    %v1026 = vpack.c.b16 %v798, %v794
    %v1027 = vpack.c.b16 %v799, %v795
    %v1028 = vpack.c.b16 %v800, %v796
    %v1029 = vpack.c.b16 %v801, %v797
    %v1030 = vpack.c.b16 %v806, %v802
    %v1031 = vpack.c.b16 %v807, %v803
    %v1032 = vpack.c.b16 %v808, %v804
    %v1033 = vpack.c.b16 %v809, %v805
    %v1034 = vpack.c.b16 %v814, %v810
    %v1035 = vpack.c.b16 %v815, %v811
    %v1036 = vpack.c.b16 %v816, %v812
    %v1037 = vpack.c.b16 %v817, %v813
    %v1038 = vpack.c.b16 %v822, %v818
    %v1039 = vpack.c.b16 %v823, %v819
    %v1040 = vpack.c.b16 %v824, %v820
    %v1041 = vpack.c.b16 %v825, %v821
    %v1042 = vpack.c.b16 %v830, %v826
    %v1043 = vpack.c.b16 %v831, %v827
    %v1044 = vpack.c.b16 %v832, %v828
    %v1045 = vpack.c.b16 %v833, %v829
    %v1046 = vpack.c.b16 %v838, %v834
    %v1047 = vpack.c.b16 %v839, %v835
    %v1048 = vpack.c.b16 %v840, %v836
    %v1049 = vpack.c.b16 %v841, %v837
    %v1050 = vpack.c.b16 %v846, %v842
    %v1051 = vpack.c.b16 %v847, %v843
    %v1052 = vpack.c.b16 %v848, %v844
    %v1053 = vpack.c.b16 %v849, %v845
    %v1054 = vpack.c.b16 %v854, %v850
    %v1055 = vpack.c.b16 %v855, %v851
    %v1056 = vpack.c.b16 %v856, %v852
    %v1057 = vpack.c.b16 %v857, %v853
    %v1058 = vpack.c.b16 %v862, %v858
    %v1059 = vpack.c.b16 %v863, %v859
    %v1060 = vpack.c.b16 %v864, %v860
    %v1061 = vpack.c.b16 %v865, %v861
    %v1062 = vpack.c.b16 %v870, %v866
    %v1063 = vpack.c.b16 %v871, %v867
    %v1064 = vpack.c.b16 %v872, %v868
    %v1065 = vpack.c.b16 %v873, %v869
    %v1066 = vpack.c.b16 %v878, %v874
    %v1067 = vpack.c.b16 %v879, %v875
    %v1068 = vpack.c.b16 %v880, %v876
    %v1069 = vpack.c.b16 %v881, %v877
    %v1070 = vpack.c.b16 %v886, %v882
    %v1071 = vpack.c.b16 %v887, %v883
    %v1072 = vpack.c.b16 %v888, %v884
    %v1073 = vpack.c.b16 %v889, %v885
    %v1074 = vpack.c.b16 %v894, %v890
    %v1075 = vpack.c.b16 %v895, %v891
    %v1076 = vpack.c.b16 %v896, %v892
    %v1077 = vpack.c.b16 %v897, %v893
    %v1078 = vpack.c.b16 %v902, %v898
    %v1079 = vpack.c.b16 %v903, %v899
    %v1080 = vpack.c.b16 %v904, %v900
    %v1081 = vpack.c.b16 %v905, %v901
    %v1082 = vpack.c.b16 %v910, %v906
    %v1083 = vpack.c.b16 %v911, %v907
    %v1084 = vpack.c.b16 %v912, %v908
    %v1085 = vpack.c.b16 %v913, %v909
    %v1086 = vpack.c.b16 %v918, %v914
    %v1087 = vpack.c.b16 %v919, %v915
    %v1088 = vpack.c.b16 %v920, %v916
    %v1089 = vpack.c.b16 %v921, %v917
    %v1090 = vpack.c.b16 %v926, %v922
    %v1091 = vpack.c.b16 %v927, %v923
    %v1092 = vpack.c.b16 %v928, %v924
    %v1093 = vpack.c.b16 %v929, %v925
    %v1094 = vpack.c.b16 %v934, %v930
    %v1095 = vpack.c.b16 %v935, %v931
    %v1096 = vpack.c.b16 %v936, %v932
    %v1097 = vpack.c.b16 %v937, %v933
    %v1098 = vpack.c.b16 %v942, %v938
    %v1099 = vpack.c.b16 %v943, %v939
    %v1100 = vpack.c.b16 %v944, %v940
    %v1101 = vpack.c.b16 %v945, %v941
    %v1102 = vpack.c.b16 %v950, %v946
    %v1103 = vpack.c.b16 %v951, %v947
    %v1104 = vpack.c.b16 %v952, %v948
    %v1105 = vpack.c.b16 %v953, %v949
    %v1106 = vpack.c.b16 %v958, %v954
    %v1107 = vpack.c.b16 %v959, %v955
    %v1108 = vpack.c.b16 %v960, %v956
    %v1109 = vpack.c.b16 %v961, %v957
    %v1110 = vpack.c.b16 %v966, %v962
    %v1111 = vpack.c.b16 %v967, %v963
    %v1112 = vpack.c.b16 %v968, %v964
    %v1113 = vpack.c.b16 %v969, %v965
    %v1114 = vpack.c.b16 %v974, %v970
    %v1115 = vpack.c.b16 %v975, %v971
    %v1116 = vpack.c.b16 %v976, %v972
    %v1117 = vpack.c.b16 %v977, %v973
    %v1118 = vpack.c.b16 %v982, %v978
    %v1119 = vpack.c.b16 %v983, %v979
    %v1120 = vpack.c.b16 %v984, %v980
    %v1121 = vpack.c.b16 %v985, %v981
    %v1122 = vpack.c.b16 %v990, %v986
    %v1123 = vpack.c.b16 %v991, %v987
    %v1124 = vpack.c.b16 %v992, %v988
    %v1125 = vpack.c.b16 %v993, %v989
    %v1126 = vpack.c.b16 %v998, %v994
    %v1127 = vpack.c.b16 %v999, %v995
    %v1128 = vpack.c.b16 %v1000, %v996
    %v1129 = vpack.c.b16 %v1001, %v997
    %1258 = vmatprep.subr.bf16.mxu0 %v1031
    %1259 = vmatpush1.bf16.msra.mxu0 %v1030
    %1260 = vmatprep.subr.bf16.mxu0 %v1027
    %1261 = vmatpush1.bf16.msra.mxu0 %v1026
    %1262 = vmatprep.subr.bf16.mxu0 %v1023
    %1263 = vmatpush1.bf16.msra.mxu0 %v1022
    %1264 = vmatprep.subr.bf16.mxu0 %v1019
    %1265 = vmatpush1.bf16.msra.mxu0 %v1018
    %1266 = vmatprep.subr.bf16.mxu0 %v1015
    %1267 = vmatpush1.bf16.msra.mxu0 %v1014
    %1268 = vmatprep.subr.bf16.mxu0 %v1011
    %1269 = vmatpush1.bf16.msra.mxu0 %v1010
    %1270 = vmatprep.subr.bf16.mxu0 %v1007
    %1271 = vmatpush1.bf16.msra.mxu0 %v1006
    %1272 = vmatprep.subr.bf16.mxu0 %v1003
    %1273 = vmatpush1.bf16.msra.mxu0 %v1002
    %1274 = vmatprep.subr.bf16.mxu0 %v1063
    %1275 = vmatpush2.bf16.msra.mxu0 %v1062
    %1276 = vmatprep.subr.bf16.mxu0 %v1059
    %1277 = vmatpush2.bf16.msra.mxu0 %v1058
    %1278 = vmatprep.subr.bf16.mxu0 %v1055
    %1279 = vmatpush2.bf16.msra.mxu0 %v1054
    %1280 = vmatprep.subr.bf16.mxu0 %v1051
    %1281 = vmatpush2.bf16.msra.mxu0 %v1050
    %1282 = vmatprep.subr.bf16.mxu0 %v1047
    %1283 = vmatpush2.bf16.msra.mxu0 %v1046
    %1284 = vmatprep.subr.bf16.mxu0 %v1043
    %1285 = vmatpush2.bf16.msra.mxu0 %v1042
    %1286 = vmatprep.subr.bf16.mxu0 %v1039
    %1287 = vmatpush2.bf16.msra.mxu0 %v1038
    %1288 = vmatprep.subr.bf16.mxu0 %v1035
    %1289 = vmatpush2.bf16.msra.mxu0 %v1034
    %1290 = vmatprep.mubr.bf16.mxu0 %v465
    %1291 = vmatmul.mubr.bf16.gmra.mxu0 %v464
    %v1292 = vpop.f32.mrf.mxu0
    %v1293 = vadd.f32 %v601, %v1292
    %v1294 = vpop.f32.mrf.mxu0
    %v1295 = vadd.f32 %v605, %v1294
    %v1296 = vpop.f32.mrf.mxu0
    %v1297 = vadd.f32 %v601, %v1296
    %v1298 = vpop.f32.mrf.mxu0
    %v1299 = vadd.f32 %v605, %v1298
    %1300 = vdwg.mxu0
    %1301 = vmatprep.subr.bf16.mxu0 %v1095
    %1302 = vmatpush1.bf16.msra.mxu0 %v1094
    %1303 = vmatprep.subr.bf16.mxu0 %v1091
    %1304 = vmatpush1.bf16.msra.mxu0 %v1090
    %1305 = vmatprep.subr.bf16.mxu0 %v1087
    %1306 = vmatpush1.bf16.msra.mxu0 %v1086
    %1307 = vmatprep.subr.bf16.mxu0 %v1083
    %1308 = vmatpush1.bf16.msra.mxu0 %v1082
    %1309 = vmatprep.subr.bf16.mxu0 %v1079
    %1310 = vmatpush1.bf16.msra.mxu0 %v1078
    %1311 = vmatprep.subr.bf16.mxu0 %v1075
    %1312 = vmatpush1.bf16.msra.mxu0 %v1074
    %1313 = vmatprep.subr.bf16.mxu0 %v1071
    %1314 = vmatpush1.bf16.msra.mxu0 %v1070
    %1315 = vmatprep.subr.bf16.mxu0 %v1067
    %1316 = vmatpush1.bf16.msra.mxu0 %v1066
    %1317 = vmatprep.subr.bf16.mxu0 %v1127
    %1318 = vmatpush2.bf16.msra.mxu0 %v1126
    %1319 = vmatprep.subr.bf16.mxu0 %v1123
    %1320 = vmatpush2.bf16.msra.mxu0 %v1122
    %1321 = vmatprep.subr.bf16.mxu0 %v1119
    %1322 = vmatpush2.bf16.msra.mxu0 %v1118
    %1323 = vmatprep.subr.bf16.mxu0 %v1115
    %1324 = vmatpush2.bf16.msra.mxu0 %v1114
    %1325 = vmatprep.subr.bf16.mxu0 %v1111
    %1326 = vmatpush2.bf16.msra.mxu0 %v1110
    %1327 = vmatprep.subr.bf16.mxu0 %v1107
    %1328 = vmatpush2.bf16.msra.mxu0 %v1106
    %1329 = vmatprep.subr.bf16.mxu0 %v1103
    %1330 = vmatpush2.bf16.msra.mxu0 %v1102
    %1331 = vmatprep.subr.bf16.mxu0 %v1099
    %1332 = vmatpush2.bf16.msra.mxu0 %v1098
    %1333 = vmatprep.mubr.bf16.mxu0 %v467
    %1334 = vmatmul.mubr.bf16.gmra.mxu0 %v466
    %v1335 = vpop.f32.mrf.mxu0
    %v1336 = vadd.f32 %v1293, %v1335
    %v1337 = vpop.f32.mrf.mxu0
    %v1338 = vadd.f32 %v1295, %v1337
    %v1339 = vpop.f32.mrf.mxu0
    %v1340 = vadd.f32 %v1297, %v1339
    %v1341 = vpop.f32.mrf.mxu0
    %v1342 = vadd.f32 %v1299, %v1341
    %1343 = vdwg.mxu0
    %1344 = vmatprep.subr.bf16.mxu0 %v1033
    %1345 = vmatpush1.bf16.msra.mxu0 %v1032
    %1346 = vmatprep.subr.bf16.mxu0 %v1029
    %1347 = vmatpush1.bf16.msra.mxu0 %v1028
    %1348 = vmatprep.subr.bf16.mxu0 %v1025
    %1349 = vmatpush1.bf16.msra.mxu0 %v1024
    %1350 = vmatprep.subr.bf16.mxu0 %v1021
    %1351 = vmatpush1.bf16.msra.mxu0 %v1020
    %1352 = vmatprep.subr.bf16.mxu0 %v1017
    %1353 = vmatpush1.bf16.msra.mxu0 %v1016
    %1354 = vmatprep.subr.bf16.mxu0 %v1013
    %1355 = vmatpush1.bf16.msra.mxu0 %v1012
    %1356 = vmatprep.subr.bf16.mxu0 %v1009
    %1357 = vmatpush1.bf16.msra.mxu0 %v1008
    %1358 = vmatprep.subr.bf16.mxu0 %v1005
    %1359 = vmatpush1.bf16.msra.mxu0 %v1004
    %1360 = vmatprep.subr.bf16.mxu0 %v1065
    %1361 = vmatpush2.bf16.msra.mxu0 %v1064
    %1362 = vmatprep.subr.bf16.mxu0 %v1061
    %1363 = vmatpush2.bf16.msra.mxu0 %v1060
    %1364 = vmatprep.subr.bf16.mxu0 %v1057
    %1365 = vmatpush2.bf16.msra.mxu0 %v1056
    %1366 = vmatprep.subr.bf16.mxu0 %v1053
    %1367 = vmatpush2.bf16.msra.mxu0 %v1052
    %1368 = vmatprep.subr.bf16.mxu0 %v1049
    %1369 = vmatpush2.bf16.msra.mxu0 %v1048
    %1370 = vmatprep.subr.bf16.mxu0 %v1045
    %1371 = vmatpush2.bf16.msra.mxu0 %v1044
    %1372 = vmatprep.subr.bf16.mxu0 %v1041
    %1373 = vmatpush2.bf16.msra.mxu0 %v1040
    %1374 = vmatprep.subr.bf16.mxu0 %v1037
    %1375 = vmatpush2.bf16.msra.mxu0 %v1036
    %1376 = vmatprep.mubr.bf16.mxu0 %v465
    %1377 = vmatmul.mubr.bf16.gmra.mxu0 %v464
    %v1378 = vpop.f32.mrf.mxu0
    %v1379 = vadd.f32 %v609, %v1378
    %v1380 = vpop.f32.mrf.mxu0
    %v1381 = vadd.f32 %v613, %v1380
    %v1382 = vpop.f32.mrf.mxu0
    %v1383 = vadd.f32 %v609, %v1382
    %v1384 = vpop.f32.mrf.mxu0
    %v1385 = vadd.f32 %v613, %v1384
    %1386 = vdwg.mxu0
    %1387 = vmatprep.subr.bf16.mxu0 %v1097
    %1388 = vmatpush1.bf16.msra.mxu0 %v1096
    %1389 = vmatprep.subr.bf16.mxu0 %v1093
    %1390 = vmatpush1.bf16.msra.mxu0 %v1092
    %1391 = vmatprep.subr.bf16.mxu0 %v1089
    %1392 = vmatpush1.bf16.msra.mxu0 %v1088
    %1393 = vmatprep.subr.bf16.mxu0 %v1085
    %1394 = vmatpush1.bf16.msra.mxu0 %v1084
    %1395 = vmatprep.subr.bf16.mxu0 %v1081
    %1396 = vmatpush1.bf16.msra.mxu0 %v1080
    %1397 = vmatprep.subr.bf16.mxu0 %v1077
    %1398 = vmatpush1.bf16.msra.mxu0 %v1076
    %1399 = vmatprep.subr.bf16.mxu0 %v1073
    %1400 = vmatpush1.bf16.msra.mxu0 %v1072
    %1401 = vmatprep.subr.bf16.mxu0 %v1069
    %1402 = vmatpush1.bf16.msra.mxu0 %v1068
    %1403 = vmatprep.subr.bf16.mxu0 %v1129
    %1404 = vmatpush2.bf16.msra.mxu0 %v1128
    %1405 = vmatprep.subr.bf16.mxu0 %v1125
    %1406 = vmatpush2.bf16.msra.mxu0 %v1124
    %1407 = vmatprep.subr.bf16.mxu0 %v1121
    %1408 = vmatpush2.bf16.msra.mxu0 %v1120
    %1409 = vmatprep.subr.bf16.mxu0 %v1117
    %1410 = vmatpush2.bf16.msra.mxu0 %v1116
    %1411 = vmatprep.subr.bf16.mxu0 %v1113
    %1412 = vmatpush2.bf16.msra.mxu0 %v1112
    %1413 = vmatprep.subr.bf16.mxu0 %v1109
    %1414 = vmatpush2.bf16.msra.mxu0 %v1108
    %1415 = vmatprep.subr.bf16.mxu0 %v1105
    %1416 = vmatpush2.bf16.msra.mxu0 %v1104
    %1417 = vmatprep.subr.bf16.mxu0 %v1101
    %1418 = vmatpush2.bf16.msra.mxu0 %v1100
    %1419 = vmatprep.mubr.bf16.mxu0 %v467
    %1420 = vmatmul.mubr.bf16.gmra.mxu0 %v466
    %v1421 = vpop.f32.mrf.mxu0
    %v1422 = vadd.f32 %v1379, %v1421
    %v1423 = vpop.f32.mrf.mxu0
    %v1424 = vadd.f32 %v1381, %v1423
    %v1425 = vpop.f32.mrf.mxu0
    %v1426 = vadd.f32 %v1383, %v1425
    %v1427 = vpop.f32.mrf.mxu0
    %v1428 = vadd.f32 %v1385, %v1427
    %1429 = vdwg.mxu0
    %v1430 = vmax.f32 %v1336, 0.0
    %v1431 = vmax.f32 %v1338, 0.0
    %v1432 = vmax.f32 %v1422, 0.0
    %v1433 = vmax.f32 %v1424, 0.0
    %v1434 = vmax.f32 %v1340, 0.0
    %v1435 = vmax.f32 %v1342, 0.0
    %v1436 = vmax.f32 %v1426, 0.0
    %v1437 = vmax.f32 %v1428, 0.0
    %v1438 = vpack.c.bf16 %v1434, %v1430
    %v1439 = vpack.c.bf16 %v1435, %v1431
    %v1440 = vpack.c.bf16 %v1436, %v1432
    %v1441 = vpack.c.bf16 %v1437, %v1433
    %v1442 = vld [vmem:[#allocation11] sm:$0xff]
    %v1443 = vld [vmem:[#allocation11 + $0x8] sm:$0xff]
    %v1444 = vld [vmem:[#allocation11 + $0x10] sm:$0xff]
    %v1445 = vld [vmem:[#allocation11 + $0x18] sm:$0xff]
    %v1446 = vld [vmem:[#allocation11 + $0x20] sm:$0xff]
    %v1447 = vld [vmem:[#allocation11 + $0x28] sm:$0xff]
    %v1448 = vld [vmem:[#allocation11 + $0x30] sm:$0xff]
    %v1449 = vld [vmem:[#allocation11 + $0x38] sm:$0xff]
    %v1450 = vld [vmem:[#allocation11 + $0x40] sm:$0xff]
    %v1451 = vld [vmem:[#allocation11 + $0x48] sm:$0xff]
    %v1452 = vld [vmem:[#allocation11 + $0x50] sm:$0xff]
    %v1453 = vld [vmem:[#allocation11 + $0x58] sm:$0xff]
    %v1454 = vld [vmem:[#allocation11 + $0x60] sm:$0xff]
    %v1455 = vld [vmem:[#allocation11 + $0x68] sm:$0xff]
    %v1456 = vld [vmem:[#allocation11 + $0x70] sm:$0xff]
    %v1457 = vld [vmem:[#allocation11 + $0x78] sm:$0xff]
    %v1458 = vld [vmem:[#allocation11 + $0x80] sm:$0xff]
    %v1459 = vld [vmem:[#allocation11 + $0x88] sm:$0xff]
    %v1460 = vld [vmem:[#allocation11 + $0x90] sm:$0xff]
    %v1461 = vld [vmem:[#allocation11 + $0x98] sm:$0xff]
    %v1462 = vld [vmem:[#allocation11 + $0xa0] sm:$0xff]
    %v1463 = vld [vmem:[#allocation11 + $0xa8] sm:$0xff]
    %v1464 = vld [vmem:[#allocation11 + $0xb0] sm:$0xff]
    %v1465 = vld [vmem:[#allocation11 + $0xb8] sm:$0xff]
    %v1466 = vld [vmem:[#allocation11 + $0xc0] sm:$0xff]
    %v1467 = vld [vmem:[#allocation11 + $0xc8] sm:$0xff]
    %v1468 = vld [vmem:[#allocation11 + $0xd0] sm:$0xff]
    %v1469 = vld [vmem:[#allocation11 + $0xd8] sm:$0xff]
    %v1470 = vld [vmem:[#allocation11 + $0xe0] sm:$0xff]
    %v1471 = vld [vmem:[#allocation11 + $0xe8] sm:$0xff]
    %v1472 = vld [vmem:[#allocation11 + $0xf0] sm:$0xff]
    %v1473 = vld [vmem:[#allocation11 + $0xf8] sm:$0xff]
    %v1474 = vld [vmem:[#allocation11 + $0x100] sm:$0xff]
    %v1475 = vld [vmem:[#allocation11 + $0x108] sm:$0xff]
    %v1476 = vld [vmem:[#allocation11 + $0x110] sm:$0xff]
    %v1477 = vld [vmem:[#allocation11 + $0x118] sm:$0xff]
    %v1478 = vld [vmem:[#allocation11 + $0x120] sm:$0xff]
    %v1479 = vld [vmem:[#allocation11 + $0x128] sm:$0xff]
    %v1480 = vld [vmem:[#allocation11 + $0x130] sm:$0xff]
    %v1481 = vld [vmem:[#allocation11 + $0x138] sm:$0xff]
    %v1482 = vld [vmem:[#allocation11 + $0x140] sm:$0xff]
    %v1483 = vld [vmem:[#allocation11 + $0x148] sm:$0xff]
    %v1484 = vld [vmem:[#allocation11 + $0x150] sm:$0xff]
    %v1485 = vld [vmem:[#allocation11 + $0x158] sm:$0xff]
    %v1486 = vld [vmem:[#allocation11 + $0x160] sm:$0xff]
    %v1487 = vld [vmem:[#allocation11 + $0x168] sm:$0xff]
    %v1488 = vld [vmem:[#allocation11 + $0x170] sm:$0xff]
    %v1489 = vld [vmem:[#allocation11 + $0x178] sm:$0xff]
    %v1490 = vld [vmem:[#allocation11 + $0x180] sm:$0xff]
    %v1491 = vld [vmem:[#allocation11 + $0x188] sm:$0xff]
    %v1492 = vld [vmem:[#allocation11 + $0x190] sm:$0xff]
    %v1493 = vld [vmem:[#allocation11 + $0x198] sm:$0xff]
    %v1494 = vld [vmem:[#allocation11 + $0x1a0] sm:$0xff]
    %v1495 = vld [vmem:[#allocation11 + $0x1a8] sm:$0xff]
    %v1496 = vld [vmem:[#allocation11 + $0x1b0] sm:$0xff]
    %v1497 = vld [vmem:[#allocation11 + $0x1b8] sm:$0xff]
    %v1498 = vld [vmem:[#allocation11 + $0x1c0] sm:$0xff]
    %v1499 = vld [vmem:[#allocation11 + $0x1c8] sm:$0xff]
    %v1500 = vld [vmem:[#allocation11 + $0x1d0] sm:$0xff]
    %v1501 = vld [vmem:[#allocation11 + $0x1d8] sm:$0xff]
    %v1502 = vld [vmem:[#allocation11 + $0x1e0] sm:$0xff]
    %v1503 = vld [vmem:[#allocation11 + $0x1e8] sm:$0xff]
    %v1504 = vld [vmem:[#allocation11 + $0x1f0] sm:$0xff]
    %v1505 = vld [vmem:[#allocation11 + $0x1f8] sm:$0xff]
    %v1506 = vld [vmem:[#allocation11 + $0x200] sm:$0xff]
    %v1507 = vld [vmem:[#allocation11 + $0x208] sm:$0xff]
    %v1508 = vld [vmem:[#allocation11 + $0x210] sm:$0xff]
    %v1509 = vld [vmem:[#allocation11 + $0x218] sm:$0xff]
    %v1510 = vld [vmem:[#allocation11 + $0x220] sm:$0xff]
    %v1511 = vld [vmem:[#allocation11 + $0x228] sm:$0xff]
    %v1512 = vld [vmem:[#allocation11 + $0x230] sm:$0xff]
    %v1513 = vld [vmem:[#allocation11 + $0x238] sm:$0xff]
    %v1514 = vld [vmem:[#allocation11 + $0x240] sm:$0xff]
    %v1515 = vld [vmem:[#allocation11 + $0x248] sm:$0xff]
    %v1516 = vld [vmem:[#allocation11 + $0x250] sm:$0xff]
    %v1517 = vld [vmem:[#allocation11 + $0x258] sm:$0xff]
    %v1518 = vld [vmem:[#allocation11 + $0x260] sm:$0xff]
    %v1519 = vld [vmem:[#allocation11 + $0x268] sm:$0xff]
    %v1520 = vld [vmem:[#allocation11 + $0x270] sm:$0xff]
    %v1521 = vld [vmem:[#allocation11 + $0x278] sm:$0xff]
    %v1522 = vld [vmem:[#allocation11 + $0x280] sm:$0xff]
    %v1523 = vld [vmem:[#allocation11 + $0x288] sm:$0xff]
    %v1524 = vld [vmem:[#allocation11 + $0x290] sm:$0xff]
    %v1525 = vld [vmem:[#allocation11 + $0x298] sm:$0xff]
    %v1526 = vld [vmem:[#allocation11 + $0x2a0] sm:$0xff]
    %v1527 = vld [vmem:[#allocation11 + $0x2a8] sm:$0xff]
    %v1528 = vld [vmem:[#allocation11 + $0x2b0] sm:$0xff]
    %v1529 = vld [vmem:[#allocation11 + $0x2b8] sm:$0xff]
    %v1530 = vld [vmem:[#allocation11 + $0x2c0] sm:$0xff]
    %v1531 = vld [vmem:[#allocation11 + $0x2c8] sm:$0xff]
    %v1532 = vld [vmem:[#allocation11 + $0x2d0] sm:$0xff]
    %v1533 = vld [vmem:[#allocation11 + $0x2d8] sm:$0xff]
    %v1534 = vld [vmem:[#allocation11 + $0x2e0] sm:$0xff]
    %v1535 = vld [vmem:[#allocation11 + $0x2e8] sm:$0xff]
    %v1536 = vld [vmem:[#allocation11 + $0x2f0] sm:$0xff]
    %v1537 = vld [vmem:[#allocation11 + $0x2f8] sm:$0xff]
    %v1538 = vld [vmem:[#allocation11 + $0x300] sm:$0xff]
    %v1539 = vld [vmem:[#allocation11 + $0x308] sm:$0xff]
    %v1540 = vld [vmem:[#allocation11 + $0x310] sm:$0xff]
    %v1541 = vld [vmem:[#allocation11 + $0x318] sm:$0xff]
    %v1542 = vld [vmem:[#allocation11 + $0x320] sm:$0xff]
    %v1543 = vld [vmem:[#allocation11 + $0x328] sm:$0xff]
    %v1544 = vld [vmem:[#allocation11 + $0x330] sm:$0xff]
    %v1545 = vld [vmem:[#allocation11 + $0x338] sm:$0xff]
    %v1546 = vld [vmem:[#allocation11 + $0x340] sm:$0xff]
    %v1547 = vld [vmem:[#allocation11 + $0x348] sm:$0xff]
    %v1548 = vld [vmem:[#allocation11 + $0x350] sm:$0xff]
    %v1549 = vld [vmem:[#allocation11 + $0x358] sm:$0xff]
    %v1550 = vld [vmem:[#allocation11 + $0x360] sm:$0xff]
    %v1551 = vld [vmem:[#allocation11 + $0x368] sm:$0xff]
    %v1552 = vld [vmem:[#allocation11 + $0x370] sm:$0xff]
    %v1553 = vld [vmem:[#allocation11 + $0x378] sm:$0xff]
    %v1554 = vld [vmem:[#allocation11 + $0x380] sm:$0xff]
    %v1555 = vld [vmem:[#allocation11 + $0x388] sm:$0xff]
    %v1556 = vld [vmem:[#allocation11 + $0x390] sm:$0xff]
    %v1557 = vld [vmem:[#allocation11 + $0x398] sm:$0xff]
    %v1558 = vld [vmem:[#allocation11 + $0x3a0] sm:$0xff]
    %v1559 = vld [vmem:[#allocation11 + $0x3a8] sm:$0xff]
    %v1560 = vld [vmem:[#allocation11 + $0x3b0] sm:$0xff]
    %v1561 = vld [vmem:[#allocation11 + $0x3b8] sm:$0xff]
    %v1562 = vld [vmem:[#allocation11 + $0x3c0] sm:$0xff]
    %v1563 = vld [vmem:[#allocation11 + $0x3c8] sm:$0xff]
    %v1564 = vld [vmem:[#allocation11 + $0x3d0] sm:$0xff]
    %v1565 = vld [vmem:[#allocation11 + $0x3d8] sm:$0xff]
    %v1566 = vld [vmem:[#allocation11 + $0x3e0] sm:$0xff]
    %v1567 = vld [vmem:[#allocation11 + $0x3e8] sm:$0xff]
    %v1568 = vld [vmem:[#allocation11 + $0x3f0] sm:$0xff]
    %v1569 = vld [vmem:[#allocation11 + $0x3f8] sm:$0xff]
    %v1570 = vld [vmem:[#allocation11 + $0x400] sm:$0xff]
    %v1571 = vld [vmem:[#allocation11 + $0x408] sm:$0xff]
    %v1572 = vld [vmem:[#allocation11 + $0x410] sm:$0xff]
    %v1573 = vld [vmem:[#allocation11 + $0x418] sm:$0xff]
    %v1574 = vld [vmem:[#allocation11 + $0x420] sm:$0xff]
    %v1575 = vld [vmem:[#allocation11 + $0x428] sm:$0xff]
    %v1576 = vld [vmem:[#allocation11 + $0x430] sm:$0xff]
    %v1577 = vld [vmem:[#allocation11 + $0x438] sm:$0xff]
    %v1578 = vld [vmem:[#allocation11 + $0x440] sm:$0xff]
    %v1579 = vld [vmem:[#allocation11 + $0x448] sm:$0xff]
    %v1580 = vld [vmem:[#allocation11 + $0x450] sm:$0xff]
    %v1581 = vld [vmem:[#allocation11 + $0x458] sm:$0xff]
    %v1582 = vld [vmem:[#allocation11 + $0x460] sm:$0xff]
    %v1583 = vld [vmem:[#allocation11 + $0x468] sm:$0xff]
    %v1584 = vld [vmem:[#allocation11 + $0x470] sm:$0xff]
    %v1585 = vld [vmem:[#allocation11 + $0x478] sm:$0xff]
    %v1586 = vld [vmem:[#allocation11 + $0x480] sm:$0xff]
    %v1587 = vld [vmem:[#allocation11 + $0x488] sm:$0xff]
    %v1588 = vld [vmem:[#allocation11 + $0x490] sm:$0xff]
    %v1589 = vld [vmem:[#allocation11 + $0x498] sm:$0xff]
    %v1590 = vld [vmem:[#allocation11 + $0x4a0] sm:$0xff]
    %v1591 = vld [vmem:[#allocation11 + $0x4a8] sm:$0xff]
    %v1592 = vld [vmem:[#allocation11 + $0x4b0] sm:$0xff]
    %v1593 = vld [vmem:[#allocation11 + $0x4b8] sm:$0xff]
    %v1594 = vld [vmem:[#allocation11 + $0x4c0] sm:$0xff]
    %v1595 = vld [vmem:[#allocation11 + $0x4c8] sm:$0xff]
    %v1596 = vld [vmem:[#allocation11 + $0x4d0] sm:$0xff]
    %v1597 = vld [vmem:[#allocation11 + $0x4d8] sm:$0xff]
    %v1598 = vld [vmem:[#allocation11 + $0x4e0] sm:$0xff]
    %v1599 = vld [vmem:[#allocation11 + $0x4e8] sm:$0xff]
    %v1600 = vld [vmem:[#allocation11 + $0x4f0] sm:$0xff]
    %v1601 = vld [vmem:[#allocation11 + $0x4f8] sm:$0xff]
    %v1602 = vld [vmem:[#allocation11 + $0x500] sm:$0xff]
    %v1603 = vld [vmem:[#allocation11 + $0x508] sm:$0xff]
    %v1604 = vld [vmem:[#allocation11 + $0x510] sm:$0xff]
    %v1605 = vld [vmem:[#allocation11 + $0x518] sm:$0xff]
    %v1606 = vld [vmem:[#allocation11 + $0x520] sm:$0xff]
    %v1607 = vld [vmem:[#allocation11 + $0x528] sm:$0xff]
    %v1608 = vld [vmem:[#allocation11 + $0x530] sm:$0xff]
    %v1609 = vld [vmem:[#allocation11 + $0x538] sm:$0xff]
    %v1610 = vld [vmem:[#allocation11 + $0x540] sm:$0xff]
    %v1611 = vld [vmem:[#allocation11 + $0x548] sm:$0xff]
    %v1612 = vld [vmem:[#allocation11 + $0x550] sm:$0xff]
    %v1613 = vld [vmem:[#allocation11 + $0x558] sm:$0xff]
    %v1614 = vld [vmem:[#allocation11 + $0x560] sm:$0xff]
    %v1615 = vld [vmem:[#allocation11 + $0x568] sm:$0xff]
    %v1616 = vld [vmem:[#allocation11 + $0x570] sm:$0xff]
    %v1617 = vld [vmem:[#allocation11 + $0x578] sm:$0xff]
    %v1618 = vld [vmem:[#allocation11 + $0x580] sm:$0xff]
    %v1619 = vld [vmem:[#allocation11 + $0x588] sm:$0xff]
    %v1620 = vld [vmem:[#allocation11 + $0x590] sm:$0xff]
    %v1621 = vld [vmem:[#allocation11 + $0x598] sm:$0xff]
    %v1622 = vld [vmem:[#allocation11 + $0x5a0] sm:$0xff]
    %v1623 = vld [vmem:[#allocation11 + $0x5a8] sm:$0xff]
    %v1624 = vld [vmem:[#allocation11 + $0x5b0] sm:$0xff]
    %v1625 = vld [vmem:[#allocation11 + $0x5b8] sm:$0xff]
    %v1626 = vld [vmem:[#allocation11 + $0x5c0] sm:$0xff]
    %v1627 = vld [vmem:[#allocation11 + $0x5c8] sm:$0xff]
    %v1628 = vld [vmem:[#allocation11 + $0x5d0] sm:$0xff]
    %v1629 = vld [vmem:[#allocation11 + $0x5d8] sm:$0xff]
    %v1630 = vld [vmem:[#allocation11 + $0x5e0] sm:$0xff]
    %v1631 = vld [vmem:[#allocation11 + $0x5e8] sm:$0xff]
    %v1632 = vld [vmem:[#allocation11 + $0x5f0] sm:$0xff]
    %v1633 = vld [vmem:[#allocation11 + $0x5f8] sm:$0xff]
    %v1634 = vld [vmem:[#allocation11 + $0x600] sm:$0xff]
    %v1635 = vld [vmem:[#allocation11 + $0x608] sm:$0xff]
    %v1636 = vld [vmem:[#allocation11 + $0x610] sm:$0xff]
    %v1637 = vld [vmem:[#allocation11 + $0x618] sm:$0xff]
    %v1638 = vld [vmem:[#allocation11 + $0x620] sm:$0xff]
    %v1639 = vld [vmem:[#allocation11 + $0x628] sm:$0xff]
    %v1640 = vld [vmem:[#allocation11 + $0x630] sm:$0xff]
    %v1641 = vld [vmem:[#allocation11 + $0x638] sm:$0xff]
    %v1642 = vld [vmem:[#allocation11 + $0x640] sm:$0xff]
    %v1643 = vld [vmem:[#allocation11 + $0x648] sm:$0xff]
    %v1644 = vld [vmem:[#allocation11 + $0x650] sm:$0xff]
    %v1645 = vld [vmem:[#allocation11 + $0x658] sm:$0xff]
    %v1646 = vld [vmem:[#allocation11 + $0x660] sm:$0xff]
    %v1647 = vld [vmem:[#allocation11 + $0x668] sm:$0xff]
    %v1648 = vld [vmem:[#allocation11 + $0x670] sm:$0xff]
    %v1649 = vld [vmem:[#allocation11 + $0x678] sm:$0xff]
    %v1650 = vld [vmem:[#allocation11 + $0x680] sm:$0xff]
    %v1651 = vld [vmem:[#allocation11 + $0x688] sm:$0xff]
    %v1652 = vld [vmem:[#allocation11 + $0x690] sm:$0xff]
    %v1653 = vld [vmem:[#allocation11 + $0x698] sm:$0xff]
    %v1654 = vld [vmem:[#allocation11 + $0x6a0] sm:$0xff]
    %v1655 = vld [vmem:[#allocation11 + $0x6a8] sm:$0xff]
    %v1656 = vld [vmem:[#allocation11 + $0x6b0] sm:$0xff]
    %v1657 = vld [vmem:[#allocation11 + $0x6b8] sm:$0xff]
    %v1658 = vld [vmem:[#allocation11 + $0x6c0] sm:$0xff]
    %v1659 = vld [vmem:[#allocation11 + $0x6c8] sm:$0xff]
    %v1660 = vld [vmem:[#allocation11 + $0x6d0] sm:$0xff]
    %v1661 = vld [vmem:[#allocation11 + $0x6d8] sm:$0xff]
    %v1662 = vld [vmem:[#allocation11 + $0x6e0] sm:$0xff]
    %v1663 = vld [vmem:[#allocation11 + $0x6e8] sm:$0xff]
    %v1664 = vld [vmem:[#allocation11 + $0x6f0] sm:$0xff]
    %v1665 = vld [vmem:[#allocation11 + $0x6f8] sm:$0xff]
    %v1666 = vld [vmem:[#allocation11 + $0x700] sm:$0xff]
    %v1667 = vld [vmem:[#allocation11 + $0x708] sm:$0xff]
    %v1668 = vld [vmem:[#allocation11 + $0x710] sm:$0xff]
    %v1669 = vld [vmem:[#allocation11 + $0x718] sm:$0xff]
    %v1670 = vld [vmem:[#allocation11 + $0x720] sm:$0xff]
    %v1671 = vld [vmem:[#allocation11 + $0x728] sm:$0xff]
    %v1672 = vld [vmem:[#allocation11 + $0x730] sm:$0xff]
    %v1673 = vld [vmem:[#allocation11 + $0x738] sm:$0xff]
    %v1674 = vld [vmem:[#allocation11 + $0x740] sm:$0xff]
    %v1675 = vld [vmem:[#allocation11 + $0x748] sm:$0xff]
    %v1676 = vld [vmem:[#allocation11 + $0x750] sm:$0xff]
    %v1677 = vld [vmem:[#allocation11 + $0x758] sm:$0xff]
    %v1678 = vld [vmem:[#allocation11 + $0x760] sm:$0xff]
    %v1679 = vld [vmem:[#allocation11 + $0x768] sm:$0xff]
    %v1680 = vld [vmem:[#allocation11 + $0x770] sm:$0xff]
    %v1681 = vld [vmem:[#allocation11 + $0x778] sm:$0xff]
    %v1682 = vld [vmem:[#allocation11 + $0x780] sm:$0xff]
    %v1683 = vld [vmem:[#allocation11 + $0x788] sm:$0xff]
    %v1684 = vld [vmem:[#allocation11 + $0x790] sm:$0xff]
    %v1685 = vld [vmem:[#allocation11 + $0x798] sm:$0xff]
    %v1686 = vld [vmem:[#allocation11 + $0x7a0] sm:$0xff]
    %v1687 = vld [vmem:[#allocation11 + $0x7a8] sm:$0xff]
    %v1688 = vld [vmem:[#allocation11 + $0x7b0] sm:$0xff]
    %v1689 = vld [vmem:[#allocation11 + $0x7b8] sm:$0xff]
    %v1690 = vld [vmem:[#allocation11 + $0x7c0] sm:$0xff]
    %v1691 = vld [vmem:[#allocation11 + $0x7c8] sm:$0xff]
    %v1692 = vld [vmem:[#allocation11 + $0x7d0] sm:$0xff]
    %v1693 = vld [vmem:[#allocation11 + $0x7d8] sm:$0xff]
    %v1694 = vld [vmem:[#allocation11 + $0x7e0] sm:$0xff]
    %v1695 = vld [vmem:[#allocation11 + $0x7e8] sm:$0xff]
    %v1696 = vld [vmem:[#allocation11 + $0x7f0] sm:$0xff]
    %v1697 = vld [vmem:[#allocation11 + $0x7f8] sm:$0xff]
    %v1698 = vld [vmem:[#allocation11 + $0x800] sm:$0xff]
    %v1699 = vld [vmem:[#allocation11 + $0x808] sm:$0xff]
    %v1700 = vld [vmem:[#allocation11 + $0x810] sm:$0xff]
    %v1701 = vld [vmem:[#allocation11 + $0x818] sm:$0xff]
    %v1702 = vld [vmem:[#allocation11 + $0x820] sm:$0xff]
    %v1703 = vld [vmem:[#allocation11 + $0x828] sm:$0xff]
    %v1704 = vld [vmem:[#allocation11 + $0x830] sm:$0xff]
    %v1705 = vld [vmem:[#allocation11 + $0x838] sm:$0xff]
    %v1706 = vld [vmem:[#allocation11 + $0x840] sm:$0xff]
    %v1707 = vld [vmem:[#allocation11 + $0x848] sm:$0xff]
    %v1708 = vld [vmem:[#allocation11 + $0x850] sm:$0xff]
    %v1709 = vld [vmem:[#allocation11 + $0x858] sm:$0xff]
    %v1710 = vld [vmem:[#allocation11 + $0x860] sm:$0xff]
    %v1711 = vld [vmem:[#allocation11 + $0x868] sm:$0xff]
    %v1712 = vld [vmem:[#allocation11 + $0x870] sm:$0xff]
    %v1713 = vld [vmem:[#allocation11 + $0x878] sm:$0xff]
    %v1714 = vld [vmem:[#allocation11 + $0x880] sm:$0xff]
    %v1715 = vld [vmem:[#allocation11 + $0x888] sm:$0xff]
    %v1716 = vld [vmem:[#allocation11 + $0x890] sm:$0xff]
    %v1717 = vld [vmem:[#allocation11 + $0x898] sm:$0xff]
    %v1718 = vld [vmem:[#allocation11 + $0x8a0] sm:$0xff]
    %v1719 = vld [vmem:[#allocation11 + $0x8a8] sm:$0xff]
    %v1720 = vld [vmem:[#allocation11 + $0x8b0] sm:$0xff]
    %v1721 = vld [vmem:[#allocation11 + $0x8b8] sm:$0xff]
    %v1722 = vld [vmem:[#allocation11 + $0x8c0] sm:$0xff]
    %v1723 = vld [vmem:[#allocation11 + $0x8c8] sm:$0xff]
    %v1724 = vld [vmem:[#allocation11 + $0x8d0] sm:$0xff]
    %v1725 = vld [vmem:[#allocation11 + $0x8d8] sm:$0xff]
    %v1726 = vld [vmem:[#allocation11 + $0x8e0] sm:$0xff]
    %v1727 = vld [vmem:[#allocation11 + $0x8e8] sm:$0xff]
    %v1728 = vld [vmem:[#allocation11 + $0x8f0] sm:$0xff]
    %v1729 = vld [vmem:[#allocation11 + $0x8f8] sm:$0xff]
    %v1730 = vld [vmem:[#allocation11 + $0x900] sm:$0xff]
    %v1731 = vld [vmem:[#allocation11 + $0x908] sm:$0xff]
    %v1732 = vld [vmem:[#allocation11 + $0x910] sm:$0xff]
    %v1733 = vld [vmem:[#allocation11 + $0x918] sm:$0xff]
    %v1734 = vld [vmem:[#allocation11 + $0x920] sm:$0xff]
    %v1735 = vld [vmem:[#allocation11 + $0x928] sm:$0xff]
    %v1736 = vld [vmem:[#allocation11 + $0x930] sm:$0xff]
    %v1737 = vld [vmem:[#allocation11 + $0x938] sm:$0xff]
    %v1738 = vld [vmem:[#allocation11 + $0x940] sm:$0xff]
    %v1739 = vld [vmem:[#allocation11 + $0x948] sm:$0xff]
    %v1740 = vld [vmem:[#allocation11 + $0x950] sm:$0xff]
    %v1741 = vld [vmem:[#allocation11 + $0x958] sm:$0xff]
    %v1742 = vld [vmem:[#allocation11 + $0x960] sm:$0xff]
    %v1743 = vld [vmem:[#allocation11 + $0x968] sm:$0xff]
    %v1744 = vld [vmem:[#allocation11 + $0x970] sm:$0xff]
    %v1745 = vld [vmem:[#allocation11 + $0x978] sm:$0xff]
    %v1746 = vld [vmem:[#allocation11 + $0x980] sm:$0xff]
    %v1747 = vld [vmem:[#allocation11 + $0x988] sm:$0xff]
    %v1748 = vld [vmem:[#allocation11 + $0x990] sm:$0xff]
    %v1749 = vld [vmem:[#allocation11 + $0x998] sm:$0xff]
    %v1750 = vld [vmem:[#allocation11 + $0x9a0] sm:$0xff]
    %v1751 = vld [vmem:[#allocation11 + $0x9a8] sm:$0xff]
    %v1752 = vld [vmem:[#allocation11 + $0x9b0] sm:$0xff]
    %v1753 = vld [vmem:[#allocation11 + $0x9b8] sm:$0xff]
    %v1754 = vld [vmem:[#allocation11 + $0x9c0] sm:$0xff]
    %v1755 = vld [vmem:[#allocation11 + $0x9c8] sm:$0xff]
    %v1756 = vld [vmem:[#allocation11 + $0x9d0] sm:$0xff]
    %v1757 = vld [vmem:[#allocation11 + $0x9d8] sm:$0xff]
    %v1758 = vld [vmem:[#allocation11 + $0x9e0] sm:$0xff]
    %v1759 = vld [vmem:[#allocation11 + $0x9e8] sm:$0xff]
    %v1760 = vld [vmem:[#allocation11 + $0x9f0] sm:$0xff]
    %v1761 = vld [vmem:[#allocation11 + $0x9f8] sm:$0xff]
    %v1762 = vld [vmem:[#allocation11 + $0xa00] sm:$0xff]
    %v1763 = vld [vmem:[#allocation11 + $0xa08] sm:$0xff]
    %v1764 = vld [vmem:[#allocation11 + $0xa10] sm:$0xff]
    %v1765 = vld [vmem:[#allocation11 + $0xa18] sm:$0xff]
    %v1766 = vld [vmem:[#allocation11 + $0xa20] sm:$0xff]
    %v1767 = vld [vmem:[#allocation11 + $0xa28] sm:$0xff]
    %v1768 = vld [vmem:[#allocation11 + $0xa30] sm:$0xff]
    %v1769 = vld [vmem:[#allocation11 + $0xa38] sm:$0xff]
    %v1770 = vld [vmem:[#allocation11 + $0xa40] sm:$0xff]
    %v1771 = vld [vmem:[#allocation11 + $0xa48] sm:$0xff]
    %v1772 = vld [vmem:[#allocation11 + $0xa50] sm:$0xff]
    %v1773 = vld [vmem:[#allocation11 + $0xa58] sm:$0xff]
    %v1774 = vld [vmem:[#allocation11 + $0xa60] sm:$0xff]
    %v1775 = vld [vmem:[#allocation11 + $0xa68] sm:$0xff]
    %v1776 = vld [vmem:[#allocation11 + $0xa70] sm:$0xff]
    %v1777 = vld [vmem:[#allocation11 + $0xa78] sm:$0xff]
    %v1778 = vld [vmem:[#allocation11 + $0xa80] sm:$0xff]
    %v1779 = vld [vmem:[#allocation11 + $0xa88] sm:$0xff]
    %v1780 = vld [vmem:[#allocation11 + $0xa90] sm:$0xff]
    %v1781 = vld [vmem:[#allocation11 + $0xa98] sm:$0xff]
    %v1782 = vld [vmem:[#allocation11 + $0xaa0] sm:$0xff]
    %v1783 = vld [vmem:[#allocation11 + $0xaa8] sm:$0xff]
    %v1784 = vld [vmem:[#allocation11 + $0xab0] sm:$0xff]
    %v1785 = vld [vmem:[#allocation11 + $0xab8] sm:$0xff]
    %v1786 = vld [vmem:[#allocation11 + $0xac0] sm:$0xff]
    %v1787 = vld [vmem:[#allocation11 + $0xac8] sm:$0xff]
    %v1788 = vld [vmem:[#allocation11 + $0xad0] sm:$0xff]
    %v1789 = vld [vmem:[#allocation11 + $0xad8] sm:$0xff]
    %v1790 = vld [vmem:[#allocation11 + $0xae0] sm:$0xff]
    %v1791 = vld [vmem:[#allocation11 + $0xae8] sm:$0xff]
    %v1792 = vld [vmem:[#allocation11 + $0xaf0] sm:$0xff]
    %v1793 = vld [vmem:[#allocation11 + $0xaf8] sm:$0xff]
    %v1794 = vld [vmem:[#allocation11 + $0xb00] sm:$0xff]
    %v1795 = vld [vmem:[#allocation11 + $0xb08] sm:$0xff]
    %v1796 = vld [vmem:[#allocation11 + $0xb10] sm:$0xff]
    %v1797 = vld [vmem:[#allocation11 + $0xb18] sm:$0xff]
    %v1798 = vld [vmem:[#allocation11 + $0xb20] sm:$0xff]
    %v1799 = vld [vmem:[#allocation11 + $0xb28] sm:$0xff]
    %v1800 = vld [vmem:[#allocation11 + $0xb30] sm:$0xff]
    %v1801 = vld [vmem:[#allocation11 + $0xb38] sm:$0xff]
    %v1802 = vld [vmem:[#allocation11 + $0xb40] sm:$0xff]
    %v1803 = vld [vmem:[#allocation11 + $0xb48] sm:$0xff]
    %v1804 = vld [vmem:[#allocation11 + $0xb50] sm:$0xff]
    %v1805 = vld [vmem:[#allocation11 + $0xb58] sm:$0xff]
    %v1806 = vld [vmem:[#allocation11 + $0xb60] sm:$0xff]
    %v1807 = vld [vmem:[#allocation11 + $0xb68] sm:$0xff]
    %v1808 = vld [vmem:[#allocation11 + $0xb70] sm:$0xff]
    %v1809 = vld [vmem:[#allocation11 + $0xb78] sm:$0xff]
    %v1810 = vld [vmem:[#allocation11 + $0xb80] sm:$0xff]
    %v1811 = vld [vmem:[#allocation11 + $0xb88] sm:$0xff]
    %v1812 = vld [vmem:[#allocation11 + $0xb90] sm:$0xff]
    %v1813 = vld [vmem:[#allocation11 + $0xb98] sm:$0xff]
    %v1814 = vld [vmem:[#allocation11 + $0xba0] sm:$0xff]
    %v1815 = vld [vmem:[#allocation11 + $0xba8] sm:$0xff]
    %v1816 = vld [vmem:[#allocation11 + $0xbb0] sm:$0xff]
    %v1817 = vld [vmem:[#allocation11 + $0xbb8] sm:$0xff]
    %v1818 = vld [vmem:[#allocation11 + $0xbc0] sm:$0xff]
    %v1819 = vld [vmem:[#allocation11 + $0xbc8] sm:$0xff]
    %v1820 = vld [vmem:[#allocation11 + $0xbd0] sm:$0xff]
    %v1821 = vld [vmem:[#allocation11 + $0xbd8] sm:$0xff]
    %v1822 = vld [vmem:[#allocation11 + $0xbe0] sm:$0xff]
    %v1823 = vld [vmem:[#allocation11 + $0xbe8] sm:$0xff]
    %v1824 = vld [vmem:[#allocation11 + $0xbf0] sm:$0xff]
    %v1825 = vld [vmem:[#allocation11 + $0xbf8] sm:$0xff]
    %v1826 = vld [vmem:[#allocation11 + $0xc00] sm:$0xff]
    %v1827 = vld [vmem:[#allocation11 + $0xc08] sm:$0xff]
    %v1828 = vld [vmem:[#allocation11 + $0xc10] sm:$0xff]
    %v1829 = vld [vmem:[#allocation11 + $0xc18] sm:$0xff]
    %v1830 = vld [vmem:[#allocation11 + $0xc20] sm:$0xff]
    %v1831 = vld [vmem:[#allocation11 + $0xc28] sm:$0xff]
    %v1832 = vld [vmem:[#allocation11 + $0xc30] sm:$0xff]
    %v1833 = vld [vmem:[#allocation11 + $0xc38] sm:$0xff]
    %v1834 = vld [vmem:[#allocation11 + $0xc40] sm:$0xff]
    %v1835 = vld [vmem:[#allocation11 + $0xc48] sm:$0xff]
    %v1836 = vld [vmem:[#allocation11 + $0xc50] sm:$0xff]
    %v1837 = vld [vmem:[#allocation11 + $0xc58] sm:$0xff]
    %v1838 = vld [vmem:[#allocation11 + $0xc60] sm:$0xff]
    %v1839 = vld [vmem:[#allocation11 + $0xc68] sm:$0xff]
    %v1840 = vld [vmem:[#allocation11 + $0xc70] sm:$0xff]
    %v1841 = vld [vmem:[#allocation11 + $0xc78] sm:$0xff]
    %v1842 = vld [vmem:[#allocation11 + $0xc80] sm:$0xff]
    %v1843 = vld [vmem:[#allocation11 + $0xc88] sm:$0xff]
    %v1844 = vld [vmem:[#allocation11 + $0xc90] sm:$0xff]
    %v1845 = vld [vmem:[#allocation11 + $0xc98] sm:$0xff]
    %v1846 = vld [vmem:[#allocation11 + $0xca0] sm:$0xff]
    %v1847 = vld [vmem:[#allocation11 + $0xca8] sm:$0xff]
    %v1848 = vld [vmem:[#allocation11 + $0xcb0] sm:$0xff]
    %v1849 = vld [vmem:[#allocation11 + $0xcb8] sm:$0xff]
    %v1850 = vld [vmem:[#allocation11 + $0xcc0] sm:$0xff]
    %v1851 = vld [vmem:[#allocation11 + $0xcc8] sm:$0xff]
    %v1852 = vld [vmem:[#allocation11 + $0xcd0] sm:$0xff]
    %v1853 = vld [vmem:[#allocation11 + $0xcd8] sm:$0xff]
    %v1854 = vld [vmem:[#allocation11 + $0xce0] sm:$0xff]
    %v1855 = vld [vmem:[#allocation11 + $0xce8] sm:$0xff]
    %v1856 = vld [vmem:[#allocation11 + $0xcf0] sm:$0xff]
    %v1857 = vld [vmem:[#allocation11 + $0xcf8] sm:$0xff]
    %v1858 = vld [vmem:[#allocation11 + $0xd00] sm:$0xff]
    %v1859 = vld [vmem:[#allocation11 + $0xd08] sm:$0xff]
    %v1860 = vld [vmem:[#allocation11 + $0xd10] sm:$0xff]
    %v1861 = vld [vmem:[#allocation11 + $0xd18] sm:$0xff]
    %v1862 = vld [vmem:[#allocation11 + $0xd20] sm:$0xff]
    %v1863 = vld [vmem:[#allocation11 + $0xd28] sm:$0xff]
    %v1864 = vld [vmem:[#allocation11 + $0xd30] sm:$0xff]
    %v1865 = vld [vmem:[#allocation11 + $0xd38] sm:$0xff]
    %v1866 = vld [vmem:[#allocation11 + $0xd40] sm:$0xff]
    %v1867 = vld [vmem:[#allocation11 + $0xd48] sm:$0xff]
    %v1868 = vld [vmem:[#allocation11 + $0xd50] sm:$0xff]
    %v1869 = vld [vmem:[#allocation11 + $0xd58] sm:$0xff]
    %v1870 = vld [vmem:[#allocation11 + $0xd60] sm:$0xff]
    %v1871 = vld [vmem:[#allocation11 + $0xd68] sm:$0xff]
    %v1872 = vld [vmem:[#allocation11 + $0xd70] sm:$0xff]
    %v1873 = vld [vmem:[#allocation11 + $0xd78] sm:$0xff]
    %v1874 = vld [vmem:[#allocation11 + $0xd80] sm:$0xff]
    %v1875 = vld [vmem:[#allocation11 + $0xd88] sm:$0xff]
    %v1876 = vld [vmem:[#allocation11 + $0xd90] sm:$0xff]
    %v1877 = vld [vmem:[#allocation11 + $0xd98] sm:$0xff]
    %v1878 = vld [vmem:[#allocation11 + $0xda0] sm:$0xff]
    %v1879 = vld [vmem:[#allocation11 + $0xda8] sm:$0xff]
    %v1880 = vld [vmem:[#allocation11 + $0xdb0] sm:$0xff]
    %v1881 = vld [vmem:[#allocation11 + $0xdb8] sm:$0xff]
    %v1882 = vld [vmem:[#allocation11 + $0xdc0] sm:$0xff]
    %v1883 = vld [vmem:[#allocation11 + $0xdc8] sm:$0xff]
    %v1884 = vld [vmem:[#allocation11 + $0xdd0] sm:$0xff]
    %v1885 = vld [vmem:[#allocation11 + $0xdd8] sm:$0xff]
    %v1886 = vld [vmem:[#allocation11 + $0xde0] sm:$0xff]
    %v1887 = vld [vmem:[#allocation11 + $0xde8] sm:$0xff]
    %v1888 = vld [vmem:[#allocation11 + $0xdf0] sm:$0xff]
    %v1889 = vld [vmem:[#allocation11 + $0xdf8] sm:$0xff]
    %v1890 = vld [vmem:[#allocation11 + $0xe00] sm:$0xff]
    %v1891 = vld [vmem:[#allocation11 + $0xe08] sm:$0xff]
    %v1892 = vld [vmem:[#allocation11 + $0xe10] sm:$0xff]
    %v1893 = vld [vmem:[#allocation11 + $0xe18] sm:$0xff]
    %v1894 = vld [vmem:[#allocation11 + $0xe20] sm:$0xff]
    %v1895 = vld [vmem:[#allocation11 + $0xe28] sm:$0xff]
    %v1896 = vld [vmem:[#allocation11 + $0xe30] sm:$0xff]
    %v1897 = vld [vmem:[#allocation11 + $0xe38] sm:$0xff]
    %v1898 = vld [vmem:[#allocation11 + $0xe40] sm:$0xff]
    %v1899 = vld [vmem:[#allocation11 + $0xe48] sm:$0xff]
    %v1900 = vld [vmem:[#allocation11 + $0xe50] sm:$0xff]
    %v1901 = vld [vmem:[#allocation11 + $0xe58] sm:$0xff]
    %v1902 = vld [vmem:[#allocation11 + $0xe60] sm:$0xff]
    %v1903 = vld [vmem:[#allocation11 + $0xe68] sm:$0xff]
    %v1904 = vld [vmem:[#allocation11 + $0xe70] sm:$0xff]
    %v1905 = vld [vmem:[#allocation11 + $0xe78] sm:$0xff]
    %v1906 = vld [vmem:[#allocation11 + $0xe80] sm:$0xff]
    %v1907 = vld [vmem:[#allocation11 + $0xe88] sm:$0xff]
    %v1908 = vld [vmem:[#allocation11 + $0xe90] sm:$0xff]
    %v1909 = vld [vmem:[#allocation11 + $0xe98] sm:$0xff]
    %v1910 = vld [vmem:[#allocation11 + $0xea0] sm:$0xff]
    %v1911 = vld [vmem:[#allocation11 + $0xea8] sm:$0xff]
    %v1912 = vld [vmem:[#allocation11 + $0xeb0] sm:$0xff]
    %v1913 = vld [vmem:[#allocation11 + $0xeb8] sm:$0xff]
    %v1914 = vld [vmem:[#allocation11 + $0xec0] sm:$0xff]
    %v1915 = vld [vmem:[#allocation11 + $0xec8] sm:$0xff]
    %v1916 = vld [vmem:[#allocation11 + $0xed0] sm:$0xff]
    %v1917 = vld [vmem:[#allocation11 + $0xed8] sm:$0xff]
    %v1918 = vld [vmem:[#allocation11 + $0xee0] sm:$0xff]
    %v1919 = vld [vmem:[#allocation11 + $0xee8] sm:$0xff]
    %v1920 = vld [vmem:[#allocation11 + $0xef0] sm:$0xff]
    %v1921 = vld [vmem:[#allocation11 + $0xef8] sm:$0xff]
    %v1922 = vld [vmem:[#allocation11 + $0xf00] sm:$0xff]
    %v1923 = vld [vmem:[#allocation11 + $0xf08] sm:$0xff]
    %v1924 = vld [vmem:[#allocation11 + $0xf10] sm:$0xff]
    %v1925 = vld [vmem:[#allocation11 + $0xf18] sm:$0xff]
    %v1926 = vld [vmem:[#allocation11 + $0xf20] sm:$0xff]
    %v1927 = vld [vmem:[#allocation11 + $0xf28] sm:$0xff]
    %v1928 = vld [vmem:[#allocation11 + $0xf30] sm:$0xff]
    %v1929 = vld [vmem:[#allocation11 + $0xf38] sm:$0xff]
    %v1930 = vld [vmem:[#allocation11 + $0xf40] sm:$0xff]
    %v1931 = vld [vmem:[#allocation11 + $0xf48] sm:$0xff]
    %v1932 = vld [vmem:[#allocation11 + $0xf50] sm:$0xff]
    %v1933 = vld [vmem:[#allocation11 + $0xf58] sm:$0xff]
    %v1934 = vld [vmem:[#allocation11 + $0xf60] sm:$0xff]
    %v1935 = vld [vmem:[#allocation11 + $0xf68] sm:$0xff]
    %v1936 = vld [vmem:[#allocation11 + $0xf70] sm:$0xff]
    %v1937 = vld [vmem:[#allocation11 + $0xf78] sm:$0xff]
    %v1938 = vld [vmem:[#allocation11 + $0xf80] sm:$0xff]
    %v1939 = vld [vmem:[#allocation11 + $0xf88] sm:$0xff]
    %v1940 = vld [vmem:[#allocation11 + $0xf90] sm:$0xff]
    %v1941 = vld [vmem:[#allocation11 + $0xf98] sm:$0xff]
    %v1942 = vld [vmem:[#allocation11 + $0xfa0] sm:$0xff]
    %v1943 = vld [vmem:[#allocation11 + $0xfa8] sm:$0xff]
    %v1944 = vld [vmem:[#allocation11 + $0xfb0] sm:$0xff]
    %v1945 = vld [vmem:[#allocation11 + $0xfb8] sm:$0xff]
    %v1946 = vld [vmem:[#allocation11 + $0xfc0] sm:$0xff]
    %v1947 = vld [vmem:[#allocation11 + $0xfc8] sm:$0xff]
    %v1948 = vld [vmem:[#allocation11 + $0xfd0] sm:$0xff]
    %v1949 = vld [vmem:[#allocation11 + $0xfd8] sm:$0xff]
    %v1950 = vld [vmem:[#allocation11 + $0xfe0] sm:$0xff]
    %v1951 = vld [vmem:[#allocation11 + $0xfe8] sm:$0xff]
    %v1952 = vld [vmem:[#allocation11 + $0xff0] sm:$0xff]
    %v1953 = vld [vmem:[#allocation11 + $0xff8] sm:$0xff]
    %v1954 = vld [vmem:[#allocation13] sm:$0xff]
    %v1955 = vld [vmem:[#allocation13 + $0x8] sm:$0xff]
    %v1958 = vlaneseq
    %v1959 = vshrl.u32 %v1958, 7
    %v1960 = vsub.s32 0, %v1959
    %v1961 = vrot.slane %v1954, %v1960
    %v1962 = vlaneseq
    %v1963 = vshrl.u32 %v1962, 7
    %v1964 = vsub.s32 1, %v1963
    %v1965 = vrot.slane %v1954, %v1964
    %v1966 = vlaneseq
    %v1967 = vshrl.u32 %v1966, 7
    %v1968 = vsub.s32 2, %v1967
    %v1969 = vrot.slane %v1954, %v1968
    %v1970 = vlaneseq
    %v1971 = vshrl.u32 %v1970, 7
    %v1972 = vsub.s32 3, %v1971
    %v1973 = vrot.slane %v1954, %v1972
    %v1974 = vlaneseq
    %v1975 = vshrl.u32 %v1974, 7
    %v1976 = vsub.s32 4, %v1975
    %v1977 = vrot.slane %v1954, %v1976
    %v1978 = vlaneseq
    %v1979 = vshrl.u32 %v1978, 7
    %v1980 = vsub.s32 5, %v1979
    %v1981 = vrot.slane %v1954, %v1980
    %v1982 = vlaneseq
    %v1983 = vshrl.u32 %v1982, 7
    %v1984 = vsub.s32 6, %v1983
    %v1985 = vrot.slane %v1954, %v1984
    %v1986 = vlaneseq
    %v1987 = vshrl.u32 %v1986, 7
    %v1988 = vsub.s32 7, %v1987
    %v1989 = vrot.slane %v1954, %v1988
    %v1990 = vlaneseq
    %v1991 = vshrl.u32 %v1990, 7
    %v1992 = vsub.s32 0, %v1991
    %v1993 = vrot.slane %v1955, %v1992
    %v1994 = vlaneseq
    %v1995 = vshrl.u32 %v1994, 7
    %v1996 = vsub.s32 1, %v1995
    %v1997 = vrot.slane %v1955, %v1996
    %v1998 = vlaneseq
    %v1999 = vshrl.u32 %v1998, 7
    %v2000 = vsub.s32 2, %v1999
    %v2001 = vrot.slane %v1955, %v2000
    %v2002 = vlaneseq
    %v2003 = vshrl.u32 %v2002, 7
    %v2004 = vsub.s32 3, %v2003
    %v2005 = vrot.slane %v1955, %v2004
    %v2006 = vlaneseq
    %v2007 = vshrl.u32 %v2006, 7
    %v2008 = vsub.s32 4, %v2007
    %v2009 = vrot.slane %v1955, %v2008
    %v2010 = vlaneseq
    %v2011 = vshrl.u32 %v2010, 7
    %v2012 = vsub.s32 5, %v2011
    %v2013 = vrot.slane %v1955, %v2012
    %v2014 = vlaneseq
    %v2015 = vshrl.u32 %v2014, 7
    %v2016 = vsub.s32 6, %v2015
    %v2017 = vrot.slane %v1955, %v2016
    %v2018 = vlaneseq
    %v2019 = vshrl.u32 %v2018, 7
    %v2020 = vsub.s32 7, %v2019
    %v2021 = vrot.slane %v1955, %v2020
    %v2550 = vunpack.c.l.b16 %v1442
    %v2551 = vunpack.c.h.b16 %v1442
    %v2552 = vunpack.c.l.b16 %v1443
    %v2553 = vunpack.c.h.b16 %v1443
    %v2554 = vunpack.c.l.b16 %v1444
    %v2555 = vunpack.c.h.b16 %v1444
    %v2556 = vunpack.c.l.b16 %v1445
    %v2557 = vunpack.c.h.b16 %v1445
    %v2558 = vunpack.c.l.b16 %v1446
    %v2559 = vunpack.c.h.b16 %v1446
    %v2560 = vunpack.c.l.b16 %v1447
    %v2561 = vunpack.c.h.b16 %v1447
    %v2562 = vunpack.c.l.b16 %v1448
    %v2563 = vunpack.c.h.b16 %v1448
    %v2564 = vunpack.c.l.b16 %v1449
    %v2565 = vunpack.c.h.b16 %v1449
    %v2566 = vunpack.c.l.b16 %v1450
    %v2567 = vunpack.c.h.b16 %v1450
    %v2568 = vunpack.c.l.b16 %v1451
    %v2569 = vunpack.c.h.b16 %v1451
    %v2570 = vunpack.c.l.b16 %v1452
    %v2571 = vunpack.c.h.b16 %v1452
    %v2572 = vunpack.c.l.b16 %v1453
    %v2573 = vunpack.c.h.b16 %v1453
    %v2574 = vunpack.c.l.b16 %v1454
    %v2575 = vunpack.c.h.b16 %v1454
    %v2576 = vunpack.c.l.b16 %v1455
    %v2577 = vunpack.c.h.b16 %v1455
    %v2578 = vunpack.c.l.b16 %v1456
    %v2579 = vunpack.c.h.b16 %v1456
    %v2580 = vunpack.c.l.b16 %v1457
    %v2581 = vunpack.c.h.b16 %v1457
    %v2582 = vunpack.c.l.b16 %v1458
    %v2583 = vunpack.c.h.b16 %v1458
    %v2584 = vunpack.c.l.b16 %v1459
    %v2585 = vunpack.c.h.b16 %v1459
    %v2586 = vunpack.c.l.b16 %v1460
    %v2587 = vunpack.c.h.b16 %v1460
    %v2588 = vunpack.c.l.b16 %v1461
    %v2589 = vunpack.c.h.b16 %v1461
    %v2590 = vunpack.c.l.b16 %v1462
    %v2591 = vunpack.c.h.b16 %v1462
    %v2592 = vunpack.c.l.b16 %v1463
    %v2593 = vunpack.c.h.b16 %v1463
    %v2594 = vunpack.c.l.b16 %v1464
    %v2595 = vunpack.c.h.b16 %v1464
    %v2596 = vunpack.c.l.b16 %v1465
    %v2597 = vunpack.c.h.b16 %v1465
    %v2598 = vunpack.c.l.b16 %v1466
    %v2599 = vunpack.c.h.b16 %v1466
    %v2600 = vunpack.c.l.b16 %v1467
    %v2601 = vunpack.c.h.b16 %v1467
    %v2602 = vunpack.c.l.b16 %v1468
    %v2603 = vunpack.c.h.b16 %v1468
    %v2604 = vunpack.c.l.b16 %v1469
    %v2605 = vunpack.c.h.b16 %v1469
    %v2606 = vunpack.c.l.b16 %v1470
    %v2607 = vunpack.c.h.b16 %v1470
    %v2608 = vunpack.c.l.b16 %v1471
    %v2609 = vunpack.c.h.b16 %v1471
    %v2610 = vunpack.c.l.b16 %v1472
    %v2611 = vunpack.c.h.b16 %v1472
    %v2612 = vunpack.c.l.b16 %v1473
    %v2613 = vunpack.c.h.b16 %v1473
    %v2614 = vunpack.c.l.b16 %v1474
    %v2615 = vunpack.c.h.b16 %v1474
    %v2616 = vunpack.c.l.b16 %v1475
    %v2617 = vunpack.c.h.b16 %v1475
    %v2618 = vunpack.c.l.b16 %v1476
    %v2619 = vunpack.c.h.b16 %v1476
    %v2620 = vunpack.c.l.b16 %v1477
    %v2621 = vunpack.c.h.b16 %v1477
    %v2622 = vunpack.c.l.b16 %v1478
    %v2623 = vunpack.c.h.b16 %v1478
    %v2624 = vunpack.c.l.b16 %v1479
    %v2625 = vunpack.c.h.b16 %v1479
    %v2626 = vunpack.c.l.b16 %v1480
    %v2627 = vunpack.c.h.b16 %v1480
    %v2628 = vunpack.c.l.b16 %v1481
    %v2629 = vunpack.c.h.b16 %v1481
    %v2630 = vunpack.c.l.b16 %v1482
    %v2631 = vunpack.c.h.b16 %v1482
    %v2632 = vunpack.c.l.b16 %v1483
    %v2633 = vunpack.c.h.b16 %v1483
    %v2634 = vunpack.c.l.b16 %v1484
    %v2635 = vunpack.c.h.b16 %v1484
    %v2636 = vunpack.c.l.b16 %v1485
    %v2637 = vunpack.c.h.b16 %v1485
    %v2638 = vunpack.c.l.b16 %v1486
    %v2639 = vunpack.c.h.b16 %v1486
    %v2640 = vunpack.c.l.b16 %v1487
    %v2641 = vunpack.c.h.b16 %v1487
    %v2642 = vunpack.c.l.b16 %v1488
    %v2643 = vunpack.c.h.b16 %v1488
    %v2644 = vunpack.c.l.b16 %v1489
    %v2645 = vunpack.c.h.b16 %v1489
    %v2646 = vunpack.c.l.b16 %v1490
    %v2647 = vunpack.c.h.b16 %v1490
    %v2648 = vunpack.c.l.b16 %v1491
    %v2649 = vunpack.c.h.b16 %v1491
    %v2650 = vunpack.c.l.b16 %v1492
    %v2651 = vunpack.c.h.b16 %v1492
    %v2652 = vunpack.c.l.b16 %v1493
    %v2653 = vunpack.c.h.b16 %v1493
    %v2654 = vunpack.c.l.b16 %v1494
    %v2655 = vunpack.c.h.b16 %v1494
    %v2656 = vunpack.c.l.b16 %v1495
    %v2657 = vunpack.c.h.b16 %v1495
    %v2658 = vunpack.c.l.b16 %v1496
    %v2659 = vunpack.c.h.b16 %v1496
    %v2660 = vunpack.c.l.b16 %v1497
    %v2661 = vunpack.c.h.b16 %v1497
    %v2662 = vunpack.c.l.b16 %v1498
    %v2663 = vunpack.c.h.b16 %v1498
    %v2664 = vunpack.c.l.b16 %v1499
    %v2665 = vunpack.c.h.b16 %v1499
    %v2666 = vunpack.c.l.b16 %v1500
    %v2667 = vunpack.c.h.b16 %v1500
    %v2668 = vunpack.c.l.b16 %v1501
    %v2669 = vunpack.c.h.b16 %v1501
    %v2670 = vunpack.c.l.b16 %v1502
    %v2671 = vunpack.c.h.b16 %v1502
    %v2672 = vunpack.c.l.b16 %v1503
    %v2673 = vunpack.c.h.b16 %v1503
    %v2674 = vunpack.c.l.b16 %v1504
    %v2675 = vunpack.c.h.b16 %v1504
    %v2676 = vunpack.c.l.b16 %v1505
    %v2677 = vunpack.c.h.b16 %v1505
    %v2678 = vunpack.c.l.b16 %v1506
    %v2679 = vunpack.c.h.b16 %v1506
    %v2680 = vunpack.c.l.b16 %v1507
    %v2681 = vunpack.c.h.b16 %v1507
    %v2682 = vunpack.c.l.b16 %v1508
    %v2683 = vunpack.c.h.b16 %v1508
    %v2684 = vunpack.c.l.b16 %v1509
    %v2685 = vunpack.c.h.b16 %v1509
    %v2686 = vunpack.c.l.b16 %v1510
    %v2687 = vunpack.c.h.b16 %v1510
    %v2688 = vunpack.c.l.b16 %v1511
    %v2689 = vunpack.c.h.b16 %v1511
    %v2690 = vunpack.c.l.b16 %v1512
    %v2691 = vunpack.c.h.b16 %v1512
    %v2692 = vunpack.c.l.b16 %v1513
    %v2693 = vunpack.c.h.b16 %v1513
    %v2694 = vunpack.c.l.b16 %v1514
    %v2695 = vunpack.c.h.b16 %v1514
    %v2696 = vunpack.c.l.b16 %v1515
    %v2697 = vunpack.c.h.b16 %v1515
    %v2698 = vunpack.c.l.b16 %v1516
    %v2699 = vunpack.c.h.b16 %v1516
    %v2700 = vunpack.c.l.b16 %v1517
    %v2701 = vunpack.c.h.b16 %v1517
    %v2702 = vunpack.c.l.b16 %v1518
    %v2703 = vunpack.c.h.b16 %v1518
    %v2704 = vunpack.c.l.b16 %v1519
    %v2705 = vunpack.c.h.b16 %v1519
    %v2706 = vunpack.c.l.b16 %v1520
    %v2707 = vunpack.c.h.b16 %v1520
    %v2708 = vunpack.c.l.b16 %v1521
    %v2709 = vunpack.c.h.b16 %v1521
    %v2710 = vunpack.c.l.b16 %v1522
    %v2711 = vunpack.c.h.b16 %v1522
    %v2712 = vunpack.c.l.b16 %v1523
    %v2713 = vunpack.c.h.b16 %v1523
    %v2714 = vunpack.c.l.b16 %v1524
    %v2715 = vunpack.c.h.b16 %v1524
    %v2716 = vunpack.c.l.b16 %v1525
    %v2717 = vunpack.c.h.b16 %v1525
    %v2718 = vunpack.c.l.b16 %v1526
    %v2719 = vunpack.c.h.b16 %v1526
    %v2720 = vunpack.c.l.b16 %v1527
    %v2721 = vunpack.c.h.b16 %v1527
    %v2722 = vunpack.c.l.b16 %v1528
    %v2723 = vunpack.c.h.b16 %v1528
    %v2724 = vunpack.c.l.b16 %v1529
    %v2725 = vunpack.c.h.b16 %v1529
    %v2726 = vunpack.c.l.b16 %v1530
    %v2727 = vunpack.c.h.b16 %v1530
    %v2728 = vunpack.c.l.b16 %v1531
    %v2729 = vunpack.c.h.b16 %v1531
    %v2730 = vunpack.c.l.b16 %v1532
    %v2731 = vunpack.c.h.b16 %v1532
    %v2732 = vunpack.c.l.b16 %v1533
    %v2733 = vunpack.c.h.b16 %v1533
    %v2734 = vunpack.c.l.b16 %v1534
    %v2735 = vunpack.c.h.b16 %v1534
    %v2736 = vunpack.c.l.b16 %v1535
    %v2737 = vunpack.c.h.b16 %v1535
    %v2738 = vunpack.c.l.b16 %v1536
    %v2739 = vunpack.c.h.b16 %v1536
    %v2740 = vunpack.c.l.b16 %v1537
    %v2741 = vunpack.c.h.b16 %v1537
    %v2742 = vunpack.c.l.b16 %v1538
    %v2743 = vunpack.c.h.b16 %v1538
    %v2744 = vunpack.c.l.b16 %v1539
    %v2745 = vunpack.c.h.b16 %v1539
    %v2746 = vunpack.c.l.b16 %v1540
    %v2747 = vunpack.c.h.b16 %v1540
    %v2748 = vunpack.c.l.b16 %v1541
    %v2749 = vunpack.c.h.b16 %v1541
    %v2750 = vunpack.c.l.b16 %v1542
    %v2751 = vunpack.c.h.b16 %v1542
    %v2752 = vunpack.c.l.b16 %v1543
    %v2753 = vunpack.c.h.b16 %v1543
    %v2754 = vunpack.c.l.b16 %v1544
    %v2755 = vunpack.c.h.b16 %v1544
    %v2756 = vunpack.c.l.b16 %v1545
    %v2757 = vunpack.c.h.b16 %v1545
    %v2758 = vunpack.c.l.b16 %v1546
    %v2759 = vunpack.c.h.b16 %v1546
    %v2760 = vunpack.c.l.b16 %v1547
    %v2761 = vunpack.c.h.b16 %v1547
    %v2762 = vunpack.c.l.b16 %v1548
    %v2763 = vunpack.c.h.b16 %v1548
    %v2764 = vunpack.c.l.b16 %v1549
    %v2765 = vunpack.c.h.b16 %v1549
    %v2766 = vunpack.c.l.b16 %v1550
    %v2767 = vunpack.c.h.b16 %v1550
    %v2768 = vunpack.c.l.b16 %v1551
    %v2769 = vunpack.c.h.b16 %v1551
    %v2770 = vunpack.c.l.b16 %v1552
    %v2771 = vunpack.c.h.b16 %v1552
    %v2772 = vunpack.c.l.b16 %v1553
    %v2773 = vunpack.c.h.b16 %v1553
    %v2774 = vunpack.c.l.b16 %v1554
    %v2775 = vunpack.c.h.b16 %v1554
    %v2776 = vunpack.c.l.b16 %v1555
    %v2777 = vunpack.c.h.b16 %v1555
    %v2778 = vunpack.c.l.b16 %v1556
    %v2779 = vunpack.c.h.b16 %v1556
    %v2780 = vunpack.c.l.b16 %v1557
    %v2781 = vunpack.c.h.b16 %v1557
    %v2782 = vunpack.c.l.b16 %v1558
    %v2783 = vunpack.c.h.b16 %v1558
    %v2784 = vunpack.c.l.b16 %v1559
    %v2785 = vunpack.c.h.b16 %v1559
    %v2786 = vunpack.c.l.b16 %v1560
    %v2787 = vunpack.c.h.b16 %v1560
    %v2788 = vunpack.c.l.b16 %v1561
    %v2789 = vunpack.c.h.b16 %v1561
    %v2790 = vunpack.c.l.b16 %v1562
    %v2791 = vunpack.c.h.b16 %v1562
    %v2792 = vunpack.c.l.b16 %v1563
    %v2793 = vunpack.c.h.b16 %v1563
    %v2794 = vunpack.c.l.b16 %v1564
    %v2795 = vunpack.c.h.b16 %v1564
    %v2796 = vunpack.c.l.b16 %v1565
    %v2797 = vunpack.c.h.b16 %v1565
    %v2798 = vunpack.c.l.b16 %v1566
    %v2799 = vunpack.c.h.b16 %v1566
    %v2800 = vunpack.c.l.b16 %v1567
    %v2801 = vunpack.c.h.b16 %v1567
    %v2802 = vunpack.c.l.b16 %v1568
    %v2803 = vunpack.c.h.b16 %v1568
    %v2804 = vunpack.c.l.b16 %v1569
    %v2805 = vunpack.c.h.b16 %v1569
    %v2806 = vunpack.c.l.b16 %v1570
    %v2807 = vunpack.c.h.b16 %v1570
    %v2808 = vunpack.c.l.b16 %v1571
    %v2809 = vunpack.c.h.b16 %v1571
    %v2810 = vunpack.c.l.b16 %v1572
    %v2811 = vunpack.c.h.b16 %v1572
    %v2812 = vunpack.c.l.b16 %v1573
    %v2813 = vunpack.c.h.b16 %v1573
    %v2814 = vunpack.c.l.b16 %v1574
    %v2815 = vunpack.c.h.b16 %v1574
    %v2816 = vunpack.c.l.b16 %v1575
    %v2817 = vunpack.c.h.b16 %v1575
    %v2818 = vunpack.c.l.b16 %v1576
    %v2819 = vunpack.c.h.b16 %v1576
    %v2820 = vunpack.c.l.b16 %v1577
    %v2821 = vunpack.c.h.b16 %v1577
    %v2822 = vunpack.c.l.b16 %v1578
    %v2823 = vunpack.c.h.b16 %v1578
    %v2824 = vunpack.c.l.b16 %v1579
    %v2825 = vunpack.c.h.b16 %v1579
    %v2826 = vunpack.c.l.b16 %v1580
    %v2827 = vunpack.c.h.b16 %v1580
    %v2828 = vunpack.c.l.b16 %v1581
    %v2829 = vunpack.c.h.b16 %v1581
    %v2830 = vunpack.c.l.b16 %v1582
    %v2831 = vunpack.c.h.b16 %v1582
    %v2832 = vunpack.c.l.b16 %v1583
    %v2833 = vunpack.c.h.b16 %v1583
    %v2834 = vunpack.c.l.b16 %v1584
    %v2835 = vunpack.c.h.b16 %v1584
    %v2836 = vunpack.c.l.b16 %v1585
    %v2837 = vunpack.c.h.b16 %v1585
    %v2838 = vunpack.c.l.b16 %v1586
    %v2839 = vunpack.c.h.b16 %v1586
    %v2840 = vunpack.c.l.b16 %v1587
    %v2841 = vunpack.c.h.b16 %v1587
    %v2842 = vunpack.c.l.b16 %v1588
    %v2843 = vunpack.c.h.b16 %v1588
    %v2844 = vunpack.c.l.b16 %v1589
    %v2845 = vunpack.c.h.b16 %v1589
    %v2846 = vunpack.c.l.b16 %v1590
    %v2847 = vunpack.c.h.b16 %v1590
    %v2848 = vunpack.c.l.b16 %v1591
    %v2849 = vunpack.c.h.b16 %v1591
    %v2850 = vunpack.c.l.b16 %v1592
    %v2851 = vunpack.c.h.b16 %v1592
    %v2852 = vunpack.c.l.b16 %v1593
    %v2853 = vunpack.c.h.b16 %v1593
    %v2854 = vunpack.c.l.b16 %v1594
    %v2855 = vunpack.c.h.b16 %v1594
    %v2856 = vunpack.c.l.b16 %v1595
    %v2857 = vunpack.c.h.b16 %v1595
    %v2858 = vunpack.c.l.b16 %v1596
    %v2859 = vunpack.c.h.b16 %v1596
    %v2860 = vunpack.c.l.b16 %v1597
    %v2861 = vunpack.c.h.b16 %v1597
    %v2862 = vunpack.c.l.b16 %v1598
    %v2863 = vunpack.c.h.b16 %v1598
    %v2864 = vunpack.c.l.b16 %v1599
    %v2865 = vunpack.c.h.b16 %v1599
    %v2866 = vunpack.c.l.b16 %v1600
    %v2867 = vunpack.c.h.b16 %v1600
    %v2868 = vunpack.c.l.b16 %v1601
    %v2869 = vunpack.c.h.b16 %v1601
    %v2870 = vunpack.c.l.b16 %v1602
    %v2871 = vunpack.c.h.b16 %v1602
    %v2872 = vunpack.c.l.b16 %v1603
    %v2873 = vunpack.c.h.b16 %v1603
    %v2874 = vunpack.c.l.b16 %v1604
    %v2875 = vunpack.c.h.b16 %v1604
    %v2876 = vunpack.c.l.b16 %v1605
    %v2877 = vunpack.c.h.b16 %v1605
    %v2878 = vunpack.c.l.b16 %v1606
    %v2879 = vunpack.c.h.b16 %v1606
    %v2880 = vunpack.c.l.b16 %v1607
    %v2881 = vunpack.c.h.b16 %v1607
    %v2882 = vunpack.c.l.b16 %v1608
    %v2883 = vunpack.c.h.b16 %v1608
    %v2884 = vunpack.c.l.b16 %v1609
    %v2885 = vunpack.c.h.b16 %v1609
    %v2886 = vunpack.c.l.b16 %v1610
    %v2887 = vunpack.c.h.b16 %v1610
    %v2888 = vunpack.c.l.b16 %v1611
    %v2889 = vunpack.c.h.b16 %v1611
    %v2890 = vunpack.c.l.b16 %v1612
    %v2891 = vunpack.c.h.b16 %v1612
    %v2892 = vunpack.c.l.b16 %v1613
    %v2893 = vunpack.c.h.b16 %v1613
    %v2894 = vunpack.c.l.b16 %v1614
    %v2895 = vunpack.c.h.b16 %v1614
    %v2896 = vunpack.c.l.b16 %v1615
    %v2897 = vunpack.c.h.b16 %v1615
    %v2898 = vunpack.c.l.b16 %v1616
    %v2899 = vunpack.c.h.b16 %v1616
    %v2900 = vunpack.c.l.b16 %v1617
    %v2901 = vunpack.c.h.b16 %v1617
    %v2902 = vunpack.c.l.b16 %v1618
    %v2903 = vunpack.c.h.b16 %v1618
    %v2904 = vunpack.c.l.b16 %v1619
    %v2905 = vunpack.c.h.b16 %v1619
    %v2906 = vunpack.c.l.b16 %v1620
    %v2907 = vunpack.c.h.b16 %v1620
    %v2908 = vunpack.c.l.b16 %v1621
    %v2909 = vunpack.c.h.b16 %v1621
    %v2910 = vunpack.c.l.b16 %v1622
    %v2911 = vunpack.c.h.b16 %v1622
    %v2912 = vunpack.c.l.b16 %v1623
    %v2913 = vunpack.c.h.b16 %v1623
    %v2914 = vunpack.c.l.b16 %v1624
    %v2915 = vunpack.c.h.b16 %v1624
    %v2916 = vunpack.c.l.b16 %v1625
    %v2917 = vunpack.c.h.b16 %v1625
    %v2918 = vunpack.c.l.b16 %v1626
    %v2919 = vunpack.c.h.b16 %v1626
    %v2920 = vunpack.c.l.b16 %v1627
    %v2921 = vunpack.c.h.b16 %v1627
    %v2922 = vunpack.c.l.b16 %v1628
    %v2923 = vunpack.c.h.b16 %v1628
    %v2924 = vunpack.c.l.b16 %v1629
    %v2925 = vunpack.c.h.b16 %v1629
    %v2926 = vunpack.c.l.b16 %v1630
    %v2927 = vunpack.c.h.b16 %v1630
    %v2928 = vunpack.c.l.b16 %v1631
    %v2929 = vunpack.c.h.b16 %v1631
    %v2930 = vunpack.c.l.b16 %v1632
    %v2931 = vunpack.c.h.b16 %v1632
    %v2932 = vunpack.c.l.b16 %v1633
    %v2933 = vunpack.c.h.b16 %v1633
    %v2934 = vunpack.c.l.b16 %v1634
    %v2935 = vunpack.c.h.b16 %v1634
    %v2936 = vunpack.c.l.b16 %v1635
    %v2937 = vunpack.c.h.b16 %v1635
    %v2938 = vunpack.c.l.b16 %v1636
    %v2939 = vunpack.c.h.b16 %v1636
    %v2940 = vunpack.c.l.b16 %v1637
    %v2941 = vunpack.c.h.b16 %v1637
    %v2942 = vunpack.c.l.b16 %v1638
    %v2943 = vunpack.c.h.b16 %v1638
    %v2944 = vunpack.c.l.b16 %v1639
    %v2945 = vunpack.c.h.b16 %v1639
    %v2946 = vunpack.c.l.b16 %v1640
    %v2947 = vunpack.c.h.b16 %v1640
    %v2948 = vunpack.c.l.b16 %v1641
    %v2949 = vunpack.c.h.b16 %v1641
    %v2950 = vunpack.c.l.b16 %v1642
    %v2951 = vunpack.c.h.b16 %v1642
    %v2952 = vunpack.c.l.b16 %v1643
    %v2953 = vunpack.c.h.b16 %v1643
    %v2954 = vunpack.c.l.b16 %v1644
    %v2955 = vunpack.c.h.b16 %v1644
    %v2956 = vunpack.c.l.b16 %v1645
    %v2957 = vunpack.c.h.b16 %v1645
    %v2958 = vunpack.c.l.b16 %v1646
    %v2959 = vunpack.c.h.b16 %v1646
    %v2960 = vunpack.c.l.b16 %v1647
    %v2961 = vunpack.c.h.b16 %v1647
    %v2962 = vunpack.c.l.b16 %v1648
    %v2963 = vunpack.c.h.b16 %v1648
    %v2964 = vunpack.c.l.b16 %v1649
    %v2965 = vunpack.c.h.b16 %v1649
    %v2966 = vunpack.c.l.b16 %v1650
    %v2967 = vunpack.c.h.b16 %v1650
    %v2968 = vunpack.c.l.b16 %v1651
    %v2969 = vunpack.c.h.b16 %v1651
    %v2970 = vunpack.c.l.b16 %v1652
    %v2971 = vunpack.c.h.b16 %v1652
    %v2972 = vunpack.c.l.b16 %v1653
    %v2973 = vunpack.c.h.b16 %v1653
    %v2974 = vunpack.c.l.b16 %v1654
    %v2975 = vunpack.c.h.b16 %v1654
    %v2976 = vunpack.c.l.b16 %v1655
    %v2977 = vunpack.c.h.b16 %v1655
    %v2978 = vunpack.c.l.b16 %v1656
    %v2979 = vunpack.c.h.b16 %v1656
    %v2980 = vunpack.c.l.b16 %v1657
    %v2981 = vunpack.c.h.b16 %v1657
    %v2982 = vunpack.c.l.b16 %v1658
    %v2983 = vunpack.c.h.b16 %v1658
    %v2984 = vunpack.c.l.b16 %v1659
    %v2985 = vunpack.c.h.b16 %v1659
    %v2986 = vunpack.c.l.b16 %v1660
    %v2987 = vunpack.c.h.b16 %v1660
    %v2988 = vunpack.c.l.b16 %v1661
    %v2989 = vunpack.c.h.b16 %v1661
    %v2990 = vunpack.c.l.b16 %v1662
    %v2991 = vunpack.c.h.b16 %v1662
    %v2992 = vunpack.c.l.b16 %v1663
    %v2993 = vunpack.c.h.b16 %v1663
    %v2994 = vunpack.c.l.b16 %v1664
    %v2995 = vunpack.c.h.b16 %v1664
    %v2996 = vunpack.c.l.b16 %v1665
    %v2997 = vunpack.c.h.b16 %v1665
    %v2998 = vunpack.c.l.b16 %v1666
    %v2999 = vunpack.c.h.b16 %v1666
    %v3000 = vunpack.c.l.b16 %v1667
    %v3001 = vunpack.c.h.b16 %v1667
    %v3002 = vunpack.c.l.b16 %v1668
    %v3003 = vunpack.c.h.b16 %v1668
    %v3004 = vunpack.c.l.b16 %v1669
    %v3005 = vunpack.c.h.b16 %v1669
    %v3006 = vunpack.c.l.b16 %v1670
    %v3007 = vunpack.c.h.b16 %v1670
    %v3008 = vunpack.c.l.b16 %v1671
    %v3009 = vunpack.c.h.b16 %v1671
    %v3010 = vunpack.c.l.b16 %v1672
    %v3011 = vunpack.c.h.b16 %v1672
    %v3012 = vunpack.c.l.b16 %v1673
    %v3013 = vunpack.c.h.b16 %v1673
    %v3014 = vunpack.c.l.b16 %v1674
    %v3015 = vunpack.c.h.b16 %v1674
    %v3016 = vunpack.c.l.b16 %v1675
    %v3017 = vunpack.c.h.b16 %v1675
    %v3018 = vunpack.c.l.b16 %v1676
    %v3019 = vunpack.c.h.b16 %v1676
    %v3020 = vunpack.c.l.b16 %v1677
    %v3021 = vunpack.c.h.b16 %v1677
    %v3022 = vunpack.c.l.b16 %v1678
    %v3023 = vunpack.c.h.b16 %v1678
    %v3024 = vunpack.c.l.b16 %v1679
    %v3025 = vunpack.c.h.b16 %v1679
    %v3026 = vunpack.c.l.b16 %v1680
    %v3027 = vunpack.c.h.b16 %v1680
    %v3028 = vunpack.c.l.b16 %v1681
    %v3029 = vunpack.c.h.b16 %v1681
    %v3030 = vunpack.c.l.b16 %v1682
    %v3031 = vunpack.c.h.b16 %v1682
    %v3032 = vunpack.c.l.b16 %v1683
    %v3033 = vunpack.c.h.b16 %v1683
    %v3034 = vunpack.c.l.b16 %v1684
    %v3035 = vunpack.c.h.b16 %v1684
    %v3036 = vunpack.c.l.b16 %v1685
    %v3037 = vunpack.c.h.b16 %v1685
    %v3038 = vunpack.c.l.b16 %v1686
    %v3039 = vunpack.c.h.b16 %v1686
    %v3040 = vunpack.c.l.b16 %v1687
    %v3041 = vunpack.c.h.b16 %v1687
    %v3042 = vunpack.c.l.b16 %v1688
    %v3043 = vunpack.c.h.b16 %v1688
    %v3044 = vunpack.c.l.b16 %v1689
    %v3045 = vunpack.c.h.b16 %v1689
    %v3046 = vunpack.c.l.b16 %v1690
    %v3047 = vunpack.c.h.b16 %v1690
    %v3048 = vunpack.c.l.b16 %v1691
    %v3049 = vunpack.c.h.b16 %v1691
    %v3050 = vunpack.c.l.b16 %v1692
    %v3051 = vunpack.c.h.b16 %v1692
    %v3052 = vunpack.c.l.b16 %v1693
    %v3053 = vunpack.c.h.b16 %v1693
    %v3054 = vunpack.c.l.b16 %v1694
    %v3055 = vunpack.c.h.b16 %v1694
    %v3056 = vunpack.c.l.b16 %v1695
    %v3057 = vunpack.c.h.b16 %v1695
    %v3058 = vunpack.c.l.b16 %v1696
    %v3059 = vunpack.c.h.b16 %v1696
    %v3060 = vunpack.c.l.b16 %v1697
    %v3061 = vunpack.c.h.b16 %v1697
    %v3062 = vunpack.c.l.b16 %v1698
    %v3063 = vunpack.c.h.b16 %v1698
    %v3064 = vunpack.c.l.b16 %v1699
    %v3065 = vunpack.c.h.b16 %v1699
    %v3066 = vunpack.c.l.b16 %v1700
    %v3067 = vunpack.c.h.b16 %v1700
    %v3068 = vunpack.c.l.b16 %v1701
    %v3069 = vunpack.c.h.b16 %v1701
    %v3070 = vunpack.c.l.b16 %v1702
    %v3071 = vunpack.c.h.b16 %v1702
    %v3072 = vunpack.c.l.b16 %v1703
    %v3073 = vunpack.c.h.b16 %v1703
    %v3074 = vunpack.c.l.b16 %v1704
    %v3075 = vunpack.c.h.b16 %v1704
    %v3076 = vunpack.c.l.b16 %v1705
    %v3077 = vunpack.c.h.b16 %v1705
    %v3078 = vunpack.c.l.b16 %v1706
    %v3079 = vunpack.c.h.b16 %v1706
    %v3080 = vunpack.c.l.b16 %v1707
    %v3081 = vunpack.c.h.b16 %v1707
    %v3082 = vunpack.c.l.b16 %v1708
    %v3083 = vunpack.c.h.b16 %v1708
    %v3084 = vunpack.c.l.b16 %v1709
    %v3085 = vunpack.c.h.b16 %v1709
    %v3086 = vunpack.c.l.b16 %v1710
    %v3087 = vunpack.c.h.b16 %v1710
    %v3088 = vunpack.c.l.b16 %v1711
    %v3089 = vunpack.c.h.b16 %v1711
    %v3090 = vunpack.c.l.b16 %v1712
    %v3091 = vunpack.c.h.b16 %v1712
    %v3092 = vunpack.c.l.b16 %v1713
    %v3093 = vunpack.c.h.b16 %v1713
    %v3094 = vunpack.c.l.b16 %v1714
    %v3095 = vunpack.c.h.b16 %v1714
    %v3096 = vunpack.c.l.b16 %v1715
    %v3097 = vunpack.c.h.b16 %v1715
    %v3098 = vunpack.c.l.b16 %v1716
    %v3099 = vunpack.c.h.b16 %v1716
    %v3100 = vunpack.c.l.b16 %v1717
    %v3101 = vunpack.c.h.b16 %v1717
    %v3102 = vunpack.c.l.b16 %v1718
    %v3103 = vunpack.c.h.b16 %v1718
    %v3104 = vunpack.c.l.b16 %v1719
    %v3105 = vunpack.c.h.b16 %v1719
    %v3106 = vunpack.c.l.b16 %v1720
    %v3107 = vunpack.c.h.b16 %v1720
    %v3108 = vunpack.c.l.b16 %v1721
    %v3109 = vunpack.c.h.b16 %v1721
    %v3110 = vunpack.c.l.b16 %v1722
    %v3111 = vunpack.c.h.b16 %v1722
    %v3112 = vunpack.c.l.b16 %v1723
    %v3113 = vunpack.c.h.b16 %v1723
    %v3114 = vunpack.c.l.b16 %v1724
    %v3115 = vunpack.c.h.b16 %v1724
    %v3116 = vunpack.c.l.b16 %v1725
    %v3117 = vunpack.c.h.b16 %v1725
    %v3118 = vunpack.c.l.b16 %v1726
    %v3119 = vunpack.c.h.b16 %v1726
    %v3120 = vunpack.c.l.b16 %v1727
    %v3121 = vunpack.c.h.b16 %v1727
    %v3122 = vunpack.c.l.b16 %v1728
    %v3123 = vunpack.c.h.b16 %v1728
    %v3124 = vunpack.c.l.b16 %v1729
    %v3125 = vunpack.c.h.b16 %v1729
    %v3126 = vunpack.c.l.b16 %v1730
    %v3127 = vunpack.c.h.b16 %v1730
    %v3128 = vunpack.c.l.b16 %v1731
    %v3129 = vunpack.c.h.b16 %v1731
    %v3130 = vunpack.c.l.b16 %v1732
    %v3131 = vunpack.c.h.b16 %v1732
    %v3132 = vunpack.c.l.b16 %v1733
    %v3133 = vunpack.c.h.b16 %v1733
    %v3134 = vunpack.c.l.b16 %v1734
    %v3135 = vunpack.c.h.b16 %v1734
    %v3136 = vunpack.c.l.b16 %v1735
    %v3137 = vunpack.c.h.b16 %v1735
    %v3138 = vunpack.c.l.b16 %v1736
    %v3139 = vunpack.c.h.b16 %v1736
    %v3140 = vunpack.c.l.b16 %v1737
    %v3141 = vunpack.c.h.b16 %v1737
    %v3142 = vunpack.c.l.b16 %v1738
    %v3143 = vunpack.c.h.b16 %v1738
    %v3144 = vunpack.c.l.b16 %v1739
    %v3145 = vunpack.c.h.b16 %v1739
    %v3146 = vunpack.c.l.b16 %v1740
    %v3147 = vunpack.c.h.b16 %v1740
    %v3148 = vunpack.c.l.b16 %v1741
    %v3149 = vunpack.c.h.b16 %v1741
    %v3150 = vunpack.c.l.b16 %v1742
    %v3151 = vunpack.c.h.b16 %v1742
    %v3152 = vunpack.c.l.b16 %v1743
    %v3153 = vunpack.c.h.b16 %v1743
    %v3154 = vunpack.c.l.b16 %v1744
    %v3155 = vunpack.c.h.b16 %v1744
    %v3156 = vunpack.c.l.b16 %v1745
    %v3157 = vunpack.c.h.b16 %v1745
    %v3158 = vunpack.c.l.b16 %v1746
    %v3159 = vunpack.c.h.b16 %v1746
    %v3160 = vunpack.c.l.b16 %v1747
    %v3161 = vunpack.c.h.b16 %v1747
    %v3162 = vunpack.c.l.b16 %v1748
    %v3163 = vunpack.c.h.b16 %v1748
    %v3164 = vunpack.c.l.b16 %v1749
    %v3165 = vunpack.c.h.b16 %v1749
    %v3166 = vunpack.c.l.b16 %v1750
    %v3167 = vunpack.c.h.b16 %v1750
    %v3168 = vunpack.c.l.b16 %v1751
    %v3169 = vunpack.c.h.b16 %v1751
    %v3170 = vunpack.c.l.b16 %v1752
    %v3171 = vunpack.c.h.b16 %v1752
    %v3172 = vunpack.c.l.b16 %v1753
    %v3173 = vunpack.c.h.b16 %v1753
    %v3174 = vunpack.c.l.b16 %v1754
    %v3175 = vunpack.c.h.b16 %v1754
    %v3176 = vunpack.c.l.b16 %v1755
    %v3177 = vunpack.c.h.b16 %v1755
    %v3178 = vunpack.c.l.b16 %v1756
    %v3179 = vunpack.c.h.b16 %v1756
    %v3180 = vunpack.c.l.b16 %v1757
    %v3181 = vunpack.c.h.b16 %v1757
    %v3182 = vunpack.c.l.b16 %v1758
    %v3183 = vunpack.c.h.b16 %v1758
    %v3184 = vunpack.c.l.b16 %v1759
    %v3185 = vunpack.c.h.b16 %v1759
    %v3186 = vunpack.c.l.b16 %v1760
    %v3187 = vunpack.c.h.b16 %v1760
    %v3188 = vunpack.c.l.b16 %v1761
    %v3189 = vunpack.c.h.b16 %v1761
    %v3190 = vunpack.c.l.b16 %v1762
    %v3191 = vunpack.c.h.b16 %v1762
    %v3192 = vunpack.c.l.b16 %v1763
    %v3193 = vunpack.c.h.b16 %v1763
    %v3194 = vunpack.c.l.b16 %v1764
    %v3195 = vunpack.c.h.b16 %v1764
    %v3196 = vunpack.c.l.b16 %v1765
    %v3197 = vunpack.c.h.b16 %v1765
    %v3198 = vunpack.c.l.b16 %v1766
    %v3199 = vunpack.c.h.b16 %v1766
    %v3200 = vunpack.c.l.b16 %v1767
    %v3201 = vunpack.c.h.b16 %v1767
    %v3202 = vunpack.c.l.b16 %v1768
    %v3203 = vunpack.c.h.b16 %v1768
    %v3204 = vunpack.c.l.b16 %v1769
    %v3205 = vunpack.c.h.b16 %v1769
    %v3206 = vunpack.c.l.b16 %v1770
    %v3207 = vunpack.c.h.b16 %v1770
    %v3208 = vunpack.c.l.b16 %v1771
    %v3209 = vunpack.c.h.b16 %v1771
    %v3210 = vunpack.c.l.b16 %v1772
    %v3211 = vunpack.c.h.b16 %v1772
    %v3212 = vunpack.c.l.b16 %v1773
    %v3213 = vunpack.c.h.b16 %v1773
    %v3214 = vunpack.c.l.b16 %v1774
    %v3215 = vunpack.c.h.b16 %v1774
    %v3216 = vunpack.c.l.b16 %v1775
    %v3217 = vunpack.c.h.b16 %v1775
    %v3218 = vunpack.c.l.b16 %v1776
    %v3219 = vunpack.c.h.b16 %v1776
    %v3220 = vunpack.c.l.b16 %v1777
    %v3221 = vunpack.c.h.b16 %v1777
    %v3222 = vunpack.c.l.b16 %v1778
    %v3223 = vunpack.c.h.b16 %v1778
    %v3224 = vunpack.c.l.b16 %v1779
    %v3225 = vunpack.c.h.b16 %v1779
    %v3226 = vunpack.c.l.b16 %v1780
    %v3227 = vunpack.c.h.b16 %v1780
    %v3228 = vunpack.c.l.b16 %v1781
    %v3229 = vunpack.c.h.b16 %v1781
    %v3230 = vunpack.c.l.b16 %v1782
    %v3231 = vunpack.c.h.b16 %v1782
    %v3232 = vunpack.c.l.b16 %v1783
    %v3233 = vunpack.c.h.b16 %v1783
    %v3234 = vunpack.c.l.b16 %v1784
    %v3235 = vunpack.c.h.b16 %v1784
    %v3236 = vunpack.c.l.b16 %v1785
    %v3237 = vunpack.c.h.b16 %v1785
    %v3238 = vunpack.c.l.b16 %v1786
    %v3239 = vunpack.c.h.b16 %v1786
    %v3240 = vunpack.c.l.b16 %v1787
    %v3241 = vunpack.c.h.b16 %v1787
    %v3242 = vunpack.c.l.b16 %v1788
    %v3243 = vunpack.c.h.b16 %v1788
    %v3244 = vunpack.c.l.b16 %v1789
    %v3245 = vunpack.c.h.b16 %v1789
    %v3246 = vunpack.c.l.b16 %v1790
    %v3247 = vunpack.c.h.b16 %v1790
    %v3248 = vunpack.c.l.b16 %v1791
    %v3249 = vunpack.c.h.b16 %v1791
    %v3250 = vunpack.c.l.b16 %v1792
    %v3251 = vunpack.c.h.b16 %v1792
    %v3252 = vunpack.c.l.b16 %v1793
    %v3253 = vunpack.c.h.b16 %v1793
    %v3254 = vunpack.c.l.b16 %v1794
    %v3255 = vunpack.c.h.b16 %v1794
    %v3256 = vunpack.c.l.b16 %v1795
    %v3257 = vunpack.c.h.b16 %v1795
    %v3258 = vunpack.c.l.b16 %v1796
    %v3259 = vunpack.c.h.b16 %v1796
    %v3260 = vunpack.c.l.b16 %v1797
    %v3261 = vunpack.c.h.b16 %v1797
    %v3262 = vunpack.c.l.b16 %v1798
    %v3263 = vunpack.c.h.b16 %v1798
    %v3264 = vunpack.c.l.b16 %v1799
    %v3265 = vunpack.c.h.b16 %v1799
    %v3266 = vunpack.c.l.b16 %v1800
    %v3267 = vunpack.c.h.b16 %v1800
    %v3268 = vunpack.c.l.b16 %v1801
    %v3269 = vunpack.c.h.b16 %v1801
    %v3270 = vunpack.c.l.b16 %v1802
    %v3271 = vunpack.c.h.b16 %v1802
    %v3272 = vunpack.c.l.b16 %v1803
    %v3273 = vunpack.c.h.b16 %v1803
    %v3274 = vunpack.c.l.b16 %v1804
    %v3275 = vunpack.c.h.b16 %v1804
    %v3276 = vunpack.c.l.b16 %v1805
    %v3277 = vunpack.c.h.b16 %v1805
    %v3278 = vunpack.c.l.b16 %v1806
    %v3279 = vunpack.c.h.b16 %v1806
    %v3280 = vunpack.c.l.b16 %v1807
    %v3281 = vunpack.c.h.b16 %v1807
    %v3282 = vunpack.c.l.b16 %v1808
    %v3283 = vunpack.c.h.b16 %v1808
    %v3284 = vunpack.c.l.b16 %v1809
    %v3285 = vunpack.c.h.b16 %v1809
    %v3286 = vunpack.c.l.b16 %v1810
    %v3287 = vunpack.c.h.b16 %v1810
    %v3288 = vunpack.c.l.b16 %v1811
    %v3289 = vunpack.c.h.b16 %v1811
    %v3290 = vunpack.c.l.b16 %v1812
    %v3291 = vunpack.c.h.b16 %v1812
    %v3292 = vunpack.c.l.b16 %v1813
    %v3293 = vunpack.c.h.b16 %v1813
    %v3294 = vunpack.c.l.b16 %v1814
    %v3295 = vunpack.c.h.b16 %v1814
    %v3296 = vunpack.c.l.b16 %v1815
    %v3297 = vunpack.c.h.b16 %v1815
    %v3298 = vunpack.c.l.b16 %v1816
    %v3299 = vunpack.c.h.b16 %v1816
    %v3300 = vunpack.c.l.b16 %v1817
    %v3301 = vunpack.c.h.b16 %v1817
    %v3302 = vunpack.c.l.b16 %v1818
    %v3303 = vunpack.c.h.b16 %v1818
    %v3304 = vunpack.c.l.b16 %v1819
    %v3305 = vunpack.c.h.b16 %v1819
    %v3306 = vunpack.c.l.b16 %v1820
    %v3307 = vunpack.c.h.b16 %v1820
    %v3308 = vunpack.c.l.b16 %v1821
    %v3309 = vunpack.c.h.b16 %v1821
    %v3310 = vunpack.c.l.b16 %v1822
    %v3311 = vunpack.c.h.b16 %v1822
    %v3312 = vunpack.c.l.b16 %v1823
    %v3313 = vunpack.c.h.b16 %v1823
    %v3314 = vunpack.c.l.b16 %v1824
    %v3315 = vunpack.c.h.b16 %v1824
    %v3316 = vunpack.c.l.b16 %v1825
    %v3317 = vunpack.c.h.b16 %v1825
    %v3318 = vunpack.c.l.b16 %v1826
    %v3319 = vunpack.c.h.b16 %v1826
    %v3320 = vunpack.c.l.b16 %v1827
    %v3321 = vunpack.c.h.b16 %v1827
    %v3322 = vunpack.c.l.b16 %v1828
    %v3323 = vunpack.c.h.b16 %v1828
    %v3324 = vunpack.c.l.b16 %v1829
    %v3325 = vunpack.c.h.b16 %v1829
    %v3326 = vunpack.c.l.b16 %v1830
    %v3327 = vunpack.c.h.b16 %v1830
    %v3328 = vunpack.c.l.b16 %v1831
    %v3329 = vunpack.c.h.b16 %v1831
    %v3330 = vunpack.c.l.b16 %v1832
    %v3331 = vunpack.c.h.b16 %v1832
    %v3332 = vunpack.c.l.b16 %v1833
    %v3333 = vunpack.c.h.b16 %v1833
    %v3334 = vunpack.c.l.b16 %v1834
    %v3335 = vunpack.c.h.b16 %v1834
    %v3336 = vunpack.c.l.b16 %v1835
    %v3337 = vunpack.c.h.b16 %v1835
    %v3338 = vunpack.c.l.b16 %v1836
    %v3339 = vunpack.c.h.b16 %v1836
    %v3340 = vunpack.c.l.b16 %v1837
    %v3341 = vunpack.c.h.b16 %v1837
    %v3342 = vunpack.c.l.b16 %v1838
    %v3343 = vunpack.c.h.b16 %v1838
    %v3344 = vunpack.c.l.b16 %v1839
    %v3345 = vunpack.c.h.b16 %v1839
    %v3346 = vunpack.c.l.b16 %v1840
    %v3347 = vunpack.c.h.b16 %v1840
    %v3348 = vunpack.c.l.b16 %v1841
    %v3349 = vunpack.c.h.b16 %v1841
    %v3350 = vunpack.c.l.b16 %v1842
    %v3351 = vunpack.c.h.b16 %v1842
    %v3352 = vunpack.c.l.b16 %v1843
    %v3353 = vunpack.c.h.b16 %v1843
    %v3354 = vunpack.c.l.b16 %v1844
    %v3355 = vunpack.c.h.b16 %v1844
    %v3356 = vunpack.c.l.b16 %v1845
    %v3357 = vunpack.c.h.b16 %v1845
    %v3358 = vunpack.c.l.b16 %v1846
    %v3359 = vunpack.c.h.b16 %v1846
    %v3360 = vunpack.c.l.b16 %v1847
    %v3361 = vunpack.c.h.b16 %v1847
    %v3362 = vunpack.c.l.b16 %v1848
    %v3363 = vunpack.c.h.b16 %v1848
    %v3364 = vunpack.c.l.b16 %v1849
    %v3365 = vunpack.c.h.b16 %v1849
    %v3366 = vunpack.c.l.b16 %v1850
    %v3367 = vunpack.c.h.b16 %v1850
    %v3368 = vunpack.c.l.b16 %v1851
    %v3369 = vunpack.c.h.b16 %v1851
    %v3370 = vunpack.c.l.b16 %v1852
    %v3371 = vunpack.c.h.b16 %v1852
    %v3372 = vunpack.c.l.b16 %v1853
    %v3373 = vunpack.c.h.b16 %v1853
    %v3374 = vunpack.c.l.b16 %v1854
    %v3375 = vunpack.c.h.b16 %v1854
    %v3376 = vunpack.c.l.b16 %v1855
    %v3377 = vunpack.c.h.b16 %v1855
    %v3378 = vunpack.c.l.b16 %v1856
    %v3379 = vunpack.c.h.b16 %v1856
    %v3380 = vunpack.c.l.b16 %v1857
    %v3381 = vunpack.c.h.b16 %v1857
    %v3382 = vunpack.c.l.b16 %v1858
    %v3383 = vunpack.c.h.b16 %v1858
    %v3384 = vunpack.c.l.b16 %v1859
    %v3385 = vunpack.c.h.b16 %v1859
    %v3386 = vunpack.c.l.b16 %v1860
    %v3387 = vunpack.c.h.b16 %v1860
    %v3388 = vunpack.c.l.b16 %v1861
    %v3389 = vunpack.c.h.b16 %v1861
    %v3390 = vunpack.c.l.b16 %v1862
    %v3391 = vunpack.c.h.b16 %v1862
    %v3392 = vunpack.c.l.b16 %v1863
    %v3393 = vunpack.c.h.b16 %v1863
    %v3394 = vunpack.c.l.b16 %v1864
    %v3395 = vunpack.c.h.b16 %v1864
    %v3396 = vunpack.c.l.b16 %v1865
    %v3397 = vunpack.c.h.b16 %v1865
    %v3398 = vunpack.c.l.b16 %v1866
    %v3399 = vunpack.c.h.b16 %v1866
    %v3400 = vunpack.c.l.b16 %v1867
    %v3401 = vunpack.c.h.b16 %v1867
    %v3402 = vunpack.c.l.b16 %v1868
    %v3403 = vunpack.c.h.b16 %v1868
    %v3404 = vunpack.c.l.b16 %v1869
    %v3405 = vunpack.c.h.b16 %v1869
    %v3406 = vunpack.c.l.b16 %v1870
    %v3407 = vunpack.c.h.b16 %v1870
    %v3408 = vunpack.c.l.b16 %v1871
    %v3409 = vunpack.c.h.b16 %v1871
    %v3410 = vunpack.c.l.b16 %v1872
    %v3411 = vunpack.c.h.b16 %v1872
    %v3412 = vunpack.c.l.b16 %v1873
    %v3413 = vunpack.c.h.b16 %v1873
    %v3414 = vunpack.c.l.b16 %v1874
    %v3415 = vunpack.c.h.b16 %v1874
    %v3416 = vunpack.c.l.b16 %v1875
    %v3417 = vunpack.c.h.b16 %v1875
    %v3418 = vunpack.c.l.b16 %v1876
    %v3419 = vunpack.c.h.b16 %v1876
    %v3420 = vunpack.c.l.b16 %v1877
    %v3421 = vunpack.c.h.b16 %v1877
    %v3422 = vunpack.c.l.b16 %v1878
    %v3423 = vunpack.c.h.b16 %v1878
    %v3424 = vunpack.c.l.b16 %v1879
    %v3425 = vunpack.c.h.b16 %v1879
    %v3426 = vunpack.c.l.b16 %v1880
    %v3427 = vunpack.c.h.b16 %v1880
    %v3428 = vunpack.c.l.b16 %v1881
    %v3429 = vunpack.c.h.b16 %v1881
    %v3430 = vunpack.c.l.b16 %v1882
    %v3431 = vunpack.c.h.b16 %v1882
    %v3432 = vunpack.c.l.b16 %v1883
    %v3433 = vunpack.c.h.b16 %v1883
    %v3434 = vunpack.c.l.b16 %v1884
    %v3435 = vunpack.c.h.b16 %v1884
    %v3436 = vunpack.c.l.b16 %v1885
    %v3437 = vunpack.c.h.b16 %v1885
    %v3438 = vunpack.c.l.b16 %v1886
    %v3439 = vunpack.c.h.b16 %v1886
    %v3440 = vunpack.c.l.b16 %v1887
    %v3441 = vunpack.c.h.b16 %v1887
    %v3442 = vunpack.c.l.b16 %v1888
    %v3443 = vunpack.c.h.b16 %v1888
    %v3444 = vunpack.c.l.b16 %v1889
    %v3445 = vunpack.c.h.b16 %v1889
    %v3446 = vunpack.c.l.b16 %v1890
    %v3447 = vunpack.c.h.b16 %v1890
    %v3448 = vunpack.c.l.b16 %v1891
    %v3449 = vunpack.c.h.b16 %v1891
    %v3450 = vunpack.c.l.b16 %v1892
    %v3451 = vunpack.c.h.b16 %v1892
    %v3452 = vunpack.c.l.b16 %v1893
    %v3453 = vunpack.c.h.b16 %v1893
    %v3454 = vunpack.c.l.b16 %v1894
    %v3455 = vunpack.c.h.b16 %v1894
    %v3456 = vunpack.c.l.b16 %v1895
    %v3457 = vunpack.c.h.b16 %v1895
    %v3458 = vunpack.c.l.b16 %v1896
    %v3459 = vunpack.c.h.b16 %v1896
    %v3460 = vunpack.c.l.b16 %v1897
    %v3461 = vunpack.c.h.b16 %v1897
    %v3462 = vunpack.c.l.b16 %v1898
    %v3463 = vunpack.c.h.b16 %v1898
    %v3464 = vunpack.c.l.b16 %v1899
    %v3465 = vunpack.c.h.b16 %v1899
    %v3466 = vunpack.c.l.b16 %v1900
    %v3467 = vunpack.c.h.b16 %v1900
    %v3468 = vunpack.c.l.b16 %v1901
    %v3469 = vunpack.c.h.b16 %v1901
    %v3470 = vunpack.c.l.b16 %v1902
    %v3471 = vunpack.c.h.b16 %v1902
    %v3472 = vunpack.c.l.b16 %v1903
    %v3473 = vunpack.c.h.b16 %v1903
    %v3474 = vunpack.c.l.b16 %v1904
    %v3475 = vunpack.c.h.b16 %v1904
    %v3476 = vunpack.c.l.b16 %v1905
    %v3477 = vunpack.c.h.b16 %v1905
    %v3478 = vunpack.c.l.b16 %v1906
    %v3479 = vunpack.c.h.b16 %v1906
    %v3480 = vunpack.c.l.b16 %v1907
    %v3481 = vunpack.c.h.b16 %v1907
    %v3482 = vunpack.c.l.b16 %v1908
    %v3483 = vunpack.c.h.b16 %v1908
    %v3484 = vunpack.c.l.b16 %v1909
    %v3485 = vunpack.c.h.b16 %v1909
    %v3486 = vunpack.c.l.b16 %v1910
    %v3487 = vunpack.c.h.b16 %v1910
    %v3488 = vunpack.c.l.b16 %v1911
    %v3489 = vunpack.c.h.b16 %v1911
    %v3490 = vunpack.c.l.b16 %v1912
    %v3491 = vunpack.c.h.b16 %v1912
    %v3492 = vunpack.c.l.b16 %v1913
    %v3493 = vunpack.c.h.b16 %v1913
    %v3494 = vunpack.c.l.b16 %v1914
    %v3495 = vunpack.c.h.b16 %v1914
    %v3496 = vunpack.c.l.b16 %v1915
    %v3497 = vunpack.c.h.b16 %v1915
    %v3498 = vunpack.c.l.b16 %v1916
    %v3499 = vunpack.c.h.b16 %v1916
    %v3500 = vunpack.c.l.b16 %v1917
    %v3501 = vunpack.c.h.b16 %v1917
    %v3502 = vunpack.c.l.b16 %v1918
    %v3503 = vunpack.c.h.b16 %v1918
    %v3504 = vunpack.c.l.b16 %v1919
    %v3505 = vunpack.c.h.b16 %v1919
    %v3506 = vunpack.c.l.b16 %v1920
    %v3507 = vunpack.c.h.b16 %v1920
    %v3508 = vunpack.c.l.b16 %v1921
    %v3509 = vunpack.c.h.b16 %v1921
    %v3510 = vunpack.c.l.b16 %v1922
    %v3511 = vunpack.c.h.b16 %v1922
    %v3512 = vunpack.c.l.b16 %v1923
    %v3513 = vunpack.c.h.b16 %v1923
    %v3514 = vunpack.c.l.b16 %v1924
    %v3515 = vunpack.c.h.b16 %v1924
    %v3516 = vunpack.c.l.b16 %v1925
    %v3517 = vunpack.c.h.b16 %v1925
    %v3518 = vunpack.c.l.b16 %v1926
    %v3519 = vunpack.c.h.b16 %v1926
    %v3520 = vunpack.c.l.b16 %v1927
    %v3521 = vunpack.c.h.b16 %v1927
    %v3522 = vunpack.c.l.b16 %v1928
    %v3523 = vunpack.c.h.b16 %v1928
    %v3524 = vunpack.c.l.b16 %v1929
    %v3525 = vunpack.c.h.b16 %v1929
    %v3526 = vunpack.c.l.b16 %v1930
    %v3527 = vunpack.c.h.b16 %v1930
    %v3528 = vunpack.c.l.b16 %v1931
    %v3529 = vunpack.c.h.b16 %v1931
    %v3530 = vunpack.c.l.b16 %v1932
    %v3531 = vunpack.c.h.b16 %v1932
    %v3532 = vunpack.c.l.b16 %v1933
    %v3533 = vunpack.c.h.b16 %v1933
    %v3534 = vunpack.c.l.b16 %v1934
    %v3535 = vunpack.c.h.b16 %v1934
    %v3536 = vunpack.c.l.b16 %v1935
    %v3537 = vunpack.c.h.b16 %v1935
    %v3538 = vunpack.c.l.b16 %v1936
    %v3539 = vunpack.c.h.b16 %v1936
    %v3540 = vunpack.c.l.b16 %v1937
    %v3541 = vunpack.c.h.b16 %v1937
    %v3542 = vunpack.c.l.b16 %v1938
    %v3543 = vunpack.c.h.b16 %v1938
    %v3544 = vunpack.c.l.b16 %v1939
    %v3545 = vunpack.c.h.b16 %v1939
    %v3546 = vunpack.c.l.b16 %v1940
    %v3547 = vunpack.c.h.b16 %v1940
    %v3548 = vunpack.c.l.b16 %v1941
    %v3549 = vunpack.c.h.b16 %v1941
    %v3550 = vunpack.c.l.b16 %v1942
    %v3551 = vunpack.c.h.b16 %v1942
    %v3552 = vunpack.c.l.b16 %v1943
    %v3553 = vunpack.c.h.b16 %v1943
    %v3554 = vunpack.c.l.b16 %v1944
    %v3555 = vunpack.c.h.b16 %v1944
    %v3556 = vunpack.c.l.b16 %v1945
    %v3557 = vunpack.c.h.b16 %v1945
    %v3558 = vunpack.c.l.b16 %v1946
    %v3559 = vunpack.c.h.b16 %v1946
    %v3560 = vunpack.c.l.b16 %v1947
    %v3561 = vunpack.c.h.b16 %v1947
    %v3562 = vunpack.c.l.b16 %v1948
    %v3563 = vunpack.c.h.b16 %v1948
    %v3564 = vunpack.c.l.b16 %v1949
    %v3565 = vunpack.c.h.b16 %v1949
    %v3566 = vunpack.c.l.b16 %v1950
    %v3567 = vunpack.c.h.b16 %v1950
    %v3568 = vunpack.c.l.b16 %v1951
    %v3569 = vunpack.c.h.b16 %v1951
    %v3570 = vunpack.c.l.b16 %v1952
    %v3571 = vunpack.c.h.b16 %v1952
    %v3572 = vunpack.c.l.b16 %v1953
    %v3573 = vunpack.c.h.b16 %v1953
    %v3574 = vpack.c.b16 %v2566, %v2550
    %v3575 = vpack.c.b16 %v2567, %v2551
    %v3576 = vpack.c.b16 %v2568, %v2552
    %v3577 = vpack.c.b16 %v2569, %v2553
    %v3578 = vpack.c.b16 %v2570, %v2554
    %v3579 = vpack.c.b16 %v2571, %v2555
    %v3580 = vpack.c.b16 %v2572, %v2556
    %v3581 = vpack.c.b16 %v2573, %v2557
    %v3582 = vpack.c.b16 %v2574, %v2558
    %v3583 = vpack.c.b16 %v2575, %v2559
    %v3584 = vpack.c.b16 %v2576, %v2560
    %v3585 = vpack.c.b16 %v2577, %v2561
    %v3586 = vpack.c.b16 %v2578, %v2562
    %v3587 = vpack.c.b16 %v2579, %v2563
    %v3588 = vpack.c.b16 %v2580, %v2564
    %v3589 = vpack.c.b16 %v2581, %v2565
    %v3590 = vpack.c.b16 %v2598, %v2582
    %v3591 = vpack.c.b16 %v2599, %v2583
    %v3592 = vpack.c.b16 %v2600, %v2584
    %v3593 = vpack.c.b16 %v2601, %v2585
    %v3594 = vpack.c.b16 %v2602, %v2586
    %v3595 = vpack.c.b16 %v2603, %v2587
    %v3596 = vpack.c.b16 %v2604, %v2588
    %v3597 = vpack.c.b16 %v2605, %v2589
    %v3598 = vpack.c.b16 %v2606, %v2590
    %v3599 = vpack.c.b16 %v2607, %v2591
    %v3600 = vpack.c.b16 %v2608, %v2592
    %v3601 = vpack.c.b16 %v2609, %v2593
    %v3602 = vpack.c.b16 %v2610, %v2594
    %v3603 = vpack.c.b16 %v2611, %v2595
    %v3604 = vpack.c.b16 %v2612, %v2596
    %v3605 = vpack.c.b16 %v2613, %v2597
    %v3606 = vpack.c.b16 %v2630, %v2614
    %v3607 = vpack.c.b16 %v2631, %v2615
    %v3608 = vpack.c.b16 %v2632, %v2616
    %v3609 = vpack.c.b16 %v2633, %v2617
    %v3610 = vpack.c.b16 %v2634, %v2618
    %v3611 = vpack.c.b16 %v2635, %v2619
    %v3612 = vpack.c.b16 %v2636, %v2620
    %v3613 = vpack.c.b16 %v2637, %v2621
    %v3614 = vpack.c.b16 %v2638, %v2622
    %v3615 = vpack.c.b16 %v2639, %v2623
    %v3616 = vpack.c.b16 %v2640, %v2624
    %v3617 = vpack.c.b16 %v2641, %v2625
    %v3618 = vpack.c.b16 %v2642, %v2626
    %v3619 = vpack.c.b16 %v2643, %v2627
    %v3620 = vpack.c.b16 %v2644, %v2628
    %v3621 = vpack.c.b16 %v2645, %v2629
    %v3622 = vpack.c.b16 %v2662, %v2646
    %v3623 = vpack.c.b16 %v2663, %v2647
    %v3624 = vpack.c.b16 %v2664, %v2648
    %v3625 = vpack.c.b16 %v2665, %v2649
    %v3626 = vpack.c.b16 %v2666, %v2650
    %v3627 = vpack.c.b16 %v2667, %v2651
    %v3628 = vpack.c.b16 %v2668, %v2652
    %v3629 = vpack.c.b16 %v2669, %v2653
    %v3630 = vpack.c.b16 %v2670, %v2654
    %v3631 = vpack.c.b16 %v2671, %v2655
    %v3632 = vpack.c.b16 %v2672, %v2656
    %v3633 = vpack.c.b16 %v2673, %v2657
    %v3634 = vpack.c.b16 %v2674, %v2658
    %v3635 = vpack.c.b16 %v2675, %v2659
    %v3636 = vpack.c.b16 %v2676, %v2660
    %v3637 = vpack.c.b16 %v2677, %v2661
    %v3638 = vpack.c.b16 %v2694, %v2678
    %v3639 = vpack.c.b16 %v2695, %v2679
    %v3640 = vpack.c.b16 %v2696, %v2680
    %v3641 = vpack.c.b16 %v2697, %v2681
    %v3642 = vpack.c.b16 %v2698, %v2682
    %v3643 = vpack.c.b16 %v2699, %v2683
    %v3644 = vpack.c.b16 %v2700, %v2684
    %v3645 = vpack.c.b16 %v2701, %v2685
    %v3646 = vpack.c.b16 %v2702, %v2686
    %v3647 = vpack.c.b16 %v2703, %v2687
    %v3648 = vpack.c.b16 %v2704, %v2688
    %v3649 = vpack.c.b16 %v2705, %v2689
    %v3650 = vpack.c.b16 %v2706, %v2690
    %v3651 = vpack.c.b16 %v2707, %v2691
    %v3652 = vpack.c.b16 %v2708, %v2692
    %v3653 = vpack.c.b16 %v2709, %v2693
    %v3654 = vpack.c.b16 %v2726, %v2710
    %v3655 = vpack.c.b16 %v2727, %v2711
    %v3656 = vpack.c.b16 %v2728, %v2712
    %v3657 = vpack.c.b16 %v2729, %v2713
    %v3658 = vpack.c.b16 %v2730, %v2714
    %v3659 = vpack.c.b16 %v2731, %v2715
    %v3660 = vpack.c.b16 %v2732, %v2716
    %v3661 = vpack.c.b16 %v2733, %v2717
    %v3662 = vpack.c.b16 %v2734, %v2718
    %v3663 = vpack.c.b16 %v2735, %v2719
    %v3664 = vpack.c.b16 %v2736, %v2720
    %v3665 = vpack.c.b16 %v2737, %v2721
    %v3666 = vpack.c.b16 %v2738, %v2722
    %v3667 = vpack.c.b16 %v2739, %v2723
    %v3668 = vpack.c.b16 %v2740, %v2724
    %v3669 = vpack.c.b16 %v2741, %v2725
    %v3670 = vpack.c.b16 %v2758, %v2742
    %v3671 = vpack.c.b16 %v2759, %v2743
    %v3672 = vpack.c.b16 %v2760, %v2744
    %v3673 = vpack.c.b16 %v2761, %v2745
    %v3674 = vpack.c.b16 %v2762, %v2746
    %v3675 = vpack.c.b16 %v2763, %v2747
    %v3676 = vpack.c.b16 %v2764, %v2748
    %v3677 = vpack.c.b16 %v2765, %v2749
    %v3678 = vpack.c.b16 %v2766, %v2750
    %v3679 = vpack.c.b16 %v2767, %v2751
    %v3680 = vpack.c.b16 %v2768, %v2752
    %v3681 = vpack.c.b16 %v2769, %v2753
    %v3682 = vpack.c.b16 %v2770, %v2754
    %v3683 = vpack.c.b16 %v2771, %v2755
    %v3684 = vpack.c.b16 %v2772, %v2756
    %v3685 = vpack.c.b16 %v2773, %v2757
    %v3686 = vpack.c.b16 %v2790, %v2774
    %v3687 = vpack.c.b16 %v2791, %v2775
    %v3688 = vpack.c.b16 %v2792, %v2776
    %v3689 = vpack.c.b16 %v2793, %v2777
    %v3690 = vpack.c.b16 %v2794, %v2778
    %v3691 = vpack.c.b16 %v2795, %v2779
    %v3692 = vpack.c.b16 %v2796, %v2780
    %v3693 = vpack.c.b16 %v2797, %v2781
    %v3694 = vpack.c.b16 %v2798, %v2782
    %v3695 = vpack.c.b16 %v2799, %v2783
    %v3696 = vpack.c.b16 %v2800, %v2784
    %v3697 = vpack.c.b16 %v2801, %v2785
    %v3698 = vpack.c.b16 %v2802, %v2786
    %v3699 = vpack.c.b16 %v2803, %v2787
    %v3700 = vpack.c.b16 %v2804, %v2788
    %v3701 = vpack.c.b16 %v2805, %v2789
    %v3702 = vpack.c.b16 %v2822, %v2806
    %v3703 = vpack.c.b16 %v2823, %v2807
    %v3704 = vpack.c.b16 %v2824, %v2808
    %v3705 = vpack.c.b16 %v2825, %v2809
    %v3706 = vpack.c.b16 %v2826, %v2810
    %v3707 = vpack.c.b16 %v2827, %v2811
    %v3708 = vpack.c.b16 %v2828, %v2812
    %v3709 = vpack.c.b16 %v2829, %v2813
    %v3710 = vpack.c.b16 %v2830, %v2814
    %v3711 = vpack.c.b16 %v2831, %v2815
    %v3712 = vpack.c.b16 %v2832, %v2816
    %v3713 = vpack.c.b16 %v2833, %v2817
    %v3714 = vpack.c.b16 %v2834, %v2818
    %v3715 = vpack.c.b16 %v2835, %v2819
    %v3716 = vpack.c.b16 %v2836, %v2820
    %v3717 = vpack.c.b16 %v2837, %v2821
    %v3718 = vpack.c.b16 %v2854, %v2838
    %v3719 = vpack.c.b16 %v2855, %v2839
    %v3720 = vpack.c.b16 %v2856, %v2840
    %v3721 = vpack.c.b16 %v2857, %v2841
    %v3722 = vpack.c.b16 %v2858, %v2842
    %v3723 = vpack.c.b16 %v2859, %v2843
    %v3724 = vpack.c.b16 %v2860, %v2844
    %v3725 = vpack.c.b16 %v2861, %v2845
    %v3726 = vpack.c.b16 %v2862, %v2846
    %v3727 = vpack.c.b16 %v2863, %v2847
    %v3728 = vpack.c.b16 %v2864, %v2848
    %v3729 = vpack.c.b16 %v2865, %v2849
    %v3730 = vpack.c.b16 %v2866, %v2850
    %v3731 = vpack.c.b16 %v2867, %v2851
    %v3732 = vpack.c.b16 %v2868, %v2852
    %v3733 = vpack.c.b16 %v2869, %v2853
    %v3734 = vpack.c.b16 %v2886, %v2870
    %v3735 = vpack.c.b16 %v2887, %v2871
    %v3736 = vpack.c.b16 %v2888, %v2872
    %v3737 = vpack.c.b16 %v2889, %v2873
    %v3738 = vpack.c.b16 %v2890, %v2874
    %v3739 = vpack.c.b16 %v2891, %v2875
    %v3740 = vpack.c.b16 %v2892, %v2876
    %v3741 = vpack.c.b16 %v2893, %v2877
    %v3742 = vpack.c.b16 %v2894, %v2878
    %v3743 = vpack.c.b16 %v2895, %v2879
    %v3744 = vpack.c.b16 %v2896, %v2880
    %v3745 = vpack.c.b16 %v2897, %v2881
    %v3746 = vpack.c.b16 %v2898, %v2882
    %v3747 = vpack.c.b16 %v2899, %v2883
    %v3748 = vpack.c.b16 %v2900, %v2884
    %v3749 = vpack.c.b16 %v2901, %v2885
    %v3750 = vpack.c.b16 %v2918, %v2902
    %v3751 = vpack.c.b16 %v2919, %v2903
    %v3752 = vpack.c.b16 %v2920, %v2904
    %v3753 = vpack.c.b16 %v2921, %v2905
    %v3754 = vpack.c.b16 %v2922, %v2906
    %v3755 = vpack.c.b16 %v2923, %v2907
    %v3756 = vpack.c.b16 %v2924, %v2908
    %v3757 = vpack.c.b16 %v2925, %v2909
    %v3758 = vpack.c.b16 %v2926, %v2910
    %v3759 = vpack.c.b16 %v2927, %v2911
    %v3760 = vpack.c.b16 %v2928, %v2912
    %v3761 = vpack.c.b16 %v2929, %v2913
    %v3762 = vpack.c.b16 %v2930, %v2914
    %v3763 = vpack.c.b16 %v2931, %v2915
    %v3764 = vpack.c.b16 %v2932, %v2916
    %v3765 = vpack.c.b16 %v2933, %v2917
    %v3766 = vpack.c.b16 %v2950, %v2934
    %v3767 = vpack.c.b16 %v2951, %v2935
    %v3768 = vpack.c.b16 %v2952, %v2936
    %v3769 = vpack.c.b16 %v2953, %v2937
    %v3770 = vpack.c.b16 %v2954, %v2938
    %v3771 = vpack.c.b16 %v2955, %v2939
    %v3772 = vpack.c.b16 %v2956, %v2940
    %v3773 = vpack.c.b16 %v2957, %v2941
    %v3774 = vpack.c.b16 %v2958, %v2942
    %v3775 = vpack.c.b16 %v2959, %v2943
    %v3776 = vpack.c.b16 %v2960, %v2944
    %v3777 = vpack.c.b16 %v2961, %v2945
    %v3778 = vpack.c.b16 %v2962, %v2946
    %v3779 = vpack.c.b16 %v2963, %v2947
    %v3780 = vpack.c.b16 %v2964, %v2948
    %v3781 = vpack.c.b16 %v2965, %v2949
    %v3782 = vpack.c.b16 %v2982, %v2966
    %v3783 = vpack.c.b16 %v2983, %v2967
    %v3784 = vpack.c.b16 %v2984, %v2968
    %v3785 = vpack.c.b16 %v2985, %v2969
    %v3786 = vpack.c.b16 %v2986, %v2970
    %v3787 = vpack.c.b16 %v2987, %v2971
    %v3788 = vpack.c.b16 %v2988, %v2972
    %v3789 = vpack.c.b16 %v2989, %v2973
    %v3790 = vpack.c.b16 %v2990, %v2974
    %v3791 = vpack.c.b16 %v2991, %v2975
    %v3792 = vpack.c.b16 %v2992, %v2976
    %v3793 = vpack.c.b16 %v2993, %v2977
    %v3794 = vpack.c.b16 %v2994, %v2978
    %v3795 = vpack.c.b16 %v2995, %v2979
    %v3796 = vpack.c.b16 %v2996, %v2980
    %v3797 = vpack.c.b16 %v2997, %v2981
    %v3798 = vpack.c.b16 %v3014, %v2998
    %v3799 = vpack.c.b16 %v3015, %v2999
    %v3800 = vpack.c.b16 %v3016, %v3000
    %v3801 = vpack.c.b16 %v3017, %v3001
    %v3802 = vpack.c.b16 %v3018, %v3002
    %v3803 = vpack.c.b16 %v3019, %v3003
    %v3804 = vpack.c.b16 %v3020, %v3004
    %v3805 = vpack.c.b16 %v3021, %v3005
    %v3806 = vpack.c.b16 %v3022, %v3006
    %v3807 = vpack.c.b16 %v3023, %v3007
    %v3808 = vpack.c.b16 %v3024, %v3008
    %v3809 = vpack.c.b16 %v3025, %v3009
    %v3810 = vpack.c.b16 %v3026, %v3010
    %v3811 = vpack.c.b16 %v3027, %v3011
    %v3812 = vpack.c.b16 %v3028, %v3012
    %v3813 = vpack.c.b16 %v3029, %v3013
    %v3814 = vpack.c.b16 %v3046, %v3030
    %v3815 = vpack.c.b16 %v3047, %v3031
    %v3816 = vpack.c.b16 %v3048, %v3032
    %v3817 = vpack.c.b16 %v3049, %v3033
    %v3818 = vpack.c.b16 %v3050, %v3034
    %v3819 = vpack.c.b16 %v3051, %v3035
    %v3820 = vpack.c.b16 %v3052, %v3036
    %v3821 = vpack.c.b16 %v3053, %v3037
    %v3822 = vpack.c.b16 %v3054, %v3038
    %v3823 = vpack.c.b16 %v3055, %v3039
    %v3824 = vpack.c.b16 %v3056, %v3040
    %v3825 = vpack.c.b16 %v3057, %v3041
    %v3826 = vpack.c.b16 %v3058, %v3042
    %v3827 = vpack.c.b16 %v3059, %v3043
    %v3828 = vpack.c.b16 %v3060, %v3044
    %v3829 = vpack.c.b16 %v3061, %v3045
    %v3830 = vpack.c.b16 %v3078, %v3062
    %v3831 = vpack.c.b16 %v3079, %v3063
    %v3832 = vpack.c.b16 %v3080, %v3064
    %v3833 = vpack.c.b16 %v3081, %v3065
    %v3834 = vpack.c.b16 %v3082, %v3066
    %v3835 = vpack.c.b16 %v3083, %v3067
    %v3836 = vpack.c.b16 %v3084, %v3068
    %v3837 = vpack.c.b16 %v3085, %v3069
    %v3838 = vpack.c.b16 %v3086, %v3070
    %v3839 = vpack.c.b16 %v3087, %v3071
    %v3840 = vpack.c.b16 %v3088, %v3072
    %v3841 = vpack.c.b16 %v3089, %v3073
    %v3842 = vpack.c.b16 %v3090, %v3074
    %v3843 = vpack.c.b16 %v3091, %v3075
    %v3844 = vpack.c.b16 %v3092, %v3076
    %v3845 = vpack.c.b16 %v3093, %v3077
    %v3846 = vpack.c.b16 %v3110, %v3094
    %v3847 = vpack.c.b16 %v3111, %v3095
    %v3848 = vpack.c.b16 %v3112, %v3096
    %v3849 = vpack.c.b16 %v3113, %v3097
    %v3850 = vpack.c.b16 %v3114, %v3098
    %v3851 = vpack.c.b16 %v3115, %v3099
    %v3852 = vpack.c.b16 %v3116, %v3100
    %v3853 = vpack.c.b16 %v3117, %v3101
    %v3854 = vpack.c.b16 %v3118, %v3102
    %v3855 = vpack.c.b16 %v3119, %v3103
    %v3856 = vpack.c.b16 %v3120, %v3104
    %v3857 = vpack.c.b16 %v3121, %v3105
    %v3858 = vpack.c.b16 %v3122, %v3106
    %v3859 = vpack.c.b16 %v3123, %v3107
    %v3860 = vpack.c.b16 %v3124, %v3108
    %v3861 = vpack.c.b16 %v3125, %v3109
    %v3862 = vpack.c.b16 %v3142, %v3126
    %v3863 = vpack.c.b16 %v3143, %v3127
    %v3864 = vpack.c.b16 %v3144, %v3128
    %v3865 = vpack.c.b16 %v3145, %v3129
    %v3866 = vpack.c.b16 %v3146, %v3130
    %v3867 = vpack.c.b16 %v3147, %v3131
    %v3868 = vpack.c.b16 %v3148, %v3132
    %v3869 = vpack.c.b16 %v3149, %v3133
    %v3870 = vpack.c.b16 %v3150, %v3134
    %v3871 = vpack.c.b16 %v3151, %v3135
    %v3872 = vpack.c.b16 %v3152, %v3136
    %v3873 = vpack.c.b16 %v3153, %v3137
    %v3874 = vpack.c.b16 %v3154, %v3138
    %v3875 = vpack.c.b16 %v3155, %v3139
    %v3876 = vpack.c.b16 %v3156, %v3140
    %v3877 = vpack.c.b16 %v3157, %v3141
    %v3878 = vpack.c.b16 %v3174, %v3158
    %v3879 = vpack.c.b16 %v3175, %v3159
    %v3880 = vpack.c.b16 %v3176, %v3160
    %v3881 = vpack.c.b16 %v3177, %v3161
    %v3882 = vpack.c.b16 %v3178, %v3162
    %v3883 = vpack.c.b16 %v3179, %v3163
    %v3884 = vpack.c.b16 %v3180, %v3164
    %v3885 = vpack.c.b16 %v3181, %v3165
    %v3886 = vpack.c.b16 %v3182, %v3166
    %v3887 = vpack.c.b16 %v3183, %v3167
    %v3888 = vpack.c.b16 %v3184, %v3168
    %v3889 = vpack.c.b16 %v3185, %v3169
    %v3890 = vpack.c.b16 %v3186, %v3170
    %v3891 = vpack.c.b16 %v3187, %v3171
    %v3892 = vpack.c.b16 %v3188, %v3172
    %v3893 = vpack.c.b16 %v3189, %v3173
    %v3894 = vpack.c.b16 %v3206, %v3190
    %v3895 = vpack.c.b16 %v3207, %v3191
    %v3896 = vpack.c.b16 %v3208, %v3192
    %v3897 = vpack.c.b16 %v3209, %v3193
    %v3898 = vpack.c.b16 %v3210, %v3194
    %v3899 = vpack.c.b16 %v3211, %v3195
    %v3900 = vpack.c.b16 %v3212, %v3196
    %v3901 = vpack.c.b16 %v3213, %v3197
    %v3902 = vpack.c.b16 %v3214, %v3198
    %v3903 = vpack.c.b16 %v3215, %v3199
    %v3904 = vpack.c.b16 %v3216, %v3200
    %v3905 = vpack.c.b16 %v3217, %v3201
    %v3906 = vpack.c.b16 %v3218, %v3202
    %v3907 = vpack.c.b16 %v3219, %v3203
    %v3908 = vpack.c.b16 %v3220, %v3204
    %v3909 = vpack.c.b16 %v3221, %v3205
    %v3910 = vpack.c.b16 %v3238, %v3222
    %v3911 = vpack.c.b16 %v3239, %v3223
    %v3912 = vpack.c.b16 %v3240, %v3224
    %v3913 = vpack.c.b16 %v3241, %v3225
    %v3914 = vpack.c.b16 %v3242, %v3226
    %v3915 = vpack.c.b16 %v3243, %v3227
    %v3916 = vpack.c.b16 %v3244, %v3228
    %v3917 = vpack.c.b16 %v3245, %v3229
    %v3918 = vpack.c.b16 %v3246, %v3230
    %v3919 = vpack.c.b16 %v3247, %v3231
    %v3920 = vpack.c.b16 %v3248, %v3232
    %v3921 = vpack.c.b16 %v3249, %v3233
    %v3922 = vpack.c.b16 %v3250, %v3234
    %v3923 = vpack.c.b16 %v3251, %v3235
    %v3924 = vpack.c.b16 %v3252, %v3236
    %v3925 = vpack.c.b16 %v3253, %v3237
    %v3926 = vpack.c.b16 %v3270, %v3254
    %v3927 = vpack.c.b16 %v3271, %v3255
    %v3928 = vpack.c.b16 %v3272, %v3256
    %v3929 = vpack.c.b16 %v3273, %v3257
    %v3930 = vpack.c.b16 %v3274, %v3258
    %v3931 = vpack.c.b16 %v3275, %v3259
    %v3932 = vpack.c.b16 %v3276, %v3260
    %v3933 = vpack.c.b16 %v3277, %v3261
    %v3934 = vpack.c.b16 %v3278, %v3262
    %v3935 = vpack.c.b16 %v3279, %v3263
    %v3936 = vpack.c.b16 %v3280, %v3264
    %v3937 = vpack.c.b16 %v3281, %v3265
    %v3938 = vpack.c.b16 %v3282, %v3266
    %v3939 = vpack.c.b16 %v3283, %v3267
    %v3940 = vpack.c.b16 %v3284, %v3268
    %v3941 = vpack.c.b16 %v3285, %v3269
    %v3942 = vpack.c.b16 %v3302, %v3286
    %v3943 = vpack.c.b16 %v3303, %v3287
    %v3944 = vpack.c.b16 %v3304, %v3288
    %v3945 = vpack.c.b16 %v3305, %v3289
    %v3946 = vpack.c.b16 %v3306, %v3290
    %v3947 = vpack.c.b16 %v3307, %v3291
    %v3948 = vpack.c.b16 %v3308, %v3292
    %v3949 = vpack.c.b16 %v3309, %v3293
    %v3950 = vpack.c.b16 %v3310, %v3294
    %v3951 = vpack.c.b16 %v3311, %v3295
    %v3952 = vpack.c.b16 %v3312, %v3296
    %v3953 = vpack.c.b16 %v3313, %v3297
    %v3954 = vpack.c.b16 %v3314, %v3298
    %v3955 = vpack.c.b16 %v3315, %v3299
    %v3956 = vpack.c.b16 %v3316, %v3300
    %v3957 = vpack.c.b16 %v3317, %v3301
    %v3958 = vpack.c.b16 %v3334, %v3318
    %v3959 = vpack.c.b16 %v3335, %v3319
    %v3960 = vpack.c.b16 %v3336, %v3320
    %v3961 = vpack.c.b16 %v3337, %v3321
    %v3962 = vpack.c.b16 %v3338, %v3322
    %v3963 = vpack.c.b16 %v3339, %v3323
    %v3964 = vpack.c.b16 %v3340, %v3324
    %v3965 = vpack.c.b16 %v3341, %v3325
    %v3966 = vpack.c.b16 %v3342, %v3326
    %v3967 = vpack.c.b16 %v3343, %v3327
    %v3968 = vpack.c.b16 %v3344, %v3328
    %v3969 = vpack.c.b16 %v3345, %v3329
    %v3970 = vpack.c.b16 %v3346, %v3330
    %v3971 = vpack.c.b16 %v3347, %v3331
    %v3972 = vpack.c.b16 %v3348, %v3332
    %v3973 = vpack.c.b16 %v3349, %v3333
    %v3974 = vpack.c.b16 %v3366, %v3350
    %v3975 = vpack.c.b16 %v3367, %v3351
    %v3976 = vpack.c.b16 %v3368, %v3352
    %v3977 = vpack.c.b16 %v3369, %v3353
    %v3978 = vpack.c.b16 %v3370, %v3354
    %v3979 = vpack.c.b16 %v3371, %v3355
    %v3980 = vpack.c.b16 %v3372, %v3356
    %v3981 = vpack.c.b16 %v3373, %v3357
    %v3982 = vpack.c.b16 %v3374, %v3358
    %v3983 = vpack.c.b16 %v3375, %v3359
    %v3984 = vpack.c.b16 %v3376, %v3360
    %v3985 = vpack.c.b16 %v3377, %v3361
    %v3986 = vpack.c.b16 %v3378, %v3362
    %v3987 = vpack.c.b16 %v3379, %v3363
    %v3988 = vpack.c.b16 %v3380, %v3364
    %v3989 = vpack.c.b16 %v3381, %v3365
    %v3990 = vpack.c.b16 %v3398, %v3382
    %v3991 = vpack.c.b16 %v3399, %v3383
    %v3992 = vpack.c.b16 %v3400, %v3384
    %v3993 = vpack.c.b16 %v3401, %v3385
    %v3994 = vpack.c.b16 %v3402, %v3386
    %v3995 = vpack.c.b16 %v3403, %v3387
    %v3996 = vpack.c.b16 %v3404, %v3388
    %v3997 = vpack.c.b16 %v3405, %v3389
    %v3998 = vpack.c.b16 %v3406, %v3390
    %v3999 = vpack.c.b16 %v3407, %v3391
    %v4000 = vpack.c.b16 %v3408, %v3392
    %v4001 = vpack.c.b16 %v3409, %v3393
    %v4002 = vpack.c.b16 %v3410, %v3394
    %v4003 = vpack.c.b16 %v3411, %v3395
    %v4004 = vpack.c.b16 %v3412, %v3396
    %v4005 = vpack.c.b16 %v3413, %v3397
    %v4006 = vpack.c.b16 %v3430, %v3414
    %v4007 = vpack.c.b16 %v3431, %v3415
    %v4008 = vpack.c.b16 %v3432, %v3416
    %v4009 = vpack.c.b16 %v3433, %v3417
    %v4010 = vpack.c.b16 %v3434, %v3418
    %v4011 = vpack.c.b16 %v3435, %v3419
    %v4012 = vpack.c.b16 %v3436, %v3420
    %v4013 = vpack.c.b16 %v3437, %v3421
    %v4014 = vpack.c.b16 %v3438, %v3422
    %v4015 = vpack.c.b16 %v3439, %v3423
    %v4016 = vpack.c.b16 %v3440, %v3424
    %v4017 = vpack.c.b16 %v3441, %v3425
    %v4018 = vpack.c.b16 %v3442, %v3426
    %v4019 = vpack.c.b16 %v3443, %v3427
    %v4020 = vpack.c.b16 %v3444, %v3428
    %v4021 = vpack.c.b16 %v3445, %v3429
    %v4022 = vpack.c.b16 %v3462, %v3446
    %v4023 = vpack.c.b16 %v3463, %v3447
    %v4024 = vpack.c.b16 %v3464, %v3448
    %v4025 = vpack.c.b16 %v3465, %v3449
    %v4026 = vpack.c.b16 %v3466, %v3450
    %v4027 = vpack.c.b16 %v3467, %v3451
    %v4028 = vpack.c.b16 %v3468, %v3452
    %v4029 = vpack.c.b16 %v3469, %v3453
    %v4030 = vpack.c.b16 %v3470, %v3454
    %v4031 = vpack.c.b16 %v3471, %v3455
    %v4032 = vpack.c.b16 %v3472, %v3456
    %v4033 = vpack.c.b16 %v3473, %v3457
    %v4034 = vpack.c.b16 %v3474, %v3458
    %v4035 = vpack.c.b16 %v3475, %v3459
    %v4036 = vpack.c.b16 %v3476, %v3460
    %v4037 = vpack.c.b16 %v3477, %v3461
    %v4038 = vpack.c.b16 %v3494, %v3478
    %v4039 = vpack.c.b16 %v3495, %v3479
    %v4040 = vpack.c.b16 %v3496, %v3480
    %v4041 = vpack.c.b16 %v3497, %v3481
    %v4042 = vpack.c.b16 %v3498, %v3482
    %v4043 = vpack.c.b16 %v3499, %v3483
    %v4044 = vpack.c.b16 %v3500, %v3484
    %v4045 = vpack.c.b16 %v3501, %v3485
    %v4046 = vpack.c.b16 %v3502, %v3486
    %v4047 = vpack.c.b16 %v3503, %v3487
    %v4048 = vpack.c.b16 %v3504, %v3488
    %v4049 = vpack.c.b16 %v3505, %v3489
    %v4050 = vpack.c.b16 %v3506, %v3490
    %v4051 = vpack.c.b16 %v3507, %v3491
    %v4052 = vpack.c.b16 %v3508, %v3492
    %v4053 = vpack.c.b16 %v3509, %v3493
    %v4054 = vpack.c.b16 %v3526, %v3510
    %v4055 = vpack.c.b16 %v3527, %v3511
    %v4056 = vpack.c.b16 %v3528, %v3512
    %v4057 = vpack.c.b16 %v3529, %v3513
    %v4058 = vpack.c.b16 %v3530, %v3514
    %v4059 = vpack.c.b16 %v3531, %v3515
    %v4060 = vpack.c.b16 %v3532, %v3516
    %v4061 = vpack.c.b16 %v3533, %v3517
    %v4062 = vpack.c.b16 %v3534, %v3518
    %v4063 = vpack.c.b16 %v3535, %v3519
    %v4064 = vpack.c.b16 %v3536, %v3520
    %v4065 = vpack.c.b16 %v3537, %v3521
    %v4066 = vpack.c.b16 %v3538, %v3522
    %v4067 = vpack.c.b16 %v3539, %v3523
    %v4068 = vpack.c.b16 %v3540, %v3524
    %v4069 = vpack.c.b16 %v3541, %v3525
    %v4070 = vpack.c.b16 %v3558, %v3542
    %v4071 = vpack.c.b16 %v3559, %v3543
    %v4072 = vpack.c.b16 %v3560, %v3544
    %v4073 = vpack.c.b16 %v3561, %v3545
    %v4074 = vpack.c.b16 %v3562, %v3546
    %v4075 = vpack.c.b16 %v3563, %v3547
    %v4076 = vpack.c.b16 %v3564, %v3548
    %v4077 = vpack.c.b16 %v3565, %v3549
    %v4078 = vpack.c.b16 %v3566, %v3550
    %v4079 = vpack.c.b16 %v3567, %v3551
    %v4080 = vpack.c.b16 %v3568, %v3552
    %v4081 = vpack.c.b16 %v3569, %v3553
    %v4082 = vpack.c.b16 %v3570, %v3554
    %v4083 = vpack.c.b16 %v3571, %v3555
    %v4084 = vpack.c.b16 %v3572, %v3556
    %v4085 = vpack.c.b16 %v3573, %v3557
    %4598 = vmatprep.subr.bf16.mxu0 %v3687
    %4599 = vmatpush1.bf16.msra.mxu0 %v3686
    %4600 = vmatprep.subr.bf16.mxu0 %v3671
    %4601 = vmatpush1.bf16.msra.mxu0 %v3670
    %4602 = vmatprep.subr.bf16.mxu0 %v3655
    %4603 = vmatpush1.bf16.msra.mxu0 %v3654
    %4604 = vmatprep.subr.bf16.mxu0 %v3639
    %4605 = vmatpush1.bf16.msra.mxu0 %v3638
    %4606 = vmatprep.subr.bf16.mxu0 %v3623
    %4607 = vmatpush1.bf16.msra.mxu0 %v3622
    %4608 = vmatprep.subr.bf16.mxu0 %v3607
    %4609 = vmatpush1.bf16.msra.mxu0 %v3606
    %4610 = vmatprep.subr.bf16.mxu0 %v3591
    %4611 = vmatpush1.bf16.msra.mxu0 %v3590
    %4612 = vmatprep.subr.bf16.mxu0 %v3575
    %4613 = vmatpush1.bf16.msra.mxu0 %v3574
    %4614 = vmatprep.subr.bf16.mxu0 %v3815
    %4615 = vmatpush2.bf16.msra.mxu0 %v3814
    %4616 = vmatprep.subr.bf16.mxu0 %v3799
    %4617 = vmatpush2.bf16.msra.mxu0 %v3798
    %4618 = vmatprep.subr.bf16.mxu0 %v3783
    %4619 = vmatpush2.bf16.msra.mxu0 %v3782
    %4620 = vmatprep.subr.bf16.mxu0 %v3767
    %4621 = vmatpush2.bf16.msra.mxu0 %v3766
    %4622 = vmatprep.subr.bf16.mxu0 %v3751
    %4623 = vmatpush2.bf16.msra.mxu0 %v3750
    %4624 = vmatprep.subr.bf16.mxu0 %v3735
    %4625 = vmatpush2.bf16.msra.mxu0 %v3734
    %4626 = vmatprep.subr.bf16.mxu0 %v3719
    %4627 = vmatpush2.bf16.msra.mxu0 %v3718
    %4628 = vmatprep.subr.bf16.mxu0 %v3703
    %4629 = vmatpush2.bf16.msra.mxu0 %v3702
    %4630 = vmatprep.mubr.bf16.mxu0 %v1439
    %4631 = vmatmul.mubr.bf16.gmra.mxu0 %v1438
    %v4632 = vpop.f32.mrf.mxu0
    %v4633 = vadd.f32 %v1961, %v4632
    %v4634 = vpop.f32.mrf.mxu0
    %v4635 = vadd.f32 %v1965, %v4634
    %v4636 = vpop.f32.mrf.mxu0
    %v4637 = vadd.f32 %v1961, %v4636
    %v4638 = vpop.f32.mrf.mxu0
    %v4639 = vadd.f32 %v1965, %v4638
    %4640 = vdwg.mxu0
    %4641 = vmatprep.subr.bf16.mxu0 %v3943
    %4642 = vmatpush1.bf16.msra.mxu0 %v3942
    %4643 = vmatprep.subr.bf16.mxu0 %v3927
    %4644 = vmatpush1.bf16.msra.mxu0 %v3926
    %4645 = vmatprep.subr.bf16.mxu0 %v3911
    %4646 = vmatpush1.bf16.msra.mxu0 %v3910
    %4647 = vmatprep.subr.bf16.mxu0 %v3895
    %4648 = vmatpush1.bf16.msra.mxu0 %v3894
    %4649 = vmatprep.subr.bf16.mxu0 %v3879
    %4650 = vmatpush1.bf16.msra.mxu0 %v3878
    %4651 = vmatprep.subr.bf16.mxu0 %v3863
    %4652 = vmatpush1.bf16.msra.mxu0 %v3862
    %4653 = vmatprep.subr.bf16.mxu0 %v3847
    %4654 = vmatpush1.bf16.msra.mxu0 %v3846
    %4655 = vmatprep.subr.bf16.mxu0 %v3831
    %4656 = vmatpush1.bf16.msra.mxu0 %v3830
    %4657 = vmatprep.subr.bf16.mxu0 %v4071
    %4658 = vmatpush2.bf16.msra.mxu0 %v4070
    %4659 = vmatprep.subr.bf16.mxu0 %v4055
    %4660 = vmatpush2.bf16.msra.mxu0 %v4054
    %4661 = vmatprep.subr.bf16.mxu0 %v4039
    %4662 = vmatpush2.bf16.msra.mxu0 %v4038
    %4663 = vmatprep.subr.bf16.mxu0 %v4023
    %4664 = vmatpush2.bf16.msra.mxu0 %v4022
    %4665 = vmatprep.subr.bf16.mxu0 %v4007
    %4666 = vmatpush2.bf16.msra.mxu0 %v4006
    %4667 = vmatprep.subr.bf16.mxu0 %v3991
    %4668 = vmatpush2.bf16.msra.mxu0 %v3990
    %4669 = vmatprep.subr.bf16.mxu0 %v3975
    %4670 = vmatpush2.bf16.msra.mxu0 %v3974
    %4671 = vmatprep.subr.bf16.mxu0 %v3959
    %4672 = vmatpush2.bf16.msra.mxu0 %v3958
    %4673 = vmatprep.mubr.bf16.mxu0 %v1441
    %4674 = vmatmul.mubr.bf16.gmra.mxu0 %v1440
    %v4675 = vpop.f32.mrf.mxu0
    %v4676 = vadd.f32 %v4633, %v4675
    %v4677 = vpop.f32.mrf.mxu0
    %v4678 = vadd.f32 %v4635, %v4677
    %v4679 = vpop.f32.mrf.mxu0
    %v4680 = vadd.f32 %v4637, %v4679
    %v4681 = vpop.f32.mrf.mxu0
    %v4682 = vadd.f32 %v4639, %v4681
    %4683 = vdwg.mxu0
    %4684 = vmatprep.subr.bf16.mxu0 %v3689
    %4685 = vmatpush1.bf16.msra.mxu0 %v3688
    %4686 = vmatprep.subr.bf16.mxu0 %v3673
    %4687 = vmatpush1.bf16.msra.mxu0 %v3672
    %4688 = vmatprep.subr.bf16.mxu0 %v3657
    %4689 = vmatpush1.bf16.msra.mxu0 %v3656
    %4690 = vmatprep.subr.bf16.mxu0 %v3641
    %4691 = vmatpush1.bf16.msra.mxu0 %v3640
    %4692 = vmatprep.subr.bf16.mxu0 %v3625
    %4693 = vmatpush1.bf16.msra.mxu0 %v3624
    %4694 = vmatprep.subr.bf16.mxu0 %v3609
    %4695 = vmatpush1.bf16.msra.mxu0 %v3608
    %4696 = vmatprep.subr.bf16.mxu0 %v3593
    %4697 = vmatpush1.bf16.msra.mxu0 %v3592
    %4698 = vmatprep.subr.bf16.mxu0 %v3577
    %4699 = vmatpush1.bf16.msra.mxu0 %v3576
    %4700 = vmatprep.subr.bf16.mxu0 %v3817
    %4701 = vmatpush2.bf16.msra.mxu0 %v3816
    %4702 = vmatprep.subr.bf16.mxu0 %v3801
    %4703 = vmatpush2.bf16.msra.mxu0 %v3800
    %4704 = vmatprep.subr.bf16.mxu0 %v3785
    %4705 = vmatpush2.bf16.msra.mxu0 %v3784
    %4706 = vmatprep.subr.bf16.mxu0 %v3769
    %4707 = vmatpush2.bf16.msra.mxu0 %v3768
    %4708 = vmatprep.subr.bf16.mxu0 %v3753
    %4709 = vmatpush2.bf16.msra.mxu0 %v3752
    %4710 = vmatprep.subr.bf16.mxu0 %v3737
    %4711 = vmatpush2.bf16.msra.mxu0 %v3736
    %4712 = vmatprep.subr.bf16.mxu0 %v3721
    %4713 = vmatpush2.bf16.msra.mxu0 %v3720
    %4714 = vmatprep.subr.bf16.mxu0 %v3705
    %4715 = vmatpush2.bf16.msra.mxu0 %v3704
    %4716 = vmatprep.mubr.bf16.mxu0 %v1439
    %4717 = vmatmul.mubr.bf16.gmra.mxu0 %v1438
    %v4718 = vpop.f32.mrf.mxu0
    %v4719 = vadd.f32 %v1969, %v4718
    %v4720 = vpop.f32.mrf.mxu0
    %v4721 = vadd.f32 %v1973, %v4720
    %v4722 = vpop.f32.mrf.mxu0
    %v4723 = vadd.f32 %v1969, %v4722
    %v4724 = vpop.f32.mrf.mxu0
    %v4725 = vadd.f32 %v1973, %v4724
    %4726 = vdwg.mxu0
    %4727 = vmatprep.subr.bf16.mxu0 %v3945
    %4728 = vmatpush1.bf16.msra.mxu0 %v3944
    %4729 = vmatprep.subr.bf16.mxu0 %v3929
    %4730 = vmatpush1.bf16.msra.mxu0 %v3928
    %4731 = vmatprep.subr.bf16.mxu0 %v3913
    %4732 = vmatpush1.bf16.msra.mxu0 %v3912
    %4733 = vmatprep.subr.bf16.mxu0 %v3897
    %4734 = vmatpush1.bf16.msra.mxu0 %v3896
    %4735 = vmatprep.subr.bf16.mxu0 %v3881
    %4736 = vmatpush1.bf16.msra.mxu0 %v3880
    %4737 = vmatprep.subr.bf16.mxu0 %v3865
    %4738 = vmatpush1.bf16.msra.mxu0 %v3864
    %4739 = vmatprep.subr.bf16.mxu0 %v3849
    %4740 = vmatpush1.bf16.msra.mxu0 %v3848
    %4741 = vmatprep.subr.bf16.mxu0 %v3833
    %4742 = vmatpush1.bf16.msra.mxu0 %v3832
    %4743 = vmatprep.subr.bf16.mxu0 %v4073
    %4744 = vmatpush2.bf16.msra.mxu0 %v4072
    %4745 = vmatprep.subr.bf16.mxu0 %v4057
    %4746 = vmatpush2.bf16.msra.mxu0 %v4056
    %4747 = vmatprep.subr.bf16.mxu0 %v4041
    %4748 = vmatpush2.bf16.msra.mxu0 %v4040
    %4749 = vmatprep.subr.bf16.mxu0 %v4025
    %4750 = vmatpush2.bf16.msra.mxu0 %v4024
    %4751 = vmatprep.subr.bf16.mxu0 %v4009
    %4752 = vmatpush2.bf16.msra.mxu0 %v4008
    %4753 = vmatprep.subr.bf16.mxu0 %v3993
    %4754 = vmatpush2.bf16.msra.mxu0 %v3992
    %4755 = vmatprep.subr.bf16.mxu0 %v3977
    %4756 = vmatpush2.bf16.msra.mxu0 %v3976
    %4757 = vmatprep.subr.bf16.mxu0 %v3961
    %4758 = vmatpush2.bf16.msra.mxu0 %v3960
    %4759 = vmatprep.mubr.bf16.mxu0 %v1441
    %4760 = vmatmul.mubr.bf16.gmra.mxu0 %v1440
    %v4761 = vpop.f32.mrf.mxu0
    %v4762 = vadd.f32 %v4719, %v4761
    %v4763 = vpop.f32.mrf.mxu0
    %v4764 = vadd.f32 %v4721, %v4763
    %v4765 = vpop.f32.mrf.mxu0
    %v4766 = vadd.f32 %v4723, %v4765
    %v4767 = vpop.f32.mrf.mxu0
    %v4768 = vadd.f32 %v4725, %v4767
    %4769 = vdwg.mxu0
    %4770 = vmatprep.subr.bf16.mxu0 %v3691
    %4771 = vmatpush1.bf16.msra.mxu0 %v3690
    %4772 = vmatprep.subr.bf16.mxu0 %v3675
    %4773 = vmatpush1.bf16.msra.mxu0 %v3674
    %4774 = vmatprep.subr.bf16.mxu0 %v3659
    %4775 = vmatpush1.bf16.msra.mxu0 %v3658
    %4776 = vmatprep.subr.bf16.mxu0 %v3643
    %4777 = vmatpush1.bf16.msra.mxu0 %v3642
    %4778 = vmatprep.subr.bf16.mxu0 %v3627
    %4779 = vmatpush1.bf16.msra.mxu0 %v3626
    %4780 = vmatprep.subr.bf16.mxu0 %v3611
    %4781 = vmatpush1.bf16.msra.mxu0 %v3610
    %4782 = vmatprep.subr.bf16.mxu0 %v3595
    %4783 = vmatpush1.bf16.msra.mxu0 %v3594
    %4784 = vmatprep.subr.bf16.mxu0 %v3579
    %4785 = vmatpush1.bf16.msra.mxu0 %v3578
    %4786 = vmatprep.subr.bf16.mxu0 %v3819
    %4787 = vmatpush2.bf16.msra.mxu0 %v3818
    %4788 = vmatprep.subr.bf16.mxu0 %v3803
    %4789 = vmatpush2.bf16.msra.mxu0 %v3802
    %4790 = vmatprep.subr.bf16.mxu0 %v3787
    %4791 = vmatpush2.bf16.msra.mxu0 %v3786
    %4792 = vmatprep.subr.bf16.mxu0 %v3771
    %4793 = vmatpush2.bf16.msra.mxu0 %v3770
    %4794 = vmatprep.subr.bf16.mxu0 %v3755
    %4795 = vmatpush2.bf16.msra.mxu0 %v3754
    %4796 = vmatprep.subr.bf16.mxu0 %v3739
    %4797 = vmatpush2.bf16.msra.mxu0 %v3738
    %4798 = vmatprep.subr.bf16.mxu0 %v3723
    %4799 = vmatpush2.bf16.msra.mxu0 %v3722
    %4800 = vmatprep.subr.bf16.mxu0 %v3707
    %4801 = vmatpush2.bf16.msra.mxu0 %v3706
    %4802 = vmatprep.mubr.bf16.mxu0 %v1439
    %4803 = vmatmul.mubr.bf16.gmra.mxu0 %v1438
    %v4804 = vpop.f32.mrf.mxu0
    %v4805 = vadd.f32 %v1977, %v4804
    %v4806 = vpop.f32.mrf.mxu0
    %v4807 = vadd.f32 %v1981, %v4806
    %v4808 = vpop.f32.mrf.mxu0
    %v4809 = vadd.f32 %v1977, %v4808
    %v4810 = vpop.f32.mrf.mxu0
    %v4811 = vadd.f32 %v1981, %v4810
    %4812 = vdwg.mxu0
    %4813 = vmatprep.subr.bf16.mxu0 %v3947
    %4814 = vmatpush1.bf16.msra.mxu0 %v3946
    %4815 = vmatprep.subr.bf16.mxu0 %v3931
    %4816 = vmatpush1.bf16.msra.mxu0 %v3930
    %4817 = vmatprep.subr.bf16.mxu0 %v3915
    %4818 = vmatpush1.bf16.msra.mxu0 %v3914
    %4819 = vmatprep.subr.bf16.mxu0 %v3899
    %4820 = vmatpush1.bf16.msra.mxu0 %v3898
    %4821 = vmatprep.subr.bf16.mxu0 %v3883
    %4822 = vmatpush1.bf16.msra.mxu0 %v3882
    %4823 = vmatprep.subr.bf16.mxu0 %v3867
    %4824 = vmatpush1.bf16.msra.mxu0 %v3866
    %4825 = vmatprep.subr.bf16.mxu0 %v3851
    %4826 = vmatpush1.bf16.msra.mxu0 %v3850
    %4827 = vmatprep.subr.bf16.mxu0 %v3835
    %4828 = vmatpush1.bf16.msra.mxu0 %v3834
    %4829 = vmatprep.subr.bf16.mxu0 %v4075
    %4830 = vmatpush2.bf16.msra.mxu0 %v4074
    %4831 = vmatprep.subr.bf16.mxu0 %v4059
    %4832 = vmatpush2.bf16.msra.mxu0 %v4058
    %4833 = vmatprep.subr.bf16.mxu0 %v4043
    %4834 = vmatpush2.bf16.msra.mxu0 %v4042
    %4835 = vmatprep.subr.bf16.mxu0 %v4027
    %4836 = vmatpush2.bf16.msra.mxu0 %v4026
    %4837 = vmatprep.subr.bf16.mxu0 %v4011
    %4838 = vmatpush2.bf16.msra.mxu0 %v4010
    %4839 = vmatprep.subr.bf16.mxu0 %v3995
    %4840 = vmatpush2.bf16.msra.mxu0 %v3994
    %4841 = vmatprep.subr.bf16.mxu0 %v3979
    %4842 = vmatpush2.bf16.msra.mxu0 %v3978
    %4843 = vmatprep.subr.bf16.mxu0 %v3963
    %4844 = vmatpush2.bf16.msra.mxu0 %v3962
    %4845 = vmatprep.mubr.bf16.mxu0 %v1441
    %4846 = vmatmul.mubr.bf16.gmra.mxu0 %v1440
    %v4847 = vpop.f32.mrf.mxu0
    %v4848 = vadd.f32 %v4805, %v4847
    %v4849 = vpop.f32.mrf.mxu0
    %v4850 = vadd.f32 %v4807, %v4849
    %v4851 = vpop.f32.mrf.mxu0
    %v4852 = vadd.f32 %v4809, %v4851
    %v4853 = vpop.f32.mrf.mxu0
    %v4854 = vadd.f32 %v4811, %v4853
    %4855 = vdwg.mxu0
    %4856 = vmatprep.subr.bf16.mxu0 %v3693
    %4857 = vmatpush1.bf16.msra.mxu0 %v3692
    %4858 = vmatprep.subr.bf16.mxu0 %v3677
    %4859 = vmatpush1.bf16.msra.mxu0 %v3676
    %4860 = vmatprep.subr.bf16.mxu0 %v3661
    %4861 = vmatpush1.bf16.msra.mxu0 %v3660
    %4862 = vmatprep.subr.bf16.mxu0 %v3645
    %4863 = vmatpush1.bf16.msra.mxu0 %v3644
    %4864 = vmatprep.subr.bf16.mxu0 %v3629
    %4865 = vmatpush1.bf16.msra.mxu0 %v3628
    %4866 = vmatprep.subr.bf16.mxu0 %v3613
    %4867 = vmatpush1.bf16.msra.mxu0 %v3612
    %4868 = vmatprep.subr.bf16.mxu0 %v3597
    %4869 = vmatpush1.bf16.msra.mxu0 %v3596
    %4870 = vmatprep.subr.bf16.mxu0 %v3581
    %4871 = vmatpush1.bf16.msra.mxu0 %v3580
    %4872 = vmatprep.subr.bf16.mxu0 %v3821
    %4873 = vmatpush2.bf16.msra.mxu0 %v3820
    %4874 = vmatprep.subr.bf16.mxu0 %v3805
    %4875 = vmatpush2.bf16.msra.mxu0 %v3804
    %4876 = vmatprep.subr.bf16.mxu0 %v3789
    %4877 = vmatpush2.bf16.msra.mxu0 %v3788
    %4878 = vmatprep.subr.bf16.mxu0 %v3773
    %4879 = vmatpush2.bf16.msra.mxu0 %v3772
    %4880 = vmatprep.subr.bf16.mxu0 %v3757
    %4881 = vmatpush2.bf16.msra.mxu0 %v3756
    %4882 = vmatprep.subr.bf16.mxu0 %v3741
    %4883 = vmatpush2.bf16.msra.mxu0 %v3740
    %4884 = vmatprep.subr.bf16.mxu0 %v3725
    %4885 = vmatpush2.bf16.msra.mxu0 %v3724
    %4886 = vmatprep.subr.bf16.mxu0 %v3709
    %4887 = vmatpush2.bf16.msra.mxu0 %v3708
    %4888 = vmatprep.mubr.bf16.mxu0 %v1439
    %4889 = vmatmul.mubr.bf16.gmra.mxu0 %v1438
    %v4890 = vpop.f32.mrf.mxu0
    %v4891 = vadd.f32 %v1985, %v4890
    %v4892 = vpop.f32.mrf.mxu0
    %v4893 = vadd.f32 %v1989, %v4892
    %v4894 = vpop.f32.mrf.mxu0
    %v4895 = vadd.f32 %v1985, %v4894
    %v4896 = vpop.f32.mrf.mxu0
    %v4897 = vadd.f32 %v1989, %v4896
    %4898 = vdwg.mxu0
    %4899 = vmatprep.subr.bf16.mxu0 %v3949
    %4900 = vmatpush1.bf16.msra.mxu0 %v3948
    %4901 = vmatprep.subr.bf16.mxu0 %v3933
    %4902 = vmatpush1.bf16.msra.mxu0 %v3932
    %4903 = vmatprep.subr.bf16.mxu0 %v3917
    %4904 = vmatpush1.bf16.msra.mxu0 %v3916
    %4905 = vmatprep.subr.bf16.mxu0 %v3901
    %4906 = vmatpush1.bf16.msra.mxu0 %v3900
    %4907 = vmatprep.subr.bf16.mxu0 %v3885
    %4908 = vmatpush1.bf16.msra.mxu0 %v3884
    %4909 = vmatprep.subr.bf16.mxu0 %v3869
    %4910 = vmatpush1.bf16.msra.mxu0 %v3868
    %4911 = vmatprep.subr.bf16.mxu0 %v3853
    %4912 = vmatpush1.bf16.msra.mxu0 %v3852
    %4913 = vmatprep.subr.bf16.mxu0 %v3837
    %4914 = vmatpush1.bf16.msra.mxu0 %v3836
    %4915 = vmatprep.subr.bf16.mxu0 %v4077
    %4916 = vmatpush2.bf16.msra.mxu0 %v4076
    %4917 = vmatprep.subr.bf16.mxu0 %v4061
    %4918 = vmatpush2.bf16.msra.mxu0 %v4060
    %4919 = vmatprep.subr.bf16.mxu0 %v4045
    %4920 = vmatpush2.bf16.msra.mxu0 %v4044
    %4921 = vmatprep.subr.bf16.mxu0 %v4029
    %4922 = vmatpush2.bf16.msra.mxu0 %v4028
    %4923 = vmatprep.subr.bf16.mxu0 %v4013
    %4924 = vmatpush2.bf16.msra.mxu0 %v4012
    %4925 = vmatprep.subr.bf16.mxu0 %v3997
    %4926 = vmatpush2.bf16.msra.mxu0 %v3996
    %4927 = vmatprep.subr.bf16.mxu0 %v3981
    %4928 = vmatpush2.bf16.msra.mxu0 %v3980
    %4929 = vmatprep.subr.bf16.mxu0 %v3965
    %4930 = vmatpush2.bf16.msra.mxu0 %v3964
    %4931 = vmatprep.mubr.bf16.mxu0 %v1441
    %4932 = vmatmul.mubr.bf16.gmra.mxu0 %v1440
    %v4933 = vpop.f32.mrf.mxu0
    %v4934 = vadd.f32 %v4891, %v4933
    %v4935 = vpop.f32.mrf.mxu0
    %v4936 = vadd.f32 %v4893, %v4935
    %v4937 = vpop.f32.mrf.mxu0
    %v4938 = vadd.f32 %v4895, %v4937
    %v4939 = vpop.f32.mrf.mxu0
    %v4940 = vadd.f32 %v4897, %v4939
    %4941 = vdwg.mxu0
    %4942 = vmatprep.subr.bf16.mxu0 %v3695
    %4943 = vmatpush1.bf16.msra.mxu0 %v3694
    %4944 = vmatprep.subr.bf16.mxu0 %v3679
    %4945 = vmatpush1.bf16.msra.mxu0 %v3678
    %4946 = vmatprep.subr.bf16.mxu0 %v3663
    %4947 = vmatpush1.bf16.msra.mxu0 %v3662
    %4948 = vmatprep.subr.bf16.mxu0 %v3647
    %4949 = vmatpush1.bf16.msra.mxu0 %v3646
    %4950 = vmatprep.subr.bf16.mxu0 %v3631
    %4951 = vmatpush1.bf16.msra.mxu0 %v3630
    %4952 = vmatprep.subr.bf16.mxu0 %v3615
    %4953 = vmatpush1.bf16.msra.mxu0 %v3614
    %4954 = vmatprep.subr.bf16.mxu0 %v3599
    %4955 = vmatpush1.bf16.msra.mxu0 %v3598
    %4956 = vmatprep.subr.bf16.mxu0 %v3583
    %4957 = vmatpush1.bf16.msra.mxu0 %v3582
    %4958 = vmatprep.subr.bf16.mxu0 %v3823
    %4959 = vmatpush2.bf16.msra.mxu0 %v3822
    %4960 = vmatprep.subr.bf16.mxu0 %v3807
    %4961 = vmatpush2.bf16.msra.mxu0 %v3806
    %4962 = vmatprep.subr.bf16.mxu0 %v3791
    %4963 = vmatpush2.bf16.msra.mxu0 %v3790
    %4964 = vmatprep.subr.bf16.mxu0 %v3775
    %4965 = vmatpush2.bf16.msra.mxu0 %v3774
    %4966 = vmatprep.subr.bf16.mxu0 %v3759
    %4967 = vmatpush2.bf16.msra.mxu0 %v3758
    %4968 = vmatprep.subr.bf16.mxu0 %v3743
    %4969 = vmatpush2.bf16.msra.mxu0 %v3742
    %4970 = vmatprep.subr.bf16.mxu0 %v3727
    %4971 = vmatpush2.bf16.msra.mxu0 %v3726
    %4972 = vmatprep.subr.bf16.mxu0 %v3711
    %4973 = vmatpush2.bf16.msra.mxu0 %v3710
    %4974 = vmatprep.mubr.bf16.mxu0 %v1439
    %4975 = vmatmul.mubr.bf16.gmra.mxu0 %v1438
    %v4976 = vpop.f32.mrf.mxu0
    %v4977 = vadd.f32 %v1993, %v4976
    %v4978 = vpop.f32.mrf.mxu0
    %v4979 = vadd.f32 %v1997, %v4978
    %v4980 = vpop.f32.mrf.mxu0
    %v4981 = vadd.f32 %v1993, %v4980
    %v4982 = vpop.f32.mrf.mxu0
    %v4983 = vadd.f32 %v1997, %v4982
    %4984 = vdwg.mxu0
    %4985 = vmatprep.subr.bf16.mxu0 %v3951
    %4986 = vmatpush1.bf16.msra.mxu0 %v3950
    %4987 = vmatprep.subr.bf16.mxu0 %v3935
    %4988 = vmatpush1.bf16.msra.mxu0 %v3934
    %4989 = vmatprep.subr.bf16.mxu0 %v3919
    %4990 = vmatpush1.bf16.msra.mxu0 %v3918
    %4991 = vmatprep.subr.bf16.mxu0 %v3903
    %4992 = vmatpush1.bf16.msra.mxu0 %v3902
    %4993 = vmatprep.subr.bf16.mxu0 %v3887
    %4994 = vmatpush1.bf16.msra.mxu0 %v3886
    %4995 = vmatprep.subr.bf16.mxu0 %v3871
    %4996 = vmatpush1.bf16.msra.mxu0 %v3870
    %4997 = vmatprep.subr.bf16.mxu0 %v3855
    %4998 = vmatpush1.bf16.msra.mxu0 %v3854
    %4999 = vmatprep.subr.bf16.mxu0 %v3839
    %5000 = vmatpush1.bf16.msra.mxu0 %v3838
    %5001 = vmatprep.subr.bf16.mxu0 %v4079
    %5002 = vmatpush2.bf16.msra.mxu0 %v4078
    %5003 = vmatprep.subr.bf16.mxu0 %v4063
    %5004 = vmatpush2.bf16.msra.mxu0 %v4062
    %5005 = vmatprep.subr.bf16.mxu0 %v4047
    %5006 = vmatpush2.bf16.msra.mxu0 %v4046
    %5007 = vmatprep.subr.bf16.mxu0 %v4031
    %5008 = vmatpush2.bf16.msra.mxu0 %v4030
    %5009 = vmatprep.subr.bf16.mxu0 %v4015
    %5010 = vmatpush2.bf16.msra.mxu0 %v4014
    %5011 = vmatprep.subr.bf16.mxu0 %v3999
    %5012 = vmatpush2.bf16.msra.mxu0 %v3998
    %5013 = vmatprep.subr.bf16.mxu0 %v3983
    %5014 = vmatpush2.bf16.msra.mxu0 %v3982
    %5015 = vmatprep.subr.bf16.mxu0 %v3967
    %5016 = vmatpush2.bf16.msra.mxu0 %v3966
    %5017 = vmatprep.mubr.bf16.mxu0 %v1441
    %5018 = vmatmul.mubr.bf16.gmra.mxu0 %v1440
    %v5019 = vpop.f32.mrf.mxu0
    %v5020 = vadd.f32 %v4977, %v5019
    %v5021 = vpop.f32.mrf.mxu0
    %v5022 = vadd.f32 %v4979, %v5021
    %v5023 = vpop.f32.mrf.mxu0
    %v5024 = vadd.f32 %v4981, %v5023
    %v5025 = vpop.f32.mrf.mxu0
    %v5026 = vadd.f32 %v4983, %v5025
    %5027 = vdwg.mxu0
    %5028 = vmatprep.subr.bf16.mxu0 %v3697
    %5029 = vmatpush1.bf16.msra.mxu0 %v3696
    %5030 = vmatprep.subr.bf16.mxu0 %v3681
    %5031 = vmatpush1.bf16.msra.mxu0 %v3680
    %5032 = vmatprep.subr.bf16.mxu0 %v3665
    %5033 = vmatpush1.bf16.msra.mxu0 %v3664
    %5034 = vmatprep.subr.bf16.mxu0 %v3649
    %5035 = vmatpush1.bf16.msra.mxu0 %v3648
    %5036 = vmatprep.subr.bf16.mxu0 %v3633
    %5037 = vmatpush1.bf16.msra.mxu0 %v3632
    %5038 = vmatprep.subr.bf16.mxu0 %v3617
    %5039 = vmatpush1.bf16.msra.mxu0 %v3616
    %5040 = vmatprep.subr.bf16.mxu0 %v3601
    %5041 = vmatpush1.bf16.msra.mxu0 %v3600
    %5042 = vmatprep.subr.bf16.mxu0 %v3585
    %5043 = vmatpush1.bf16.msra.mxu0 %v3584
    %5044 = vmatprep.subr.bf16.mxu0 %v3825
    %5045 = vmatpush2.bf16.msra.mxu0 %v3824
    %5046 = vmatprep.subr.bf16.mxu0 %v3809
    %5047 = vmatpush2.bf16.msra.mxu0 %v3808
    %5048 = vmatprep.subr.bf16.mxu0 %v3793
    %5049 = vmatpush2.bf16.msra.mxu0 %v3792
    %5050 = vmatprep.subr.bf16.mxu0 %v3777
    %5051 = vmatpush2.bf16.msra.mxu0 %v3776
    %5052 = vmatprep.subr.bf16.mxu0 %v3761
    %5053 = vmatpush2.bf16.msra.mxu0 %v3760
    %5054 = vmatprep.subr.bf16.mxu0 %v3745
    %5055 = vmatpush2.bf16.msra.mxu0 %v3744
    %5056 = vmatprep.subr.bf16.mxu0 %v3729
    %5057 = vmatpush2.bf16.msra.mxu0 %v3728
    %5058 = vmatprep.subr.bf16.mxu0 %v3713
    %5059 = vmatpush2.bf16.msra.mxu0 %v3712
    %5060 = vmatprep.mubr.bf16.mxu0 %v1439
    %5061 = vmatmul.mubr.bf16.gmra.mxu0 %v1438
    %v5062 = vpop.f32.mrf.mxu0
    %v5063 = vadd.f32 %v2001, %v5062
    %v5064 = vpop.f32.mrf.mxu0
    %v5065 = vadd.f32 %v2005, %v5064
    %v5066 = vpop.f32.mrf.mxu0
    %v5067 = vadd.f32 %v2001, %v5066
    %v5068 = vpop.f32.mrf.mxu0
    %v5069 = vadd.f32 %v2005, %v5068
    %5070 = vdwg.mxu0
    %5071 = vmatprep.subr.bf16.mxu0 %v3953
    %5072 = vmatpush1.bf16.msra.mxu0 %v3952
    %5073 = vmatprep.subr.bf16.mxu0 %v3937
    %5074 = vmatpush1.bf16.msra.mxu0 %v3936
    %5075 = vmatprep.subr.bf16.mxu0 %v3921
    %5076 = vmatpush1.bf16.msra.mxu0 %v3920
    %5077 = vmatprep.subr.bf16.mxu0 %v3905
    %5078 = vmatpush1.bf16.msra.mxu0 %v3904
    %5079 = vmatprep.subr.bf16.mxu0 %v3889
    %5080 = vmatpush1.bf16.msra.mxu0 %v3888
    %5081 = vmatprep.subr.bf16.mxu0 %v3873
    %5082 = vmatpush1.bf16.msra.mxu0 %v3872
    %5083 = vmatprep.subr.bf16.mxu0 %v3857
    %5084 = vmatpush1.bf16.msra.mxu0 %v3856
    %5085 = vmatprep.subr.bf16.mxu0 %v3841
    %5086 = vmatpush1.bf16.msra.mxu0 %v3840
    %5087 = vmatprep.subr.bf16.mxu0 %v4081
    %5088 = vmatpush2.bf16.msra.mxu0 %v4080
    %5089 = vmatprep.subr.bf16.mxu0 %v4065
    %5090 = vmatpush2.bf16.msra.mxu0 %v4064
    %5091 = vmatprep.subr.bf16.mxu0 %v4049
    %5092 = vmatpush2.bf16.msra.mxu0 %v4048
    %5093 = vmatprep.subr.bf16.mxu0 %v4033
    %5094 = vmatpush2.bf16.msra.mxu0 %v4032
    %5095 = vmatprep.subr.bf16.mxu0 %v4017
    %5096 = vmatpush2.bf16.msra.mxu0 %v4016
    %5097 = vmatprep.subr.bf16.mxu0 %v4001
    %5098 = vmatpush2.bf16.msra.mxu0 %v4000
    %5099 = vmatprep.subr.bf16.mxu0 %v3985
    %5100 = vmatpush2.bf16.msra.mxu0 %v3984
    %5101 = vmatprep.subr.bf16.mxu0 %v3969
    %5102 = vmatpush2.bf16.msra.mxu0 %v3968
    %5103 = vmatprep.mubr.bf16.mxu0 %v1441
    %5104 = vmatmul.mubr.bf16.gmra.mxu0 %v1440
    %v5105 = vpop.f32.mrf.mxu0
    %v5106 = vadd.f32 %v5063, %v5105
    %v5107 = vpop.f32.mrf.mxu0
    %v5108 = vadd.f32 %v5065, %v5107
    %v5109 = vpop.f32.mrf.mxu0
    %v5110 = vadd.f32 %v5067, %v5109
    %v5111 = vpop.f32.mrf.mxu0
    %v5112 = vadd.f32 %v5069, %v5111
    %5113 = vdwg.mxu0
    %5114 = vmatprep.subr.bf16.mxu0 %v3699
    %5115 = vmatpush1.bf16.msra.mxu0 %v3698
    %5116 = vmatprep.subr.bf16.mxu0 %v3683
    %5117 = vmatpush1.bf16.msra.mxu0 %v3682
    %5118 = vmatprep.subr.bf16.mxu0 %v3667
    %5119 = vmatpush1.bf16.msra.mxu0 %v3666
    %5120 = vmatprep.subr.bf16.mxu0 %v3651
    %5121 = vmatpush1.bf16.msra.mxu0 %v3650
    %5122 = vmatprep.subr.bf16.mxu0 %v3635
    %5123 = vmatpush1.bf16.msra.mxu0 %v3634
    %5124 = vmatprep.subr.bf16.mxu0 %v3619
    %5125 = vmatpush1.bf16.msra.mxu0 %v3618
    %5126 = vmatprep.subr.bf16.mxu0 %v3603
    %5127 = vmatpush1.bf16.msra.mxu0 %v3602
    %5128 = vmatprep.subr.bf16.mxu0 %v3587
    %5129 = vmatpush1.bf16.msra.mxu0 %v3586
    %5130 = vmatprep.subr.bf16.mxu0 %v3827
    %5131 = vmatpush2.bf16.msra.mxu0 %v3826
    %5132 = vmatprep.subr.bf16.mxu0 %v3811
    %5133 = vmatpush2.bf16.msra.mxu0 %v3810
    %5134 = vmatprep.subr.bf16.mxu0 %v3795
    %5135 = vmatpush2.bf16.msra.mxu0 %v3794
    %5136 = vmatprep.subr.bf16.mxu0 %v3779
    %5137 = vmatpush2.bf16.msra.mxu0 %v3778
    %5138 = vmatprep.subr.bf16.mxu0 %v3763
    %5139 = vmatpush2.bf16.msra.mxu0 %v3762
    %5140 = vmatprep.subr.bf16.mxu0 %v3747
    %5141 = vmatpush2.bf16.msra.mxu0 %v3746
    %5142 = vmatprep.subr.bf16.mxu0 %v3731
    %5143 = vmatpush2.bf16.msra.mxu0 %v3730
    %5144 = vmatprep.subr.bf16.mxu0 %v3715
    %5145 = vmatpush2.bf16.msra.mxu0 %v3714
    %5146 = vmatprep.mubr.bf16.mxu0 %v1439
    %5147 = vmatmul.mubr.bf16.gmra.mxu0 %v1438
    %v5148 = vpop.f32.mrf.mxu0
    %v5149 = vadd.f32 %v2009, %v5148
    %v5150 = vpop.f32.mrf.mxu0
    %v5151 = vadd.f32 %v2013, %v5150
    %v5152 = vpop.f32.mrf.mxu0
    %v5153 = vadd.f32 %v2009, %v5152
    %v5154 = vpop.f32.mrf.mxu0
    %v5155 = vadd.f32 %v2013, %v5154
    %5156 = vdwg.mxu0
    %5157 = vmatprep.subr.bf16.mxu0 %v3955
    %5158 = vmatpush1.bf16.msra.mxu0 %v3954
    %5159 = vmatprep.subr.bf16.mxu0 %v3939
    %5160 = vmatpush1.bf16.msra.mxu0 %v3938
    %5161 = vmatprep.subr.bf16.mxu0 %v3923
    %5162 = vmatpush1.bf16.msra.mxu0 %v3922
    %5163 = vmatprep.subr.bf16.mxu0 %v3907
    %5164 = vmatpush1.bf16.msra.mxu0 %v3906
    %5165 = vmatprep.subr.bf16.mxu0 %v3891
    %5166 = vmatpush1.bf16.msra.mxu0 %v3890
    %5167 = vmatprep.subr.bf16.mxu0 %v3875
    %5168 = vmatpush1.bf16.msra.mxu0 %v3874
    %5169 = vmatprep.subr.bf16.mxu0 %v3859
    %5170 = vmatpush1.bf16.msra.mxu0 %v3858
    %5171 = vmatprep.subr.bf16.mxu0 %v3843
    %5172 = vmatpush1.bf16.msra.mxu0 %v3842
    %5173 = vmatprep.subr.bf16.mxu0 %v4083
    %5174 = vmatpush2.bf16.msra.mxu0 %v4082
    %5175 = vmatprep.subr.bf16.mxu0 %v4067
    %5176 = vmatpush2.bf16.msra.mxu0 %v4066
    %5177 = vmatprep.subr.bf16.mxu0 %v4051
    %5178 = vmatpush2.bf16.msra.mxu0 %v4050
    %5179 = vmatprep.subr.bf16.mxu0 %v4035
    %5180 = vmatpush2.bf16.msra.mxu0 %v4034
    %5181 = vmatprep.subr.bf16.mxu0 %v4019
    %5182 = vmatpush2.bf16.msra.mxu0 %v4018
    %5183 = vmatprep.subr.bf16.mxu0 %v4003
    %5184 = vmatpush2.bf16.msra.mxu0 %v4002
    %5185 = vmatprep.subr.bf16.mxu0 %v3987
    %5186 = vmatpush2.bf16.msra.mxu0 %v3986
    %5187 = vmatprep.subr.bf16.mxu0 %v3971
    %5188 = vmatpush2.bf16.msra.mxu0 %v3970
    %5189 = vmatprep.mubr.bf16.mxu0 %v1441
    %5190 = vmatmul.mubr.bf16.gmra.mxu0 %v1440
    %v5191 = vpop.f32.mrf.mxu0
    %v5192 = vadd.f32 %v5149, %v5191
    %v5193 = vpop.f32.mrf.mxu0
    %v5194 = vadd.f32 %v5151, %v5193
    %v5195 = vpop.f32.mrf.mxu0
    %v5196 = vadd.f32 %v5153, %v5195
    %v5197 = vpop.f32.mrf.mxu0
    %v5198 = vadd.f32 %v5155, %v5197
    %5199 = vdwg.mxu0
    %5200 = vmatprep.subr.bf16.mxu0 %v3701
    %5201 = vmatpush1.bf16.msra.mxu0 %v3700
    %5202 = vmatprep.subr.bf16.mxu0 %v3685
    %5203 = vmatpush1.bf16.msra.mxu0 %v3684
    %5204 = vmatprep.subr.bf16.mxu0 %v3669
    %5205 = vmatpush1.bf16.msra.mxu0 %v3668
    %5206 = vmatprep.subr.bf16.mxu0 %v3653
    %5207 = vmatpush1.bf16.msra.mxu0 %v3652
    %5208 = vmatprep.subr.bf16.mxu0 %v3637
    %5209 = vmatpush1.bf16.msra.mxu0 %v3636
    %5210 = vmatprep.subr.bf16.mxu0 %v3621
    %5211 = vmatpush1.bf16.msra.mxu0 %v3620
    %5212 = vmatprep.subr.bf16.mxu0 %v3605
    %5213 = vmatpush1.bf16.msra.mxu0 %v3604
    %5214 = vmatprep.subr.bf16.mxu0 %v3589
    %5215 = vmatpush1.bf16.msra.mxu0 %v3588
    %5216 = vmatprep.subr.bf16.mxu0 %v3829
    %5217 = vmatpush2.bf16.msra.mxu0 %v3828
    %5218 = vmatprep.subr.bf16.mxu0 %v3813
    %5219 = vmatpush2.bf16.msra.mxu0 %v3812
    %5220 = vmatprep.subr.bf16.mxu0 %v3797
    %5221 = vmatpush2.bf16.msra.mxu0 %v3796
    %5222 = vmatprep.subr.bf16.mxu0 %v3781
    %5223 = vmatpush2.bf16.msra.mxu0 %v3780
    %5224 = vmatprep.subr.bf16.mxu0 %v3765
    %5225 = vmatpush2.bf16.msra.mxu0 %v3764
    %5226 = vmatprep.subr.bf16.mxu0 %v3749
    %5227 = vmatpush2.bf16.msra.mxu0 %v3748
    %5228 = vmatprep.subr.bf16.mxu0 %v3733
    %5229 = vmatpush2.bf16.msra.mxu0 %v3732
    %5230 = vmatprep.subr.bf16.mxu0 %v3717
    %5231 = vmatpush2.bf16.msra.mxu0 %v3716
    %5232 = vmatprep.mubr.bf16.mxu0 %v1439
    %5233 = vmatmul.mubr.bf16.gmra.mxu0 %v1438
    %v5234 = vpop.f32.mrf.mxu0
    %v5235 = vadd.f32 %v2017, %v5234
    %v5236 = vpop.f32.mrf.mxu0
    %v5237 = vadd.f32 %v2021, %v5236
    %v5238 = vpop.f32.mrf.mxu0
    %v5239 = vadd.f32 %v2017, %v5238
    %v5240 = vpop.f32.mrf.mxu0
    %v5241 = vadd.f32 %v2021, %v5240
    %5242 = vdwg.mxu0
    %5243 = vmatprep.subr.bf16.mxu0 %v3957
    %5244 = vmatpush1.bf16.msra.mxu0 %v3956
    %5245 = vmatprep.subr.bf16.mxu0 %v3941
    %5246 = vmatpush1.bf16.msra.mxu0 %v3940
    %5247 = vmatprep.subr.bf16.mxu0 %v3925
    %5248 = vmatpush1.bf16.msra.mxu0 %v3924
    %5249 = vmatprep.subr.bf16.mxu0 %v3909
    %5250 = vmatpush1.bf16.msra.mxu0 %v3908
    %5251 = vmatprep.subr.bf16.mxu0 %v3893
    %5252 = vmatpush1.bf16.msra.mxu0 %v3892
    %5253 = vmatprep.subr.bf16.mxu0 %v3877
    %5254 = vmatpush1.bf16.msra.mxu0 %v3876
    %5255 = vmatprep.subr.bf16.mxu0 %v3861
    %5256 = vmatpush1.bf16.msra.mxu0 %v3860
    %5257 = vmatprep.subr.bf16.mxu0 %v3845
    %5258 = vmatpush1.bf16.msra.mxu0 %v3844
    %5259 = vmatprep.subr.bf16.mxu0 %v4085
    %5260 = vmatpush2.bf16.msra.mxu0 %v4084
    %5261 = vmatprep.subr.bf16.mxu0 %v4069
    %5262 = vmatpush2.bf16.msra.mxu0 %v4068
    %5263 = vmatprep.subr.bf16.mxu0 %v4053
    %5264 = vmatpush2.bf16.msra.mxu0 %v4052
    %5265 = vmatprep.subr.bf16.mxu0 %v4037
    %5266 = vmatpush2.bf16.msra.mxu0 %v4036
    %5267 = vmatprep.subr.bf16.mxu0 %v4021
    %5268 = vmatpush2.bf16.msra.mxu0 %v4020
    %5269 = vmatprep.subr.bf16.mxu0 %v4005
    %5270 = vmatpush2.bf16.msra.mxu0 %v4004
    %5271 = vmatprep.subr.bf16.mxu0 %v3989
    %5272 = vmatpush2.bf16.msra.mxu0 %v3988
    %5273 = vmatprep.subr.bf16.mxu0 %v3973
    %5274 = vmatpush2.bf16.msra.mxu0 %v3972
    %5275 = vmatprep.mubr.bf16.mxu0 %v1441
    %5276 = vmatmul.mubr.bf16.gmra.mxu0 %v1440
    %v5277 = vpop.f32.mrf.mxu0
    %v5278 = vadd.f32 %v5235, %v5277
    %v5279 = vpop.f32.mrf.mxu0
    %v5280 = vadd.f32 %v5237, %v5279
    %v5281 = vpop.f32.mrf.mxu0
    %v5282 = vadd.f32 %v5239, %v5281
    %v5283 = vpop.f32.mrf.mxu0
    %v5284 = vadd.f32 %v5241, %v5283
    %5285 = vdwg.mxu0
    %v5286 = vmax.f32 %v4676, 0.0
    %v5287 = vmax.f32 %v4678, 0.0
    %v5288 = vmax.f32 %v4762, 0.0
    %v5289 = vmax.f32 %v4764, 0.0
    %v5290 = vmax.f32 %v4848, 0.0
    %v5291 = vmax.f32 %v4850, 0.0
    %v5292 = vmax.f32 %v4934, 0.0
    %v5293 = vmax.f32 %v4936, 0.0
    %v5294 = vmax.f32 %v5020, 0.0
    %v5295 = vmax.f32 %v5022, 0.0
    %v5296 = vmax.f32 %v5106, 0.0
    %v5297 = vmax.f32 %v5108, 0.0
    %v5298 = vmax.f32 %v5192, 0.0
    %v5299 = vmax.f32 %v5194, 0.0
    %v5300 = vmax.f32 %v5278, 0.0
    %v5301 = vmax.f32 %v5280, 0.0
    %v5302 = vmax.f32 %v4680, 0.0
    %v5303 = vmax.f32 %v4682, 0.0
    %v5304 = vmax.f32 %v4766, 0.0
    %v5305 = vmax.f32 %v4768, 0.0
    %v5306 = vmax.f32 %v4852, 0.0
    %v5307 = vmax.f32 %v4854, 0.0
    %v5308 = vmax.f32 %v4938, 0.0
    %v5309 = vmax.f32 %v4940, 0.0
    %v5310 = vmax.f32 %v5024, 0.0
    %v5311 = vmax.f32 %v5026, 0.0
    %v5312 = vmax.f32 %v5110, 0.0
    %v5313 = vmax.f32 %v5112, 0.0
    %v5314 = vmax.f32 %v5196, 0.0
    %v5315 = vmax.f32 %v5198, 0.0
    %v5316 = vmax.f32 %v5282, 0.0
    %v5317 = vmax.f32 %v5284, 0.0
    %v5318 = vpack.c.bf16 %v5302, %v5286
    %v5319 = vpack.c.bf16 %v5303, %v5287
    %v5320 = vpack.c.bf16 %v5304, %v5288
    %v5321 = vpack.c.bf16 %v5305, %v5289
    %v5322 = vpack.c.bf16 %v5306, %v5290
    %v5323 = vpack.c.bf16 %v5307, %v5291
    %v5324 = vpack.c.bf16 %v5308, %v5292
    %v5325 = vpack.c.bf16 %v5309, %v5293
    %v5326 = vpack.c.bf16 %v5310, %v5294
    %v5327 = vpack.c.bf16 %v5311, %v5295
    %v5328 = vpack.c.bf16 %v5312, %v5296
    %v5329 = vpack.c.bf16 %v5313, %v5297
    %v5330 = vpack.c.bf16 %v5314, %v5298
    %v5331 = vpack.c.bf16 %v5315, %v5299
    %v5332 = vpack.c.bf16 %v5316, %v5300
    %v5333 = vpack.c.bf16 %v5317, %v5301
    %v5334 = vld [vmem:[#allocation14] sm:$0xf]
    %v5335 = vld [vmem:[#allocation14 + $0x4] sm:$0xf]
    %v5336 = vld [vmem:[#allocation14 + $0x8] sm:$0xf]
    %v5337 = vld [vmem:[#allocation14 + $0xc] sm:$0xf]
    %v5338 = vld [vmem:[#allocation14 + $0x10] sm:$0xf]
    %v5339 = vld [vmem:[#allocation14 + $0x14] sm:$0xf]
    %v5340 = vld [vmem:[#allocation14 + $0x18] sm:$0xf]
    %v5341 = vld [vmem:[#allocation14 + $0x1c] sm:$0xf]
    %v5342 = vld [vmem:[#allocation14 + $0x20] sm:$0xf]
    %v5343 = vld [vmem:[#allocation14 + $0x24] sm:$0xf]
    %v5344 = vld [vmem:[#allocation14 + $0x28] sm:$0xf]
    %v5345 = vld [vmem:[#allocation14 + $0x2c] sm:$0xf]
    %v5346 = vld [vmem:[#allocation14 + $0x30] sm:$0xf]
    %v5347 = vld [vmem:[#allocation14 + $0x34] sm:$0xf]
    %v5348 = vld [vmem:[#allocation14 + $0x38] sm:$0xf]
    %v5349 = vld [vmem:[#allocation14 + $0x3c] sm:$0xf]
    %v5350 = vld [vmem:[#allocation14 + $0x40] sm:$0xf]
    %v5351 = vld [vmem:[#allocation14 + $0x44] sm:$0xf]
    %v5352 = vld [vmem:[#allocation14 + $0x48] sm:$0xf]
    %v5353 = vld [vmem:[#allocation14 + $0x4c] sm:$0xf]
    %v5354 = vld [vmem:[#allocation14 + $0x50] sm:$0xf]
    %v5355 = vld [vmem:[#allocation14 + $0x54] sm:$0xf]
    %v5356 = vld [vmem:[#allocation14 + $0x58] sm:$0xf]
    %v5357 = vld [vmem:[#allocation14 + $0x5c] sm:$0xf]
    %v5358 = vld [vmem:[#allocation14 + $0x60] sm:$0xf]
    %v5359 = vld [vmem:[#allocation14 + $0x64] sm:$0xf]
    %v5360 = vld [vmem:[#allocation14 + $0x68] sm:$0xf]
    %v5361 = vld [vmem:[#allocation14 + $0x6c] sm:$0xf]
    %v5362 = vld [vmem:[#allocation14 + $0x70] sm:$0xf]
    %v5363 = vld [vmem:[#allocation14 + $0x74] sm:$0xf]
    %v5364 = vld [vmem:[#allocation14 + $0x78] sm:$0xf]
    %v5365 = vld [vmem:[#allocation14 + $0x7c] sm:$0xf]
    %v5366 = vld [vmem:[#allocation14 + $0x80] sm:$0xf]
    %v5367 = vld [vmem:[#allocation14 + $0x84] sm:$0xf]
    %v5368 = vld [vmem:[#allocation14 + $0x88] sm:$0xf]
    %v5369 = vld [vmem:[#allocation14 + $0x8c] sm:$0xf]
    %v5370 = vld [vmem:[#allocation14 + $0x90] sm:$0xf]
    %v5371 = vld [vmem:[#allocation14 + $0x94] sm:$0xf]
    %v5372 = vld [vmem:[#allocation14 + $0x98] sm:$0xf]
    %v5373 = vld [vmem:[#allocation14 + $0x9c] sm:$0xf]
    %v5374 = vld [vmem:[#allocation14 + $0xa0] sm:$0xf]
    %v5375 = vld [vmem:[#allocation14 + $0xa4] sm:$0xf]
    %v5376 = vld [vmem:[#allocation14 + $0xa8] sm:$0xf]
    %v5377 = vld [vmem:[#allocation14 + $0xac] sm:$0xf]
    %v5378 = vld [vmem:[#allocation14 + $0xb0] sm:$0xf]
    %v5379 = vld [vmem:[#allocation14 + $0xb4] sm:$0xf]
    %v5380 = vld [vmem:[#allocation14 + $0xb8] sm:$0xf]
    %v5381 = vld [vmem:[#allocation14 + $0xbc] sm:$0xf]
    %v5382 = vld [vmem:[#allocation14 + $0xc0] sm:$0xf]
    %v5383 = vld [vmem:[#allocation14 + $0xc4] sm:$0xf]
    %v5384 = vld [vmem:[#allocation14 + $0xc8] sm:$0xf]
    %v5385 = vld [vmem:[#allocation14 + $0xcc] sm:$0xf]
    %v5386 = vld [vmem:[#allocation14 + $0xd0] sm:$0xf]
    %v5387 = vld [vmem:[#allocation14 + $0xd4] sm:$0xf]
    %v5388 = vld [vmem:[#allocation14 + $0xd8] sm:$0xf]
    %v5389 = vld [vmem:[#allocation14 + $0xdc] sm:$0xf]
    %v5390 = vld [vmem:[#allocation14 + $0xe0] sm:$0xf]
    %v5391 = vld [vmem:[#allocation14 + $0xe4] sm:$0xf]
    %v5392 = vld [vmem:[#allocation14 + $0xe8] sm:$0xf]
    %v5393 = vld [vmem:[#allocation14 + $0xec] sm:$0xf]
    %v5394 = vld [vmem:[#allocation14 + $0xf0] sm:$0xf]
    %v5395 = vld [vmem:[#allocation14 + $0xf4] sm:$0xf]
    %v5396 = vld [vmem:[#allocation14 + $0xf8] sm:$0xf]
    %v5397 = vld [vmem:[#allocation14 + $0xfc] sm:$0xf]
    %v5398 = vld [vmem:[#allocation14 + $0x100] sm:$0xf]
    %v5399 = vld [vmem:[#allocation14 + $0x104] sm:$0xf]
    %v5400 = vld [vmem:[#allocation14 + $0x108] sm:$0xf]
    %v5401 = vld [vmem:[#allocation14 + $0x10c] sm:$0xf]
    %v5402 = vld [vmem:[#allocation14 + $0x110] sm:$0xf]
    %v5403 = vld [vmem:[#allocation14 + $0x114] sm:$0xf]
    %v5404 = vld [vmem:[#allocation14 + $0x118] sm:$0xf]
    %v5405 = vld [vmem:[#allocation14 + $0x11c] sm:$0xf]
    %v5406 = vld [vmem:[#allocation14 + $0x120] sm:$0xf]
    %v5407 = vld [vmem:[#allocation14 + $0x124] sm:$0xf]
    %v5408 = vld [vmem:[#allocation14 + $0x128] sm:$0xf]
    %v5409 = vld [vmem:[#allocation14 + $0x12c] sm:$0xf]
    %v5410 = vld [vmem:[#allocation14 + $0x130] sm:$0xf]
    %v5411 = vld [vmem:[#allocation14 + $0x134] sm:$0xf]
    %v5412 = vld [vmem:[#allocation14 + $0x138] sm:$0xf]
    %v5413 = vld [vmem:[#allocation14 + $0x13c] sm:$0xf]
    %v5414 = vld [vmem:[#allocation14 + $0x140] sm:$0xf]
    %v5415 = vld [vmem:[#allocation14 + $0x144] sm:$0xf]
    %v5416 = vld [vmem:[#allocation14 + $0x148] sm:$0xf]
    %v5417 = vld [vmem:[#allocation14 + $0x14c] sm:$0xf]
    %v5418 = vld [vmem:[#allocation14 + $0x150] sm:$0xf]
    %v5419 = vld [vmem:[#allocation14 + $0x154] sm:$0xf]
    %v5420 = vld [vmem:[#allocation14 + $0x158] sm:$0xf]
    %v5421 = vld [vmem:[#allocation14 + $0x15c] sm:$0xf]
    %v5422 = vld [vmem:[#allocation14 + $0x160] sm:$0xf]
    %v5423 = vld [vmem:[#allocation14 + $0x164] sm:$0xf]
    %v5424 = vld [vmem:[#allocation14 + $0x168] sm:$0xf]
    %v5425 = vld [vmem:[#allocation14 + $0x16c] sm:$0xf]
    %v5426 = vld [vmem:[#allocation14 + $0x170] sm:$0xf]
    %v5427 = vld [vmem:[#allocation14 + $0x174] sm:$0xf]
    %v5428 = vld [vmem:[#allocation14 + $0x178] sm:$0xf]
    %v5429 = vld [vmem:[#allocation14 + $0x17c] sm:$0xf]
    %v5430 = vld [vmem:[#allocation14 + $0x180] sm:$0xf]
    %v5431 = vld [vmem:[#allocation14 + $0x184] sm:$0xf]
    %v5432 = vld [vmem:[#allocation14 + $0x188] sm:$0xf]
    %v5433 = vld [vmem:[#allocation14 + $0x18c] sm:$0xf]
    %v5434 = vld [vmem:[#allocation14 + $0x190] sm:$0xf]
    %v5435 = vld [vmem:[#allocation14 + $0x194] sm:$0xf]
    %v5436 = vld [vmem:[#allocation14 + $0x198] sm:$0xf]
    %v5437 = vld [vmem:[#allocation14 + $0x19c] sm:$0xf]
    %v5438 = vld [vmem:[#allocation14 + $0x1a0] sm:$0xf]
    %v5439 = vld [vmem:[#allocation14 + $0x1a4] sm:$0xf]
    %v5440 = vld [vmem:[#allocation14 + $0x1a8] sm:$0xf]
    %v5441 = vld [vmem:[#allocation14 + $0x1ac] sm:$0xf]
    %v5442 = vld [vmem:[#allocation14 + $0x1b0] sm:$0xf]
    %v5443 = vld [vmem:[#allocation14 + $0x1b4] sm:$0xf]
    %v5444 = vld [vmem:[#allocation14 + $0x1b8] sm:$0xf]
    %v5445 = vld [vmem:[#allocation14 + $0x1bc] sm:$0xf]
    %v5446 = vld [vmem:[#allocation14 + $0x1c0] sm:$0xf]
    %v5447 = vld [vmem:[#allocation14 + $0x1c4] sm:$0xf]
    %v5448 = vld [vmem:[#allocation14 + $0x1c8] sm:$0xf]
    %v5449 = vld [vmem:[#allocation14 + $0x1cc] sm:$0xf]
    %v5450 = vld [vmem:[#allocation14 + $0x1d0] sm:$0xf]
    %v5451 = vld [vmem:[#allocation14 + $0x1d4] sm:$0xf]
    %v5452 = vld [vmem:[#allocation14 + $0x1d8] sm:$0xf]
    %v5453 = vld [vmem:[#allocation14 + $0x1dc] sm:$0xf]
    %v5454 = vld [vmem:[#allocation14 + $0x1e0] sm:$0xf]
    %v5455 = vld [vmem:[#allocation14 + $0x1e4] sm:$0xf]
    %v5456 = vld [vmem:[#allocation14 + $0x1e8] sm:$0xf]
    %v5457 = vld [vmem:[#allocation14 + $0x1ec] sm:$0xf]
    %v5458 = vld [vmem:[#allocation14 + $0x1f0] sm:$0xf]
    %v5459 = vld [vmem:[#allocation14 + $0x1f4] sm:$0xf]
    %v5460 = vld [vmem:[#allocation14 + $0x1f8] sm:$0xf]
    %v5461 = vld [vmem:[#allocation14 + $0x1fc] sm:$0xf]
    %v5462 = vld [vmem:[#allocation14 + $0x200] sm:$0xf]
    %v5463 = vld [vmem:[#allocation14 + $0x204] sm:$0xf]
    %v5464 = vld [vmem:[#allocation14 + $0x208] sm:$0xf]
    %v5465 = vld [vmem:[#allocation14 + $0x20c] sm:$0xf]
    %v5466 = vld [vmem:[#allocation14 + $0x210] sm:$0xf]
    %v5467 = vld [vmem:[#allocation14 + $0x214] sm:$0xf]
    %v5468 = vld [vmem:[#allocation14 + $0x218] sm:$0xf]
    %v5469 = vld [vmem:[#allocation14 + $0x21c] sm:$0xf]
    %v5470 = vld [vmem:[#allocation14 + $0x220] sm:$0xf]
    %v5471 = vld [vmem:[#allocation14 + $0x224] sm:$0xf]
    %v5472 = vld [vmem:[#allocation14 + $0x228] sm:$0xf]
    %v5473 = vld [vmem:[#allocation14 + $0x22c] sm:$0xf]
    %v5474 = vld [vmem:[#allocation14 + $0x230] sm:$0xf]
    %v5475 = vld [vmem:[#allocation14 + $0x234] sm:$0xf]
    %v5476 = vld [vmem:[#allocation14 + $0x238] sm:$0xf]
    %v5477 = vld [vmem:[#allocation14 + $0x23c] sm:$0xf]
    %v5478 = vld [vmem:[#allocation14 + $0x240] sm:$0xf]
    %v5479 = vld [vmem:[#allocation14 + $0x244] sm:$0xf]
    %v5480 = vld [vmem:[#allocation14 + $0x248] sm:$0xf]
    %v5481 = vld [vmem:[#allocation14 + $0x24c] sm:$0xf]
    %v5482 = vld [vmem:[#allocation14 + $0x250] sm:$0xf]
    %v5483 = vld [vmem:[#allocation14 + $0x254] sm:$0xf]
    %v5484 = vld [vmem:[#allocation14 + $0x258] sm:$0xf]
    %v5485 = vld [vmem:[#allocation14 + $0x25c] sm:$0xf]
    %v5486 = vld [vmem:[#allocation14 + $0x260] sm:$0xf]
    %v5487 = vld [vmem:[#allocation14 + $0x264] sm:$0xf]
    %v5488 = vld [vmem:[#allocation14 + $0x268] sm:$0xf]
    %v5489 = vld [vmem:[#allocation14 + $0x26c] sm:$0xf]
    %v5490 = vld [vmem:[#allocation14 + $0x270] sm:$0xf]
    %v5491 = vld [vmem:[#allocation14 + $0x274] sm:$0xf]
    %v5492 = vld [vmem:[#allocation14 + $0x278] sm:$0xf]
    %v5493 = vld [vmem:[#allocation14 + $0x27c] sm:$0xf]
    %v5494 = vld [vmem:[#allocation14 + $0x280] sm:$0xf]
    %v5495 = vld [vmem:[#allocation14 + $0x284] sm:$0xf]
    %v5496 = vld [vmem:[#allocation14 + $0x288] sm:$0xf]
    %v5497 = vld [vmem:[#allocation14 + $0x28c] sm:$0xf]
    %v5498 = vld [vmem:[#allocation14 + $0x290] sm:$0xf]
    %v5499 = vld [vmem:[#allocation14 + $0x294] sm:$0xf]
    %v5500 = vld [vmem:[#allocation14 + $0x298] sm:$0xf]
    %v5501 = vld [vmem:[#allocation14 + $0x29c] sm:$0xf]
    %v5502 = vld [vmem:[#allocation14 + $0x2a0] sm:$0xf]
    %v5503 = vld [vmem:[#allocation14 + $0x2a4] sm:$0xf]
    %v5504 = vld [vmem:[#allocation14 + $0x2a8] sm:$0xf]
    %v5505 = vld [vmem:[#allocation14 + $0x2ac] sm:$0xf]
    %v5506 = vld [vmem:[#allocation14 + $0x2b0] sm:$0xf]
    %v5507 = vld [vmem:[#allocation14 + $0x2b4] sm:$0xf]
    %v5508 = vld [vmem:[#allocation14 + $0x2b8] sm:$0xf]
    %v5509 = vld [vmem:[#allocation14 + $0x2bc] sm:$0xf]
    %v5510 = vld [vmem:[#allocation14 + $0x2c0] sm:$0xf]
    %v5511 = vld [vmem:[#allocation14 + $0x2c4] sm:$0xf]
    %v5512 = vld [vmem:[#allocation14 + $0x2c8] sm:$0xf]
    %v5513 = vld [vmem:[#allocation14 + $0x2cc] sm:$0xf]
    %v5514 = vld [vmem:[#allocation14 + $0x2d0] sm:$0xf]
    %v5515 = vld [vmem:[#allocation14 + $0x2d4] sm:$0xf]
    %v5516 = vld [vmem:[#allocation14 + $0x2d8] sm:$0xf]
    %v5517 = vld [vmem:[#allocation14 + $0x2dc] sm:$0xf]
    %v5518 = vld [vmem:[#allocation14 + $0x2e0] sm:$0xf]
    %v5519 = vld [vmem:[#allocation14 + $0x2e4] sm:$0xf]
    %v5520 = vld [vmem:[#allocation14 + $0x2e8] sm:$0xf]
    %v5521 = vld [vmem:[#allocation14 + $0x2ec] sm:$0xf]
    %v5522 = vld [vmem:[#allocation14 + $0x2f0] sm:$0xf]
    %v5523 = vld [vmem:[#allocation14 + $0x2f4] sm:$0xf]
    %v5524 = vld [vmem:[#allocation14 + $0x2f8] sm:$0xf]
    %v5525 = vld [vmem:[#allocation14 + $0x2fc] sm:$0xf]
    %v5526 = vld [vmem:[#allocation14 + $0x300] sm:$0xf]
    %v5527 = vld [vmem:[#allocation14 + $0x304] sm:$0xf]
    %v5528 = vld [vmem:[#allocation14 + $0x308] sm:$0xf]
    %v5529 = vld [vmem:[#allocation14 + $0x30c] sm:$0xf]
    %v5530 = vld [vmem:[#allocation14 + $0x310] sm:$0xf]
    %v5531 = vld [vmem:[#allocation14 + $0x314] sm:$0xf]
    %v5532 = vld [vmem:[#allocation14 + $0x318] sm:$0xf]
    %v5533 = vld [vmem:[#allocation14 + $0x31c] sm:$0xf]
    %v5534 = vld [vmem:[#allocation14 + $0x320] sm:$0xf]
    %v5535 = vld [vmem:[#allocation14 + $0x324] sm:$0xf]
    %v5536 = vld [vmem:[#allocation14 + $0x328] sm:$0xf]
    %v5537 = vld [vmem:[#allocation14 + $0x32c] sm:$0xf]
    %v5538 = vld [vmem:[#allocation14 + $0x330] sm:$0xf]
    %v5539 = vld [vmem:[#allocation14 + $0x334] sm:$0xf]
    %v5540 = vld [vmem:[#allocation14 + $0x338] sm:$0xf]
    %v5541 = vld [vmem:[#allocation14 + $0x33c] sm:$0xf]
    %v5542 = vld [vmem:[#allocation14 + $0x340] sm:$0xf]
    %v5543 = vld [vmem:[#allocation14 + $0x344] sm:$0xf]
    %v5544 = vld [vmem:[#allocation14 + $0x348] sm:$0xf]
    %v5545 = vld [vmem:[#allocation14 + $0x34c] sm:$0xf]
    %v5546 = vld [vmem:[#allocation14 + $0x350] sm:$0xf]
    %v5547 = vld [vmem:[#allocation14 + $0x354] sm:$0xf]
    %v5548 = vld [vmem:[#allocation14 + $0x358] sm:$0xf]
    %v5549 = vld [vmem:[#allocation14 + $0x35c] sm:$0xf]
    %v5550 = vld [vmem:[#allocation14 + $0x360] sm:$0xf]
    %v5551 = vld [vmem:[#allocation14 + $0x364] sm:$0xf]
    %v5552 = vld [vmem:[#allocation14 + $0x368] sm:$0xf]
    %v5553 = vld [vmem:[#allocation14 + $0x36c] sm:$0xf]
    %v5554 = vld [vmem:[#allocation14 + $0x370] sm:$0xf]
    %v5555 = vld [vmem:[#allocation14 + $0x374] sm:$0xf]
    %v5556 = vld [vmem:[#allocation14 + $0x378] sm:$0xf]
    %v5557 = vld [vmem:[#allocation14 + $0x37c] sm:$0xf]
    %v5558 = vld [vmem:[#allocation14 + $0x380] sm:$0xf]
    %v5559 = vld [vmem:[#allocation14 + $0x384] sm:$0xf]
    %v5560 = vld [vmem:[#allocation14 + $0x388] sm:$0xf]
    %v5561 = vld [vmem:[#allocation14 + $0x38c] sm:$0xf]
    %v5562 = vld [vmem:[#allocation14 + $0x390] sm:$0xf]
    %v5563 = vld [vmem:[#allocation14 + $0x394] sm:$0xf]
    %v5564 = vld [vmem:[#allocation14 + $0x398] sm:$0xf]
    %v5565 = vld [vmem:[#allocation14 + $0x39c] sm:$0xf]
    %v5566 = vld [vmem:[#allocation14 + $0x3a0] sm:$0xf]
    %v5567 = vld [vmem:[#allocation14 + $0x3a4] sm:$0xf]
    %v5568 = vld [vmem:[#allocation14 + $0x3a8] sm:$0xf]
    %v5569 = vld [vmem:[#allocation14 + $0x3ac] sm:$0xf]
    %v5570 = vld [vmem:[#allocation14 + $0x3b0] sm:$0xf]
    %v5571 = vld [vmem:[#allocation14 + $0x3b4] sm:$0xf]
    %v5572 = vld [vmem:[#allocation14 + $0x3b8] sm:$0xf]
    %v5573 = vld [vmem:[#allocation14 + $0x3bc] sm:$0xf]
    %v5574 = vld [vmem:[#allocation14 + $0x3c0] sm:$0xf]
    %v5575 = vld [vmem:[#allocation14 + $0x3c4] sm:$0xf]
    %v5576 = vld [vmem:[#allocation14 + $0x3c8] sm:$0xf]
    %v5577 = vld [vmem:[#allocation14 + $0x3cc] sm:$0xf]
    %v5578 = vld [vmem:[#allocation14 + $0x3d0] sm:$0xf]
    %v5579 = vld [vmem:[#allocation14 + $0x3d4] sm:$0xf]
    %v5580 = vld [vmem:[#allocation14 + $0x3d8] sm:$0xf]
    %v5581 = vld [vmem:[#allocation14 + $0x3dc] sm:$0xf]
    %v5582 = vld [vmem:[#allocation14 + $0x3e0] sm:$0xf]
    %v5583 = vld [vmem:[#allocation14 + $0x3e4] sm:$0xf]
    %v5584 = vld [vmem:[#allocation14 + $0x3e8] sm:$0xf]
    %v5585 = vld [vmem:[#allocation14 + $0x3ec] sm:$0xf]
    %v5586 = vld [vmem:[#allocation14 + $0x3f0] sm:$0xf]
    %v5587 = vld [vmem:[#allocation14 + $0x3f4] sm:$0xf]
    %v5588 = vld [vmem:[#allocation14 + $0x3f8] sm:$0xf]
    %v5589 = vld [vmem:[#allocation14 + $0x3fc] sm:$0xf]
    %v5590 = vld [vmem:[#allocation16] sm:$0x1]
    %v5592 = vlaneseq
    %v5593 = vshrl.u32 %v5592, 7
    %v5594 = vsub.s32 0, %v5593
    %v5595 = vrot.slane %v5590, %v5594
    %v5853 = vunpack.c.l.b16 %v5334
    %v5854 = vunpack.c.l.b16 %v5335
    %v5855 = vunpack.c.l.b16 %v5336
    %v5856 = vunpack.c.l.b16 %v5337
    %v5857 = vunpack.c.l.b16 %v5338
    %v5858 = vunpack.c.l.b16 %v5339
    %v5859 = vunpack.c.l.b16 %v5340
    %v5860 = vunpack.c.l.b16 %v5341
    %v5861 = vunpack.c.l.b16 %v5342
    %v5862 = vunpack.c.l.b16 %v5343
    %v5863 = vunpack.c.l.b16 %v5344
    %v5864 = vunpack.c.l.b16 %v5345
    %v5865 = vunpack.c.l.b16 %v5346
    %v5866 = vunpack.c.l.b16 %v5347
    %v5867 = vunpack.c.l.b16 %v5348
    %v5868 = vunpack.c.l.b16 %v5349
    %v5869 = vunpack.c.l.b16 %v5350
    %v5870 = vunpack.c.l.b16 %v5351
    %v5871 = vunpack.c.l.b16 %v5352
    %v5872 = vunpack.c.l.b16 %v5353
    %v5873 = vunpack.c.l.b16 %v5354
    %v5874 = vunpack.c.l.b16 %v5355
    %v5875 = vunpack.c.l.b16 %v5356
    %v5876 = vunpack.c.l.b16 %v5357
    %v5877 = vunpack.c.l.b16 %v5358
    %v5878 = vunpack.c.l.b16 %v5359
    %v5879 = vunpack.c.l.b16 %v5360
    %v5880 = vunpack.c.l.b16 %v5361
    %v5881 = vunpack.c.l.b16 %v5362
    %v5882 = vunpack.c.l.b16 %v5363
    %v5883 = vunpack.c.l.b16 %v5364
    %v5884 = vunpack.c.l.b16 %v5365
    %v5885 = vunpack.c.l.b16 %v5366
    %v5886 = vunpack.c.l.b16 %v5367
    %v5887 = vunpack.c.l.b16 %v5368
    %v5888 = vunpack.c.l.b16 %v5369
    %v5889 = vunpack.c.l.b16 %v5370
    %v5890 = vunpack.c.l.b16 %v5371
    %v5891 = vunpack.c.l.b16 %v5372
    %v5892 = vunpack.c.l.b16 %v5373
    %v5893 = vunpack.c.l.b16 %v5374
    %v5894 = vunpack.c.l.b16 %v5375
    %v5895 = vunpack.c.l.b16 %v5376
    %v5896 = vunpack.c.l.b16 %v5377
    %v5897 = vunpack.c.l.b16 %v5378
    %v5898 = vunpack.c.l.b16 %v5379
    %v5899 = vunpack.c.l.b16 %v5380
    %v5900 = vunpack.c.l.b16 %v5381
    %v5901 = vunpack.c.l.b16 %v5382
    %v5902 = vunpack.c.l.b16 %v5383
    %v5903 = vunpack.c.l.b16 %v5384
    %v5904 = vunpack.c.l.b16 %v5385
    %v5905 = vunpack.c.l.b16 %v5386
    %v5906 = vunpack.c.l.b16 %v5387
    %v5907 = vunpack.c.l.b16 %v5388
    %v5908 = vunpack.c.l.b16 %v5389
    %v5909 = vunpack.c.l.b16 %v5390
    %v5910 = vunpack.c.l.b16 %v5391
    %v5911 = vunpack.c.l.b16 %v5392
    %v5912 = vunpack.c.l.b16 %v5393
    %v5913 = vunpack.c.l.b16 %v5394
    %v5914 = vunpack.c.l.b16 %v5395
    %v5915 = vunpack.c.l.b16 %v5396
    %v5916 = vunpack.c.l.b16 %v5397
    %v5917 = vunpack.c.l.b16 %v5398
    %v5918 = vunpack.c.l.b16 %v5399
    %v5919 = vunpack.c.l.b16 %v5400
    %v5920 = vunpack.c.l.b16 %v5401
    %v5921 = vunpack.c.l.b16 %v5402
    %v5922 = vunpack.c.l.b16 %v5403
    %v5923 = vunpack.c.l.b16 %v5404
    %v5924 = vunpack.c.l.b16 %v5405
    %v5925 = vunpack.c.l.b16 %v5406
    %v5926 = vunpack.c.l.b16 %v5407
    %v5927 = vunpack.c.l.b16 %v5408
    %v5928 = vunpack.c.l.b16 %v5409
    %v5929 = vunpack.c.l.b16 %v5410
    %v5930 = vunpack.c.l.b16 %v5411
    %v5931 = vunpack.c.l.b16 %v5412
    %v5932 = vunpack.c.l.b16 %v5413
    %v5933 = vunpack.c.l.b16 %v5414
    %v5934 = vunpack.c.l.b16 %v5415
    %v5935 = vunpack.c.l.b16 %v5416
    %v5936 = vunpack.c.l.b16 %v5417
    %v5937 = vunpack.c.l.b16 %v5418
    %v5938 = vunpack.c.l.b16 %v5419
    %v5939 = vunpack.c.l.b16 %v5420
    %v5940 = vunpack.c.l.b16 %v5421
    %v5941 = vunpack.c.l.b16 %v5422
    %v5942 = vunpack.c.l.b16 %v5423
    %v5943 = vunpack.c.l.b16 %v5424
    %v5944 = vunpack.c.l.b16 %v5425
    %v5945 = vunpack.c.l.b16 %v5426
    %v5946 = vunpack.c.l.b16 %v5427
    %v5947 = vunpack.c.l.b16 %v5428
    %v5948 = vunpack.c.l.b16 %v5429
    %v5949 = vunpack.c.l.b16 %v5430
    %v5950 = vunpack.c.l.b16 %v5431
    %v5951 = vunpack.c.l.b16 %v5432
    %v5952 = vunpack.c.l.b16 %v5433
    %v5953 = vunpack.c.l.b16 %v5434
    %v5954 = vunpack.c.l.b16 %v5435
    %v5955 = vunpack.c.l.b16 %v5436
    %v5956 = vunpack.c.l.b16 %v5437
    %v5957 = vunpack.c.l.b16 %v5438
    %v5958 = vunpack.c.l.b16 %v5439
    %v5959 = vunpack.c.l.b16 %v5440
    %v5960 = vunpack.c.l.b16 %v5441
    %v5961 = vunpack.c.l.b16 %v5442
    %v5962 = vunpack.c.l.b16 %v5443
    %v5963 = vunpack.c.l.b16 %v5444
    %v5964 = vunpack.c.l.b16 %v5445
    %v5965 = vunpack.c.l.b16 %v5446
    %v5966 = vunpack.c.l.b16 %v5447
    %v5967 = vunpack.c.l.b16 %v5448
    %v5968 = vunpack.c.l.b16 %v5449
    %v5969 = vunpack.c.l.b16 %v5450
    %v5970 = vunpack.c.l.b16 %v5451
    %v5971 = vunpack.c.l.b16 %v5452
    %v5972 = vunpack.c.l.b16 %v5453
    %v5973 = vunpack.c.l.b16 %v5454
    %v5974 = vunpack.c.l.b16 %v5455
    %v5975 = vunpack.c.l.b16 %v5456
    %v5976 = vunpack.c.l.b16 %v5457
    %v5977 = vunpack.c.l.b16 %v5458
    %v5978 = vunpack.c.l.b16 %v5459
    %v5979 = vunpack.c.l.b16 %v5460
    %v5980 = vunpack.c.l.b16 %v5461
    %v5981 = vunpack.c.l.b16 %v5462
    %v5982 = vunpack.c.l.b16 %v5463
    %v5983 = vunpack.c.l.b16 %v5464
    %v5984 = vunpack.c.l.b16 %v5465
    %v5985 = vunpack.c.l.b16 %v5466
    %v5986 = vunpack.c.l.b16 %v5467
    %v5987 = vunpack.c.l.b16 %v5468
    %v5988 = vunpack.c.l.b16 %v5469
    %v5989 = vunpack.c.l.b16 %v5470
    %v5990 = vunpack.c.l.b16 %v5471
    %v5991 = vunpack.c.l.b16 %v5472
    %v5992 = vunpack.c.l.b16 %v5473
    %v5993 = vunpack.c.l.b16 %v5474
    %v5994 = vunpack.c.l.b16 %v5475
    %v5995 = vunpack.c.l.b16 %v5476
    %v5996 = vunpack.c.l.b16 %v5477
    %v5997 = vunpack.c.l.b16 %v5478
    %v5998 = vunpack.c.l.b16 %v5479
    %v5999 = vunpack.c.l.b16 %v5480
    %v6000 = vunpack.c.l.b16 %v5481
    %v6001 = vunpack.c.l.b16 %v5482
    %v6002 = vunpack.c.l.b16 %v5483
    %v6003 = vunpack.c.l.b16 %v5484
    %v6004 = vunpack.c.l.b16 %v5485
    %v6005 = vunpack.c.l.b16 %v5486
    %v6006 = vunpack.c.l.b16 %v5487
    %v6007 = vunpack.c.l.b16 %v5488
    %v6008 = vunpack.c.l.b16 %v5489
    %v6009 = vunpack.c.l.b16 %v5490
    %v6010 = vunpack.c.l.b16 %v5491
    %v6011 = vunpack.c.l.b16 %v5492
    %v6012 = vunpack.c.l.b16 %v5493
    %v6013 = vunpack.c.l.b16 %v5494
    %v6014 = vunpack.c.l.b16 %v5495
    %v6015 = vunpack.c.l.b16 %v5496
    %v6016 = vunpack.c.l.b16 %v5497
    %v6017 = vunpack.c.l.b16 %v5498
    %v6018 = vunpack.c.l.b16 %v5499
    %v6019 = vunpack.c.l.b16 %v5500
    %v6020 = vunpack.c.l.b16 %v5501
    %v6021 = vunpack.c.l.b16 %v5502
    %v6022 = vunpack.c.l.b16 %v5503
    %v6023 = vunpack.c.l.b16 %v5504
    %v6024 = vunpack.c.l.b16 %v5505
    %v6025 = vunpack.c.l.b16 %v5506
    %v6026 = vunpack.c.l.b16 %v5507
    %v6027 = vunpack.c.l.b16 %v5508
    %v6028 = vunpack.c.l.b16 %v5509
    %v6029 = vunpack.c.l.b16 %v5510
    %v6030 = vunpack.c.l.b16 %v5511
    %v6031 = vunpack.c.l.b16 %v5512
    %v6032 = vunpack.c.l.b16 %v5513
    %v6033 = vunpack.c.l.b16 %v5514
    %v6034 = vunpack.c.l.b16 %v5515
    %v6035 = vunpack.c.l.b16 %v5516
    %v6036 = vunpack.c.l.b16 %v5517
    %v6037 = vunpack.c.l.b16 %v5518
    %v6038 = vunpack.c.l.b16 %v5519
    %v6039 = vunpack.c.l.b16 %v5520
    %v6040 = vunpack.c.l.b16 %v5521
    %v6041 = vunpack.c.l.b16 %v5522
    %v6042 = vunpack.c.l.b16 %v5523
    %v6043 = vunpack.c.l.b16 %v5524
    %v6044 = vunpack.c.l.b16 %v5525
    %v6045 = vunpack.c.l.b16 %v5526
    %v6046 = vunpack.c.l.b16 %v5527
    %v6047 = vunpack.c.l.b16 %v5528
    %v6048 = vunpack.c.l.b16 %v5529
    %v6049 = vunpack.c.l.b16 %v5530
    %v6050 = vunpack.c.l.b16 %v5531
    %v6051 = vunpack.c.l.b16 %v5532
    %v6052 = vunpack.c.l.b16 %v5533
    %v6053 = vunpack.c.l.b16 %v5534
    %v6054 = vunpack.c.l.b16 %v5535
    %v6055 = vunpack.c.l.b16 %v5536
    %v6056 = vunpack.c.l.b16 %v5537
    %v6057 = vunpack.c.l.b16 %v5538
    %v6058 = vunpack.c.l.b16 %v5539
    %v6059 = vunpack.c.l.b16 %v5540
    %v6060 = vunpack.c.l.b16 %v5541
    %v6061 = vunpack.c.l.b16 %v5542
    %v6062 = vunpack.c.l.b16 %v5543
    %v6063 = vunpack.c.l.b16 %v5544
    %v6064 = vunpack.c.l.b16 %v5545
    %v6065 = vunpack.c.l.b16 %v5546
    %v6066 = vunpack.c.l.b16 %v5547
    %v6067 = vunpack.c.l.b16 %v5548
    %v6068 = vunpack.c.l.b16 %v5549
    %v6069 = vunpack.c.l.b16 %v5550
    %v6070 = vunpack.c.l.b16 %v5551
    %v6071 = vunpack.c.l.b16 %v5552
    %v6072 = vunpack.c.l.b16 %v5553
    %v6073 = vunpack.c.l.b16 %v5554
    %v6074 = vunpack.c.l.b16 %v5555
    %v6075 = vunpack.c.l.b16 %v5556
    %v6076 = vunpack.c.l.b16 %v5557
    %v6077 = vunpack.c.l.b16 %v5558
    %v6078 = vunpack.c.l.b16 %v5559
    %v6079 = vunpack.c.l.b16 %v5560
    %v6080 = vunpack.c.l.b16 %v5561
    %v6081 = vunpack.c.l.b16 %v5562
    %v6082 = vunpack.c.l.b16 %v5563
    %v6083 = vunpack.c.l.b16 %v5564
    %v6084 = vunpack.c.l.b16 %v5565
    %v6085 = vunpack.c.l.b16 %v5566
    %v6086 = vunpack.c.l.b16 %v5567
    %v6087 = vunpack.c.l.b16 %v5568
    %v6088 = vunpack.c.l.b16 %v5569
    %v6089 = vunpack.c.l.b16 %v5570
    %v6090 = vunpack.c.l.b16 %v5571
    %v6091 = vunpack.c.l.b16 %v5572
    %v6092 = vunpack.c.l.b16 %v5573
    %v6093 = vunpack.c.l.b16 %v5574
    %v6094 = vunpack.c.l.b16 %v5575
    %v6095 = vunpack.c.l.b16 %v5576
    %v6096 = vunpack.c.l.b16 %v5577
    %v6097 = vunpack.c.l.b16 %v5578
    %v6098 = vunpack.c.l.b16 %v5579
    %v6099 = vunpack.c.l.b16 %v5580
    %v6100 = vunpack.c.l.b16 %v5581
    %v6101 = vunpack.c.l.b16 %v5582
    %v6102 = vunpack.c.l.b16 %v5583
    %v6103 = vunpack.c.l.b16 %v5584
    %v6104 = vunpack.c.l.b16 %v5585
    %v6105 = vunpack.c.l.b16 %v5586
    %v6106 = vunpack.c.l.b16 %v5587
    %v6107 = vunpack.c.l.b16 %v5588
    %v6108 = vunpack.c.l.b16 %v5589
    %v6109 = vpack.c.b16 %v5854, %v5853
    %v6110 = vpack.c.b16 %v5856, %v5855
    %v6111 = vpack.c.b16 %v5858, %v5857
    %v6112 = vpack.c.b16 %v5860, %v5859
    %v6113 = vpack.c.b16 %v5862, %v5861
    %v6114 = vpack.c.b16 %v5864, %v5863
    %v6115 = vpack.c.b16 %v5866, %v5865
    %v6116 = vpack.c.b16 %v5868, %v5867
    %v6117 = vpack.c.b16 %v5870, %v5869
    %v6118 = vpack.c.b16 %v5872, %v5871
    %v6119 = vpack.c.b16 %v5874, %v5873
    %v6120 = vpack.c.b16 %v5876, %v5875
    %v6121 = vpack.c.b16 %v5878, %v5877
    %v6122 = vpack.c.b16 %v5880, %v5879
    %v6123 = vpack.c.b16 %v5882, %v5881
    %v6124 = vpack.c.b16 %v5884, %v5883
    %v6125 = vpack.c.b16 %v5886, %v5885
    %v6126 = vpack.c.b16 %v5888, %v5887
    %v6127 = vpack.c.b16 %v5890, %v5889
    %v6128 = vpack.c.b16 %v5892, %v5891
    %v6129 = vpack.c.b16 %v5894, %v5893
    %v6130 = vpack.c.b16 %v5896, %v5895
    %v6131 = vpack.c.b16 %v5898, %v5897
    %v6132 = vpack.c.b16 %v5900, %v5899
    %v6133 = vpack.c.b16 %v5902, %v5901
    %v6134 = vpack.c.b16 %v5904, %v5903
    %v6135 = vpack.c.b16 %v5906, %v5905
    %v6136 = vpack.c.b16 %v5908, %v5907
    %v6137 = vpack.c.b16 %v5910, %v5909
    %v6138 = vpack.c.b16 %v5912, %v5911
    %v6139 = vpack.c.b16 %v5914, %v5913
    %v6140 = vpack.c.b16 %v5916, %v5915
    %v6141 = vpack.c.b16 %v5918, %v5917
    %v6142 = vpack.c.b16 %v5920, %v5919
    %v6143 = vpack.c.b16 %v5922, %v5921
    %v6144 = vpack.c.b16 %v5924, %v5923
    %v6145 = vpack.c.b16 %v5926, %v5925
    %v6146 = vpack.c.b16 %v5928, %v5927
    %v6147 = vpack.c.b16 %v5930, %v5929
    %v6148 = vpack.c.b16 %v5932, %v5931
    %v6149 = vpack.c.b16 %v5934, %v5933
    %v6150 = vpack.c.b16 %v5936, %v5935
    %v6151 = vpack.c.b16 %v5938, %v5937
    %v6152 = vpack.c.b16 %v5940, %v5939
    %v6153 = vpack.c.b16 %v5942, %v5941
    %v6154 = vpack.c.b16 %v5944, %v5943
    %v6155 = vpack.c.b16 %v5946, %v5945
    %v6156 = vpack.c.b16 %v5948, %v5947
    %v6157 = vpack.c.b16 %v5950, %v5949
    %v6158 = vpack.c.b16 %v5952, %v5951
    %v6159 = vpack.c.b16 %v5954, %v5953
    %v6160 = vpack.c.b16 %v5956, %v5955
    %v6161 = vpack.c.b16 %v5958, %v5957
    %v6162 = vpack.c.b16 %v5960, %v5959
    %v6163 = vpack.c.b16 %v5962, %v5961
    %v6164 = vpack.c.b16 %v5964, %v5963
    %v6165 = vpack.c.b16 %v5966, %v5965
    %v6166 = vpack.c.b16 %v5968, %v5967
    %v6167 = vpack.c.b16 %v5970, %v5969
    %v6168 = vpack.c.b16 %v5972, %v5971
    %v6169 = vpack.c.b16 %v5974, %v5973
    %v6170 = vpack.c.b16 %v5976, %v5975
    %v6171 = vpack.c.b16 %v5978, %v5977
    %v6172 = vpack.c.b16 %v5980, %v5979
    %v6173 = vpack.c.b16 %v5982, %v5981
    %v6174 = vpack.c.b16 %v5984, %v5983
    %v6175 = vpack.c.b16 %v5986, %v5985
    %v6176 = vpack.c.b16 %v5988, %v5987
    %v6177 = vpack.c.b16 %v5990, %v5989
    %v6178 = vpack.c.b16 %v5992, %v5991
    %v6179 = vpack.c.b16 %v5994, %v5993
    %v6180 = vpack.c.b16 %v5996, %v5995
    %v6181 = vpack.c.b16 %v5998, %v5997
    %v6182 = vpack.c.b16 %v6000, %v5999
    %v6183 = vpack.c.b16 %v6002, %v6001
    %v6184 = vpack.c.b16 %v6004, %v6003
    %v6185 = vpack.c.b16 %v6006, %v6005
    %v6186 = vpack.c.b16 %v6008, %v6007
    %v6187 = vpack.c.b16 %v6010, %v6009
    %v6188 = vpack.c.b16 %v6012, %v6011
    %v6189 = vpack.c.b16 %v6014, %v6013
    %v6190 = vpack.c.b16 %v6016, %v6015
    %v6191 = vpack.c.b16 %v6018, %v6017
    %v6192 = vpack.c.b16 %v6020, %v6019
    %v6193 = vpack.c.b16 %v6022, %v6021
    %v6194 = vpack.c.b16 %v6024, %v6023
    %v6195 = vpack.c.b16 %v6026, %v6025
    %v6196 = vpack.c.b16 %v6028, %v6027
    %v6197 = vpack.c.b16 %v6030, %v6029
    %v6198 = vpack.c.b16 %v6032, %v6031
    %v6199 = vpack.c.b16 %v6034, %v6033
    %v6200 = vpack.c.b16 %v6036, %v6035
    %v6201 = vpack.c.b16 %v6038, %v6037
    %v6202 = vpack.c.b16 %v6040, %v6039
    %v6203 = vpack.c.b16 %v6042, %v6041
    %v6204 = vpack.c.b16 %v6044, %v6043
    %v6205 = vpack.c.b16 %v6046, %v6045
    %v6206 = vpack.c.b16 %v6048, %v6047
    %v6207 = vpack.c.b16 %v6050, %v6049
    %v6208 = vpack.c.b16 %v6052, %v6051
    %v6209 = vpack.c.b16 %v6054, %v6053
    %v6210 = vpack.c.b16 %v6056, %v6055
    %v6211 = vpack.c.b16 %v6058, %v6057
    %v6212 = vpack.c.b16 %v6060, %v6059
    %v6213 = vpack.c.b16 %v6062, %v6061
    %v6214 = vpack.c.b16 %v6064, %v6063
    %v6215 = vpack.c.b16 %v6066, %v6065
    %v6216 = vpack.c.b16 %v6068, %v6067
    %v6217 = vpack.c.b16 %v6070, %v6069
    %v6218 = vpack.c.b16 %v6072, %v6071
    %v6219 = vpack.c.b16 %v6074, %v6073
    %v6220 = vpack.c.b16 %v6076, %v6075
    %v6221 = vpack.c.b16 %v6078, %v6077
    %v6222 = vpack.c.b16 %v6080, %v6079
    %v6223 = vpack.c.b16 %v6082, %v6081
    %v6224 = vpack.c.b16 %v6084, %v6083
    %v6225 = vpack.c.b16 %v6086, %v6085
    %v6226 = vpack.c.b16 %v6088, %v6087
    %v6227 = vpack.c.b16 %v6090, %v6089
    %v6228 = vpack.c.b16 %v6092, %v6091
    %v6229 = vpack.c.b16 %v6094, %v6093
    %v6230 = vpack.c.b16 %v6096, %v6095
    %v6231 = vpack.c.b16 %v6098, %v6097
    %v6232 = vpack.c.b16 %v6100, %v6099
    %v6233 = vpack.c.b16 %v6102, %v6101
    %v6234 = vpack.c.b16 %v6104, %v6103
    %v6235 = vpack.c.b16 %v6106, %v6105
    %v6236 = vpack.c.b16 %v6108, %v6107
    %6365 = vmatprep.subr.bf16.mxu0 0
    %6366 = vmatpush1.bf16.msra.mxu0 %v6116
    %6367 = vmatprep.subr.bf16.mxu0 0
    %6368 = vmatpush1.bf16.msra.mxu0 %v6115
    %6369 = vmatprep.subr.bf16.mxu0 0
    %6370 = vmatpush1.bf16.msra.mxu0 %v6114
    %6371 = vmatprep.subr.bf16.mxu0 0
    %6372 = vmatpush1.bf16.msra.mxu0 %v6113
    %6373 = vmatprep.subr.bf16.mxu0 0
    %6374 = vmatpush1.bf16.msra.mxu0 %v6112
    %6375 = vmatprep.subr.bf16.mxu0 0
    %6376 = vmatpush1.bf16.msra.mxu0 %v6111
    %6377 = vmatprep.subr.bf16.mxu0 0
    %6378 = vmatpush1.bf16.msra.mxu0 %v6110
    %6379 = vmatprep.subr.bf16.mxu0 0
    %6380 = vmatpush1.bf16.msra.mxu0 %v6109
    %6381 = vmatprep.subr.bf16.mxu0 0
    %6382 = vmatpush2.bf16.msra.mxu0 %v6124
    %6383 = vmatprep.subr.bf16.mxu0 0
    %6384 = vmatpush2.bf16.msra.mxu0 %v6123
    %6385 = vmatprep.subr.bf16.mxu0 0
    %6386 = vmatpush2.bf16.msra.mxu0 %v6122
    %6387 = vmatprep.subr.bf16.mxu0 0
    %6388 = vmatpush2.bf16.msra.mxu0 %v6121
    %6389 = vmatprep.subr.bf16.mxu0 0
    %6390 = vmatpush2.bf16.msra.mxu0 %v6120
    %6391 = vmatprep.subr.bf16.mxu0 0
    %6392 = vmatpush2.bf16.msra.mxu0 %v6119
    %6393 = vmatprep.subr.bf16.mxu0 0
    %6394 = vmatpush2.bf16.msra.mxu0 %v6118
    %6395 = vmatprep.subr.bf16.mxu0 0
    %6396 = vmatpush2.bf16.msra.mxu0 %v6117
    %6397 = vmatprep.mubr.bf16.mxu0 %v5319
    %6398 = vmatmul.mubr.bf16.gmra.mxu0 %v5318
    %v6399 = vpop.f32.mrf.mxu0
    %v6400 = vadd.f32 %v5595, %v6399
    %v6401 = vpop.f32.mrf.mxu0
    %v6402 = vpop.f32.mrf.mxu0
    %v6403 = vadd.f32 %v5595, %v6402
    %v6404 = vpop.f32.mrf.mxu0
    %6405 = vdwg.mxu0
    %6406 = vmatprep.subr.bf16.mxu0 0
    %6407 = vmatpush1.bf16.msra.mxu0 %v6132
    %6408 = vmatprep.subr.bf16.mxu0 0
    %6409 = vmatpush1.bf16.msra.mxu0 %v6131
    %6410 = vmatprep.subr.bf16.mxu0 0
    %6411 = vmatpush1.bf16.msra.mxu0 %v6130
    %6412 = vmatprep.subr.bf16.mxu0 0
    %6413 = vmatpush1.bf16.msra.mxu0 %v6129
    %6414 = vmatprep.subr.bf16.mxu0 0
    %6415 = vmatpush1.bf16.msra.mxu0 %v6128
    %6416 = vmatprep.subr.bf16.mxu0 0
    %6417 = vmatpush1.bf16.msra.mxu0 %v6127
    %6418 = vmatprep.subr.bf16.mxu0 0
    %6419 = vmatpush1.bf16.msra.mxu0 %v6126
    %6420 = vmatprep.subr.bf16.mxu0 0
    %6421 = vmatpush1.bf16.msra.mxu0 %v6125
    %6422 = vmatprep.subr.bf16.mxu0 0
    %6423 = vmatpush2.bf16.msra.mxu0 %v6140
    %6424 = vmatprep.subr.bf16.mxu0 0
    %6425 = vmatpush2.bf16.msra.mxu0 %v6139
    %6426 = vmatprep.subr.bf16.mxu0 0
    %6427 = vmatpush2.bf16.msra.mxu0 %v6138
    %6428 = vmatprep.subr.bf16.mxu0 0
    %6429 = vmatpush2.bf16.msra.mxu0 %v6137
    %6430 = vmatprep.subr.bf16.mxu0 0
    %6431 = vmatpush2.bf16.msra.mxu0 %v6136
    %6432 = vmatprep.subr.bf16.mxu0 0
    %6433 = vmatpush2.bf16.msra.mxu0 %v6135
    %6434 = vmatprep.subr.bf16.mxu0 0
    %6435 = vmatpush2.bf16.msra.mxu0 %v6134
    %6436 = vmatprep.subr.bf16.mxu0 0
    %6437 = vmatpush2.bf16.msra.mxu0 %v6133
    %6438 = vmatprep.mubr.bf16.mxu0 %v5321
    %6439 = vmatmul.mubr.bf16.gmra.mxu0 %v5320
    %v6440 = vpop.f32.mrf.mxu0
    %v6441 = vadd.f32 %v6400, %v6440
    %v6442 = vpop.f32.mrf.mxu0
    %v6443 = vpop.f32.mrf.mxu0
    %v6444 = vadd.f32 %v6403, %v6443
    %v6445 = vpop.f32.mrf.mxu0
    %6446 = vdwg.mxu0
    %6447 = vmatprep.subr.bf16.mxu0 0
    %6448 = vmatpush1.bf16.msra.mxu0 %v6148
    %6449 = vmatprep.subr.bf16.mxu0 0
    %6450 = vmatpush1.bf16.msra.mxu0 %v6147
    %6451 = vmatprep.subr.bf16.mxu0 0
    %6452 = vmatpush1.bf16.msra.mxu0 %v6146
    %6453 = vmatprep.subr.bf16.mxu0 0
    %6454 = vmatpush1.bf16.msra.mxu0 %v6145
    %6455 = vmatprep.subr.bf16.mxu0 0
    %6456 = vmatpush1.bf16.msra.mxu0 %v6144
    %6457 = vmatprep.subr.bf16.mxu0 0
    %6458 = vmatpush1.bf16.msra.mxu0 %v6143
    %6459 = vmatprep.subr.bf16.mxu0 0
    %6460 = vmatpush1.bf16.msra.mxu0 %v6142
    %6461 = vmatprep.subr.bf16.mxu0 0
    %6462 = vmatpush1.bf16.msra.mxu0 %v6141
    %6463 = vmatprep.subr.bf16.mxu0 0
    %6464 = vmatpush2.bf16.msra.mxu0 %v6156
    %6465 = vmatprep.subr.bf16.mxu0 0
    %6466 = vmatpush2.bf16.msra.mxu0 %v6155
    %6467 = vmatprep.subr.bf16.mxu0 0
    %6468 = vmatpush2.bf16.msra.mxu0 %v6154
    %6469 = vmatprep.subr.bf16.mxu0 0
    %6470 = vmatpush2.bf16.msra.mxu0 %v6153
    %6471 = vmatprep.subr.bf16.mxu0 0
    %6472 = vmatpush2.bf16.msra.mxu0 %v6152
    %6473 = vmatprep.subr.bf16.mxu0 0
    %6474 = vmatpush2.bf16.msra.mxu0 %v6151
    %6475 = vmatprep.subr.bf16.mxu0 0
    %6476 = vmatpush2.bf16.msra.mxu0 %v6150
    %6477 = vmatprep.subr.bf16.mxu0 0
    %6478 = vmatpush2.bf16.msra.mxu0 %v6149
    %6479 = vmatprep.mubr.bf16.mxu0 %v5323
    %6480 = vmatmul.mubr.bf16.gmra.mxu0 %v5322
    %v6481 = vpop.f32.mrf.mxu0
    %v6482 = vadd.f32 %v6441, %v6481
    %v6483 = vpop.f32.mrf.mxu0
    %v6484 = vpop.f32.mrf.mxu0
    %v6485 = vadd.f32 %v6444, %v6484
    %v6486 = vpop.f32.mrf.mxu0
    %6487 = vdwg.mxu0
    %6488 = vmatprep.subr.bf16.mxu0 0
    %6489 = vmatpush1.bf16.msra.mxu0 %v6164
    %6490 = vmatprep.subr.bf16.mxu0 0
    %6491 = vmatpush1.bf16.msra.mxu0 %v6163
    %6492 = vmatprep.subr.bf16.mxu0 0
    %6493 = vmatpush1.bf16.msra.mxu0 %v6162
    %6494 = vmatprep.subr.bf16.mxu0 0
    %6495 = vmatpush1.bf16.msra.mxu0 %v6161
    %6496 = vmatprep.subr.bf16.mxu0 0
    %6497 = vmatpush1.bf16.msra.mxu0 %v6160
    %6498 = vmatprep.subr.bf16.mxu0 0
    %6499 = vmatpush1.bf16.msra.mxu0 %v6159
    %6500 = vmatprep.subr.bf16.mxu0 0
    %6501 = vmatpush1.bf16.msra.mxu0 %v6158
    %6502 = vmatprep.subr.bf16.mxu0 0
    %6503 = vmatpush1.bf16.msra.mxu0 %v6157
    %6504 = vmatprep.subr.bf16.mxu0 0
    %6505 = vmatpush2.bf16.msra.mxu0 %v6172
    %6506 = vmatprep.subr.bf16.mxu0 0
    %6507 = vmatpush2.bf16.msra.mxu0 %v6171
    %6508 = vmatprep.subr.bf16.mxu0 0
    %6509 = vmatpush2.bf16.msra.mxu0 %v6170
    %6510 = vmatprep.subr.bf16.mxu0 0
    %6511 = vmatpush2.bf16.msra.mxu0 %v6169
    %6512 = vmatprep.subr.bf16.mxu0 0
    %6513 = vmatpush2.bf16.msra.mxu0 %v6168
    %6514 = vmatprep.subr.bf16.mxu0 0
    %6515 = vmatpush2.bf16.msra.mxu0 %v6167
    %6516 = vmatprep.subr.bf16.mxu0 0
    %6517 = vmatpush2.bf16.msra.mxu0 %v6166
    %6518 = vmatprep.subr.bf16.mxu0 0
    %6519 = vmatpush2.bf16.msra.mxu0 %v6165
    %6520 = vmatprep.mubr.bf16.mxu0 %v5325
    %6521 = vmatmul.mubr.bf16.gmra.mxu0 %v5324
    %v6522 = vpop.f32.mrf.mxu0
    %v6523 = vadd.f32 %v6482, %v6522
    %v6524 = vpop.f32.mrf.mxu0
    %v6525 = vpop.f32.mrf.mxu0
    %v6526 = vadd.f32 %v6485, %v6525
    %v6527 = vpop.f32.mrf.mxu0
    %6528 = vdwg.mxu0
    %6529 = vmatprep.subr.bf16.mxu0 0
    %6530 = vmatpush1.bf16.msra.mxu0 %v6180
    %6531 = vmatprep.subr.bf16.mxu0 0
    %6532 = vmatpush1.bf16.msra.mxu0 %v6179
    %6533 = vmatprep.subr.bf16.mxu0 0
    %6534 = vmatpush1.bf16.msra.mxu0 %v6178
    %6535 = vmatprep.subr.bf16.mxu0 0
    %6536 = vmatpush1.bf16.msra.mxu0 %v6177
    %6537 = vmatprep.subr.bf16.mxu0 0
    %6538 = vmatpush1.bf16.msra.mxu0 %v6176
    %6539 = vmatprep.subr.bf16.mxu0 0
    %6540 = vmatpush1.bf16.msra.mxu0 %v6175
    %6541 = vmatprep.subr.bf16.mxu0 0
    %6542 = vmatpush1.bf16.msra.mxu0 %v6174
    %6543 = vmatprep.subr.bf16.mxu0 0
    %6544 = vmatpush1.bf16.msra.mxu0 %v6173
    %6545 = vmatprep.subr.bf16.mxu0 0
    %6546 = vmatpush2.bf16.msra.mxu0 %v6188
    %6547 = vmatprep.subr.bf16.mxu0 0
    %6548 = vmatpush2.bf16.msra.mxu0 %v6187
    %6549 = vmatprep.subr.bf16.mxu0 0
    %6550 = vmatpush2.bf16.msra.mxu0 %v6186
    %6551 = vmatprep.subr.bf16.mxu0 0
    %6552 = vmatpush2.bf16.msra.mxu0 %v6185
    %6553 = vmatprep.subr.bf16.mxu0 0
    %6554 = vmatpush2.bf16.msra.mxu0 %v6184
    %6555 = vmatprep.subr.bf16.mxu0 0
    %6556 = vmatpush2.bf16.msra.mxu0 %v6183
    %6557 = vmatprep.subr.bf16.mxu0 0
    %6558 = vmatpush2.bf16.msra.mxu0 %v6182
    %6559 = vmatprep.subr.bf16.mxu0 0
    %6560 = vmatpush2.bf16.msra.mxu0 %v6181
    %6561 = vmatprep.mubr.bf16.mxu0 %v5327
    %6562 = vmatmul.mubr.bf16.gmra.mxu0 %v5326
    %v6563 = vpop.f32.mrf.mxu0
    %v6564 = vadd.f32 %v6523, %v6563
    %v6565 = vpop.f32.mrf.mxu0
    %v6566 = vpop.f32.mrf.mxu0
    %v6567 = vadd.f32 %v6526, %v6566
    %v6568 = vpop.f32.mrf.mxu0
    %6569 = vdwg.mxu0
    %6570 = vmatprep.subr.bf16.mxu0 0
    %6571 = vmatpush1.bf16.msra.mxu0 %v6196
    %6572 = vmatprep.subr.bf16.mxu0 0
    %6573 = vmatpush1.bf16.msra.mxu0 %v6195
    %6574 = vmatprep.subr.bf16.mxu0 0
    %6575 = vmatpush1.bf16.msra.mxu0 %v6194
    %6576 = vmatprep.subr.bf16.mxu0 0
    %6577 = vmatpush1.bf16.msra.mxu0 %v6193
    %6578 = vmatprep.subr.bf16.mxu0 0
    %6579 = vmatpush1.bf16.msra.mxu0 %v6192
    %6580 = vmatprep.subr.bf16.mxu0 0
    %6581 = vmatpush1.bf16.msra.mxu0 %v6191
    %6582 = vmatprep.subr.bf16.mxu0 0
    %6583 = vmatpush1.bf16.msra.mxu0 %v6190
    %6584 = vmatprep.subr.bf16.mxu0 0
    %6585 = vmatpush1.bf16.msra.mxu0 %v6189
    %6586 = vmatprep.subr.bf16.mxu0 0
    %6587 = vmatpush2.bf16.msra.mxu0 %v6204
    %6588 = vmatprep.subr.bf16.mxu0 0
    %6589 = vmatpush2.bf16.msra.mxu0 %v6203
    %6590 = vmatprep.subr.bf16.mxu0 0
    %6591 = vmatpush2.bf16.msra.mxu0 %v6202
    %6592 = vmatprep.subr.bf16.mxu0 0
    %6593 = vmatpush2.bf16.msra.mxu0 %v6201
    %6594 = vmatprep.subr.bf16.mxu0 0
    %6595 = vmatpush2.bf16.msra.mxu0 %v6200
    %6596 = vmatprep.subr.bf16.mxu0 0
    %6597 = vmatpush2.bf16.msra.mxu0 %v6199
    %6598 = vmatprep.subr.bf16.mxu0 0
    %6599 = vmatpush2.bf16.msra.mxu0 %v6198
    %6600 = vmatprep.subr.bf16.mxu0 0
    %6601 = vmatpush2.bf16.msra.mxu0 %v6197
    %6602 = vmatprep.mubr.bf16.mxu0 %v5329
    %6603 = vmatmul.mubr.bf16.gmra.mxu0 %v5328
    %v6604 = vpop.f32.mrf.mxu0
    %v6605 = vadd.f32 %v6564, %v6604
    %v6606 = vpop.f32.mrf.mxu0
    %v6607 = vpop.f32.mrf.mxu0
    %v6608 = vadd.f32 %v6567, %v6607
    %v6609 = vpop.f32.mrf.mxu0
    %6610 = vdwg.mxu0
    %6611 = vmatprep.subr.bf16.mxu0 0
    %6612 = vmatpush1.bf16.msra.mxu0 %v6212
    %6613 = vmatprep.subr.bf16.mxu0 0
    %6614 = vmatpush1.bf16.msra.mxu0 %v6211
    %6615 = vmatprep.subr.bf16.mxu0 0
    %6616 = vmatpush1.bf16.msra.mxu0 %v6210
    %6617 = vmatprep.subr.bf16.mxu0 0
    %6618 = vmatpush1.bf16.msra.mxu0 %v6209
    %6619 = vmatprep.subr.bf16.mxu0 0
    %6620 = vmatpush1.bf16.msra.mxu0 %v6208
    %6621 = vmatprep.subr.bf16.mxu0 0
    %6622 = vmatpush1.bf16.msra.mxu0 %v6207
    %6623 = vmatprep.subr.bf16.mxu0 0
    %6624 = vmatpush1.bf16.msra.mxu0 %v6206
    %6625 = vmatprep.subr.bf16.mxu0 0
    %6626 = vmatpush1.bf16.msra.mxu0 %v6205
    %6627 = vmatprep.subr.bf16.mxu0 0
    %6628 = vmatpush2.bf16.msra.mxu0 %v6220
    %6629 = vmatprep.subr.bf16.mxu0 0
    %6630 = vmatpush2.bf16.msra.mxu0 %v6219
    %6631 = vmatprep.subr.bf16.mxu0 0
    %6632 = vmatpush2.bf16.msra.mxu0 %v6218
    %6633 = vmatprep.subr.bf16.mxu0 0
    %6634 = vmatpush2.bf16.msra.mxu0 %v6217
    %6635 = vmatprep.subr.bf16.mxu0 0
    %6636 = vmatpush2.bf16.msra.mxu0 %v6216
    %6637 = vmatprep.subr.bf16.mxu0 0
    %6638 = vmatpush2.bf16.msra.mxu0 %v6215
    %6639 = vmatprep.subr.bf16.mxu0 0
    %6640 = vmatpush2.bf16.msra.mxu0 %v6214
    %6641 = vmatprep.subr.bf16.mxu0 0
    %6642 = vmatpush2.bf16.msra.mxu0 %v6213
    %6643 = vmatprep.mubr.bf16.mxu0 %v5331
    %6644 = vmatmul.mubr.bf16.gmra.mxu0 %v5330
    %v6645 = vpop.f32.mrf.mxu0
    %v6646 = vadd.f32 %v6605, %v6645
    %v6647 = vpop.f32.mrf.mxu0
    %v6648 = vpop.f32.mrf.mxu0
    %v6649 = vadd.f32 %v6608, %v6648
    %v6650 = vpop.f32.mrf.mxu0
    %6651 = vdwg.mxu0
    %6652 = vmatprep.subr.bf16.mxu0 0
    %6653 = vmatpush1.bf16.msra.mxu0 %v6228
    %6654 = vmatprep.subr.bf16.mxu0 0
    %6655 = vmatpush1.bf16.msra.mxu0 %v6227
    %6656 = vmatprep.subr.bf16.mxu0 0
    %6657 = vmatpush1.bf16.msra.mxu0 %v6226
    %6658 = vmatprep.subr.bf16.mxu0 0
    %6659 = vmatpush1.bf16.msra.mxu0 %v6225
    %6660 = vmatprep.subr.bf16.mxu0 0
    %6661 = vmatpush1.bf16.msra.mxu0 %v6224
    %6662 = vmatprep.subr.bf16.mxu0 0
    %6663 = vmatpush1.bf16.msra.mxu0 %v6223
    %6664 = vmatprep.subr.bf16.mxu0 0
    %6665 = vmatpush1.bf16.msra.mxu0 %v6222
    %6666 = vmatprep.subr.bf16.mxu0 0
    %6667 = vmatpush1.bf16.msra.mxu0 %v6221
    %6668 = vmatprep.subr.bf16.mxu0 0
    %6669 = vmatpush2.bf16.msra.mxu0 %v6236
    %6670 = vmatprep.subr.bf16.mxu0 0
    %6671 = vmatpush2.bf16.msra.mxu0 %v6235
    %6672 = vmatprep.subr.bf16.mxu0 0
    %6673 = vmatpush2.bf16.msra.mxu0 %v6234
    %6674 = vmatprep.subr.bf16.mxu0 0
    %6675 = vmatpush2.bf16.msra.mxu0 %v6233
    %6676 = vmatprep.subr.bf16.mxu0 0
    %6677 = vmatpush2.bf16.msra.mxu0 %v6232
    %6678 = vmatprep.subr.bf16.mxu0 0
    %6679 = vmatpush2.bf16.msra.mxu0 %v6231
    %6680 = vmatprep.subr.bf16.mxu0 0
    %6681 = vmatpush2.bf16.msra.mxu0 %v6230
    %6682 = vmatprep.subr.bf16.mxu0 0
    %6683 = vmatpush2.bf16.msra.mxu0 %v6229
    %6684 = vmatprep.mubr.bf16.mxu0 %v5333
    %6685 = vmatmul.mubr.bf16.gmra.mxu0 %v5332
    %v6686 = vpop.f32.mrf.mxu0
    %v6687 = vadd.f32 %v6646, %v6686
    %v6688 = vpop.f32.mrf.mxu0
    %v6689 = vpop.f32.mrf.mxu0
    %v6690 = vadd.f32 %v6649, %v6689
    %v6691 = vpop.f32.mrf.mxu0
    %6692 = vdwg.mxu0
    %v6693 = vmax.f32 %v6687, 0.0
    %v6694 = vmax.f32 %v6690, 0.0
    %6695 = vst [vmem:[#allocation17] sm:$0xff] %v6693
    %6696 = vst [vmem:[#allocation17 + $0x8] sm:$0xff] %v6694
    // Predicated region
    $region74: #{tpu_custom_call.1} parent=1 // pred_check
      _
    $region75: #{tpu_custom_call.1} parent=1 // pred_check_branch
      %6698 = sbr.rel (0) target = $region77
    $region76: #{tpu_custom_call.1} parent=1 // pred_region
      %s6700 = ssub.s32 256, 256
      %6701 = vsyncadd [#allocation4], %s6700
      %s6702 = sshll.u32 [#allocation17], 4
      %s6703 = int_to_ptr.vmem [resolvable:$true] %s6702
      %6708 = dma.vmem_to_hbm [thread:$0]  %s6703, 256, %s9, [#allocation4], 128, 128, 8
    $region77: #{tpu_custom_call.1} parent=1 // pred_fallthru
      _
    // Predicated region
    $region78: #{tpu_custom_call.1} parent=1 // pred_check
      _
    $region79: #{tpu_custom_call.1} parent=1 // pred_check_branch
      %6710 = sbr.rel (0) target = $region81
    $region80: #{tpu_custom_call.1} parent=1 // pred_region
      %6711 = dma.done [#allocation4], 256
    $region81: #{tpu_custom_call.1} parent=1 // pred_fallthru
      _
    %6712 = vsyncpa [#allocation3], 1
    %6713 = vsyncpa [#allocation6], 1
    %6714 = vsyncpa [#allocation9], 1
    %6715 = vsyncpa [#allocation12], 1
    %6716 = vsyncpa [#allocation15], 1
    %6717 = vsyncpa [#allocation4], 1

</llo_original>
